<compile_context>
chip_gen: v6e
topology: v6e:2x2x1
jax: 0.10.0
libtpu: 0.0.40
codegen_flags: <defaults>
</compile_context>

<pallas_src>
import functools

import jax
import jax.numpy as jnp
from jax import lax
from jax.experimental import pallas as pl
from jax.experimental.pallas import tpu as pltpu

BN_EPS = 1e-5
LANE = 128


def _round_up(x, m):
    return (x + m - 1) // m * m


def _row_tile(hh):
    # largest divisor of the pooled height that is <= 128 output rows per step
    for t in (128, 64, 32, 16, 8, 4, 2, 1):
        if t <= hh and hh % t == 0:
            return t
    return hh


# ------------------------------ fused kernel --------------------------------

def _fused_down_kernel(x4_hbm, w1_ref, w2_ref, s1_ref, t1_ref, s2_ref, t2_ref,
                       o_ref, xbuf, pool_ref, h1_ref, dma_sem,
                       *, T, Hh, Wh, Cinp, Coutp):
    # grid = (batch, row-tile); this step produces output rows [r0, r0+T).
    n = pl.program_id(0)
    h = pl.program_id(1)
    r0 = h * T

    # ---- halo fetch (manual DMA: consecutive row tiles overlap by 4 rows,
    #      which a plain Blocked BlockSpec cannot express).
    #      src layout: (N*4 corners, Hh+4 padded-pooled rows, Wh+4 cols, Cinp)
    cp = pltpu.make_async_copy(
        x4_hbm.at[pl.ds(n * 4, 4), pl.ds(r0, T + 4), :, :],
        xbuf,
        dma_sem.at[0],
    )
    cp.start()
    cp.wait()

    # ---- fused MaxPool2d(2): element-wise max of the four window corners (VPU)
    pool_ref[...] = jnp.maximum(jnp.maximum(xbuf[0], xbuf[1]),
                                jnp.maximum(xbuf[2], xbuf[3]))
    # pool_ref[t, c, :] == padded pooled image at pooled row (r0 + t - 2), col (c - 2)

    T2, W2 = T + 2, Wh + 2  # conv1 output "frame" = conv2 input incl. its zero ring

    # ---- conv1 (3x3, pad 1) + BN + ReLU: 9 accumulated MXU matmuls over shifted slabs
    acc1 = jnp.zeros((T2 * W2, Coutp), jnp.float32)
    for dh in range(3):
        for dw in range(3):
            slab = pool_ref[dh:dh + T2, dw:dw + W2, :].reshape(T2 * W2, Cinp)
            acc1 += jnp.dot(slab, w1_ref[dh, dw],
                            preferred_element_type=jnp.float32)
    y1 = jnp.maximum(acc1 * s1_ref[...] + t1_ref[...], 0.0)  # folded bias+BN, ReLU
    y1 = y1.reshape(T2, W2, Coutp)

    # frame positions that correspond to conv2's zero padding must be exactly 0
    rid = lax.broadcasted_iota(jnp.int32, (T2, W2, Coutp), 0) + (r0 - 1)
    cid = lax.broadcasted_iota(jnp.int32, (T2, W2, Coutp), 1)
    valid = (rid >= 0) & (rid < Hh) & (cid >= 1) & (cid <= Wh)
    h1_ref[...] = jnp.where(valid, y1, 0.0)

    # ---- conv2 (3x3, pad 1) + BN + ReLU on the in-VMEM intermediate
    acc2 = jnp.zeros((T * Wh, Coutp), jnp.float32)
    for dh in range(3):
        for dw in range(3):
            slab = h1_ref[dh:dh + T, dw:dw + Wh, :].reshape(T * Wh, Coutp)
            acc2 += jnp.dot(slab, w2_ref[dh, dw],
                            preferred_element_type=jnp.float32)
    y2 = jnp.maximum(acc2 * s2_ref[...] + t2_ref[...], 0.0)
    o_ref[...] = y2.reshape(1, T, Wh, Coutp).astype(o_ref.dtype)


# ------------------------------- wrapper -------------------------------------

def _fold_bn(conv_bias, gamma, beta, running_mean, running_var):
    scale = gamma / jnp.sqrt(running_var + BN_EPS)
    shift = beta + (conv_bias - running_mean) * scale
    return scale, shift


def _pad_to(a, axis, new_size):
    pad = [(0, 0)] * a.ndim
    pad[axis] = (0, new_size - a.shape[axis])
    return jnp.pad(a, pad)


@jax.jit
def down_forward(x_nchw, params):
    N, Cin, H, W = x_nchw.shape
    assert H % 2 == 0 and W % 2 == 0, "MaxPool2d(2) path assumes even H, W"
    Cout = params["w1"].shape[0]
    Hh, Wh = H // 2, W // 2
    Cinp = _round_up(Cin, LANE)     # lane-dense (128-aligned) contraction dim
    Coutp = _round_up(Cout, LANE)   # lane-dense (128-aligned) output dim
    T = _row_tile(Hh)               # output rows per grid step

    # glue: NCHW -> NHWC, channel pad to lane width, spatial zero-pad by
    # 4 input px (= 2 pooled px, covering both convs' halos), and split the
    # 2x2 pool window into a leading "corner" axis so pooling is a pure
    # element-wise max inside the kernel.
    x = jnp.transpose(x_nchw, (0, 2, 3, 1))
    x = jnp.pad(x, ((0, 0), (4, 4), (4, 4), (0, Cinp - Cin)))
    x4 = x.reshape(N, Hh + 4, 2, Wh + 4, 2, Cinp)
    x4 = x4.transpose(0, 2, 4, 1, 3, 5).reshape(N * 4, Hh + 4, Wh + 4, Cinp)

    # weights: OIHW -> (kh, kw, Cin, Cout), zero-padded to lane multiples
    w1 = jnp.transpose(params["w1"], (2, 3, 1, 0))
    w1 = jnp.pad(w1, ((0, 0), (0, 0), (0, Cinp - Cin), (0, Coutp - Cout)))
    w2 = jnp.transpose(params["w2"], (2, 3, 1, 0))
    w2 = jnp.pad(w2, ((0, 0), (0, 0), (0, Coutp - Cout), (0, Coutp - Cout)))

    # fold conv bias + eval-mode BN into per-channel scale/shift (zeros in the
    # padded channels keep them exactly 0 through both stages)
    s1, t1 = _fold_bn(params["b1"], params["g1"], params["bt1"],
                      params["m1"], params["v1"])
    s2, t2 = _fold_bn(params["b2"], params["g2"], params["bt2"],
                      params["m2"], params["v2"])
    s1 = _pad_to(s1, 0, Coutp).reshape(1, Coutp)
    t1 = _pad_to(t1, 0, Coutp).reshape(1, Coutp)
    s2 = _pad_to(s2, 0, Coutp).reshape(1, Coutp)
    t2 = _pad_to(t2, 0, Coutp).reshape(1, Coutp)

    kernel = functools.partial(_fused_down_kernel, T=T, Hh=Hh, Wh=Wh,
                               Cinp=Cinp, Coutp=Coutp)

    const4 = lambda n, h: (0, 0, 0, 0)
    const2 = lambda n, h: (0, 0)

    out = pl.pallas_call(
        kernel,
        grid=(N, Hh // T),
        in_specs=[
            pl.BlockSpec(memory_space=pl.ANY),           # x4: raw HBM, manual halo DMA
            pl.BlockSpec((3, 3, Cinp, Coutp), const4),   # w1 (VMEM resident, fetched once)
            pl.BlockSpec((3, 3, Coutp, Coutp), const4),  # w2
            pl.BlockSpec((1, Coutp), const2),            # scale1
            pl.BlockSpec((1, Coutp), const2),            # shift1
            pl.BlockSpec((1, Coutp), const2),            # scale2
            pl.BlockSpec((1, Coutp), const2),            # shift2
        ],
        out_specs=pl.BlockSpec((1, T, Wh, Coutp), lambda n, h: (n, h, 0, 0)),
        out_shape=jax.ShapeDtypeStruct((N, Hh, Wh, Coutp), jnp.float32),
        scratch_shapes=[
            pltpu.VMEM((4, T + 4, Wh + 4, Cinp), jnp.float32),  # halo pre-pool corners
            pltpu.VMEM((T + 4, Wh + 4, Cinp), jnp.float32),     # pooled (padded) tile
            pltpu.VMEM((T + 2, Wh + 2, Coutp), jnp.float32),    # conv1 output frame
            pltpu.SemaphoreType.DMA((1,)),
        ],
        compiler_params=pltpu.CompilerParams(
            # both axes are independent -> shard across TensorCores (v7x megacore)
            dimension_semantics=("parallel", "parallel"),
            # explicit budget; per-step working set is a few MiB at these tiles,
            # well under v7x's 64 MiB physical / 32 MiB default scoped VMEM.
            vmem_limit_bytes=32 * 1024 * 1024,
        ),
    )(x4, w1, w2, s1, t1, s2, t2)

    out = out[..., :Cout]                      # drop lane padding
    return jnp.transpose(out, (0, 3, 1, 2))    # NHWC -> NCHW


# -------------------------- pure-JAX reference ------------------------------

def _reference(x, params):
    p = lax.reduce_window(x, -jnp.inf, lax.max, (1, 1, 2, 2), (1, 1, 2, 2), "VALID")

    def conv_bn_relu_ref(y, w, b, g, bt, m, v):
        y = lax.conv_general_dilated(
            y, w, window_strides=(1, 1), padding=((1, 1), (1, 1)),
            dimension_numbers=("NCHW", "OIHW", "NCHW"))
        y = y + b[None, :, None, None]
        y = (y - m[None, :, None, None]) / jnp.sqrt(v[None, :, None, None] + BN_EPS)
        y = y * g[None, :, None, None] + bt[None, :, None, None]
        return jnp.maximum(y, 0.0)

    p = conv_bn_relu_ref(p, params["w1"], params["b1"], params["g1"],
                         params["bt1"], params["m1"], params["v1"])
    p = conv_bn_relu_ref(p, params["w2"], params["b2"], params["g2"],
                         params["bt2"], params["m2"], params["v2"])
    return p


# ------------------------------- init / main --------------------------------

def init_params(key, in_ch, out_ch):
    k1, k2, k3, k4 = jax.random.split(key, 4)
    f32 = jnp.float32
    return {
        "w1": 0.1 * jax.random.normal(k1, (out_ch, in_ch, 3, 3), f32),
        "b1": 0.1 * jax.random.normal(k2, (out_ch,), f32),
        "g1": jnp.ones((out_ch,), f32), "bt1": jnp.zeros((out_ch,), f32),
        "m1": jnp.zeros((out_ch,), f32), "v1": jnp.ones((out_ch,), f32),
        "w2": 0.1 * jax.random.normal(k3, (out_ch, out_ch, 3, 3), f32),
        "b2": 0.1 * jax.random.normal(k4, (out_ch,), f32),
        "g2": jnp.ones((out_ch,), f32), "bt2": jnp.zeros((out_ch,), f32),
        "m2": jnp.zeros((out_ch,), f32), "v2": jnp.ones((out_ch,), f32),
    }


if __name__ == "__main__":
    key = jax.random.PRNGKey(0)
    kx, kp = jax.random.split(key)
    in_ch, out_ch = 4, 8
    x = jax.random.normal(kx, (2, in_ch, 16, 16), jnp.float32)   # NCHW, like PyTorch
    params = init_params(kp, in_ch, out_ch)

    out = jax.block_until_ready(down_forward(x, params))
    ref = jax.block_until_ready(_reference(x, params))

    assert out.shape == (2, out_ch, 8, 8), out.shape
    max_err = float(jnp.max(jnp.abs(out - ref)))
    assert jnp.allclose(out, ref, atol=1e-3, rtol=1e-3), max_err
    print("KERNEL_OK")
</pallas_src>

<mosaic_0001>
module attributes {stable_mosaic.version = 11 : i64} {
  func.func @_fused_down_kernel(%arg0: i32, %arg1: i32, %arg2: memref<8x12x12x128xf32, #tpu.memory_space<any>>, %arg3: memref<3x3x128x128xf32, #tpu.memory_space<vmem>>, %arg4: memref<3x3x128x128xf32, #tpu.memory_space<vmem>>, %arg5: memref<1x128xf32, #tpu.memory_space<vmem>>, %arg6: memref<1x128xf32, #tpu.memory_space<vmem>>, %arg7: memref<1x128xf32, #tpu.memory_space<vmem>>, %arg8: memref<1x128xf32, #tpu.memory_space<vmem>>, %arg9: memref<1x8x8x128xf32, #tpu.memory_space<vmem>>, %arg10: memref<4x12x12x128xf32, #tpu.memory_space<vmem>>, %arg11: memref<12x12x128xf32, #tpu.memory_space<vmem>>, %arg12: memref<10x10x128xf32, #tpu.memory_space<vmem>>, %arg13: memref<1x!tpu.dma_semaphore, #tpu.memory_space<semaphore_mem>>) attributes {dimension_semantics = [#tpu.dimension_semantics<parallel>, #tpu.dimension_semantics<parallel>], iteration_bounds = array<i64: 2, 1>, scalar_prefetch = 0 : i64, scratch_operands = 4 : i64, tpu.core_type = #tpu.core_type<tc>, window_params = [{}, {pipeline_mode = #tpu.pipeline_mode<synchronous>, transform_indices = @transform_1, window_bounds = array<i64: 3, 3, 128, 128>}, {pipeline_mode = #tpu.pipeline_mode<synchronous>, transform_indices = @transform_2, window_bounds = array<i64: 3, 3, 128, 128>}, {pipeline_mode = #tpu.pipeline_mode<synchronous>, transform_indices = @transform_3, window_bounds = array<i64: 1, 128>}, {pipeline_mode = #tpu.pipeline_mode<synchronous>, transform_indices = @transform_4, window_bounds = array<i64: 1, 128>}, {pipeline_mode = #tpu.pipeline_mode<synchronous>, transform_indices = @transform_5, window_bounds = array<i64: 1, 128>}, {pipeline_mode = #tpu.pipeline_mode<synchronous>, transform_indices = @transform_6, window_bounds = array<i64: 1, 128>}, {transform_indices = @transform_7, window_bounds = array<i64: 1, 8, 8, 128>}]} {
    %c8_i32 = arith.constant 8 : i32
    %0 = arith.muli %arg1, %c8_i32 : i32
    %c4_i32 = arith.constant 4 : i32
    %1 = arith.muli %arg0, %c4_i32 : i32
    %c0_i32 = arith.constant 0 : i32
    %c0_i32_0 = arith.constant 0 : i32
    %c0_i32_1 = arith.constant 0 : i32
    %2 = tpu.memref_slice %arg2[%1, %0, %c0_i32_0, %c0_i32_1] : memref<8x12x12x128xf32, #tpu.memory_space<any>> -> memref<4x12x12x128xf32, #tpu.memory_space<any>>
    %3 = tpu.memref_slice %arg13[%c0_i32] : memref<1x!tpu.dma_semaphore, #tpu.memory_space<semaphore_mem>> -> memref<1x!tpu.dma_semaphore, #tpu.memory_space<semaphore_mem>>
    %4 = tpu.memref_squeeze %3 : memref<1x!tpu.dma_semaphore, #tpu.memory_space<semaphore_mem>> -> memref<!tpu.dma_semaphore, #tpu.memory_space<semaphore_mem>>
    tpu.enqueue_dma source(%2 : memref<4x12x12x128xf32, #tpu.memory_space<any>>) target(%arg10 : memref<4x12x12x128xf32, #tpu.memory_space<vmem>>) target_semaphore(%4 : memref<!tpu.dma_semaphore, #tpu.memory_space<semaphore_mem>>)
    %c0_i32_2 = arith.constant 0 : i32
    %c0_i32_3 = arith.constant 0 : i32
    %c0_i32_4 = arith.constant 0 : i32
    %5 = tpu.memref_slice %arg2[%1, %0, %c0_i32_3, %c0_i32_4] : memref<8x12x12x128xf32, #tpu.memory_space<any>> -> memref<4x12x12x128xf32, #tpu.memory_space<any>>
    %6 = tpu.memref_slice %arg13[%c0_i32_2] : memref<1x!tpu.dma_semaphore, #tpu.memory_space<semaphore_mem>> -> memref<1x!tpu.dma_semaphore, #tpu.memory_space<semaphore_mem>>
    %7 = tpu.memref_squeeze %6 : memref<1x!tpu.dma_semaphore, #tpu.memory_space<semaphore_mem>> -> memref<!tpu.dma_semaphore, #tpu.memory_space<semaphore_mem>>
    tpu.wait_dma2 semaphore(%7 : memref<!tpu.dma_semaphore, #tpu.memory_space<semaphore_mem>>) src(%5 : memref<4x12x12x128xf32, #tpu.memory_space<any>>) dst(%arg10 : memref<4x12x12x128xf32, #tpu.memory_space<vmem>>)
    %c0 = arith.constant 0 : index
    %c0_5 = arith.constant 0 : index
    %c0_6 = arith.constant 0 : index
    %c0_7 = arith.constant 0 : index
    %8 = vector.load %arg10[%c0, %c0_5, %c0_6, %c0_7] : memref<4x12x12x128xf32, #tpu.memory_space<vmem>>, vector<1x12x12x128xf32>
    %9 = vector.shape_cast %8 : vector<1x12x12x128xf32> to vector<12x12x128xf32>
    %c1 = arith.constant 1 : index
    %c0_8 = arith.constant 0 : index
    %c0_9 = arith.constant 0 : index
    %c0_10 = arith.constant 0 : index
    %10 = vector.load %arg10[%c1, %c0_8, %c0_9, %c0_10] : memref<4x12x12x128xf32, #tpu.memory_space<vmem>>, vector<1x12x12x128xf32>
    %11 = vector.shape_cast %10 : vector<1x12x12x128xf32> to vector<12x12x128xf32>
    %12 = arith.maximumf %9, %11 : vector<12x12x128xf32>
    %c2 = arith.constant 2 : index
    %c0_11 = arith.constant 0 : index
    %c0_12 = arith.constant 0 : index
    %c0_13 = arith.constant 0 : index
    %13 = vector.load %arg10[%c2, %c0_11, %c0_12, %c0_13] : memref<4x12x12x128xf32, #tpu.memory_space<vmem>>, vector<1x12x12x128xf32>
    %14 = vector.shape_cast %13 : vector<1x12x12x128xf32> to vector<12x12x128xf32>
    %c3 = arith.constant 3 : index
    %c0_14 = arith.constant 0 : index
    %c0_15 = arith.constant 0 : index
    %c0_16 = arith.constant 0 : index
    %15 = vector.load %arg10[%c3, %c0_14, %c0_15, %c0_16] : memref<4x12x12x128xf32, #tpu.memory_space<vmem>>, vector<1x12x12x128xf32>
    %16 = vector.shape_cast %15 : vector<1x12x12x128xf32> to vector<12x12x128xf32>
    %17 = arith.maximumf %14, %16 : vector<12x12x128xf32>
    %18 = arith.maximumf %12, %17 : vector<12x12x128xf32>
    %c0_17 = arith.constant 0 : index
    %c0_18 = arith.constant 0 : index
    %c0_19 = arith.constant 0 : index
    %19 = vector.load %arg11[%c0_17, %c0_18, %c0_19] : memref<12x12x128xf32, #tpu.memory_space<vmem>>, vector<12x12x128xf32>
    tpu.vector_store %arg11[%c0_17, %c0_18, %c0_19], %18 {strides = array<i32>} : memref<12x12x128xf32, #tpu.memory_space<vmem>>, vector<12x12x128xf32>,
    %cst = arith.constant 0.000000e+00 : f32
    %20 = vector.broadcast %cst : f32 to vector<100x128xf32>
    %c0_20 = arith.constant 0 : index
    %c0_21 = arith.constant 0 : index
    %c0_22 = arith.constant 0 : index
    %21 = vector.load %arg11[%c0_20, %c0_21, %c0_22] : memref<12x12x128xf32, #tpu.memory_space<vmem>>, vector<10x10x128xf32>
    %22 = vector.shape_cast %21 : vector<10x10x128xf32> to vector<100x128xf32>
    %c0_23 = arith.constant 0 : index
    %c0_24 = arith.constant 0 : index
    %c0_25 = arith.constant 0 : index
    %c0_26 = arith.constant 0 : index
    %23 = vector.load %arg3[%c0_23, %c0_24, %c0_25, %c0_26] : memref<3x3x128x128xf32, #tpu.memory_space<vmem>>, vector<1x1x128x128xf32>
    %24 = vector.shape_cast %23 : vector<1x1x128x128xf32> to vector<128x128xf32>
    %cst_27 = arith.constant dense<0.000000e+00> : vector<100x128xf32>
    %25 = tpu.matmul %22, %24, %cst_27 {dimension_numbers = #tpu.dot_dimension_numbers<[1], [0], [0], [1], [0, 0, 1, 1], [], []>} : vector<100x128xf32>, vector<128x128xf32>, vector<100x128xf32> -> vector<100x128xf32>
    %26 = arith.addf %20, %25 : vector<100x128xf32>
    %c0_28 = arith.constant 0 : index
    %c1_29 = arith.constant 1 : index
    %c0_30 = arith.constant 0 : index
    %27 = vector.load %arg11[%c0_28, %c1_29, %c0_30] : memref<12x12x128xf32, #tpu.memory_space<vmem>>, vector<10x10x128xf32>
    %28 = vector.shape_cast %27 : vector<10x10x128xf32> to vector<100x128xf32>
    %c0_31 = arith.constant 0 : index
    %c1_32 = arith.constant 1 : index
    %c0_33 = arith.constant 0 : index
    %c0_34 = arith.constant 0 : index
    %29 = vector.load %arg3[%c0_31, %c1_32, %c0_33, %c0_34] : memref<3x3x128x128xf32, #tpu.memory_space<vmem>>, vector<1x1x128x128xf32>
    %30 = vector.shape_cast %29 : vector<1x1x128x128xf32> to vector<128x128xf32>
    %cst_35 = arith.constant dense<0.000000e+00> : vector<100x128xf32>
    %31 = tpu.matmul %28, %30, %cst_35 {dimension_numbers = #tpu.dot_dimension_numbers<[1], [0], [0], [1], [0, 0, 1, 1], [], []>} : vector<100x128xf32>, vector<128x128xf32>, vector<100x128xf32> -> vector<100x128xf32>
    %32 = arith.addf %26, %31 : vector<100x128xf32>
    %c0_36 = arith.constant 0 : index
    %c2_37 = arith.constant 2 : index
    %c0_38 = arith.constant 0 : index
    %33 = vector.load %arg11[%c0_36, %c2_37, %c0_38] : memref<12x12x128xf32, #tpu.memory_space<vmem>>, vector<10x10x128xf32>
    %34 = vector.shape_cast %33 : vector<10x10x128xf32> to vector<100x128xf32>
    %c0_39 = arith.constant 0 : index
    %c2_40 = arith.constant 2 : index
    %c0_41 = arith.constant 0 : index
    %c0_42 = arith.constant 0 : index
    %35 = vector.load %arg3[%c0_39, %c2_40, %c0_41, %c0_42] : memref<3x3x128x128xf32, #tpu.memory_space<vmem>>, vector<1x1x128x128xf32>
    %36 = vector.shape_cast %35 : vector<1x1x128x128xf32> to vector<128x128xf32>
    %cst_43 = arith.constant dense<0.000000e+00> : vector<100x128xf32>
    %37 = tpu.matmul %34, %36, %cst_43 {dimension_numbers = #tpu.dot_dimension_numbers<[1], [0], [0], [1], [0, 0, 1, 1], [], []>} : vector<100x128xf32>, vector<128x128xf32>, vector<100x128xf32> -> vector<100x128xf32>
    %38 = arith.addf %32, %37 : vector<100x128xf32>
    %c1_44 = arith.constant 1 : index
    %c0_45 = arith.constant 0 : index
    %c0_46 = arith.constant 0 : index
    %39 = vector.load %arg11[%c1_44, %c0_45, %c0_46] : memref<12x12x128xf32, #tpu.memory_space<vmem>>, vector<10x10x128xf32>
    %40 = vector.shape_cast %39 : vector<10x10x128xf32> to vector<100x128xf32>
    %c1_47 = arith.constant 1 : index
    %c0_48 = arith.constant 0 : index
    %c0_49 = arith.constant 0 : index
    %c0_50 = arith.constant 0 : index
    %41 = vector.load %arg3[%c1_47, %c0_48, %c0_49, %c0_50] : memref<3x3x128x128xf32, #tpu.memory_space<vmem>>, vector<1x1x128x128xf32>
    %42 = vector.shape_cast %41 : vector<1x1x128x128xf32> to vector<128x128xf32>
    %cst_51 = arith.constant dense<0.000000e+00> : vector<100x128xf32>
    %43 = tpu.matmul %40, %42, %cst_51 {dimension_numbers = #tpu.dot_dimension_numbers<[1], [0], [0], [1], [0, 0, 1, 1], [], []>} : vector<100x128xf32>, vector<128x128xf32>, vector<100x128xf32> -> vector<100x128xf32>
    %44 = arith.addf %38, %43 : vector<100x128xf32>
    %c1_52 = arith.constant 1 : index
    %c1_53 = arith.constant 1 : index
    %c0_54 = arith.constant 0 : index
    %45 = vector.load %arg11[%c1_52, %c1_53, %c0_54] : memref<12x12x128xf32, #tpu.memory_space<vmem>>, vector<10x10x128xf32>
    %46 = vector.shape_cast %45 : vector<10x10x128xf32> to vector<100x128xf32>
    %c1_55 = arith.constant 1 : index
    %c1_56 = arith.constant 1 : index
    %c0_57 = arith.constant 0 : index
    %c0_58 = arith.constant 0 : index
    %47 = vector.load %arg3[%c1_55, %c1_56, %c0_57, %c0_58] : memref<3x3x128x128xf32, #tpu.memory_space<vmem>>, vector<1x1x128x128xf32>
    %48 = vector.shape_cast %47 : vector<1x1x128x128xf32> to vector<128x128xf32>
    %cst_59 = arith.constant dense<0.000000e+00> : vector<100x128xf32>
    %49 = tpu.matmul %46, %48, %cst_59 {dimension_numbers = #tpu.dot_dimension_numbers<[1], [0], [0], [1], [0, 0, 1, 1], [], []>} : vector<100x128xf32>, vector<128x128xf32>, vector<100x128xf32> -> vector<100x128xf32>
    %50 = arith.addf %44, %49 : vector<100x128xf32>
    %c1_60 = arith.constant 1 : index
    %c2_61 = arith.constant 2 : index
    %c0_62 = arith.constant 0 : index
    %51 = vector.load %arg11[%c1_60, %c2_61, %c0_62] : memref<12x12x128xf32, #tpu.memory_space<vmem>>, vector<10x10x128xf32>
    %52 = vector.shape_cast %51 : vector<10x10x128xf32> to vector<100x128xf32>
    %c1_63 = arith.constant 1 : index
    %c2_64 = arith.constant 2 : index
    %c0_65 = arith.constant 0 : index
    %c0_66 = arith.constant 0 : index
    %53 = vector.load %arg3[%c1_63, %c2_64, %c0_65, %c0_66] : memref<3x3x128x128xf32, #tpu.memory_space<vmem>>, vector<1x1x128x128xf32>
    %54 = vector.shape_cast %53 : vector<1x1x128x128xf32> to vector<128x128xf32>
    %cst_67 = arith.constant dense<0.000000e+00> : vector<100x128xf32>
    %55 = tpu.matmul %52, %54, %cst_67 {dimension_numbers = #tpu.dot_dimension_numbers<[1], [0], [0], [1], [0, 0, 1, 1], [], []>} : vector<100x128xf32>, vector<128x128xf32>, vector<100x128xf32> -> vector<100x128xf32>
    %56 = arith.addf %50, %55 : vector<100x128xf32>
    %c2_68 = arith.constant 2 : index
    %c0_69 = arith.constant 0 : index
    %c0_70 = arith.constant 0 : index
    %57 = vector.load %arg11[%c2_68, %c0_69, %c0_70] : memref<12x12x128xf32, #tpu.memory_space<vmem>>, vector<10x10x128xf32>
    %58 = vector.shape_cast %57 : vector<10x10x128xf32> to vector<100x128xf32>
    %c2_71 = arith.constant 2 : index
    %c0_72 = arith.constant 0 : index
    %c0_73 = arith.constant 0 : index
    %c0_74 = arith.constant 0 : index
    %59 = vector.load %arg3[%c2_71, %c0_72, %c0_73, %c0_74] : memref<3x3x128x128xf32, #tpu.memory_space<vmem>>, vector<1x1x128x128xf32>
    %60 = vector.shape_cast %59 : vector<1x1x128x128xf32> to vector<128x128xf32>
    %cst_75 = arith.constant dense<0.000000e+00> : vector<100x128xf32>
    %61 = tpu.matmul %58, %60, %cst_75 {dimension_numbers = #tpu.dot_dimension_numbers<[1], [0], [0], [1], [0, 0, 1, 1], [], []>} : vector<100x128xf32>, vector<128x128xf32>, vector<100x128xf32> -> vector<100x128xf32>
    %62 = arith.addf %56, %61 : vector<100x128xf32>
    %c2_76 = arith.constant 2 : index
    %c1_77 = arith.constant 1 : index
    %c0_78 = arith.constant 0 : index
    %63 = vector.load %arg11[%c2_76, %c1_77, %c0_78] : memref<12x12x128xf32, #tpu.memory_space<vmem>>, vector<10x10x128xf32>
    %64 = vector.shape_cast %63 : vector<10x10x128xf32> to vector<100x128xf32>
    %c2_79 = arith.constant 2 : index
    %c1_80 = arith.constant 1 : index
    %c0_81 = arith.constant 0 : index
    %c0_82 = arith.constant 0 : index
    %65 = vector.load %arg3[%c2_79, %c1_80, %c0_81, %c0_82] : memref<3x3x128x128xf32, #tpu.memory_space<vmem>>, vector<1x1x128x128xf32>
    %66 = vector.shape_cast %65 : vector<1x1x128x128xf32> to vector<128x128xf32>
    %cst_83 = arith.constant dense<0.000000e+00> : vector<100x128xf32>
    %67 = tpu.matmul %64, %66, %cst_83 {dimension_numbers = #tpu.dot_dimension_numbers<[1], [0], [0], [1], [0, 0, 1, 1], [], []>} : vector<100x128xf32>, vector<128x128xf32>, vector<100x128xf32> -> vector<100x128xf32>
    %68 = arith.addf %62, %67 : vector<100x128xf32>
    %c2_84 = arith.constant 2 : index
    %c2_85 = arith.constant 2 : index
    %c0_86 = arith.constant 0 : index
    %69 = vector.load %arg11[%c2_84, %c2_85, %c0_86] : memref<12x12x128xf32, #tpu.memory_space<vmem>>, vector<10x10x128xf32>
    %70 = vector.shape_cast %69 : vector<10x10x128xf32> to vector<100x128xf32>
    %c2_87 = arith.constant 2 : index
    %c2_88 = arith.constant 2 : index
    %c0_89 = arith.constant 0 : index
    %c0_90 = arith.constant 0 : index
    %71 = vector.load %arg3[%c2_87, %c2_88, %c0_89, %c0_90] : memref<3x3x128x128xf32, #tpu.memory_space<vmem>>, vector<1x1x128x128xf32>
    %72 = vector.shape_cast %71 : vector<1x1x128x128xf32> to vector<128x128xf32>
    %cst_91 = arith.constant dense<0.000000e+00> : vector<100x128xf32>
    %73 = tpu.matmul %70, %72, %cst_91 {dimension_numbers = #tpu.dot_dimension_numbers<[1], [0], [0], [1], [0, 0, 1, 1], [], []>} : vector<100x128xf32>, vector<128x128xf32>, vector<100x128xf32> -> vector<100x128xf32>
    %74 = arith.addf %68, %73 : vector<100x128xf32>
    %c0_92 = arith.constant 0 : index
    %c0_93 = arith.constant 0 : index
    %75 = vector.load %arg5[%c0_92, %c0_93] : memref<1x128xf32, #tpu.memory_space<vmem>>, vector<1x128xf32>
    %76 = vector.broadcast %75 : vector<1x128xf32> to vector<100x128xf32>
    %77 = arith.mulf %74, %76 : vector<100x128xf32>
    %c0_94 = arith.constant 0 : index
    %c0_95 = arith.constant 0 : index
    %78 = vector.load %arg6[%c0_94, %c0_95] : memref<1x128xf32, #tpu.memory_space<vmem>>, vector<1x128xf32>
    %79 = vector.broadcast %78 : vector<1x128xf32> to vector<100x128xf32>
    %80 = arith.addf %77, %79 : vector<100x128xf32>
    %cst_96 = arith.constant 0.000000e+00 : f32
    %81 = vector.broadcast %cst_96 : f32 to vector<100x128xf32>
    %82 = arith.maximumf %80, %81 : vector<100x128xf32>
    %83 = vector.shape_cast %82 : vector<100x128xf32> to vector<10x10x128xf32>
    %84 = tpu.iota {dimensions = array<i32: 0>} : vector<10x10x128xi32>
    %c1_i32 = arith.constant 1 : i32
    %85 = arith.subi %0, %c1_i32 : i32
    %86 = vector.broadcast %85 : i32 to vector<10x10x128xi32>
    %87 = arith.addi %84, %86 : vector<10x10x128xi32>
    %88 = tpu.iota {dimensions = array<i32: 1>} : vector<10x10x128xi32>
    %c0_i32_97 = arith.constant 0 : i32
    %89 = vector.broadcast %c0_i32_97 : i32 to vector<10x10x128xi32>
    %90 = arith.cmpi sge, %87, %89 : vector<10x10x128xi32>
    %c8_i32_98 = arith.constant 8 : i32
    %91 = vector.broadcast %c8_i32_98 : i32 to vector<10x10x128xi32>
    %92 = arith.cmpi slt, %87, %91 : vector<10x10x128xi32>
    %93 = arith.andi %90, %92 : vector<10x10x128xi1>
    %c1_i32_99 = arith.constant 1 : i32
    %94 = vector.broadcast %c1_i32_99 : i32 to vector<10x10x128xi32>
    %95 = arith.cmpi sge, %88, %94 : vector<10x10x128xi32>
    %96 = arith.andi %93, %95 : vector<10x10x128xi1>
    %c8_i32_100 = arith.constant 8 : i32
    %97 = vector.broadcast %c8_i32_100 : i32 to vector<10x10x128xi32>
    %98 = arith.cmpi sle, %88, %97 : vector<10x10x128xi32>
    %99 = arith.andi %96, %98 : vector<10x10x128xi1>
    %cst_101 = arith.constant 0.000000e+00 : f32
    %100 = vector.broadcast %cst_101 : f32 to vector<10x10x128xf32>
    %101 = arith.select %99, %83, %100 : vector<10x10x128xi1>, vector<10x10x128xf32>
    %c0_102 = arith.constant 0 : index
    %c0_103 = arith.constant 0 : index
    %c0_104 = arith.constant 0 : index
    %102 = vector.load %arg12[%c0_102, %c0_103, %c0_104] : memref<10x10x128xf32, #tpu.memory_space<vmem>>, vector<10x10x128xf32>
    tpu.vector_store %arg12[%c0_102, %c0_103, %c0_104], %101 {strides = array<i32>} : memref<10x10x128xf32, #tpu.memory_space<vmem>>, vector<10x10x128xf32>,
    %cst_105 = arith.constant 0.000000e+00 : f32
    %103 = vector.broadcast %cst_105 : f32 to vector<64x128xf32>
    %c0_106 = arith.constant 0 : index
    %c0_107 = arith.constant 0 : index
    %c0_108 = arith.constant 0 : index
    %104 = vector.load %arg12[%c0_106, %c0_107, %c0_108] : memref<10x10x128xf32, #tpu.memory_space<vmem>>, vector<8x8x128xf32>
    %105 = vector.shape_cast %104 : vector<8x8x128xf32> to vector<64x128xf32>
    %c0_109 = arith.constant 0 : index
    %c0_110 = arith.constant 0 : index
    %c0_111 = arith.constant 0 : index
    %c0_112 = arith.constant 0 : index
    %106 = vector.load %arg4[%c0_109, %c0_110, %c0_111, %c0_112] : memref<3x3x128x128xf32, #tpu.memory_space<vmem>>, vector<1x1x128x128xf32>
    %107 = vector.shape_cast %106 : vector<1x1x128x128xf32> to vector<128x128xf32>
    %cst_113 = arith.constant dense<0.000000e+00> : vector<64x128xf32>
    %108 = tpu.matmul %105, %107, %cst_113 {dimension_numbers = #tpu.dot_dimension_numbers<[1], [0], [0], [1], [0, 0, 1, 1], [], []>} : vector<64x128xf32>, vector<128x128xf32>, vector<64x128xf32> -> vector<64x128xf32>
    %109 = arith.addf %103, %108 : vector<64x128xf32>
    %c0_114 = arith.constant 0 : index
    %c1_115 = arith.constant 1 : index
    %c0_116 = arith.constant 0 : index
    %110 = vector.load %arg12[%c0_114, %c1_115, %c0_116] : memref<10x10x128xf32, #tpu.memory_space<vmem>>, vector<8x8x128xf32>
    %111 = vector.shape_cast %110 : vector<8x8x128xf32> to vector<64x128xf32>
    %c0_117 = arith.constant 0 : index
    %c1_118 = arith.constant 1 : index
    %c0_119 = arith.constant 0 : index
    %c0_120 = arith.constant 0 : index
    %112 = vector.load %arg4[%c0_117, %c1_118, %c0_119, %c0_120] : memref<3x3x128x128xf32, #tpu.memory_space<vmem>>, vector<1x1x128x128xf32>
    %113 = vector.shape_cast %112 : vector<1x1x128x128xf32> to vector<128x128xf32>
    %cst_121 = arith.constant dense<0.000000e+00> : vector<64x128xf32>
    %114 = tpu.matmul %111, %113, %cst_121 {dimension_numbers = #tpu.dot_dimension_numbers<[1], [0], [0], [1], [0, 0, 1, 1], [], []>} : vector<64x128xf32>, vector<128x128xf32>, vector<64x128xf32> -> vector<64x128xf32>
    %115 = arith.addf %109, %114 : vector<64x128xf32>
    %c0_122 = arith.constant 0 : index
    %c2_123 = arith.constant 2 : index
    %c0_124 = arith.constant 0 : index
    %116 = vector.load %arg12[%c0_122, %c2_123, %c0_124] : memref<10x10x128xf32, #tpu.memory_space<vmem>>, vector<8x8x128xf32>
    %117 = vector.shape_cast %116 : vector<8x8x128xf32> to vector<64x128xf32>
    %c0_125 = arith.constant 0 : index
    %c2_126 = arith.constant 2 : index
    %c0_127 = arith.constant 0 : index
    %c0_128 = arith.constant 0 : index
    %118 = vector.load %arg4[%c0_125, %c2_126, %c0_127, %c0_128] : memref<3x3x128x128xf32, #tpu.memory_space<vmem>>, vector<1x1x128x128xf32>
    %119 = vector.shape_cast %118 : vector<1x1x128x128xf32> to vector<128x128xf32>
    %cst_129 = arith.constant dense<0.000000e+00> : vector<64x128xf32>
    %120 = tpu.matmul %117, %119, %cst_129 {dimension_numbers = #tpu.dot_dimension_numbers<[1], [0], [0], [1], [0, 0, 1, 1], [], []>} : vector<64x128xf32>, vector<128x128xf32>, vector<64x128xf32> -> vector<64x128xf32>
    %121 = arith.addf %115, %120 : vector<64x128xf32>
    %c1_130 = arith.constant 1 : index
    %c0_131 = arith.constant 0 : index
    %c0_132 = arith.constant 0 : index
    %122 = vector.load %arg12[%c1_130, %c0_131, %c0_132] : memref<10x10x128xf32, #tpu.memory_space<vmem>>, vector<8x8x128xf32>
    %123 = vector.shape_cast %122 : vector<8x8x128xf32> to vector<64x128xf32>
    %c1_133 = arith.constant 1 : index
    %c0_134 = arith.constant 0 : index
    %c0_135 = arith.constant 0 : index
    %c0_136 = arith.constant 0 : index
    %124 = vector.load %arg4[%c1_133, %c0_134, %c0_135, %c0_136] : memref<3x3x128x128xf32, #tpu.memory_space<vmem>>, vector<1x1x128x128xf32>
    %125 = vector.shape_cast %124 : vector<1x1x128x128xf32> to vector<128x128xf32>
    %cst_137 = arith.constant dense<0.000000e+00> : vector<64x128xf32>
    %126 = tpu.matmul %123, %125, %cst_137 {dimension_numbers = #tpu.dot_dimension_numbers<[1], [0], [0], [1], [0, 0, 1, 1], [], []>} : vector<64x128xf32>, vector<128x128xf32>, vector<64x128xf32> -> vector<64x128xf32>
    %127 = arith.addf %121, %126 : vector<64x128xf32>
    %c1_138 = arith.constant 1 : index
    %c1_139 = arith.constant 1 : index
    %c0_140 = arith.constant 0 : index
    %128 = vector.load %arg12[%c1_138, %c1_139, %c0_140] : memref<10x10x128xf32, #tpu.memory_space<vmem>>, vector<8x8x128xf32>
    %129 = vector.shape_cast %128 : vector<8x8x128xf32> to vector<64x128xf32>
    %c1_141 = arith.constant 1 : index
    %c1_142 = arith.constant 1 : index
    %c0_143 = arith.constant 0 : index
    %c0_144 = arith.constant 0 : index
    %130 = vector.load %arg4[%c1_141, %c1_142, %c0_143, %c0_144] : memref<3x3x128x128xf32, #tpu.memory_space<vmem>>, vector<1x1x128x128xf32>
    %131 = vector.shape_cast %130 : vector<1x1x128x128xf32> to vector<128x128xf32>
    %cst_145 = arith.constant dense<0.000000e+00> : vector<64x128xf32>
    %132 = tpu.matmul %129, %131, %cst_145 {dimension_numbers = #tpu.dot_dimension_numbers<[1], [0], [0], [1], [0, 0, 1, 1], [], []>} : vector<64x128xf32>, vector<128x128xf32>, vector<64x128xf32> -> vector<64x128xf32>
    %133 = arith.addf %127, %132 : vector<64x128xf32>
    %c1_146 = arith.constant 1 : index
    %c2_147 = arith.constant 2 : index
    %c0_148 = arith.constant 0 : index
    %134 = vector.load %arg12[%c1_146, %c2_147, %c0_148] : memref<10x10x128xf32, #tpu.memory_space<vmem>>, vector<8x8x128xf32>
    %135 = vector.shape_cast %134 : vector<8x8x128xf32> to vector<64x128xf32>
    %c1_149 = arith.constant 1 : index
    %c2_150 = arith.constant 2 : index
    %c0_151 = arith.constant 0 : index
    %c0_152 = arith.constant 0 : index
    %136 = vector.load %arg4[%c1_149, %c2_150, %c0_151, %c0_152] : memref<3x3x128x128xf32, #tpu.memory_space<vmem>>, vector<1x1x128x128xf32>
    %137 = vector.shape_cast %136 : vector<1x1x128x128xf32> to vector<128x128xf32>
    %cst_153 = arith.constant dense<0.000000e+00> : vector<64x128xf32>
    %138 = tpu.matmul %135, %137, %cst_153 {dimension_numbers = #tpu.dot_dimension_numbers<[1], [0], [0], [1], [0, 0, 1, 1], [], []>} : vector<64x128xf32>, vector<128x128xf32>, vector<64x128xf32> -> vector<64x128xf32>
    %139 = arith.addf %133, %138 : vector<64x128xf32>
    %c2_154 = arith.constant 2 : index
    %c0_155 = arith.constant 0 : index
    %c0_156 = arith.constant 0 : index
    %140 = vector.load %arg12[%c2_154, %c0_155, %c0_156] : memref<10x10x128xf32, #tpu.memory_space<vmem>>, vector<8x8x128xf32>
    %141 = vector.shape_cast %140 : vector<8x8x128xf32> to vector<64x128xf32>
    %c2_157 = arith.constant 2 : index
    %c0_158 = arith.constant 0 : index
    %c0_159 = arith.constant 0 : index
    %c0_160 = arith.constant 0 : index
    %142 = vector.load %arg4[%c2_157, %c0_158, %c0_159, %c0_160] : memref<3x3x128x128xf32, #tpu.memory_space<vmem>>, vector<1x1x128x128xf32>
    %143 = vector.shape_cast %142 : vector<1x1x128x128xf32> to vector<128x128xf32>
    %cst_161 = arith.constant dense<0.000000e+00> : vector<64x128xf32>
    %144 = tpu.matmul %141, %143, %cst_161 {dimension_numbers = #tpu.dot_dimension_numbers<[1], [0], [0], [1], [0, 0, 1, 1], [], []>} : vector<64x128xf32>, vector<128x128xf32>, vector<64x128xf32> -> vector<64x128xf32>
    %145 = arith.addf %139, %144 : vector<64x128xf32>
    %c2_162 = arith.constant 2 : index
    %c1_163 = arith.constant 1 : index
    %c0_164 = arith.constant 0 : index
    %146 = vector.load %arg12[%c2_162, %c1_163, %c0_164] : memref<10x10x128xf32, #tpu.memory_space<vmem>>, vector<8x8x128xf32>
    %147 = vector.shape_cast %146 : vector<8x8x128xf32> to vector<64x128xf32>
    %c2_165 = arith.constant 2 : index
    %c1_166 = arith.constant 1 : index
    %c0_167 = arith.constant 0 : index
    %c0_168 = arith.constant 0 : index
    %148 = vector.load %arg4[%c2_165, %c1_166, %c0_167, %c0_168] : memref<3x3x128x128xf32, #tpu.memory_space<vmem>>, vector<1x1x128x128xf32>
    %149 = vector.shape_cast %148 : vector<1x1x128x128xf32> to vector<128x128xf32>
    %cst_169 = arith.constant dense<0.000000e+00> : vector<64x128xf32>
    %150 = tpu.matmul %147, %149, %cst_169 {dimension_numbers = #tpu.dot_dimension_numbers<[1], [0], [0], [1], [0, 0, 1, 1], [], []>} : vector<64x128xf32>, vector<128x128xf32>, vector<64x128xf32> -> vector<64x128xf32>
    %151 = arith.addf %145, %150 : vector<64x128xf32>
    %c2_170 = arith.constant 2 : index
    %c2_171 = arith.constant 2 : index
    %c0_172 = arith.constant 0 : index
    %152 = vector.load %arg12[%c2_170, %c2_171, %c0_172] : memref<10x10x128xf32, #tpu.memory_space<vmem>>, vector<8x8x128xf32>
    %153 = vector.shape_cast %152 : vector<8x8x128xf32> to vector<64x128xf32>
    %c2_173 = arith.constant 2 : index
    %c2_174 = arith.constant 2 : index
    %c0_175 = arith.constant 0 : index
    %c0_176 = arith.constant 0 : index
    %154 = vector.load %arg4[%c2_173, %c2_174, %c0_175, %c0_176] : memref<3x3x128x128xf32, #tpu.memory_space<vmem>>, vector<1x1x128x128xf32>
    %155 = vector.shape_cast %154 : vector<1x1x128x128xf32> to vector<128x128xf32>
    %cst_177 = arith.constant dense<0.000000e+00> : vector<64x128xf32>
    %156 = tpu.matmul %153, %155, %cst_177 {dimension_numbers = #tpu.dot_dimension_numbers<[1], [0], [0], [1], [0, 0, 1, 1], [], []>} : vector<64x128xf32>, vector<128x128xf32>, vector<64x128xf32> -> vector<64x128xf32>
    %157 = arith.addf %151, %156 : vector<64x128xf32>
    %c0_178 = arith.constant 0 : index
    %c0_179 = arith.constant 0 : index
    %158 = vector.load %arg7[%c0_178, %c0_179] : memref<1x128xf32, #tpu.memory_space<vmem>>, vector<1x128xf32>
    %159 = vector.broadcast %158 : vector<1x128xf32> to vector<64x128xf32>
    %160 = arith.mulf %157, %159 : vector<64x128xf32>
    %c0_180 = arith.constant 0 : index
    %c0_181 = arith.constant 0 : index
    %161 = vector.load %arg8[%c0_180, %c0_181] : memref<1x128xf32, #tpu.memory_space<vmem>>, vector<1x128xf32>
    %162 = vector.broadcast %161 : vector<1x128xf32> to vector<64x128xf32>
    %163 = arith.addf %160, %162 : vector<64x128xf32>
    %cst_182 = arith.constant 0.000000e+00 : f32
    %164 = vector.broadcast %cst_182 : f32 to vector<64x128xf32>
    %165 = arith.maximumf %163, %164 : vector<64x128xf32>
    %166 = vector.shape_cast %165 : vector<64x128xf32> to vector<1x8x8x128xf32>
    %c0_183 = arith.constant 0 : index
    %c0_184 = arith.constant 0 : index
    %c0_185 = arith.constant 0 : index
    %c0_186 = arith.constant 0 : index
    %167 = vector.load %arg9[%c0_183, %c0_184, %c0_185, %c0_186] : memref<1x8x8x128xf32, #tpu.memory_space<vmem>>, vector<1x8x8x128xf32>
    tpu.vector_store %arg9[%c0_183, %c0_184, %c0_185, %c0_186], %166 {strides = array<i32>} : memref<1x8x8x128xf32, #tpu.memory_space<vmem>>, vector<1x8x8x128xf32>,
    return
  }
  func.func @transform_1(%arg0: i32, %arg1: i32) -> (i32, i32, i32, i32) {
    %c0_i32 = arith.constant 0 : i32
    %c0_i32_0 = arith.constant 0 : i32
    %c0_i32_1 = arith.constant 0 : i32
    %c0_i32_2 = arith.constant 0 : i32
    %c0_i32_3 = arith.constant 0 : i32
    return %c0_i32, %c0_i32_0, %c0_i32_1, %c0_i32_2 : i32, i32, i32, i32
  }
  func.func @transform_2(%arg0: i32, %arg1: i32) -> (i32, i32, i32, i32) {
    %c0_i32 = arith.constant 0 : i32
    %c0_i32_0 = arith.constant 0 : i32
    %c0_i32_1 = arith.constant 0 : i32
    %c0_i32_2 = arith.constant 0 : i32
    %c0_i32_3 = arith.constant 0 : i32
    return %c0_i32, %c0_i32_0, %c0_i32_1, %c0_i32_2 : i32, i32, i32, i32
  }
  func.func @transform_3(%arg0: i32, %arg1: i32) -> (i32, i32) {
    %c0_i32 = arith.constant 0 : i32
    %c0_i32_0 = arith.constant 0 : i32
    %c0_i32_1 = arith.constant 0 : i32
    return %c0_i32, %c0_i32_0 : i32, i32
  }
  func.func @transform_4(%arg0: i32, %arg1: i32) -> (i32, i32) {
    %c0_i32 = arith.constant 0 : i32
    %c0_i32_0 = arith.constant 0 : i32
    %c0_i32_1 = arith.constant 0 : i32
    return %c0_i32, %c0_i32_0 : i32, i32
  }
  func.func @transform_5(%arg0: i32, %arg1: i32) -> (i32, i32) {
    %c0_i32 = arith.constant 0 : i32
    %c0_i32_0 = arith.constant 0 : i32
    %c0_i32_1 = arith.constant 0 : i32
    return %c0_i32, %c0_i32_0 : i32, i32
  }
  func.func @transform_6(%arg0: i32, %arg1: i32) -> (i32, i32) {
    %c0_i32 = arith.constant 0 : i32
    %c0_i32_0 = arith.constant 0 : i32
    %c0_i32_1 = arith.constant 0 : i32
    return %c0_i32, %c0_i32_0 : i32, i32
  }
  func.func @transform_7(%arg0: i32, %arg1: i32) -> (i32, i32, i32, i32) {
    %c0_i32 = arith.constant 0 : i32
    %c0_i32_0 = arith.constant 0 : i32
    %c0_i32_1 = arith.constant 0 : i32
    return %arg0, %arg1, %c0_i32, %c0_i32_0 : i32, i32, i32, i32
  }
}

</mosaic_0001>

<llo_original>
// kernel: down_forward.1
$region0: #{down_forward.1}
  #allocation0 [shape = 'u32[]', space=smem, size = 0x4, offset = 0x4, fixed_abs, tag = 'smem constant byte address 0x4 - core index']
  #allocation1 [shape = 'u32[144,128]{1,0:T(1,128)}', space=vmem, size = 0x12000, scoped, tag = 'internal scratch']
  #allocation2 [shape = 'f32[4,12,12,128]{3,2,1,0:T(8,128)}', space=vmem, size = 0x60000, scoped, tag = 'scratch operand']
  #allocation3 [shape = 'f32[12,12,128]{2,1,0:T(8,128)}', space=vmem, size = 0x18000, scoped, tag = 'scratch operand']
  #allocation4 [shape = 'f32[10,10,128]{2,1,0:T(8,128)}', space=vmem, size = 0x14000, scoped, tag = 'scratch operand']
  #allocation5 [shape = 's32[1]{0}', space=sflag, size = 0x4, scoped, tag = 'scratch operand']
  #allocation6 [shape = 's32[]', space=sflag, size = 0x4, offset = 0, fixed_abs, tag = 'sflag constant byte address 0x0 - dummy sync flag']
  %s0 = inlined_call_operand.vmem [shape: f32[8,12,12,128], index: 0, kind: input, shape index: {}]
  %s1 = inlined_call_operand.vmem [shape: f32[3,3,128,128], index: 1, kind: input, shape index: {}]
  %s2 = inlined_call_operand.vmem [shape: f32[3,3,128,128], index: 2, kind: input, shape index: {}]
  %s3 = inlined_call_operand.vmem [shape: f32[1,128], index: 3, kind: input, shape index: {}]
  %s4 = inlined_call_operand.vmem [shape: f32[1,128], index: 4, kind: input, shape index: {}]
  %s5 = inlined_call_operand.vmem [shape: f32[1,128], index: 5, kind: input, shape index: {}]
  %s6 = inlined_call_operand.vmem [shape: f32[1,128], index: 6, kind: input, shape index: {}]
  %s7 = inlined_call_operand.vmem [shape: f32[2,8,8,128], index: 7, kind: output, shape index: {}]
  %s8 = sld [smem:[#allocation0]]
  $region94: #{down_forward.1} parent=0
    _
  %s10 = ssub.s32 1, %s8
  %s11 = scalar_select 0, %s10, %s8
  loop: start=0, step=1, limit=4
  $region2: #{down_forward.1} parent=0 // loop_pre_header
    _
  $region3: #{down_forward.1} parent=0 // loop_header
    %s13 = sphi 0, %s17
    %p14 = scmp.ge.s32.totalorder %s13, 4
    %s20 = sphi 0, %s32
    %s21 = sphi 0, %s28
    %s22 = sphi 0, %s20
    %s23 = sphi 0, %s21
    %s24 = sphi 0, %s22
    %s25 = sphi 0, %s23
    %s33 = sphi 0, %s33
    %s35 = sphi 0, %s33
    %s36 = sphi 0, %s35
    %s50 = sphi 0, %s36
    %s54 = sphi 0, %s54
    %s56 = sphi 0, %s54
    %s57 = sphi 0, %s56
    %s71 = sphi 0, %s57
    %s75 = sphi 0, %s75
    %s77 = sphi 0, %s75
    %s78 = sphi 0, %s77
    %s92 = sphi 0, %s78
    %s96 = sphi 0, %s96
    %s98 = sphi 0, %s96
    %s99 = sphi 0, %s98
    %s113 = sphi 0, %s99
    %s117 = sphi 0, %s117
    %s119 = sphi 0, %s117
    %s120 = sphi 0, %s119
    %s134 = sphi 0, %s120
    %s138 = sphi 0, %s138
    %s140 = sphi 0, %s138
    %s141 = sphi 0, %s140
    %s155 = sphi 0, %s141
    %s163 = sphi 0, %s165
    %s166 = sphi 0, %s163
    %s167 = sphi 0, %s166
    %s183 = sphi 0, %s167
  $region4: #{down_forward.1} parent=0 // loop_header_branch
    %16 = sbr.rel (%p14) target = $region8
  $region5: #{down_forward.1} parent=0 // loop_body
    %s18 = ssub.s32 %s13, 1
    %s19 = ssub.s32 %s13, 2
    %s26 = sadd.s32 1, %s21
    %p27 = scmp.ge.s32.totalorder %s26, 1
    %s28 = scalar_select %p27, 0, %s26
    %s29 = sadd.s32 1, %s20
    %s30 = scalar_select %p27, %s29, %s20
    %p31 = scmp.ge.s32.totalorder %s30, 2
    %s32 = scalar_select %p31, 0, %s30
    %s34 = sadd.s32 %s33, 1
    %p37 = scmp.eq.s32.totalorder %s13, 1
    %p38 = scmp.ne.s32.totalorder %s33, %s35
    %p39 = scmp.eq.s32.totalorder %s13, 0
    %p40 = por %p38, %p39
    %p41 = scmp.ne.s32.totalorder %s33, %s35
    %p42 = scmp.eq.s32.totalorder %s18, 1
    %p43 = por %p41, %p42
    %p44 = scmp.ne.s32.totalorder %s35, %s36
    %p45 = scmp.eq.s32.totalorder %s18, 0
    %p46 = por %p44, %p45
    %p47 = scmp.ne.s32.totalorder %s35, %s36
    %p48 = scmp.eq.s32.totalorder %s19, 1
    %p49 = por %p47, %p48
    %p51 = scmp.ne.s32.totalorder %s36, %s50
    %p52 = scmp.eq.s32.totalorder %s19, 0
    %p53 = por %p51, %p52
    %s55 = sadd.s32 %s54, 1
    %p58 = scmp.eq.s32.totalorder %s13, 1
    %p59 = scmp.ne.s32.totalorder %s54, %s56
    %p60 = scmp.eq.s32.totalorder %s13, 0
    %p61 = por %p59, %p60
    %p62 = scmp.ne.s32.totalorder %s54, %s56
    %p63 = scmp.eq.s32.totalorder %s18, 1
    %p64 = por %p62, %p63
    %p65 = scmp.ne.s32.totalorder %s56, %s57
    %p66 = scmp.eq.s32.totalorder %s18, 0
    %p67 = por %p65, %p66
    %p68 = scmp.ne.s32.totalorder %s56, %s57
    %p69 = scmp.eq.s32.totalorder %s19, 1
    %p70 = por %p68, %p69
    %p72 = scmp.ne.s32.totalorder %s57, %s71
    %p73 = scmp.eq.s32.totalorder %s19, 0
    %p74 = por %p72, %p73
    %s76 = sadd.s32 %s75, 1
    %p79 = scmp.eq.s32.totalorder %s13, 1
    %p80 = scmp.ne.s32.totalorder %s75, %s77
    %p81 = scmp.eq.s32.totalorder %s13, 0
    %p82 = por %p80, %p81
    %p83 = scmp.ne.s32.totalorder %s75, %s77
    %p84 = scmp.eq.s32.totalorder %s18, 1
    %p85 = por %p83, %p84
    %p86 = scmp.ne.s32.totalorder %s77, %s78
    %p87 = scmp.eq.s32.totalorder %s18, 0
    %p88 = por %p86, %p87
    %p89 = scmp.ne.s32.totalorder %s77, %s78
    %p90 = scmp.eq.s32.totalorder %s19, 1
    %p91 = por %p89, %p90
    %p93 = scmp.ne.s32.totalorder %s78, %s92
    %p94 = scmp.eq.s32.totalorder %s19, 0
    %p95 = por %p93, %p94
    %s97 = sadd.s32 %s96, 1
    %p100 = scmp.eq.s32.totalorder %s13, 1
    %p101 = scmp.ne.s32.totalorder %s96, %s98
    %p102 = scmp.eq.s32.totalorder %s13, 0
    %p103 = por %p101, %p102
    %p104 = scmp.ne.s32.totalorder %s96, %s98
    %p105 = scmp.eq.s32.totalorder %s18, 1
    %p106 = por %p104, %p105
    %p107 = scmp.ne.s32.totalorder %s98, %s99
    %p108 = scmp.eq.s32.totalorder %s18, 0
    %p109 = por %p107, %p108
    %p110 = scmp.ne.s32.totalorder %s98, %s99
    %p111 = scmp.eq.s32.totalorder %s19, 1
    %p112 = por %p110, %p111
    %p114 = scmp.ne.s32.totalorder %s99, %s113
    %p115 = scmp.eq.s32.totalorder %s19, 0
    %p116 = por %p114, %p115
    %s118 = sadd.s32 %s117, 1
    %p121 = scmp.eq.s32.totalorder %s13, 1
    %p122 = scmp.ne.s32.totalorder %s117, %s119
    %p123 = scmp.eq.s32.totalorder %s13, 0
    %p124 = por %p122, %p123
    %p125 = scmp.ne.s32.totalorder %s117, %s119
    %p126 = scmp.eq.s32.totalorder %s18, 1
    %p127 = por %p125, %p126
    %p128 = scmp.ne.s32.totalorder %s119, %s120
    %p129 = scmp.eq.s32.totalorder %s18, 0
    %p130 = por %p128, %p129
    %p131 = scmp.ne.s32.totalorder %s119, %s120
    %p132 = scmp.eq.s32.totalorder %s19, 1
    %p133 = por %p131, %p132
    %p135 = scmp.ne.s32.totalorder %s120, %s134
    %p136 = scmp.eq.s32.totalorder %s19, 0
    %p137 = por %p135, %p136
    %s139 = sadd.s32 %s138, 1
    %p142 = scmp.eq.s32.totalorder %s13, 1
    %p143 = scmp.ne.s32.totalorder %s138, %s140
    %p144 = scmp.eq.s32.totalorder %s13, 0
    %p145 = por %p143, %p144
    %p146 = scmp.ne.s32.totalorder %s138, %s140
    %p147 = scmp.eq.s32.totalorder %s18, 1
    %p148 = por %p146, %p147
    %p149 = scmp.ne.s32.totalorder %s140, %s141
    %p150 = scmp.eq.s32.totalorder %s18, 0
    %p151 = por %p149, %p150
    %p152 = scmp.ne.s32.totalorder %s140, %s141
    %p153 = scmp.eq.s32.totalorder %s19, 1
    %p154 = por %p152, %p153
    %p156 = scmp.ne.s32.totalorder %s141, %s155
    %p157 = scmp.eq.s32.totalorder %s19, 0
    %p158 = por %p156, %p157
    %s159 = ssub.s32 %s20, %s32
    %s160 = ssub.s32 %s21, %s28
    %s161 = sor.u32 %s159, %s160
    %p162 = scmp.eq.s32.totalorder %s161, 0
    %s164 = sadd.s32 %s163, 1
    %s165 = scalar_select %p162, %s163, %s164
    %p168 = pneg %p162
    %p169 = scmp.eq.s32.totalorder %s13, 1
    %p170 = por %p168, %p169
    %p171 = scmp.ne.s32.totalorder %s163, %s166
    %p172 = scmp.eq.s32.totalorder %s13, 0
    %p173 = por %p171, %p172
    %p174 = scmp.ne.s32.totalorder %s163, %s166
    %p175 = scmp.eq.s32.totalorder %s18, 1
    %p176 = por %p174, %p175
    %p177 = scmp.ne.s32.totalorder %s166, %s167
    %p178 = scmp.eq.s32.totalorder %s18, 0
    %p179 = por %p177, %p178
    %p180 = scmp.ne.s32.totalorder %s166, %s167
    %p181 = scmp.eq.s32.totalorder %s19, 1
    %p182 = por %p180, %p181
    %p184 = scmp.ne.s32.totalorder %s167, %s183
    %p185 = scmp.eq.s32.totalorder %s19, 0
    %p186 = por %p184, %p185
    %p187 = scmp.le.s32.totalorder 1, %s13
    %p188 = scmp.lt.s32.totalorder %s13, 3
    %p189 = pnand %p187, %p188
    %p190 = pneg %p189
    // Predicated region
    $region9: #{down_forward.1} parent=5 // pred_check
      _
    $region10: #{down_forward.1} parent=5 // pred_check_branch
      %192 = sbr.rel (%p189) target = $region12
    $region11: #{down_forward.1} parent=5 // pred_region
      %s193 = ssub.s32 %s13, 1
      // Predicated region
      $region13: #{down_forward.1} parent=11 // pred_check
        %p194 = pneg %p46
      $region14: #{down_forward.1} parent=11 // pred_check_branch
        %196 = sbr.rel (%p194) target = $region16
      $region15: #{down_forward.1} parent=11 // pred_region
        _
      $region16: #{down_forward.1} parent=11 // pred_fallthru
        _
      // Predicated region
      $region17: #{down_forward.1} parent=11 // pred_check
        %p197 = pneg %p67
      $region18: #{down_forward.1} parent=11 // pred_check_branch
        %199 = sbr.rel (%p197) target = $region20
      $region19: #{down_forward.1} parent=11 // pred_region
        _
      $region20: #{down_forward.1} parent=11 // pred_fallthru
        _
      // Predicated region
      $region21: #{down_forward.1} parent=11 // pred_check
        %p200 = pneg %p88
      $region22: #{down_forward.1} parent=11 // pred_check_branch
        %202 = sbr.rel (%p200) target = $region24
      $region23: #{down_forward.1} parent=11 // pred_region
        _
      $region24: #{down_forward.1} parent=11 // pred_fallthru
        _
      // Predicated region
      $region25: #{down_forward.1} parent=11 // pred_check
        %p203 = pneg %p109
      $region26: #{down_forward.1} parent=11 // pred_check_branch
        %205 = sbr.rel (%p203) target = $region28
      $region27: #{down_forward.1} parent=11 // pred_region
        _
      $region28: #{down_forward.1} parent=11 // pred_fallthru
        _
      // Predicated region
      $region29: #{down_forward.1} parent=11 // pred_check
        %p206 = pneg %p130
      $region30: #{down_forward.1} parent=11 // pred_check_branch
        %208 = sbr.rel (%p206) target = $region32
      $region31: #{down_forward.1} parent=11 // pred_region
        _
      $region32: #{down_forward.1} parent=11 // pred_fallthru
        _
      // Predicated region
      $region33: #{down_forward.1} parent=11 // pred_check
        %p209 = pneg %p151
      $region34: #{down_forward.1} parent=11 // pred_check_branch
        %211 = sbr.rel (%p209) target = $region36
      $region35: #{down_forward.1} parent=11 // pred_region
        _
      $region36: #{down_forward.1} parent=11 // pred_fallthru
        _
    $region12: #{down_forward.1} parent=5 // pred_fallthru
      _
    %p212 = scmp.lt.s32.totalorder %s13, 2
    // Predicated region
    $region37: #{down_forward.1} parent=5 // pred_check
      %p213 = pneg %p212
    $region38: #{down_forward.1} parent=5 // pred_check_branch
      %215 = sbr.rel (%p213) target = $region40
    $region39: #{down_forward.1} parent=5 // pred_region
      _
    $region40: #{down_forward.1} parent=5 // pred_fallthru
      _
    %p216 = scmp.le.s32.totalorder 1, %s13
    %p217 = scmp.lt.s32.totalorder %s13, 3
    %p218 = pnand %p216, %p217
    %p219 = pneg %p218
    // Predicated region
    $region41: #{down_forward.1} parent=5 // pred_check
      _
    $region42: #{down_forward.1} parent=5 // pred_check_branch
      %221 = sbr.rel (%p218) target = $region44
    $region43: #{down_forward.1} parent=5 // pred_region
      %s222 = ssub.s32 %s13, 1
      %p223 = pneg %p46
      %p224 = pneg %p43
      %p225 = pneg %p67
      %p226 = pneg %p64
      %p227 = pneg %p88
      %p228 = pneg %p85
      %p229 = pneg %p109
      %p230 = pneg %p106
      %p231 = pneg %p130
      %p232 = pneg %p127
      %p233 = pneg %p151
      %p234 = pneg %p148
      %p235 = pneg %p179
      %p236 = pneg %p176
      %s237 = smul.u32 8, %s23
      %p238 = scmp.lt.s32.totalorder %s22, 1
      %s239 = scalar_select %p238, %s22, 1
      %p240 = scmp.lt.s32.totalorder %s237, 7
      %s241 = scalar_select %p240, %s237, 7
      %s242 = smul.addr %s239, 8
      %s243 = sadd.s32 %s241, %s242
      %s244 = smul.addr %s243, 8
      %s245 = scalar_lea.vmem %s7, %s244
      %s246 = smul.u32 8, %s23
      %p247 = scmp.lt.s32.totalorder %s22, 1
      %s248 = scalar_select %p247, %s22, 1
      %p249 = scmp.lt.s32.totalorder %s246, 7
      %s250 = scalar_select %p249, %s246, 7
      %s251 = smul.addr %s248, 8
      %s252 = sadd.s32 %s250, %s251
      %s253 = smul.addr %s252, 8
      %s254 = scalar_lea.vmem %s7, %s253
      %s255 = smul.u32 8, %s23
      %s256 = smul.u32 %s23, 8
      %s257 = smul.u32 %s22, 4
      %s258 = smul.u32 %s256, 16
      %s259 = smul.u32 %s257, 192
      %s260 = sadd.s32 %s258, %s259
      %s261 = scalar_lea.vmem %s0, %s260
      %p263 = scmp.lt.u32.totalorder 12, 8
      %p264 = pneg %p263
      // Predicated region
      $region45: #{down_forward.1} parent=43 // pred_check
        _
      $region46: #{down_forward.1} parent=43 // pred_check_branch
        %266 = sbr.rel (%p263) target = $region48
      $region47: #{down_forward.1} parent=43 // pred_region
        %s376 = sand.u32 12, 7
        %p377 = scmp.eq.s32.totalorder %s376, 0
        %p378 = pneg %p377
        // Predicated region
        $region60: #{down_forward.1} parent=47 // pred_check
          _
        $region61: #{down_forward.1} parent=47 // pred_check_branch
          %380 = sbr.rel (%p377) target = $region63
        $region62: #{down_forward.1} parent=47 // pred_region
          %s381 = sand.u32 12, 7
          %s382 = ssub.s32 12, %s381
          %s383 = scalar_lea.vmem %s261, %s382
          %s384 = ssub.s32 12, %s381
          %s385 = scalar_lea.vmem [#allocation2], %s384
          loop: start=0, step=1, limit=1
          $region64: #{down_forward.1} parent=62 // loop_pre_header
            _
          $region65: #{down_forward.1} parent=62 // loop_header
            %s387 = sphi 0, %s391
            %p388 = scmp.ge.s32.totalorder %s387, 1
            %s392 = sphi %s261, %s261
            %s393 = sphi [#allocation2], [#allocation2]
          $region66: #{down_forward.1} parent=62 // loop_header_branch
            %390 = sbr.rel (%p388) target = $region70
          $region67: #{down_forward.1} parent=62 // loop_body
            %v394 = vld [vmem:[%s392] sm:$0xff]
            %395 = vst [vmem:[%s393] sm:$0xff] %v394
            %v396 = vld [vmem:[%s392 + $0x10] sm:$0xff]
            %397 = vst [vmem:[%s393 + $0x10] sm:$0xff] %v396
            %v398 = vld [vmem:[%s392 + $0x20] sm:$0xff]
            %399 = vst [vmem:[%s393 + $0x20] sm:$0xff] %v398
            %v400 = vld [vmem:[%s392 + $0x30] sm:$0xff]
            %401 = vst [vmem:[%s393 + $0x30] sm:$0xff] %v400
            %v402 = vld [vmem:[%s392 + $0x40] sm:$0xff]
            %403 = vst [vmem:[%s393 + $0x40] sm:$0xff] %v402
            %v404 = vld [vmem:[%s392 + $0x50] sm:$0xff]
            %405 = vst [vmem:[%s393 + $0x50] sm:$0xff] %v404
            %v406 = vld [vmem:[%s392 + $0x60] sm:$0xff]
            %407 = vst [vmem:[%s393 + $0x60] sm:$0xff] %v406
            %v408 = vld [vmem:[%s392 + $0x70] sm:$0xff]
            %409 = vst [vmem:[%s393 + $0x70] sm:$0xff] %v408
            %v410 = vld [vmem:[%s392 + $0x80] sm:$0xff]
            %411 = vst [vmem:[%s393 + $0x80] sm:$0xff] %v410
            %v412 = vld [vmem:[%s392 + $0x90] sm:$0xff]
            %413 = vst [vmem:[%s393 + $0x90] sm:$0xff] %v412
            %v414 = vld [vmem:[%s392 + $0xa0] sm:$0xff]
            %415 = vst [vmem:[%s393 + $0xa0] sm:$0xff] %v414
            %v416 = vld [vmem:[%s392 + $0xb0] sm:$0xff]
            %417 = vst [vmem:[%s393 + $0xb0] sm:$0xff] %v416
            %v418 = vld [vmem:[%s392 + $0xc0] sm:$0xff]
            %419 = vst [vmem:[%s393 + $0xc0] sm:$0xff] %v418
            %v420 = vld [vmem:[%s392 + $0xd0] sm:$0xff]
            %421 = vst [vmem:[%s393 + $0xd0] sm:$0xff] %v420
            %v422 = vld [vmem:[%s392 + $0xe0] sm:$0xff]
            %423 = vst [vmem:[%s393 + $0xe0] sm:$0xff] %v422
            %v424 = vld [vmem:[%s392 + $0xf0] sm:$0xff]
            %425 = vst [vmem:[%s393 + $0xf0] sm:$0xff] %v424
            %v426 = vld [vmem:[%s392 + $0x100] sm:$0xff]
            %427 = vst [vmem:[%s393 + $0x100] sm:$0xff] %v426
            %v428 = vld [vmem:[%s392 + $0x110] sm:$0xff]
            %429 = vst [vmem:[%s393 + $0x110] sm:$0xff] %v428
            %v430 = vld [vmem:[%s392 + $0x120] sm:$0xff]
            %431 = vst [vmem:[%s393 + $0x120] sm:$0xff] %v430
            %v432 = vld [vmem:[%s392 + $0x130] sm:$0xff]
            %433 = vst [vmem:[%s393 + $0x130] sm:$0xff] %v432
            %v434 = vld [vmem:[%s392 + $0x140] sm:$0xff]
            %435 = vst [vmem:[%s393 + $0x140] sm:$0xff] %v434
            %v436 = vld [vmem:[%s392 + $0x150] sm:$0xff]
            %437 = vst [vmem:[%s393 + $0x150] sm:$0xff] %v436
            %v438 = vld [vmem:[%s392 + $0x160] sm:$0xff]
            %439 = vst [vmem:[%s393 + $0x160] sm:$0xff] %v438
            %v440 = vld [vmem:[%s392 + $0x170] sm:$0xff]
            %441 = vst [vmem:[%s393 + $0x170] sm:$0xff] %v440
            %v442 = vld [vmem:[%s392 + $0x180] sm:$0xff]
            %443 = vst [vmem:[%s393 + $0x180] sm:$0xff] %v442
            %v444 = vld [vmem:[%s392 + $0x190] sm:$0xff]
            %445 = vst [vmem:[%s393 + $0x190] sm:$0xff] %v444
            %v446 = vld [vmem:[%s392 + $0x1a0] sm:$0xff]
            %447 = vst [vmem:[%s393 + $0x1a0] sm:$0xff] %v446
            %v448 = vld [vmem:[%s392 + $0x1b0] sm:$0xff]
            %449 = vst [vmem:[%s393 + $0x1b0] sm:$0xff] %v448
            %v450 = vld [vmem:[%s392 + $0x1c0] sm:$0xff]
            %451 = vst [vmem:[%s393 + $0x1c0] sm:$0xff] %v450
            %v452 = vld [vmem:[%s392 + $0x1d0] sm:$0xff]
            %453 = vst [vmem:[%s393 + $0x1d0] sm:$0xff] %v452
            %v454 = vld [vmem:[%s392 + $0x1e0] sm:$0xff]
            %455 = vst [vmem:[%s393 + $0x1e0] sm:$0xff] %v454
            %v456 = vld [vmem:[%s392 + $0x1f0] sm:$0xff]
            %457 = vst [vmem:[%s393 + $0x1f0] sm:$0xff] %v456
            %v458 = vld [vmem:[%s392 + $0x200] sm:$0xff]
            %459 = vst [vmem:[%s393 + $0x200] sm:$0xff] %v458
            %v460 = vld [vmem:[%s392 + $0x210] sm:$0xff]
            %461 = vst [vmem:[%s393 + $0x210] sm:$0xff] %v460
            %v462 = vld [vmem:[%s392 + $0x220] sm:$0xff]
            %463 = vst [vmem:[%s393 + $0x220] sm:$0xff] %v462
            %v464 = vld [vmem:[%s392 + $0x230] sm:$0xff]
            %465 = vst [vmem:[%s393 + $0x230] sm:$0xff] %v464
            %v466 = vld [vmem:[%s392 + $0x240] sm:$0xff]
            %467 = vst [vmem:[%s393 + $0x240] sm:$0xff] %v466
            %v468 = vld [vmem:[%s392 + $0x250] sm:$0xff]
            %469 = vst [vmem:[%s393 + $0x250] sm:$0xff] %v468
            %v470 = vld [vmem:[%s392 + $0x260] sm:$0xff]
            %471 = vst [vmem:[%s393 + $0x260] sm:$0xff] %v470
            %v472 = vld [vmem:[%s392 + $0x270] sm:$0xff]
            %473 = vst [vmem:[%s393 + $0x270] sm:$0xff] %v472
            %v474 = vld [vmem:[%s392 + $0x280] sm:$0xff]
            %475 = vst [vmem:[%s393 + $0x280] sm:$0xff] %v474
            %v476 = vld [vmem:[%s392 + $0x290] sm:$0xff]
            %477 = vst [vmem:[%s393 + $0x290] sm:$0xff] %v476
            %v478 = vld [vmem:[%s392 + $0x2a0] sm:$0xff]
            %479 = vst [vmem:[%s393 + $0x2a0] sm:$0xff] %v478
            %v480 = vld [vmem:[%s392 + $0x2b0] sm:$0xff]
            %481 = vst [vmem:[%s393 + $0x2b0] sm:$0xff] %v480
            %v482 = vld [vmem:[%s392 + $0x2c0] sm:$0xff]
            %483 = vst [vmem:[%s393 + $0x2c0] sm:$0xff] %v482
            %v484 = vld [vmem:[%s392 + $0x2d0] sm:$0xff]
            %485 = vst [vmem:[%s393 + $0x2d0] sm:$0xff] %v484
            %v486 = vld [vmem:[%s392 + $0x2e0] sm:$0xff]
            %487 = vst [vmem:[%s393 + $0x2e0] sm:$0xff] %v486
            %v488 = vld [vmem:[%s392 + $0x2f0] sm:$0xff]
            %489 = vst [vmem:[%s393 + $0x2f0] sm:$0xff] %v488
          $region68: #{down_forward.1} parent=62 // loop_footer
            %s391 = sadd.s32 1, %s387
          $region69: #{down_forward.1} parent=62 // loop_footer_branch
            %386 = sbr.rel target = $region65
          $region70: #{down_forward.1} parent=62 // loop_exit
            _
          %s490 = sshll.u32 1, %s381
          %s491 = ssub.s32 %s490, 1
          loop: start=0, step=1, limit=1
          $region71: #{down_forward.1} parent=62 // loop_pre_header
            _
          $region72: #{down_forward.1} parent=62 // loop_header
            %s493 = sphi 0, %s497
            %p494 = scmp.ge.s32.totalorder %s493, 1
            %s498 = sphi %s383, %s383
            %s499 = sphi %s385, %s385
          $region73: #{down_forward.1} parent=62 // loop_header_branch
            %496 = sbr.rel (%p494) target = $region77
          $region74: #{down_forward.1} parent=62 // loop_body
            %v500 = vld [vmem:[%s498] sm:%s491]
            %501 = vst [vmem:[%s499] sm:%s491] %v500
            %v502 = vld [vmem:[%s498 + $0x10] sm:%s491]
            %503 = vst [vmem:[%s499 + $0x10] sm:%s491] %v502
            %v504 = vld [vmem:[%s498 + $0x20] sm:%s491]
            %505 = vst [vmem:[%s499 + $0x20] sm:%s491] %v504
            %v506 = vld [vmem:[%s498 + $0x30] sm:%s491]
            %507 = vst [vmem:[%s499 + $0x30] sm:%s491] %v506
            %v508 = vld [vmem:[%s498 + $0x40] sm:%s491]
            %509 = vst [vmem:[%s499 + $0x40] sm:%s491] %v508
            %v510 = vld [vmem:[%s498 + $0x50] sm:%s491]
            %511 = vst [vmem:[%s499 + $0x50] sm:%s491] %v510
            %v512 = vld [vmem:[%s498 + $0x60] sm:%s491]
            %513 = vst [vmem:[%s499 + $0x60] sm:%s491] %v512
            %v514 = vld [vmem:[%s498 + $0x70] sm:%s491]
            %515 = vst [vmem:[%s499 + $0x70] sm:%s491] %v514
            %v516 = vld [vmem:[%s498 + $0x80] sm:%s491]
            %517 = vst [vmem:[%s499 + $0x80] sm:%s491] %v516
            %v518 = vld [vmem:[%s498 + $0x90] sm:%s491]
            %519 = vst [vmem:[%s499 + $0x90] sm:%s491] %v518
            %v520 = vld [vmem:[%s498 + $0xa0] sm:%s491]
            %521 = vst [vmem:[%s499 + $0xa0] sm:%s491] %v520
            %v522 = vld [vmem:[%s498 + $0xb0] sm:%s491]
            %523 = vst [vmem:[%s499 + $0xb0] sm:%s491] %v522
            %v524 = vld [vmem:[%s498 + $0xc0] sm:%s491]
            %525 = vst [vmem:[%s499 + $0xc0] sm:%s491] %v524
            %v526 = vld [vmem:[%s498 + $0xd0] sm:%s491]
            %527 = vst [vmem:[%s499 + $0xd0] sm:%s491] %v526
            %v528 = vld [vmem:[%s498 + $0xe0] sm:%s491]
            %529 = vst [vmem:[%s499 + $0xe0] sm:%s491] %v528
            %v530 = vld [vmem:[%s498 + $0xf0] sm:%s491]
            %531 = vst [vmem:[%s499 + $0xf0] sm:%s491] %v530
            %v532 = vld [vmem:[%s498 + $0x100] sm:%s491]
            %533 = vst [vmem:[%s499 + $0x100] sm:%s491] %v532
            %v534 = vld [vmem:[%s498 + $0x110] sm:%s491]
            %535 = vst [vmem:[%s499 + $0x110] sm:%s491] %v534
            %v536 = vld [vmem:[%s498 + $0x120] sm:%s491]
            %537 = vst [vmem:[%s499 + $0x120] sm:%s491] %v536
            %v538 = vld [vmem:[%s498 + $0x130] sm:%s491]
            %539 = vst [vmem:[%s499 + $0x130] sm:%s491] %v538
            %v540 = vld [vmem:[%s498 + $0x140] sm:%s491]
            %541 = vst [vmem:[%s499 + $0x140] sm:%s491] %v540
            %v542 = vld [vmem:[%s498 + $0x150] sm:%s491]
            %543 = vst [vmem:[%s499 + $0x150] sm:%s491] %v542
            %v544 = vld [vmem:[%s498 + $0x160] sm:%s491]
            %545 = vst [vmem:[%s499 + $0x160] sm:%s491] %v544
            %v546 = vld [vmem:[%s498 + $0x170] sm:%s491]
            %547 = vst [vmem:[%s499 + $0x170] sm:%s491] %v546
            %v548 = vld [vmem:[%s498 + $0x180] sm:%s491]
            %549 = vst [vmem:[%s499 + $0x180] sm:%s491] %v548
            %v550 = vld [vmem:[%s498 + $0x190] sm:%s491]
            %551 = vst [vmem:[%s499 + $0x190] sm:%s491] %v550
            %v552 = vld [vmem:[%s498 + $0x1a0] sm:%s491]
            %553 = vst [vmem:[%s499 + $0x1a0] sm:%s491] %v552
            %v554 = vld [vmem:[%s498 + $0x1b0] sm:%s491]
            %555 = vst [vmem:[%s499 + $0x1b0] sm:%s491] %v554
            %v556 = vld [vmem:[%s498 + $0x1c0] sm:%s491]
            %557 = vst [vmem:[%s499 + $0x1c0] sm:%s491] %v556
            %v558 = vld [vmem:[%s498 + $0x1d0] sm:%s491]
            %559 = vst [vmem:[%s499 + $0x1d0] sm:%s491] %v558
            %v560 = vld [vmem:[%s498 + $0x1e0] sm:%s491]
            %561 = vst [vmem:[%s499 + $0x1e0] sm:%s491] %v560
            %v562 = vld [vmem:[%s498 + $0x1f0] sm:%s491]
            %563 = vst [vmem:[%s499 + $0x1f0] sm:%s491] %v562
            %v564 = vld [vmem:[%s498 + $0x200] sm:%s491]
            %565 = vst [vmem:[%s499 + $0x200] sm:%s491] %v564
            %v566 = vld [vmem:[%s498 + $0x210] sm:%s491]
            %567 = vst [vmem:[%s499 + $0x210] sm:%s491] %v566
            %v568 = vld [vmem:[%s498 + $0x220] sm:%s491]
            %569 = vst [vmem:[%s499 + $0x220] sm:%s491] %v568
            %v570 = vld [vmem:[%s498 + $0x230] sm:%s491]
            %571 = vst [vmem:[%s499 + $0x230] sm:%s491] %v570
            %v572 = vld [vmem:[%s498 + $0x240] sm:%s491]
            %573 = vst [vmem:[%s499 + $0x240] sm:%s491] %v572
            %v574 = vld [vmem:[%s498 + $0x250] sm:%s491]
            %575 = vst [vmem:[%s499 + $0x250] sm:%s491] %v574
            %v576 = vld [vmem:[%s498 + $0x260] sm:%s491]
            %577 = vst [vmem:[%s499 + $0x260] sm:%s491] %v576
            %v578 = vld [vmem:[%s498 + $0x270] sm:%s491]
            %579 = vst [vmem:[%s499 + $0x270] sm:%s491] %v578
            %v580 = vld [vmem:[%s498 + $0x280] sm:%s491]
            %581 = vst [vmem:[%s499 + $0x280] sm:%s491] %v580
            %v582 = vld [vmem:[%s498 + $0x290] sm:%s491]
            %583 = vst [vmem:[%s499 + $0x290] sm:%s491] %v582
            %v584 = vld [vmem:[%s498 + $0x2a0] sm:%s491]
            %585 = vst [vmem:[%s499 + $0x2a0] sm:%s491] %v584
            %v586 = vld [vmem:[%s498 + $0x2b0] sm:%s491]
            %587 = vst [vmem:[%s499 + $0x2b0] sm:%s491] %v586
            %v588 = vld [vmem:[%s498 + $0x2c0] sm:%s491]
            %589 = vst [vmem:[%s499 + $0x2c0] sm:%s491] %v588
            %v590 = vld [vmem:[%s498 + $0x2d0] sm:%s491]
            %591 = vst [vmem:[%s499 + $0x2d0] sm:%s491] %v590
            %v592 = vld [vmem:[%s498 + $0x2e0] sm:%s491]
            %593 = vst [vmem:[%s499 + $0x2e0] sm:%s491] %v592
            %v594 = vld [vmem:[%s498 + $0x2f0] sm:%s491]
            %595 = vst [vmem:[%s499 + $0x2f0] sm:%s491] %v594
          $region75: #{down_forward.1} parent=62 // loop_footer
            %s497 = sadd.s32 1, %s493
          $region76: #{down_forward.1} parent=62 // loop_footer_branch
            %492 = sbr.rel target = $region72
          $region77: #{down_forward.1} parent=62 // loop_exit
            _
        $region63: #{down_forward.1} parent=47 // pred_fallthru
          _
      $region48: #{down_forward.1} parent=43 // pred_fallthru
        _
      // Predicated region
      $region49: #{down_forward.1} parent=43 // pred_check
        %p267 = pneg %p263
      $region50: #{down_forward.1} parent=43 // pred_check_branch
        %269 = sbr.rel (%p267) target = $region52
      $region51: #{down_forward.1} parent=43 // pred_region
        %s270 = sshll.u32 1, 12
        %s271 = ssub.s32 %s270, 1
        loop: start=0, step=1, limit=1
        $region53: #{down_forward.1} parent=51 // loop_pre_header
          _
        $region54: #{down_forward.1} parent=51 // loop_header
          %s273 = sphi 0, %s277
          %p274 = scmp.ge.s32.totalorder %s273, 1
          %s278 = sphi %s261, %s261
          %s279 = sphi [#allocation2], [#allocation2]
        $region55: #{down_forward.1} parent=51 // loop_header_branch
          %276 = sbr.rel (%p274) target = $region59
        $region56: #{down_forward.1} parent=51 // loop_body
          %v280 = vld [vmem:[%s278] sm:%s271]
          %281 = vst [vmem:[%s279] sm:%s271] %v280
          %v282 = vld [vmem:[%s278 + $0x10] sm:%s271]
          %283 = vst [vmem:[%s279 + $0x10] sm:%s271] %v282
          %v284 = vld [vmem:[%s278 + $0x20] sm:%s271]
          %285 = vst [vmem:[%s279 + $0x20] sm:%s271] %v284
          %v286 = vld [vmem:[%s278 + $0x30] sm:%s271]
          %287 = vst [vmem:[%s279 + $0x30] sm:%s271] %v286
          %v288 = vld [vmem:[%s278 + $0x40] sm:%s271]
          %289 = vst [vmem:[%s279 + $0x40] sm:%s271] %v288
          %v290 = vld [vmem:[%s278 + $0x50] sm:%s271]
          %291 = vst [vmem:[%s279 + $0x50] sm:%s271] %v290
          %v292 = vld [vmem:[%s278 + $0x60] sm:%s271]
          %293 = vst [vmem:[%s279 + $0x60] sm:%s271] %v292
          %v294 = vld [vmem:[%s278 + $0x70] sm:%s271]
          %295 = vst [vmem:[%s279 + $0x70] sm:%s271] %v294
          %v296 = vld [vmem:[%s278 + $0x80] sm:%s271]
          %297 = vst [vmem:[%s279 + $0x80] sm:%s271] %v296
          %v298 = vld [vmem:[%s278 + $0x90] sm:%s271]
          %299 = vst [vmem:[%s279 + $0x90] sm:%s271] %v298
          %v300 = vld [vmem:[%s278 + $0xa0] sm:%s271]
          %301 = vst [vmem:[%s279 + $0xa0] sm:%s271] %v300
          %v302 = vld [vmem:[%s278 + $0xb0] sm:%s271]
          %303 = vst [vmem:[%s279 + $0xb0] sm:%s271] %v302
          %v304 = vld [vmem:[%s278 + $0xc0] sm:%s271]
          %305 = vst [vmem:[%s279 + $0xc0] sm:%s271] %v304
          %v306 = vld [vmem:[%s278 + $0xd0] sm:%s271]
          %307 = vst [vmem:[%s279 + $0xd0] sm:%s271] %v306
          %v308 = vld [vmem:[%s278 + $0xe0] sm:%s271]
          %309 = vst [vmem:[%s279 + $0xe0] sm:%s271] %v308
          %v310 = vld [vmem:[%s278 + $0xf0] sm:%s271]
          %311 = vst [vmem:[%s279 + $0xf0] sm:%s271] %v310
          %v312 = vld [vmem:[%s278 + $0x100] sm:%s271]
          %313 = vst [vmem:[%s279 + $0x100] sm:%s271] %v312
          %v314 = vld [vmem:[%s278 + $0x110] sm:%s271]
          %315 = vst [vmem:[%s279 + $0x110] sm:%s271] %v314
          %v316 = vld [vmem:[%s278 + $0x120] sm:%s271]
          %317 = vst [vmem:[%s279 + $0x120] sm:%s271] %v316
          %v318 = vld [vmem:[%s278 + $0x130] sm:%s271]
          %319 = vst [vmem:[%s279 + $0x130] sm:%s271] %v318
          %v320 = vld [vmem:[%s278 + $0x140] sm:%s271]
          %321 = vst [vmem:[%s279 + $0x140] sm:%s271] %v320
          %v322 = vld [vmem:[%s278 + $0x150] sm:%s271]
          %323 = vst [vmem:[%s279 + $0x150] sm:%s271] %v322
          %v324 = vld [vmem:[%s278 + $0x160] sm:%s271]
          %325 = vst [vmem:[%s279 + $0x160] sm:%s271] %v324
          %v326 = vld [vmem:[%s278 + $0x170] sm:%s271]
          %327 = vst [vmem:[%s279 + $0x170] sm:%s271] %v326
          %v328 = vld [vmem:[%s278 + $0x180] sm:%s271]
          %329 = vst [vmem:[%s279 + $0x180] sm:%s271] %v328
          %v330 = vld [vmem:[%s278 + $0x190] sm:%s271]
          %331 = vst [vmem:[%s279 + $0x190] sm:%s271] %v330
          %v332 = vld [vmem:[%s278 + $0x1a0] sm:%s271]
          %333 = vst [vmem:[%s279 + $0x1a0] sm:%s271] %v332
          %v334 = vld [vmem:[%s278 + $0x1b0] sm:%s271]
          %335 = vst [vmem:[%s279 + $0x1b0] sm:%s271] %v334
          %v336 = vld [vmem:[%s278 + $0x1c0] sm:%s271]
          %337 = vst [vmem:[%s279 + $0x1c0] sm:%s271] %v336
          %v338 = vld [vmem:[%s278 + $0x1d0] sm:%s271]
          %339 = vst [vmem:[%s279 + $0x1d0] sm:%s271] %v338
          %v340 = vld [vmem:[%s278 + $0x1e0] sm:%s271]
          %341 = vst [vmem:[%s279 + $0x1e0] sm:%s271] %v340
          %v342 = vld [vmem:[%s278 + $0x1f0] sm:%s271]
          %343 = vst [vmem:[%s279 + $0x1f0] sm:%s271] %v342
          %v344 = vld [vmem:[%s278 + $0x200] sm:%s271]
          %345 = vst [vmem:[%s279 + $0x200] sm:%s271] %v344
          %v346 = vld [vmem:[%s278 + $0x210] sm:%s271]
          %347 = vst [vmem:[%s279 + $0x210] sm:%s271] %v346
          %v348 = vld [vmem:[%s278 + $0x220] sm:%s271]
          %349 = vst [vmem:[%s279 + $0x220] sm:%s271] %v348
          %v350 = vld [vmem:[%s278 + $0x230] sm:%s271]
          %351 = vst [vmem:[%s279 + $0x230] sm:%s271] %v350
          %v352 = vld [vmem:[%s278 + $0x240] sm:%s271]
          %353 = vst [vmem:[%s279 + $0x240] sm:%s271] %v352
          %v354 = vld [vmem:[%s278 + $0x250] sm:%s271]
          %355 = vst [vmem:[%s279 + $0x250] sm:%s271] %v354
          %v356 = vld [vmem:[%s278 + $0x260] sm:%s271]
          %357 = vst [vmem:[%s279 + $0x260] sm:%s271] %v356
          %v358 = vld [vmem:[%s278 + $0x270] sm:%s271]
          %359 = vst [vmem:[%s279 + $0x270] sm:%s271] %v358
          %v360 = vld [vmem:[%s278 + $0x280] sm:%s271]
          %361 = vst [vmem:[%s279 + $0x280] sm:%s271] %v360
          %v362 = vld [vmem:[%s278 + $0x290] sm:%s271]
          %363 = vst [vmem:[%s279 + $0x290] sm:%s271] %v362
          %v364 = vld [vmem:[%s278 + $0x2a0] sm:%s271]
          %365 = vst [vmem:[%s279 + $0x2a0] sm:%s271] %v364
          %v366 = vld [vmem:[%s278 + $0x2b0] sm:%s271]
          %367 = vst [vmem:[%s279 + $0x2b0] sm:%s271] %v366
          %v368 = vld [vmem:[%s278 + $0x2c0] sm:%s271]
          %369 = vst [vmem:[%s279 + $0x2c0] sm:%s271] %v368
          %v370 = vld [vmem:[%s278 + $0x2d0] sm:%s271]
          %371 = vst [vmem:[%s279 + $0x2d0] sm:%s271] %v370
          %v372 = vld [vmem:[%s278 + $0x2e0] sm:%s271]
          %373 = vst [vmem:[%s279 + $0x2e0] sm:%s271] %v372
          %v374 = vld [vmem:[%s278 + $0x2f0] sm:%s271]
          %375 = vst [vmem:[%s279 + $0x2f0] sm:%s271] %v374
        $region57: #{down_forward.1} parent=51 // loop_footer
          %s277 = sadd.s32 1, %s273
        $region58: #{down_forward.1} parent=51 // loop_footer_branch
          %272 = sbr.rel target = $region54
        $region59: #{down_forward.1} parent=51 // loop_exit
          _
      $region52: #{down_forward.1} parent=43 // pred_fallthru
        _
      // Predicated region
      $region78: #{down_forward.1} parent=43 // pred_check
        _
      $region79: #{down_forward.1} parent=43 // pred_check_branch
        %598 = sbr.rel (0) target = $region81
      $region80: #{down_forward.1} parent=43 // pred_region
        %599 = vsyncadd [#allocation5], 9216
      $region81: #{down_forward.1} parent=43 // pred_fallthru
        _
      %s600 = smul.u32 4, 12
      %s601 = smul.u32 %s600, 12
      %s602 = smul.u32 %s601, 1
      %s603 = sshll.u32 %s602, 4
      %604 = dma.done [#allocation5], %s603
      %v605 = vld [vmem:[#allocation2] sm:$0xff]
      %v606 = vld [vmem:[#allocation2 + $0x8] sm:$0xf]
      %v607 = vld [vmem:[#allocation2 + $0x10] sm:$0xff]
      %v608 = vld [vmem:[#allocation2 + $0x18] sm:$0xf]
      %v609 = vld [vmem:[#allocation2 + $0x20] sm:$0xff]
      %v610 = vld [vmem:[#allocation2 + $0x28] sm:$0xf]
      %v611 = vld [vmem:[#allocation2 + $0x30] sm:$0xff]
      %v612 = vld [vmem:[#allocation2 + $0x38] sm:$0xf]
      %v613 = vld [vmem:[#allocation2 + $0x40] sm:$0xff]
      %v614 = vld [vmem:[#allocation2 + $0x48] sm:$0xf]
      %v615 = vld [vmem:[#allocation2 + $0x50] sm:$0xff]
      %v616 = vld [vmem:[#allocation2 + $0x58] sm:$0xf]
      %v617 = vld [vmem:[#allocation2 + $0x60] sm:$0xff]
      %v618 = vld [vmem:[#allocation2 + $0x68] sm:$0xf]
      %v619 = vld [vmem:[#allocation2 + $0x70] sm:$0xff]
      %v620 = vld [vmem:[#allocation2 + $0x78] sm:$0xf]
      %v621 = vld [vmem:[#allocation2 + $0x80] sm:$0xff]
      %v622 = vld [vmem:[#allocation2 + $0x88] sm:$0xf]
      %v623 = vld [vmem:[#allocation2 + $0x90] sm:$0xff]
      %v624 = vld [vmem:[#allocation2 + $0x98] sm:$0xf]
      %v625 = vld [vmem:[#allocation2 + $0xa0] sm:$0xff]
      %v626 = vld [vmem:[#allocation2 + $0xa8] sm:$0xf]
      %v627 = vld [vmem:[#allocation2 + $0xb0] sm:$0xff]
      %v628 = vld [vmem:[#allocation2 + $0xb8] sm:$0xf]
      %s629 = scalar_lea.vmem [#allocation2], 192
      %v630 = vld [vmem:[%s629] sm:$0xff]
      %v631 = vld [vmem:[%s629 + $0x8] sm:$0xf]
      %v632 = vld [vmem:[%s629 + $0x10] sm:$0xff]
      %v633 = vld [vmem:[%s629 + $0x18] sm:$0xf]
      %v634 = vld [vmem:[%s629 + $0x20] sm:$0xff]
      %v635 = vld [vmem:[%s629 + $0x28] sm:$0xf]
      %v636 = vld [vmem:[%s629 + $0x30] sm:$0xff]
      %v637 = vld [vmem:[%s629 + $0x38] sm:$0xf]
      %v638 = vld [vmem:[%s629 + $0x40] sm:$0xff]
      %v639 = vld [vmem:[%s629 + $0x48] sm:$0xf]
      %v640 = vld [vmem:[%s629 + $0x50] sm:$0xff]
      %v641 = vld [vmem:[%s629 + $0x58] sm:$0xf]
      %v642 = vld [vmem:[%s629 + $0x60] sm:$0xff]
      %v643 = vld [vmem:[%s629 + $0x68] sm:$0xf]
      %v644 = vld [vmem:[%s629 + $0x70] sm:$0xff]
      %v645 = vld [vmem:[%s629 + $0x78] sm:$0xf]
      %v646 = vld [vmem:[%s629 + $0x80] sm:$0xff]
      %v647 = vld [vmem:[%s629 + $0x88] sm:$0xf]
      %v648 = vld [vmem:[%s629 + $0x90] sm:$0xff]
      %v649 = vld [vmem:[%s629 + $0x98] sm:$0xf]
      %v650 = vld [vmem:[%s629 + $0xa0] sm:$0xff]
      %v651 = vld [vmem:[%s629 + $0xa8] sm:$0xf]
      %v652 = vld [vmem:[%s629 + $0xb0] sm:$0xff]
      %v653 = vld [vmem:[%s629 + $0xb8] sm:$0xf]
      %v654 = vmax.f32 %v605, %v630
      %v655 = vmax.f32 %v606, %v631
      %v656 = vmax.f32 %v607, %v632
      %v657 = vmax.f32 %v608, %v633
      %v658 = vmax.f32 %v609, %v634
      %v659 = vmax.f32 %v610, %v635
      %v660 = vmax.f32 %v611, %v636
      %v661 = vmax.f32 %v612, %v637
      %v662 = vmax.f32 %v613, %v638
      %v663 = vmax.f32 %v614, %v639
      %v664 = vmax.f32 %v615, %v640
      %v665 = vmax.f32 %v616, %v641
      %v666 = vmax.f32 %v617, %v642
      %v667 = vmax.f32 %v618, %v643
      %v668 = vmax.f32 %v619, %v644
      %v669 = vmax.f32 %v620, %v645
      %v670 = vmax.f32 %v621, %v646
      %v671 = vmax.f32 %v622, %v647
      %v672 = vmax.f32 %v623, %v648
      %v673 = vmax.f32 %v624, %v649
      %v674 = vmax.f32 %v625, %v650
      %v675 = vmax.f32 %v626, %v651
      %v676 = vmax.f32 %v627, %v652
      %v677 = vmax.f32 %v628, %v653
      %s678 = scalar_lea.vmem [#allocation2], 384
      %v679 = vld [vmem:[%s678] sm:$0xff]
      %v680 = vld [vmem:[%s678 + $0x8] sm:$0xf]
      %v681 = vld [vmem:[%s678 + $0x10] sm:$0xff]
      %v682 = vld [vmem:[%s678 + $0x18] sm:$0xf]
      %v683 = vld [vmem:[%s678 + $0x20] sm:$0xff]
      %v684 = vld [vmem:[%s678 + $0x28] sm:$0xf]
      %v685 = vld [vmem:[%s678 + $0x30] sm:$0xff]
      %v686 = vld [vmem:[%s678 + $0x38] sm:$0xf]
      %v687 = vld [vmem:[%s678 + $0x40] sm:$0xff]
      %v688 = vld [vmem:[%s678 + $0x48] sm:$0xf]
      %v689 = vld [vmem:[%s678 + $0x50] sm:$0xff]
      %v690 = vld [vmem:[%s678 + $0x58] sm:$0xf]
      %v691 = vld [vmem:[%s678 + $0x60] sm:$0xff]
      %v692 = vld [vmem:[%s678 + $0x68] sm:$0xf]
      %v693 = vld [vmem:[%s678 + $0x70] sm:$0xff]
      %v694 = vld [vmem:[%s678 + $0x78] sm:$0xf]
      %v695 = vld [vmem:[%s678 + $0x80] sm:$0xff]
      %v696 = vld [vmem:[%s678 + $0x88] sm:$0xf]
      %v697 = vld [vmem:[%s678 + $0x90] sm:$0xff]
      %v698 = vld [vmem:[%s678 + $0x98] sm:$0xf]
      %v699 = vld [vmem:[%s678 + $0xa0] sm:$0xff]
      %v700 = vld [vmem:[%s678 + $0xa8] sm:$0xf]
      %v701 = vld [vmem:[%s678 + $0xb0] sm:$0xff]
      %v702 = vld [vmem:[%s678 + $0xb8] sm:$0xf]
      %s703 = scalar_lea.vmem [#allocation2], 576
      %v704 = vld [vmem:[%s703] sm:$0xff]
      %v705 = vld [vmem:[%s703 + $0x8] sm:$0xf]
      %v706 = vld [vmem:[%s703 + $0x10] sm:$0xff]
      %v707 = vld [vmem:[%s703 + $0x18] sm:$0xf]
      %v708 = vld [vmem:[%s703 + $0x20] sm:$0xff]
      %v709 = vld [vmem:[%s703 + $0x28] sm:$0xf]
      %v710 = vld [vmem:[%s703 + $0x30] sm:$0xff]
      %v711 = vld [vmem:[%s703 + $0x38] sm:$0xf]
      %v712 = vld [vmem:[%s703 + $0x40] sm:$0xff]
      %v713 = vld [vmem:[%s703 + $0x48] sm:$0xf]
      %v714 = vld [vmem:[%s703 + $0x50] sm:$0xff]
      %v715 = vld [vmem:[%s703 + $0x58] sm:$0xf]
      %v716 = vld [vmem:[%s703 + $0x60] sm:$0xff]
      %v717 = vld [vmem:[%s703 + $0x68] sm:$0xf]
      %v718 = vld [vmem:[%s703 + $0x70] sm:$0xff]
      %v719 = vld [vmem:[%s703 + $0x78] sm:$0xf]
      %v720 = vld [vmem:[%s703 + $0x80] sm:$0xff]
      %v721 = vld [vmem:[%s703 + $0x88] sm:$0xf]
      %v722 = vld [vmem:[%s703 + $0x90] sm:$0xff]
      %v723 = vld [vmem:[%s703 + $0x98] sm:$0xf]
      %v724 = vld [vmem:[%s703 + $0xa0] sm:$0xff]
      %v725 = vld [vmem:[%s703 + $0xa8] sm:$0xf]
      %v726 = vld [vmem:[%s703 + $0xb0] sm:$0xff]
      %v727 = vld [vmem:[%s703 + $0xb8] sm:$0xf]
      %v728 = vmax.f32 %v679, %v704
      %v729 = vmax.f32 %v680, %v705
      %v730 = vmax.f32 %v681, %v706
      %v731 = vmax.f32 %v682, %v707
      %v732 = vmax.f32 %v683, %v708
      %v733 = vmax.f32 %v684, %v709
      %v734 = vmax.f32 %v685, %v710
      %v735 = vmax.f32 %v686, %v711
      %v736 = vmax.f32 %v687, %v712
      %v737 = vmax.f32 %v688, %v713
      %v738 = vmax.f32 %v689, %v714
      %v739 = vmax.f32 %v690, %v715
      %v740 = vmax.f32 %v691, %v716
      %v741 = vmax.f32 %v692, %v717
      %v742 = vmax.f32 %v693, %v718
      %v743 = vmax.f32 %v694, %v719
      %v744 = vmax.f32 %v695, %v720
      %v745 = vmax.f32 %v696, %v721
      %v746 = vmax.f32 %v697, %v722
      %v747 = vmax.f32 %v698, %v723
      %v748 = vmax.f32 %v699, %v724
      %v749 = vmax.f32 %v700, %v725
      %v750 = vmax.f32 %v701, %v726
      %v751 = vmax.f32 %v702, %v727
      %v752 = vmax.f32 %v654, %v728
      %v753 = vmax.f32 %v655, %v729
      %v754 = vmax.f32 %v656, %v730
      %v755 = vmax.f32 %v657, %v731
      %v756 = vmax.f32 %v658, %v732
      %v757 = vmax.f32 %v659, %v733
      %v758 = vmax.f32 %v660, %v734
      %v759 = vmax.f32 %v661, %v735
      %v760 = vmax.f32 %v662, %v736
      %v761 = vmax.f32 %v663, %v737
      %v762 = vmax.f32 %v664, %v738
      %v763 = vmax.f32 %v665, %v739
      %v764 = vmax.f32 %v666, %v740
      %v765 = vmax.f32 %v667, %v741
      %v766 = vmax.f32 %v668, %v742
      %v767 = vmax.f32 %v669, %v743
      %v768 = vmax.f32 %v670, %v744
      %v769 = vmax.f32 %v671, %v745
      %v770 = vmax.f32 %v672, %v746
      %v771 = vmax.f32 %v673, %v747
      %v772 = vmax.f32 %v674, %v748
      %v773 = vmax.f32 %v675, %v749
      %v774 = vmax.f32 %v676, %v750
      %v775 = vmax.f32 %v677, %v751
      %776 = vst [vmem:[#allocation3] sm:$0xff] %v752
      %777 = vst [vmem:[#allocation3 + $0x8] sm:$0xf] %v753
      %778 = vst [vmem:[#allocation3 + $0x10] sm:$0xff] %v754
      %779 = vst [vmem:[#allocation3 + $0x18] sm:$0xf] %v755
      %780 = vst [vmem:[#allocation3 + $0x20] sm:$0xff] %v756
      %781 = vst [vmem:[#allocation3 + $0x28] sm:$0xf] %v757
      %782 = vst [vmem:[#allocation3 + $0x30] sm:$0xff] %v758
      %783 = vst [vmem:[#allocation3 + $0x38] sm:$0xf] %v759
      %784 = vst [vmem:[#allocation3 + $0x40] sm:$0xff] %v760
      %785 = vst [vmem:[#allocation3 + $0x48] sm:$0xf] %v761
      %786 = vst [vmem:[#allocation3 + $0x50] sm:$0xff] %v762
      %787 = vst [vmem:[#allocation3 + $0x58] sm:$0xf] %v763
      %788 = vst [vmem:[#allocation3 + $0x60] sm:$0xff] %v764
      %789 = vst [vmem:[#allocation3 + $0x68] sm:$0xf] %v765
      %790 = vst [vmem:[#allocation3 + $0x70] sm:$0xff] %v766
      %791 = vst [vmem:[#allocation3 + $0x78] sm:$0xf] %v767
      %792 = vst [vmem:[#allocation3 + $0x80] sm:$0xff] %v768
      %793 = vst [vmem:[#allocation3 + $0x88] sm:$0xf] %v769
      %794 = vst [vmem:[#allocation3 + $0x90] sm:$0xff] %v770
      %795 = vst [vmem:[#allocation3 + $0x98] sm:$0xf] %v771
      %796 = vst [vmem:[#allocation3 + $0xa0] sm:$0xff] %v772
      %797 = vst [vmem:[#allocation3 + $0xa8] sm:$0xf] %v773
      %798 = vst [vmem:[#allocation3 + $0xb0] sm:$0xff] %v774
      %799 = vst [vmem:[#allocation3 + $0xb8] sm:$0xf] %v775
      %v800 = vld [vmem:[#allocation3] sm:$0xff]
      %v801 = vld [vmem:[#allocation3 + $0x8] sm:$0x3]
      %v802 = vld [vmem:[#allocation3 + $0x10] sm:$0xff]
      %v803 = vld [vmem:[#allocation3 + $0x18] sm:$0x3]
      %v804 = vld [vmem:[#allocation3 + $0x20] sm:$0xff]
      %v805 = vld [vmem:[#allocation3 + $0x28] sm:$0x3]
      %v806 = vld [vmem:[#allocation3 + $0x30] sm:$0xff]
      %v807 = vld [vmem:[#allocation3 + $0x38] sm:$0x3]
      %v808 = vld [vmem:[#allocation3 + $0x40] sm:$0xff]
      %v809 = vld [vmem:[#allocation3 + $0x48] sm:$0x3]
      %v810 = vld [vmem:[#allocation3 + $0x50] sm:$0xff]
      %v811 = vld [vmem:[#allocation3 + $0x58] sm:$0x3]
      %v812 = vld [vmem:[#allocation3 + $0x60] sm:$0xff]
      %v813 = vld [vmem:[#allocation3 + $0x68] sm:$0x3]
      %v814 = vld [vmem:[#allocation3 + $0x70] sm:$0xff]
      %v815 = vld [vmem:[#allocation3 + $0x78] sm:$0x3]
      %v816 = vld [vmem:[#allocation3 + $0x80] sm:$0xff]
      %v817 = vld [vmem:[#allocation3 + $0x88] sm:$0x3]
      %v818 = vld [vmem:[#allocation3 + $0x90] sm:$0xff]
      %v819 = vld [vmem:[#allocation3 + $0x98] sm:$0x3]
      %v840 = vcombine.high %v800, %v800
      %v842 = vunpack.c.l.s4 1983009808
      %v843 = vunpack.c.0.s8 %v842
      %v844 = vlaneseq
      %v845 = vshrl.u32 %v844, 7
      %v846 = vsub.s32 %v843, %v845
      %v847 = vrot.slane %v800, %v846
      %v849 = vunpack.c.l.s4 1983009808
      %v850 = vunpack.c.0.s8 %v849
      %v851 = vlaneseq
      %v852 = vshrl.u32 %v851, 7
      %v853 = vsub.s32 %v850, %v852
      %v854 = vrot.slane %v840, %v853
      %v855 = vcombine.high %v847, %v847
      %v856 = vcombine.high %v854, %v854
      %v858 = vunpack.c.l.s4 1983009808
      %v859 = vunpack.c.0.s8 %v858
      %v860 = vlaneseq
      %v861 = vshrl.u32 %v860, 7
      %v862 = vsub.s32 %v859, %v861
      %v863 = vrot.slane %v801, %v862
      %v864 = vcombine.high %v802, %v802
      %v866 = vunpack.c.l.s4 1983009808
      %v867 = vunpack.c.0.s8 %v866
      %v868 = vlaneseq
      %v869 = vshrl.u32 %v868, 7
      %v870 = vsub.s32 %v867, %v869
      %v871 = vrot.slane %v802, %v870
      %v873 = vunpack.c.l.s4 1983009808
      %v874 = vunpack.c.0.s8 %v873
      %v875 = vlaneseq
      %v876 = vshrl.u32 %v875, 7
      %v877 = vsub.s32 %v874, %v876
      %v878 = vrot.slane %v864, %v877
      %v879 = vcombine.high %v871, %v871
      %v880 = vcombine.high %v878, %v878
      %v882 = vunpack.c.l.s4 1983009808
      %v883 = vunpack.c.0.s8 %v882
      %v884 = vlaneseq
      %v885 = vshrl.u32 %v884, 7
      %v886 = vsub.s32 %v883, %v885
      %v887 = vrot.slane %v803, %v886
      %v888 = vcombine.high %v804, %v804
      %v890 = vunpack.c.l.s4 1983009808
      %v891 = vunpack.c.0.s8 %v890
      %v892 = vlaneseq
      %v893 = vshrl.u32 %v892, 7
      %v894 = vsub.s32 %v891, %v893
      %v895 = vrot.slane %v804, %v894
      %v897 = vunpack.c.l.s4 1983009808
      %v898 = vunpack.c.0.s8 %v897
      %v899 = vlaneseq
      %v900 = vshrl.u32 %v899, 7
      %v901 = vsub.s32 %v898, %v900
      %v902 = vrot.slane %v888, %v901
      %v903 = vcombine.high %v895, %v895
      %v904 = vcombine.high %v902, %v902
      %v906 = vunpack.c.l.s4 1983009808
      %v907 = vunpack.c.0.s8 %v906
      %v908 = vlaneseq
      %v909 = vshrl.u32 %v908, 7
      %v910 = vsub.s32 %v907, %v909
      %v911 = vrot.slane %v805, %v910
      %v912 = vcombine.high %v806, %v806
      %v914 = vunpack.c.l.s4 1983009808
      %v915 = vunpack.c.0.s8 %v914
      %v916 = vlaneseq
      %v917 = vshrl.u32 %v916, 7
      %v918 = vsub.s32 %v915, %v917
      %v919 = vrot.slane %v806, %v918
      %v921 = vunpack.c.l.s4 1983009808
      %v922 = vunpack.c.0.s8 %v921
      %v923 = vlaneseq
      %v924 = vshrl.u32 %v923, 7
      %v925 = vsub.s32 %v922, %v924
      %v926 = vrot.slane %v912, %v925
      %v927 = vcombine.high %v919, %v919
      %v928 = vcombine.high %v926, %v926
      %v930 = vunpack.c.l.s4 1983009808
      %v931 = vunpack.c.0.s8 %v930
      %v932 = vlaneseq
      %v933 = vshrl.u32 %v932, 7
      %v934 = vsub.s32 %v931, %v933
      %v935 = vrot.slane %v807, %v934
      %v936 = vcombine.high %v808, %v808
      %v938 = vunpack.c.l.s4 1983009808
      %v939 = vunpack.c.0.s8 %v938
      %v940 = vlaneseq
      %v941 = vshrl.u32 %v940, 7
      %v942 = vsub.s32 %v939, %v941
      %v943 = vrot.slane %v808, %v942
      %v945 = vunpack.c.l.s4 1983009808
      %v946 = vunpack.c.0.s8 %v945
      %v947 = vlaneseq
      %v948 = vshrl.u32 %v947, 7
      %v949 = vsub.s32 %v946, %v948
      %v950 = vrot.slane %v936, %v949
      %v951 = vcombine.high %v943, %v943
      %v952 = vcombine.high %v950, %v950
      %v954 = vunpack.c.l.s4 1983009808
      %v955 = vunpack.c.0.s8 %v954
      %v956 = vlaneseq
      %v957 = vshrl.u32 %v956, 7
      %v958 = vsub.s32 %v955, %v957
      %v959 = vrot.slane %v809, %v958
      %v960 = vcombine.high %v810, %v810
      %v962 = vunpack.c.l.s4 1983009808
      %v963 = vunpack.c.0.s8 %v962
      %v964 = vlaneseq
      %v965 = vshrl.u32 %v964, 7
      %v966 = vsub.s32 %v963, %v965
      %v967 = vrot.slane %v810, %v966
      %v969 = vunpack.c.l.s4 1983009808
      %v970 = vunpack.c.0.s8 %v969
      %v971 = vlaneseq
      %v972 = vshrl.u32 %v971, 7
      %v973 = vsub.s32 %v970, %v972
      %v974 = vrot.slane %v960, %v973
      %v975 = vcombine.high %v967, %v967
      %v976 = vcombine.high %v974, %v974
      %v978 = vunpack.c.l.s4 1983009808
      %v979 = vunpack.c.0.s8 %v978
      %v980 = vlaneseq
      %v981 = vshrl.u32 %v980, 7
      %v982 = vsub.s32 %v979, %v981
      %v983 = vrot.slane %v811, %v982
      %v984 = vcombine.high %v812, %v812
      %v986 = vunpack.c.l.s4 1983009808
      %v987 = vunpack.c.0.s8 %v986
      %v988 = vlaneseq
      %v989 = vshrl.u32 %v988, 7
      %v990 = vsub.s32 %v987, %v989
      %v991 = vrot.slane %v812, %v990
      %v993 = vunpack.c.l.s4 1983009808
      %v994 = vunpack.c.0.s8 %v993
      %v995 = vlaneseq
      %v996 = vshrl.u32 %v995, 7
      %v997 = vsub.s32 %v994, %v996
      %v998 = vrot.slane %v984, %v997
      %v999 = vcombine.high %v991, %v991
      %v1000 = vcombine.high %v998, %v998
      %v1002 = vunpack.c.l.s4 1983009808
      %v1003 = vunpack.c.0.s8 %v1002
      %v1004 = vlaneseq
      %v1005 = vshrl.u32 %v1004, 7
      %v1006 = vsub.s32 %v1003, %v1005
      %v1007 = vrot.slane %v813, %v1006
      %v1008 = vcombine.high %v814, %v814
      %v1010 = vunpack.c.l.s4 1983009808
      %v1011 = vunpack.c.0.s8 %v1010
      %v1012 = vlaneseq
      %v1013 = vshrl.u32 %v1012, 7
      %v1014 = vsub.s32 %v1011, %v1013
      %v1015 = vrot.slane %v814, %v1014
      %v1017 = vunpack.c.l.s4 1983009808
      %v1018 = vunpack.c.0.s8 %v1017
      %v1019 = vlaneseq
      %v1020 = vshrl.u32 %v1019, 7
      %v1021 = vsub.s32 %v1018, %v1020
      %v1022 = vrot.slane %v1008, %v1021
      %v1023 = vcombine.high %v1015, %v1015
      %v1024 = vcombine.high %v1022, %v1022
      %v1026 = vunpack.c.l.s4 1983009808
      %v1027 = vunpack.c.0.s8 %v1026
      %v1028 = vlaneseq
      %v1029 = vshrl.u32 %v1028, 7
      %v1030 = vsub.s32 %v1027, %v1029
      %v1031 = vrot.slane %v815, %v1030
      %v1032 = vcombine.high %v816, %v816
      %v1034 = vunpack.c.l.s4 1983009808
      %v1035 = vunpack.c.0.s8 %v1034
      %v1036 = vlaneseq
      %v1037 = vshrl.u32 %v1036, 7
      %v1038 = vsub.s32 %v1035, %v1037
      %v1039 = vrot.slane %v816, %v1038
      %v1041 = vunpack.c.l.s4 1983009808
      %v1042 = vunpack.c.0.s8 %v1041
      %v1043 = vlaneseq
      %v1044 = vshrl.u32 %v1043, 7
      %v1045 = vsub.s32 %v1042, %v1044
      %v1046 = vrot.slane %v1032, %v1045
      %v1047 = vcombine.high %v1039, %v1039
      %v1048 = vcombine.high %v1046, %v1046
      %v1050 = vunpack.c.l.s4 1983009808
      %v1051 = vunpack.c.0.s8 %v1050
      %v1052 = vlaneseq
      %v1053 = vshrl.u32 %v1052, 7
      %v1054 = vsub.s32 %v1051, %v1053
      %v1055 = vrot.slane %v817, %v1054
      %v1056 = vcombine.high %v818, %v818
      %v1058 = vunpack.c.l.s4 1983009808
      %v1059 = vunpack.c.0.s8 %v1058
      %v1060 = vlaneseq
      %v1061 = vshrl.u32 %v1060, 7
      %v1062 = vsub.s32 %v1059, %v1061
      %v1063 = vrot.slane %v818, %v1062
      %v1065 = vunpack.c.l.s4 1983009808
      %v1066 = vunpack.c.0.s8 %v1065
      %v1067 = vlaneseq
      %v1068 = vshrl.u32 %v1067, 7
      %v1069 = vsub.s32 %v1066, %v1068
      %v1070 = vrot.slane %v1056, %v1069
      %v1071 = vcombine.high %v1063, %v1063
      %v1072 = vcombine.high %v1070, %v1070
      %v1074 = vunpack.c.l.s4 1983009808
      %v1075 = vunpack.c.0.s8 %v1074
      %v1076 = vlaneseq
      %v1077 = vshrl.u32 %v1076, 7
      %v1078 = vsub.s32 %v1075, %v1077
      %v1079 = vrot.slane %v819, %v1078
      %v1080 = vld [vmem:[%s1] sm:$0xff]
      %v1081 = vld [vmem:[%s1 + $0x8] sm:$0xff]
      %v1082 = vld [vmem:[%s1 + $0x10] sm:$0xff]
      %v1083 = vld [vmem:[%s1 + $0x18] sm:$0xff]
      %v1084 = vld [vmem:[%s1 + $0x20] sm:$0xff]
      %v1085 = vld [vmem:[%s1 + $0x28] sm:$0xff]
      %v1086 = vld [vmem:[%s1 + $0x30] sm:$0xff]
      %v1087 = vld [vmem:[%s1 + $0x38] sm:$0xff]
      %v1088 = vld [vmem:[%s1 + $0x40] sm:$0xff]
      %v1089 = vld [vmem:[%s1 + $0x48] sm:$0xff]
      %v1090 = vld [vmem:[%s1 + $0x50] sm:$0xff]
      %v1091 = vld [vmem:[%s1 + $0x58] sm:$0xff]
      %v1092 = vld [vmem:[%s1 + $0x60] sm:$0xff]
      %v1093 = vld [vmem:[%s1 + $0x68] sm:$0xff]
      %v1094 = vld [vmem:[%s1 + $0x70] sm:$0xff]
      %v1095 = vld [vmem:[%s1 + $0x78] sm:$0xff]
      %v1096 = vld [vmem:[#allocation3 + $0x1] sm:$0xff]
      %v1097 = vld [vmem:[#allocation3 + $0x9] sm:$0x3]
      %v1098 = vld [vmem:[#allocation3 + $0x11] sm:$0xff]
      %v1099 = vld [vmem:[#allocation3 + $0x19] sm:$0x3]
      %v1100 = vld [vmem:[#allocation3 + $0x21] sm:$0xff]
      %v1101 = vld [vmem:[#allocation3 + $0x29] sm:$0x3]
      %v1102 = vld [vmem:[#allocation3 + $0x31] sm:$0xff]
      %v1103 = vld [vmem:[#allocation3 + $0x39] sm:$0x3]
      %v1104 = vld [vmem:[#allocation3 + $0x41] sm:$0xff]
      %v1105 = vld [vmem:[#allocation3 + $0x49] sm:$0x3]
      %v1106 = vld [vmem:[#allocation3 + $0x51] sm:$0xff]
      %v1107 = vld [vmem:[#allocation3 + $0x59] sm:$0x3]
      %v1108 = vld [vmem:[#allocation3 + $0x61] sm:$0xff]
      %v1109 = vld [vmem:[#allocation3 + $0x69] sm:$0x3]
      %v1110 = vld [vmem:[#allocation3 + $0x71] sm:$0xff]
      %v1111 = vld [vmem:[#allocation3 + $0x79] sm:$0x3]
      %v1112 = vld [vmem:[#allocation3 + $0x81] sm:$0xff]
      %v1113 = vld [vmem:[#allocation3 + $0x89] sm:$0x3]
      %v1114 = vld [vmem:[#allocation3 + $0x91] sm:$0xff]
      %v1115 = vld [vmem:[#allocation3 + $0x99] sm:$0x3]
      %v1136 = vcombine.high %v1096, %v1096
      %v1138 = vunpack.c.l.s4 1983009808
      %v1139 = vunpack.c.0.s8 %v1138
      %v1140 = vlaneseq
      %v1141 = vshrl.u32 %v1140, 7
      %v1142 = vsub.s32 %v1139, %v1141
      %v1143 = vrot.slane %v1096, %v1142
      %v1145 = vunpack.c.l.s4 1983009808
      %v1146 = vunpack.c.0.s8 %v1145
      %v1147 = vlaneseq
      %v1148 = vshrl.u32 %v1147, 7
      %v1149 = vsub.s32 %v1146, %v1148
      %v1150 = vrot.slane %v1136, %v1149
      %v1151 = vcombine.high %v1143, %v1143
      %v1152 = vcombine.high %v1150, %v1150
      %v1154 = vunpack.c.l.s4 1983009808
      %v1155 = vunpack.c.0.s8 %v1154
      %v1156 = vlaneseq
      %v1157 = vshrl.u32 %v1156, 7
      %v1158 = vsub.s32 %v1155, %v1157
      %v1159 = vrot.slane %v1097, %v1158
      %v1160 = vcombine.high %v1098, %v1098
      %v1162 = vunpack.c.l.s4 1983009808
      %v1163 = vunpack.c.0.s8 %v1162
      %v1164 = vlaneseq
      %v1165 = vshrl.u32 %v1164, 7
      %v1166 = vsub.s32 %v1163, %v1165
      %v1167 = vrot.slane %v1098, %v1166
      %v1169 = vunpack.c.l.s4 1983009808
      %v1170 = vunpack.c.0.s8 %v1169
      %v1171 = vlaneseq
      %v1172 = vshrl.u32 %v1171, 7
      %v1173 = vsub.s32 %v1170, %v1172
      %v1174 = vrot.slane %v1160, %v1173
      %v1175 = vcombine.high %v1167, %v1167
      %v1176 = vcombine.high %v1174, %v1174
      %v1178 = vunpack.c.l.s4 1983009808
      %v1179 = vunpack.c.0.s8 %v1178
      %v1180 = vlaneseq
      %v1181 = vshrl.u32 %v1180, 7
      %v1182 = vsub.s32 %v1179, %v1181
      %v1183 = vrot.slane %v1099, %v1182
      %v1184 = vcombine.high %v1100, %v1100
      %v1186 = vunpack.c.l.s4 1983009808
      %v1187 = vunpack.c.0.s8 %v1186
      %v1188 = vlaneseq
      %v1189 = vshrl.u32 %v1188, 7
      %v1190 = vsub.s32 %v1187, %v1189
      %v1191 = vrot.slane %v1100, %v1190
      %v1193 = vunpack.c.l.s4 1983009808
      %v1194 = vunpack.c.0.s8 %v1193
      %v1195 = vlaneseq
      %v1196 = vshrl.u32 %v1195, 7
      %v1197 = vsub.s32 %v1194, %v1196
      %v1198 = vrot.slane %v1184, %v1197
      %v1199 = vcombine.high %v1191, %v1191
      %v1200 = vcombine.high %v1198, %v1198
      %v1202 = vunpack.c.l.s4 1983009808
      %v1203 = vunpack.c.0.s8 %v1202
      %v1204 = vlaneseq
      %v1205 = vshrl.u32 %v1204, 7
      %v1206 = vsub.s32 %v1203, %v1205
      %v1207 = vrot.slane %v1101, %v1206
      %v1208 = vcombine.high %v1102, %v1102
      %v1210 = vunpack.c.l.s4 1983009808
      %v1211 = vunpack.c.0.s8 %v1210
      %v1212 = vlaneseq
      %v1213 = vshrl.u32 %v1212, 7
      %v1214 = vsub.s32 %v1211, %v1213
      %v1215 = vrot.slane %v1102, %v1214
      %v1217 = vunpack.c.l.s4 1983009808
      %v1218 = vunpack.c.0.s8 %v1217
      %v1219 = vlaneseq
      %v1220 = vshrl.u32 %v1219, 7
      %v1221 = vsub.s32 %v1218, %v1220
      %v1222 = vrot.slane %v1208, %v1221
      %v1223 = vcombine.high %v1215, %v1215
      %v1224 = vcombine.high %v1222, %v1222
      %v1226 = vunpack.c.l.s4 1983009808
      %v1227 = vunpack.c.0.s8 %v1226
      %v1228 = vlaneseq
      %v1229 = vshrl.u32 %v1228, 7
      %v1230 = vsub.s32 %v1227, %v1229
      %v1231 = vrot.slane %v1103, %v1230
      %v1232 = vcombine.high %v1104, %v1104
      %v1234 = vunpack.c.l.s4 1983009808
      %v1235 = vunpack.c.0.s8 %v1234
      %v1236 = vlaneseq
      %v1237 = vshrl.u32 %v1236, 7
      %v1238 = vsub.s32 %v1235, %v1237
      %v1239 = vrot.slane %v1104, %v1238
      %v1241 = vunpack.c.l.s4 1983009808
      %v1242 = vunpack.c.0.s8 %v1241
      %v1243 = vlaneseq
      %v1244 = vshrl.u32 %v1243, 7
      %v1245 = vsub.s32 %v1242, %v1244
      %v1246 = vrot.slane %v1232, %v1245
      %v1247 = vcombine.high %v1239, %v1239
      %v1248 = vcombine.high %v1246, %v1246
      %v1250 = vunpack.c.l.s4 1983009808
      %v1251 = vunpack.c.0.s8 %v1250
      %v1252 = vlaneseq
      %v1253 = vshrl.u32 %v1252, 7
      %v1254 = vsub.s32 %v1251, %v1253
      %v1255 = vrot.slane %v1105, %v1254
      %v1256 = vcombine.high %v1106, %v1106
      %v1258 = vunpack.c.l.s4 1983009808
      %v1259 = vunpack.c.0.s8 %v1258
      %v1260 = vlaneseq
      %v1261 = vshrl.u32 %v1260, 7
      %v1262 = vsub.s32 %v1259, %v1261
      %v1263 = vrot.slane %v1106, %v1262
      %v1265 = vunpack.c.l.s4 1983009808
      %v1266 = vunpack.c.0.s8 %v1265
      %v1267 = vlaneseq
      %v1268 = vshrl.u32 %v1267, 7
      %v1269 = vsub.s32 %v1266, %v1268
      %v1270 = vrot.slane %v1256, %v1269
      %v1271 = vcombine.high %v1263, %v1263
      %v1272 = vcombine.high %v1270, %v1270
      %v1274 = vunpack.c.l.s4 1983009808
      %v1275 = vunpack.c.0.s8 %v1274
      %v1276 = vlaneseq
      %v1277 = vshrl.u32 %v1276, 7
      %v1278 = vsub.s32 %v1275, %v1277
      %v1279 = vrot.slane %v1107, %v1278
      %v1280 = vcombine.high %v1108, %v1108
      %v1282 = vunpack.c.l.s4 1983009808
      %v1283 = vunpack.c.0.s8 %v1282
      %v1284 = vlaneseq
      %v1285 = vshrl.u32 %v1284, 7
      %v1286 = vsub.s32 %v1283, %v1285
      %v1287 = vrot.slane %v1108, %v1286
      %v1289 = vunpack.c.l.s4 1983009808
      %v1290 = vunpack.c.0.s8 %v1289
      %v1291 = vlaneseq
      %v1292 = vshrl.u32 %v1291, 7
      %v1293 = vsub.s32 %v1290, %v1292
      %v1294 = vrot.slane %v1280, %v1293
      %v1295 = vcombine.high %v1287, %v1287
      %v1296 = vcombine.high %v1294, %v1294
      %v1298 = vunpack.c.l.s4 1983009808
      %v1299 = vunpack.c.0.s8 %v1298
      %v1300 = vlaneseq
      %v1301 = vshrl.u32 %v1300, 7
      %v1302 = vsub.s32 %v1299, %v1301
      %v1303 = vrot.slane %v1109, %v1302
      %v1304 = vcombine.high %v1110, %v1110
      %v1306 = vunpack.c.l.s4 1983009808
      %v1307 = vunpack.c.0.s8 %v1306
      %v1308 = vlaneseq
      %v1309 = vshrl.u32 %v1308, 7
      %v1310 = vsub.s32 %v1307, %v1309
      %v1311 = vrot.slane %v1110, %v1310
      %v1313 = vunpack.c.l.s4 1983009808
      %v1314 = vunpack.c.0.s8 %v1313
      %v1315 = vlaneseq
      %v1316 = vshrl.u32 %v1315, 7
      %v1317 = vsub.s32 %v1314, %v1316
      %v1318 = vrot.slane %v1304, %v1317
      %v1319 = vcombine.high %v1311, %v1311
      %v1320 = vcombine.high %v1318, %v1318
      %v1322 = vunpack.c.l.s4 1983009808
      %v1323 = vunpack.c.0.s8 %v1322
      %v1324 = vlaneseq
      %v1325 = vshrl.u32 %v1324, 7
      %v1326 = vsub.s32 %v1323, %v1325
      %v1327 = vrot.slane %v1111, %v1326
      %v1328 = vcombine.high %v1112, %v1112
      %v1330 = vunpack.c.l.s4 1983009808
      %v1331 = vunpack.c.0.s8 %v1330
      %v1332 = vlaneseq
      %v1333 = vshrl.u32 %v1332, 7
      %v1334 = vsub.s32 %v1331, %v1333
      %v1335 = vrot.slane %v1112, %v1334
      %v1337 = vunpack.c.l.s4 1983009808
      %v1338 = vunpack.c.0.s8 %v1337
      %v1339 = vlaneseq
      %v1340 = vshrl.u32 %v1339, 7
      %v1341 = vsub.s32 %v1338, %v1340
      %v1342 = vrot.slane %v1328, %v1341
      %v1343 = vcombine.high %v1335, %v1335
      %v1344 = vcombine.high %v1342, %v1342
      %v1346 = vunpack.c.l.s4 1983009808
      %v1347 = vunpack.c.0.s8 %v1346
      %v1348 = vlaneseq
      %v1349 = vshrl.u32 %v1348, 7
      %v1350 = vsub.s32 %v1347, %v1349
      %v1351 = vrot.slane %v1113, %v1350
      %v1352 = vcombine.high %v1114, %v1114
      %v1354 = vunpack.c.l.s4 1983009808
      %v1355 = vunpack.c.0.s8 %v1354
      %v1356 = vlaneseq
      %v1357 = vshrl.u32 %v1356, 7
      %v1358 = vsub.s32 %v1355, %v1357
      %v1359 = vrot.slane %v1114, %v1358
      %v1361 = vunpack.c.l.s4 1983009808
      %v1362 = vunpack.c.0.s8 %v1361
      %v1363 = vlaneseq
      %v1364 = vshrl.u32 %v1363, 7
      %v1365 = vsub.s32 %v1362, %v1364
      %v1366 = vrot.slane %v1352, %v1365
      %v1367 = vcombine.high %v1359, %v1359
      %v1368 = vcombine.high %v1366, %v1366
      %v1370 = vunpack.c.l.s4 1983009808
      %v1371 = vunpack.c.0.s8 %v1370
      %v1372 = vlaneseq
      %v1373 = vshrl.u32 %v1372, 7
      %v1374 = vsub.s32 %v1371, %v1373
      %v1375 = vrot.slane %v1115, %v1374
      %s1376 = scalar_lea.vmem %s1, 128
      %v1377 = vld [vmem:[%s1376] sm:$0xff]
      %v1378 = vld [vmem:[%s1376 + $0x8] sm:$0xff]
      %v1379 = vld [vmem:[%s1376 + $0x10] sm:$0xff]
      %v1380 = vld [vmem:[%s1376 + $0x18] sm:$0xff]
      %v1381 = vld [vmem:[%s1376 + $0x20] sm:$0xff]
      %v1382 = vld [vmem:[%s1376 + $0x28] sm:$0xff]
      %v1383 = vld [vmem:[%s1376 + $0x30] sm:$0xff]
      %v1384 = vld [vmem:[%s1376 + $0x38] sm:$0xff]
      %v1385 = vld [vmem:[%s1376 + $0x40] sm:$0xff]
      %v1386 = vld [vmem:[%s1376 + $0x48] sm:$0xff]
      %v1387 = vld [vmem:[%s1376 + $0x50] sm:$0xff]
      %v1388 = vld [vmem:[%s1376 + $0x58] sm:$0xff]
      %v1389 = vld [vmem:[%s1376 + $0x60] sm:$0xff]
      %v1390 = vld [vmem:[%s1376 + $0x68] sm:$0xff]
      %v1391 = vld [vmem:[%s1376 + $0x70] sm:$0xff]
      %v1392 = vld [vmem:[%s1376 + $0x78] sm:$0xff]
      %v1393 = vcombine.low %v1143, %v1151
      %v1394 = vcombine.low %v1150, %v1152
      %v1396 = vunpack.c.l.s4 1983009808
      %v1397 = vunpack.c.0.s8 %v1396
      %v1398 = vlaneseq
      %v1399 = vshrl.u32 %v1398, 7
      %v1400 = vsub.s32 %v1397, %v1399
      %v1401 = vrot.slane %v1393, %v1400
      %v1403 = vunpack.c.l.s4 1983009808
      %v1404 = vunpack.c.0.s8 %v1403
      %v1405 = vlaneseq
      %v1406 = vshrl.u32 %v1405, 7
      %v1407 = vsub.s32 %v1404, %v1406
      %v1408 = vrot.slane %v1394, %v1407
      %v1409 = vcombine.low %v1401, %v1408
      %v1410 = vcombine.low %v1159, %v1167
      %v1411 = vcombine.low %v1175, %v1174
      %v1413 = vunpack.c.l.s4 1983009808
      %v1414 = vunpack.c.0.s8 %v1413
      %v1415 = vlaneseq
      %v1416 = vshrl.u32 %v1415, 7
      %v1417 = vsub.s32 %v1414, %v1416
      %v1418 = vrot.slane %v1410, %v1417
      %v1420 = vunpack.c.l.s4 1983009808
      %v1421 = vunpack.c.0.s8 %v1420
      %v1422 = vlaneseq
      %v1423 = vshrl.u32 %v1422, 7
      %v1424 = vsub.s32 %v1421, %v1423
      %v1425 = vrot.slane %v1411, %v1424
      %v1426 = vcombine.low %v1418, %v1425
      %v1427 = vcombine.low %v1176, %v1183
      %v1428 = vcombine.low %v1191, %v1199
      %v1430 = vunpack.c.l.s4 1983009808
      %v1431 = vunpack.c.0.s8 %v1430
      %v1432 = vlaneseq
      %v1433 = vshrl.u32 %v1432, 7
      %v1434 = vsub.s32 %v1431, %v1433
      %v1435 = vrot.slane %v1427, %v1434
      %v1437 = vunpack.c.l.s4 1983009808
      %v1438 = vunpack.c.0.s8 %v1437
      %v1439 = vlaneseq
      %v1440 = vshrl.u32 %v1439, 7
      %v1441 = vsub.s32 %v1438, %v1440
      %v1442 = vrot.slane %v1428, %v1441
      %v1443 = vcombine.low %v1435, %v1442
      %v1444 = vcombine.low %v1198, %v1200
      %v1445 = vcombine.low %v1207, %v1215
      %v1447 = vunpack.c.l.s4 1983009808
      %v1448 = vunpack.c.0.s8 %v1447
      %v1449 = vlaneseq
      %v1450 = vshrl.u32 %v1449, 7
      %v1451 = vsub.s32 %v1448, %v1450
      %v1452 = vrot.slane %v1444, %v1451
      %v1454 = vunpack.c.l.s4 1983009808
      %v1455 = vunpack.c.0.s8 %v1454
      %v1456 = vlaneseq
      %v1457 = vshrl.u32 %v1456, 7
      %v1458 = vsub.s32 %v1455, %v1457
      %v1459 = vrot.slane %v1445, %v1458
      %v1460 = vcombine.low %v1452, %v1459
      %v1461 = vcombine.low %v1223, %v1222
      %v1462 = vcombine.low %v1224, %v1231
      %v1464 = vunpack.c.l.s4 1983009808
      %v1465 = vunpack.c.0.s8 %v1464
      %v1466 = vlaneseq
      %v1467 = vshrl.u32 %v1466, 7
      %v1468 = vsub.s32 %v1465, %v1467
      %v1469 = vrot.slane %v1461, %v1468
      %v1471 = vunpack.c.l.s4 1983009808
      %v1472 = vunpack.c.0.s8 %v1471
      %v1473 = vlaneseq
      %v1474 = vshrl.u32 %v1473, 7
      %v1475 = vsub.s32 %v1472, %v1474
      %v1476 = vrot.slane %v1462, %v1475
      %v1477 = vcombine.low %v1469, %v1476
      %v1478 = vcombine.low %v1239, %v1247
      %v1479 = vcombine.low %v1246, %v1248
      %v1481 = vunpack.c.l.s4 1983009808
      %v1482 = vunpack.c.0.s8 %v1481
      %v1483 = vlaneseq
      %v1484 = vshrl.u32 %v1483, 7
      %v1485 = vsub.s32 %v1482, %v1484
      %v1486 = vrot.slane %v1478, %v1485
      %v1488 = vunpack.c.l.s4 1983009808
      %v1489 = vunpack.c.0.s8 %v1488
      %v1490 = vlaneseq
      %v1491 = vshrl.u32 %v1490, 7
      %v1492 = vsub.s32 %v1489, %v1491
      %v1493 = vrot.slane %v1479, %v1492
      %v1494 = vcombine.low %v1486, %v1493
      %v1495 = vcombine.low %v1255, %v1263
      %v1496 = vcombine.low %v1271, %v1270
      %v1498 = vunpack.c.l.s4 1983009808
      %v1499 = vunpack.c.0.s8 %v1498
      %v1500 = vlaneseq
      %v1501 = vshrl.u32 %v1500, 7
      %v1502 = vsub.s32 %v1499, %v1501
      %v1503 = vrot.slane %v1495, %v1502
      %v1505 = vunpack.c.l.s4 1983009808
      %v1506 = vunpack.c.0.s8 %v1505
      %v1507 = vlaneseq
      %v1508 = vshrl.u32 %v1507, 7
      %v1509 = vsub.s32 %v1506, %v1508
      %v1510 = vrot.slane %v1496, %v1509
      %v1511 = vcombine.low %v1503, %v1510
      %v1512 = vcombine.low %v1272, %v1279
      %v1513 = vcombine.low %v1287, %v1295
      %v1515 = vunpack.c.l.s4 1983009808
      %v1516 = vunpack.c.0.s8 %v1515
      %v1517 = vlaneseq
      %v1518 = vshrl.u32 %v1517, 7
      %v1519 = vsub.s32 %v1516, %v1518
      %v1520 = vrot.slane %v1512, %v1519
      %v1522 = vunpack.c.l.s4 1983009808
      %v1523 = vunpack.c.0.s8 %v1522
      %v1524 = vlaneseq
      %v1525 = vshrl.u32 %v1524, 7
      %v1526 = vsub.s32 %v1523, %v1525
      %v1527 = vrot.slane %v1513, %v1526
      %v1528 = vcombine.low %v1520, %v1527
      %v1529 = vcombine.low %v1294, %v1296
      %v1530 = vcombine.low %v1303, %v1311
      %v1532 = vunpack.c.l.s4 1983009808
      %v1533 = vunpack.c.0.s8 %v1532
      %v1534 = vlaneseq
      %v1535 = vshrl.u32 %v1534, 7
      %v1536 = vsub.s32 %v1533, %v1535
      %v1537 = vrot.slane %v1529, %v1536
      %v1539 = vunpack.c.l.s4 1983009808
      %v1540 = vunpack.c.0.s8 %v1539
      %v1541 = vlaneseq
      %v1542 = vshrl.u32 %v1541, 7
      %v1543 = vsub.s32 %v1540, %v1542
      %v1544 = vrot.slane %v1530, %v1543
      %v1545 = vcombine.low %v1537, %v1544
      %v1546 = vcombine.low %v1319, %v1318
      %v1547 = vcombine.low %v1320, %v1327
      %v1549 = vunpack.c.l.s4 1983009808
      %v1550 = vunpack.c.0.s8 %v1549
      %v1551 = vlaneseq
      %v1552 = vshrl.u32 %v1551, 7
      %v1553 = vsub.s32 %v1550, %v1552
      %v1554 = vrot.slane %v1546, %v1553
      %v1556 = vunpack.c.l.s4 1983009808
      %v1557 = vunpack.c.0.s8 %v1556
      %v1558 = vlaneseq
      %v1559 = vshrl.u32 %v1558, 7
      %v1560 = vsub.s32 %v1557, %v1559
      %v1561 = vrot.slane %v1547, %v1560
      %v1562 = vcombine.low %v1554, %v1561
      %v1563 = vcombine.low %v1335, %v1343
      %v1564 = vcombine.low %v1342, %v1344
      %v1566 = vunpack.c.l.s4 1983009808
      %v1567 = vunpack.c.0.s8 %v1566
      %v1568 = vlaneseq
      %v1569 = vshrl.u32 %v1568, 7
      %v1570 = vsub.s32 %v1567, %v1569
      %v1571 = vrot.slane %v1563, %v1570
      %v1573 = vunpack.c.l.s4 1983009808
      %v1574 = vunpack.c.0.s8 %v1573
      %v1575 = vlaneseq
      %v1576 = vshrl.u32 %v1575, 7
      %v1577 = vsub.s32 %v1574, %v1576
      %v1578 = vrot.slane %v1564, %v1577
      %v1579 = vcombine.low %v1571, %v1578
      %v1580 = vcombine.low %v1351, %v1359
      %v1581 = vcombine.low %v1367, %v1366
      %v1583 = vunpack.c.l.s4 1983009808
      %v1584 = vunpack.c.0.s8 %v1583
      %v1585 = vlaneseq
      %v1586 = vshrl.u32 %v1585, 7
      %v1587 = vsub.s32 %v1584, %v1586
      %v1588 = vrot.slane %v1580, %v1587
      %v1590 = vunpack.c.l.s4 1983009808
      %v1591 = vunpack.c.0.s8 %v1590
      %v1592 = vlaneseq
      %v1593 = vshrl.u32 %v1592, 7
      %v1594 = vsub.s32 %v1591, %v1593
      %v1595 = vrot.slane %v1581, %v1594
      %v1596 = vcombine.low %v1588, %v1595
      %v1597 = vcombine.low %v1368, %v1375
      %v1599 = vunpack.c.l.s4 1983009808
      %v1600 = vunpack.c.0.s8 %v1599
      %v1601 = vlaneseq
      %v1602 = vshrl.u32 %v1601, 7
      %v1603 = vsub.s32 %v1600, %v1602
      %v1604 = vrot.slane %v1597, %v1603
      %1618 = vmatprep.subr.mxu0 0.0
      %1619 = vmatpush1.msra.mxu0 %v1392
      %1620 = vmatprep.subr.mxu0 0.0
      %1621 = vmatpush1.msra.mxu0 %v1391
      %1622 = vmatprep.subr.mxu0 0.0
      %1623 = vmatpush1.msra.mxu0 %v1390
      %1624 = vmatprep.subr.mxu0 0.0
      %1625 = vmatpush1.msra.mxu0 %v1389
      %1626 = vmatprep.subr.mxu0 0.0
      %1627 = vmatpush1.msra.mxu0 %v1388
      %1628 = vmatprep.subr.mxu0 0.0
      %1629 = vmatpush1.msra.mxu0 %v1387
      %1630 = vmatprep.subr.mxu0 0.0
      %1631 = vmatpush1.msra.mxu0 %v1386
      %1632 = vmatprep.subr.mxu0 0.0
      %1633 = vmatpush1.msra.mxu0 %v1385
      %1634 = vmatprep.subr.mxu0 0.0
      %1635 = vmatpush1.msra.mxu0 %v1384
      %1636 = vmatprep.subr.mxu0 0.0
      %1637 = vmatpush1.msra.mxu0 %v1383
      %1638 = vmatprep.subr.mxu0 0.0
      %1639 = vmatpush1.msra.mxu0 %v1382
      %1640 = vmatprep.subr.mxu0 0.0
      %1641 = vmatpush1.msra.mxu0 %v1381
      %1642 = vmatprep.subr.mxu0 0.0
      %1643 = vmatpush1.msra.mxu0 %v1380
      %1644 = vmatprep.subr.mxu0 0.0
      %1645 = vmatpush1.msra.mxu0 %v1379
      %1646 = vmatprep.subr.mxu0 0.0
      %1647 = vmatpush1.msra.mxu0 %v1378
      %1648 = vmatprep.subr.mxu0 0.0
      %1649 = vmatpush1.msra.mxu0 %v1377
      %1650 = vmatprep.subr.mxu0 0.0
      %1651 = vmatpush2.msra.mxu0 0.0
      %1652 = vmatprep.subr.mxu0 0.0
      %1653 = vmatpush2.msra.mxu0 0.0
      %1654 = vmatprep.subr.mxu0 0.0
      %1655 = vmatpush2.msra.mxu0 0.0
      %1656 = vmatprep.subr.mxu0 0.0
      %1657 = vmatpush2.msra.mxu0 0.0
      %1658 = vmatprep.subr.mxu0 0.0
      %1659 = vmatpush2.msra.mxu0 0.0
      %1660 = vmatprep.subr.mxu0 0.0
      %1661 = vmatpush2.msra.mxu0 0.0
      %1662 = vmatprep.subr.mxu0 0.0
      %1663 = vmatpush2.msra.mxu0 0.0
      %1664 = vmatprep.subr.mxu0 0.0
      %1665 = vmatpush2.msra.mxu0 0.0
      %1666 = vmatprep.subr.mxu0 0.0
      %1667 = vmatpush2.msra.mxu0 0.0
      %1668 = vmatprep.subr.mxu0 0.0
      %1669 = vmatpush2.msra.mxu0 0.0
      %1670 = vmatprep.subr.mxu0 0.0
      %1671 = vmatpush2.msra.mxu0 0.0
      %1672 = vmatprep.subr.mxu0 0.0
      %1673 = vmatpush2.msra.mxu0 0.0
      %1674 = vmatprep.subr.mxu0 0.0
      %1675 = vmatpush2.msra.mxu0 0.0
      %1676 = vmatprep.subr.mxu0 0.0
      %1677 = vmatpush2.msra.mxu0 0.0
      %1678 = vmatprep.subr.mxu0 0.0
      %1679 = vmatpush2.msra.mxu0 0.0
      %1680 = vmatprep.subr.mxu0 0.0
      %1681 = vmatpush2.msra.mxu0 0.0
      %1682 = vmatprep.mubr.f32.mxu0 0.0
      %1683 = vmatmul.mubr.f32.gmra.mxu0 %v1409
      %v1684 = vpop.f32.mrf.mxu0
      %v1685 = vadd.f32 0.0, %v1684
      %v1686 = vpop.f32.mrf.mxu0
      %1687 = vmatprep.mubr.f32.mxu0 0.0
      %1688 = vmatmul.mubr.f32.gmra.mxu0 %v1426
      %v1689 = vpop.f32.mrf.mxu0
      %v1690 = vadd.f32 0.0, %v1689
      %v1691 = vpop.f32.mrf.mxu0
      %1692 = vmatprep.mubr.f32.mxu0 0.0
      %1693 = vmatmul.mubr.f32.gmra.mxu0 %v1443
      %v1694 = vpop.f32.mrf.mxu0
      %v1695 = vadd.f32 0.0, %v1694
      %v1696 = vpop.f32.mrf.mxu0
      %1697 = vmatprep.mubr.f32.mxu0 0.0
      %1698 = vmatmul.mubr.f32.gmra.mxu0 %v1460
      %v1699 = vpop.f32.mrf.mxu0
      %v1700 = vadd.f32 0.0, %v1699
      %v1701 = vpop.f32.mrf.mxu0
      %1702 = vmatprep.mubr.f32.mxu0 0.0
      %1703 = vmatmul.mubr.f32.gmra.mxu0 %v1477
      %v1704 = vpop.f32.mrf.mxu0
      %v1705 = vadd.f32 0.0, %v1704
      %v1706 = vpop.f32.mrf.mxu0
      %1707 = vmatprep.mubr.f32.mxu0 0.0
      %1708 = vmatmul.mubr.f32.gmra.mxu0 %v1494
      %v1709 = vpop.f32.mrf.mxu0
      %v1710 = vadd.f32 0.0, %v1709
      %v1711 = vpop.f32.mrf.mxu0
      %1712 = vmatprep.mubr.f32.mxu0 0.0
      %1713 = vmatmul.mubr.f32.gmra.mxu0 %v1511
      %v1714 = vpop.f32.mrf.mxu0
      %v1715 = vadd.f32 0.0, %v1714
      %v1716 = vpop.f32.mrf.mxu0
      %1717 = vmatprep.mubr.f32.mxu0 0.0
      %1718 = vmatmul.mubr.f32.gmra.mxu0 %v1528
      %v1719 = vpop.f32.mrf.mxu0
      %v1720 = vadd.f32 0.0, %v1719
      %v1721 = vpop.f32.mrf.mxu0
      %1722 = vmatprep.mubr.f32.mxu0 0.0
      %1723 = vmatmul.mubr.f32.gmra.mxu0 %v1545
      %v1724 = vpop.f32.mrf.mxu0
      %v1725 = vadd.f32 0.0, %v1724
      %v1726 = vpop.f32.mrf.mxu0
      %1727 = vmatprep.mubr.f32.mxu0 0.0
      %1728 = vmatmul.mubr.f32.gmra.mxu0 %v1562
      %v1729 = vpop.f32.mrf.mxu0
      %v1730 = vadd.f32 0.0, %v1729
      %v1731 = vpop.f32.mrf.mxu0
      %1732 = vmatprep.mubr.f32.mxu0 0.0
      %1733 = vmatmul.mubr.f32.gmra.mxu0 %v1579
      %v1734 = vpop.f32.mrf.mxu0
      %v1735 = vadd.f32 0.0, %v1734
      %v1736 = vpop.f32.mrf.mxu0
      %1737 = vmatprep.mubr.f32.mxu0 0.0
      %1738 = vmatmul.mubr.f32.gmra.mxu0 %v1596
      %v1739 = vpop.f32.mrf.mxu0
      %v1740 = vadd.f32 0.0, %v1739
      %v1741 = vpop.f32.mrf.mxu0
      %1742 = vmatprep.mubr.f32.mxu0 0.0
      %1743 = vmatmul.mubr.f32.gmra.mxu0 %v1604
      %v1744 = vpop.f32.mrf.mxu0
      %v1745 = vadd.f32 0.0, %v1744
      %v1746 = vpop.f32.mrf.mxu0
      %1747 = vdwg.mxu0
      %v1748 = vcombine.low %v847, %v855
      %v1749 = vcombine.low %v854, %v856
      %v1751 = vunpack.c.l.s4 1983009808
      %v1752 = vunpack.c.0.s8 %v1751
      %v1753 = vlaneseq
      %v1754 = vshrl.u32 %v1753, 7
      %v1755 = vsub.s32 %v1752, %v1754
      %v1756 = vrot.slane %v1748, %v1755
      %v1758 = vunpack.c.l.s4 1983009808
      %v1759 = vunpack.c.0.s8 %v1758
      %v1760 = vlaneseq
      %v1761 = vshrl.u32 %v1760, 7
      %v1762 = vsub.s32 %v1759, %v1761
      %v1763 = vrot.slane %v1749, %v1762
      %v1764 = vcombine.low %v1756, %v1763
      %v1765 = vcombine.low %v863, %v871
      %v1766 = vcombine.low %v879, %v878
      %v1768 = vunpack.c.l.s4 1983009808
      %v1769 = vunpack.c.0.s8 %v1768
      %v1770 = vlaneseq
      %v1771 = vshrl.u32 %v1770, 7
      %v1772 = vsub.s32 %v1769, %v1771
      %v1773 = vrot.slane %v1765, %v1772
      %v1775 = vunpack.c.l.s4 1983009808
      %v1776 = vunpack.c.0.s8 %v1775
      %v1777 = vlaneseq
      %v1778 = vshrl.u32 %v1777, 7
      %v1779 = vsub.s32 %v1776, %v1778
      %v1780 = vrot.slane %v1766, %v1779
      %v1781 = vcombine.low %v1773, %v1780
      %v1782 = vcombine.low %v880, %v887
      %v1783 = vcombine.low %v895, %v903
      %v1785 = vunpack.c.l.s4 1983009808
      %v1786 = vunpack.c.0.s8 %v1785
      %v1787 = vlaneseq
      %v1788 = vshrl.u32 %v1787, 7
      %v1789 = vsub.s32 %v1786, %v1788
      %v1790 = vrot.slane %v1782, %v1789
      %v1792 = vunpack.c.l.s4 1983009808
      %v1793 = vunpack.c.0.s8 %v1792
      %v1794 = vlaneseq
      %v1795 = vshrl.u32 %v1794, 7
      %v1796 = vsub.s32 %v1793, %v1795
      %v1797 = vrot.slane %v1783, %v1796
      %v1798 = vcombine.low %v1790, %v1797
      %v1799 = vcombine.low %v902, %v904
      %v1800 = vcombine.low %v911, %v919
      %v1802 = vunpack.c.l.s4 1983009808
      %v1803 = vunpack.c.0.s8 %v1802
      %v1804 = vlaneseq
      %v1805 = vshrl.u32 %v1804, 7
      %v1806 = vsub.s32 %v1803, %v1805
      %v1807 = vrot.slane %v1799, %v1806
      %v1809 = vunpack.c.l.s4 1983009808
      %v1810 = vunpack.c.0.s8 %v1809
      %v1811 = vlaneseq
      %v1812 = vshrl.u32 %v1811, 7
      %v1813 = vsub.s32 %v1810, %v1812
      %v1814 = vrot.slane %v1800, %v1813
      %v1815 = vcombine.low %v1807, %v1814
      %v1816 = vcombine.low %v927, %v926
      %v1817 = vcombine.low %v928, %v935
      %v1819 = vunpack.c.l.s4 1983009808
      %v1820 = vunpack.c.0.s8 %v1819
      %v1821 = vlaneseq
      %v1822 = vshrl.u32 %v1821, 7
      %v1823 = vsub.s32 %v1820, %v1822
      %v1824 = vrot.slane %v1816, %v1823
      %v1826 = vunpack.c.l.s4 1983009808
      %v1827 = vunpack.c.0.s8 %v1826
      %v1828 = vlaneseq
      %v1829 = vshrl.u32 %v1828, 7
      %v1830 = vsub.s32 %v1827, %v1829
      %v1831 = vrot.slane %v1817, %v1830
      %v1832 = vcombine.low %v1824, %v1831
      %v1833 = vcombine.low %v943, %v951
      %v1834 = vcombine.low %v950, %v952
      %v1836 = vunpack.c.l.s4 1983009808
      %v1837 = vunpack.c.0.s8 %v1836
      %v1838 = vlaneseq
      %v1839 = vshrl.u32 %v1838, 7
      %v1840 = vsub.s32 %v1837, %v1839
      %v1841 = vrot.slane %v1833, %v1840
      %v1843 = vunpack.c.l.s4 1983009808
      %v1844 = vunpack.c.0.s8 %v1843
      %v1845 = vlaneseq
      %v1846 = vshrl.u32 %v1845, 7
      %v1847 = vsub.s32 %v1844, %v1846
      %v1848 = vrot.slane %v1834, %v1847
      %v1849 = vcombine.low %v1841, %v1848
      %v1850 = vcombine.low %v959, %v967
      %v1851 = vcombine.low %v975, %v974
      %v1853 = vunpack.c.l.s4 1983009808
      %v1854 = vunpack.c.0.s8 %v1853
      %v1855 = vlaneseq
      %v1856 = vshrl.u32 %v1855, 7
      %v1857 = vsub.s32 %v1854, %v1856
      %v1858 = vrot.slane %v1850, %v1857
      %v1860 = vunpack.c.l.s4 1983009808
      %v1861 = vunpack.c.0.s8 %v1860
      %v1862 = vlaneseq
      %v1863 = vshrl.u32 %v1862, 7
      %v1864 = vsub.s32 %v1861, %v1863
      %v1865 = vrot.slane %v1851, %v1864
      %v1866 = vcombine.low %v1858, %v1865
      %v1867 = vcombine.low %v976, %v983
      %v1868 = vcombine.low %v991, %v999
      %v1870 = vunpack.c.l.s4 1983009808
      %v1871 = vunpack.c.0.s8 %v1870
      %v1872 = vlaneseq
      %v1873 = vshrl.u32 %v1872, 7
      %v1874 = vsub.s32 %v1871, %v1873
      %v1875 = vrot.slane %v1867, %v1874
      %v1877 = vunpack.c.l.s4 1983009808
      %v1878 = vunpack.c.0.s8 %v1877
      %v1879 = vlaneseq
      %v1880 = vshrl.u32 %v1879, 7
      %v1881 = vsub.s32 %v1878, %v1880
      %v1882 = vrot.slane %v1868, %v1881
      %v1883 = vcombine.low %v1875, %v1882
      %v1884 = vcombine.low %v998, %v1000
      %v1885 = vcombine.low %v1007, %v1015
      %v1887 = vunpack.c.l.s4 1983009808
      %v1888 = vunpack.c.0.s8 %v1887
      %v1889 = vlaneseq
      %v1890 = vshrl.u32 %v1889, 7
      %v1891 = vsub.s32 %v1888, %v1890
      %v1892 = vrot.slane %v1884, %v1891
      %v1894 = vunpack.c.l.s4 1983009808
      %v1895 = vunpack.c.0.s8 %v1894
      %v1896 = vlaneseq
      %v1897 = vshrl.u32 %v1896, 7
      %v1898 = vsub.s32 %v1895, %v1897
      %v1899 = vrot.slane %v1885, %v1898
      %v1900 = vcombine.low %v1892, %v1899
      %v1901 = vcombine.low %v1023, %v1022
      %v1902 = vcombine.low %v1024, %v1031
      %v1904 = vunpack.c.l.s4 1983009808
      %v1905 = vunpack.c.0.s8 %v1904
      %v1906 = vlaneseq
      %v1907 = vshrl.u32 %v1906, 7
      %v1908 = vsub.s32 %v1905, %v1907
      %v1909 = vrot.slane %v1901, %v1908
      %v1911 = vunpack.c.l.s4 1983009808
      %v1912 = vunpack.c.0.s8 %v1911
      %v1913 = vlaneseq
      %v1914 = vshrl.u32 %v1913, 7
      %v1915 = vsub.s32 %v1912, %v1914
      %v1916 = vrot.slane %v1902, %v1915
      %v1917 = vcombine.low %v1909, %v1916
      %v1918 = vcombine.low %v1039, %v1047
      %v1919 = vcombine.low %v1046, %v1048
      %v1921 = vunpack.c.l.s4 1983009808
      %v1922 = vunpack.c.0.s8 %v1921
      %v1923 = vlaneseq
      %v1924 = vshrl.u32 %v1923, 7
      %v1925 = vsub.s32 %v1922, %v1924
      %v1926 = vrot.slane %v1918, %v1925
      %v1928 = vunpack.c.l.s4 1983009808
      %v1929 = vunpack.c.0.s8 %v1928
      %v1930 = vlaneseq
      %v1931 = vshrl.u32 %v1930, 7
      %v1932 = vsub.s32 %v1929, %v1931
      %v1933 = vrot.slane %v1919, %v1932
      %v1934 = vcombine.low %v1926, %v1933
      %v1935 = vcombine.low %v1055, %v1063
      %v1936 = vcombine.low %v1071, %v1070
      %v1938 = vunpack.c.l.s4 1983009808
      %v1939 = vunpack.c.0.s8 %v1938
      %v1940 = vlaneseq
      %v1941 = vshrl.u32 %v1940, 7
      %v1942 = vsub.s32 %v1939, %v1941
      %v1943 = vrot.slane %v1935, %v1942
      %v1945 = vunpack.c.l.s4 1983009808
      %v1946 = vunpack.c.0.s8 %v1945
      %v1947 = vlaneseq
      %v1948 = vshrl.u32 %v1947, 7
      %v1949 = vsub.s32 %v1946, %v1948
      %v1950 = vrot.slane %v1936, %v1949
      %v1951 = vcombine.low %v1943, %v1950
      %v1952 = vcombine.low %v1072, %v1079
      %v1954 = vunpack.c.l.s4 1983009808
      %v1955 = vunpack.c.0.s8 %v1954
      %v1956 = vlaneseq
      %v1957 = vshrl.u32 %v1956, 7
      %v1958 = vsub.s32 %v1955, %v1957
      %v1959 = vrot.slane %v1952, %v1958
      %1973 = vmatprep.subr.mxu0 0.0
      %1974 = vmatpush1.msra.mxu0 %v1095
      %1975 = vmatprep.subr.mxu0 0.0
      %1976 = vmatpush1.msra.mxu0 %v1094
      %1977 = vmatprep.subr.mxu0 0.0
      %1978 = vmatpush1.msra.mxu0 %v1093
      %1979 = vmatprep.subr.mxu0 0.0
      %1980 = vmatpush1.msra.mxu0 %v1092
      %1981 = vmatprep.subr.mxu0 0.0
      %1982 = vmatpush1.msra.mxu0 %v1091
      %1983 = vmatprep.subr.mxu0 0.0
      %1984 = vmatpush1.msra.mxu0 %v1090
      %1985 = vmatprep.subr.mxu0 0.0
      %1986 = vmatpush1.msra.mxu0 %v1089
      %1987 = vmatprep.subr.mxu0 0.0
      %1988 = vmatpush1.msra.mxu0 %v1088
      %1989 = vmatprep.subr.mxu0 0.0
      %1990 = vmatpush1.msra.mxu0 %v1087
      %1991 = vmatprep.subr.mxu0 0.0
      %1992 = vmatpush1.msra.mxu0 %v1086
      %1993 = vmatprep.subr.mxu0 0.0
      %1994 = vmatpush1.msra.mxu0 %v1085
      %1995 = vmatprep.subr.mxu0 0.0
      %1996 = vmatpush1.msra.mxu0 %v1084
      %1997 = vmatprep.subr.mxu0 0.0
      %1998 = vmatpush1.msra.mxu0 %v1083
      %1999 = vmatprep.subr.mxu0 0.0
      %2000 = vmatpush1.msra.mxu0 %v1082
      %2001 = vmatprep.subr.mxu0 0.0
      %2002 = vmatpush1.msra.mxu0 %v1081
      %2003 = vmatprep.subr.mxu0 0.0
      %2004 = vmatpush1.msra.mxu0 %v1080
      %2005 = vmatprep.subr.mxu0 0.0
      %2006 = vmatpush2.msra.mxu0 0.0
      %2007 = vmatprep.subr.mxu0 0.0
      %2008 = vmatpush2.msra.mxu0 0.0
      %2009 = vmatprep.subr.mxu0 0.0
      %2010 = vmatpush2.msra.mxu0 0.0
      %2011 = vmatprep.subr.mxu0 0.0
      %2012 = vmatpush2.msra.mxu0 0.0
      %2013 = vmatprep.subr.mxu0 0.0
      %2014 = vmatpush2.msra.mxu0 0.0
      %2015 = vmatprep.subr.mxu0 0.0
      %2016 = vmatpush2.msra.mxu0 0.0
      %2017 = vmatprep.subr.mxu0 0.0
      %2018 = vmatpush2.msra.mxu0 0.0
      %2019 = vmatprep.subr.mxu0 0.0
      %2020 = vmatpush2.msra.mxu0 0.0
      %2021 = vmatprep.subr.mxu0 0.0
      %2022 = vmatpush2.msra.mxu0 0.0
      %2023 = vmatprep.subr.mxu0 0.0
      %2024 = vmatpush2.msra.mxu0 0.0
      %2025 = vmatprep.subr.mxu0 0.0
      %2026 = vmatpush2.msra.mxu0 0.0
      %2027 = vmatprep.subr.mxu0 0.0
      %2028 = vmatpush2.msra.mxu0 0.0
      %2029 = vmatprep.subr.mxu0 0.0
      %2030 = vmatpush2.msra.mxu0 0.0
      %2031 = vmatprep.subr.mxu0 0.0
      %2032 = vmatpush2.msra.mxu0 0.0
      %2033 = vmatprep.subr.mxu0 0.0
      %2034 = vmatpush2.msra.mxu0 0.0
      %2035 = vmatprep.subr.mxu0 0.0
      %2036 = vmatpush2.msra.mxu0 0.0
      %2037 = vmatprep.mubr.f32.mxu0 0.0
      %2038 = vmatmul.mubr.f32.gmra.mxu0 %v1764
      %v2039 = vpop.f32.mrf.mxu0
      %v2040 = vadd.f32 %v1685, %v2039
      %v2041 = vpop.f32.mrf.mxu0
      %2042 = vmatprep.mubr.f32.mxu0 0.0
      %2043 = vmatmul.mubr.f32.gmra.mxu0 %v1781
      %v2044 = vpop.f32.mrf.mxu0
      %v2045 = vadd.f32 %v1690, %v2044
      %v2046 = vpop.f32.mrf.mxu0
      %2047 = vmatprep.mubr.f32.mxu0 0.0
      %2048 = vmatmul.mubr.f32.gmra.mxu0 %v1798
      %v2049 = vpop.f32.mrf.mxu0
      %v2050 = vadd.f32 %v1695, %v2049
      %v2051 = vpop.f32.mrf.mxu0
      %2052 = vmatprep.mubr.f32.mxu0 0.0
      %2053 = vmatmul.mubr.f32.gmra.mxu0 %v1815
      %v2054 = vpop.f32.mrf.mxu0
      %v2055 = vadd.f32 %v1700, %v2054
      %v2056 = vpop.f32.mrf.mxu0
      %2057 = vmatprep.mubr.f32.mxu0 0.0
      %2058 = vmatmul.mubr.f32.gmra.mxu0 %v1832
      %v2059 = vpop.f32.mrf.mxu0
      %v2060 = vadd.f32 %v1705, %v2059
      %v2061 = vpop.f32.mrf.mxu0
      %2062 = vmatprep.mubr.f32.mxu0 0.0
      %2063 = vmatmul.mubr.f32.gmra.mxu0 %v1849
      %v2064 = vpop.f32.mrf.mxu0
      %v2065 = vadd.f32 %v1710, %v2064
      %v2066 = vpop.f32.mrf.mxu0
      %2067 = vmatprep.mubr.f32.mxu0 0.0
      %2068 = vmatmul.mubr.f32.gmra.mxu0 %v1866
      %v2069 = vpop.f32.mrf.mxu0
      %v2070 = vadd.f32 %v1715, %v2069
      %v2071 = vpop.f32.mrf.mxu0
      %2072 = vmatprep.mubr.f32.mxu0 0.0
      %2073 = vmatmul.mubr.f32.gmra.mxu0 %v1883
      %v2074 = vpop.f32.mrf.mxu0
      %v2075 = vadd.f32 %v1720, %v2074
      %v2076 = vpop.f32.mrf.mxu0
      %2077 = vmatprep.mubr.f32.mxu0 0.0
      %2078 = vmatmul.mubr.f32.gmra.mxu0 %v1900
      %v2079 = vpop.f32.mrf.mxu0
      %v2080 = vadd.f32 %v1725, %v2079
      %v2081 = vpop.f32.mrf.mxu0
      %2082 = vmatprep.mubr.f32.mxu0 0.0
      %2083 = vmatmul.mubr.f32.gmra.mxu0 %v1917
      %v2084 = vpop.f32.mrf.mxu0
      %v2085 = vadd.f32 %v1730, %v2084
      %v2086 = vpop.f32.mrf.mxu0
      %2087 = vmatprep.mubr.f32.mxu0 0.0
      %2088 = vmatmul.mubr.f32.gmra.mxu0 %v1934
      %v2089 = vpop.f32.mrf.mxu0
      %v2090 = vadd.f32 %v1735, %v2089
      %v2091 = vpop.f32.mrf.mxu0
      %2092 = vmatprep.mubr.f32.mxu0 0.0
      %2093 = vmatmul.mubr.f32.gmra.mxu0 %v1951
      %v2094 = vpop.f32.mrf.mxu0
      %v2095 = vadd.f32 %v1740, %v2094
      %v2096 = vpop.f32.mrf.mxu0
      %2097 = vmatprep.mubr.f32.mxu0 0.0
      %2098 = vmatmul.mubr.f32.gmra.mxu0 %v1959
      %v2099 = vpop.f32.mrf.mxu0
      %v2100 = vadd.f32 %v1745, %v2099
      %v2101 = vpop.f32.mrf.mxu0
      %2102 = vdwg.mxu0
      %v2103 = vld [vmem:[#allocation3 + $0x2] sm:$0xff]
      %v2104 = vld [vmem:[#allocation3 + $0xa] sm:$0x3]
      %v2105 = vld [vmem:[#allocation3 + $0x12] sm:$0xff]
      %v2106 = vld [vmem:[#allocation3 + $0x1a] sm:$0x3]
      %v2107 = vld [vmem:[#allocation3 + $0x22] sm:$0xff]
      %v2108 = vld [vmem:[#allocation3 + $0x2a] sm:$0x3]
      %v2109 = vld [vmem:[#allocation3 + $0x32] sm:$0xff]
      %v2110 = vld [vmem:[#allocation3 + $0x3a] sm:$0x3]
      %v2111 = vld [vmem:[#allocation3 + $0x42] sm:$0xff]
      %v2112 = vld [vmem:[#allocation3 + $0x4a] sm:$0x3]
      %v2113 = vld [vmem:[#allocation3 + $0x52] sm:$0xff]
      %v2114 = vld [vmem:[#allocation3 + $0x5a] sm:$0x3]
      %v2115 = vld [vmem:[#allocation3 + $0x62] sm:$0xff]
      %v2116 = vld [vmem:[#allocation3 + $0x6a] sm:$0x3]
      %v2117 = vld [vmem:[#allocation3 + $0x72] sm:$0xff]
      %v2118 = vld [vmem:[#allocation3 + $0x7a] sm:$0x3]
      %v2119 = vld [vmem:[#allocation3 + $0x82] sm:$0xff]
      %v2120 = vld [vmem:[#allocation3 + $0x8a] sm:$0x3]
      %v2121 = vld [vmem:[#allocation3 + $0x92] sm:$0xff]
      %v2122 = vld [vmem:[#allocation3 + $0x9a] sm:$0x3]
      %v2143 = vcombine.high %v2103, %v2103
      %v2145 = vunpack.c.l.s4 1983009808
      %v2146 = vunpack.c.0.s8 %v2145
      %v2147 = vlaneseq
      %v2148 = vshrl.u32 %v2147, 7
      %v2149 = vsub.s32 %v2146, %v2148
      %v2150 = vrot.slane %v2103, %v2149
      %v2152 = vunpack.c.l.s4 1983009808
      %v2153 = vunpack.c.0.s8 %v2152
      %v2154 = vlaneseq
      %v2155 = vshrl.u32 %v2154, 7
      %v2156 = vsub.s32 %v2153, %v2155
      %v2157 = vrot.slane %v2143, %v2156
      %v2158 = vcombine.high %v2150, %v2150
      %v2159 = vcombine.high %v2157, %v2157
      %v2161 = vunpack.c.l.s4 1983009808
      %v2162 = vunpack.c.0.s8 %v2161
      %v2163 = vlaneseq
      %v2164 = vshrl.u32 %v2163, 7
      %v2165 = vsub.s32 %v2162, %v2164
      %v2166 = vrot.slane %v2104, %v2165
      %v2167 = vcombine.high %v2105, %v2105
      %v2169 = vunpack.c.l.s4 1983009808
      %v2170 = vunpack.c.0.s8 %v2169
      %v2171 = vlaneseq
      %v2172 = vshrl.u32 %v2171, 7
      %v2173 = vsub.s32 %v2170, %v2172
      %v2174 = vrot.slane %v2105, %v2173
      %v2176 = vunpack.c.l.s4 1983009808
      %v2177 = vunpack.c.0.s8 %v2176
      %v2178 = vlaneseq
      %v2179 = vshrl.u32 %v2178, 7
      %v2180 = vsub.s32 %v2177, %v2179
      %v2181 = vrot.slane %v2167, %v2180
      %v2182 = vcombine.high %v2174, %v2174
      %v2183 = vcombine.high %v2181, %v2181
      %v2185 = vunpack.c.l.s4 1983009808
      %v2186 = vunpack.c.0.s8 %v2185
      %v2187 = vlaneseq
      %v2188 = vshrl.u32 %v2187, 7
      %v2189 = vsub.s32 %v2186, %v2188
      %v2190 = vrot.slane %v2106, %v2189
      %v2191 = vcombine.high %v2107, %v2107
      %v2193 = vunpack.c.l.s4 1983009808
      %v2194 = vunpack.c.0.s8 %v2193
      %v2195 = vlaneseq
      %v2196 = vshrl.u32 %v2195, 7
      %v2197 = vsub.s32 %v2194, %v2196
      %v2198 = vrot.slane %v2107, %v2197
      %v2200 = vunpack.c.l.s4 1983009808
      %v2201 = vunpack.c.0.s8 %v2200
      %v2202 = vlaneseq
      %v2203 = vshrl.u32 %v2202, 7
      %v2204 = vsub.s32 %v2201, %v2203
      %v2205 = vrot.slane %v2191, %v2204
      %v2206 = vcombine.high %v2198, %v2198
      %v2207 = vcombine.high %v2205, %v2205
      %v2209 = vunpack.c.l.s4 1983009808
      %v2210 = vunpack.c.0.s8 %v2209
      %v2211 = vlaneseq
      %v2212 = vshrl.u32 %v2211, 7
      %v2213 = vsub.s32 %v2210, %v2212
      %v2214 = vrot.slane %v2108, %v2213
      %v2215 = vcombine.high %v2109, %v2109
      %v2217 = vunpack.c.l.s4 1983009808
      %v2218 = vunpack.c.0.s8 %v2217
      %v2219 = vlaneseq
      %v2220 = vshrl.u32 %v2219, 7
      %v2221 = vsub.s32 %v2218, %v2220
      %v2222 = vrot.slane %v2109, %v2221
      %v2224 = vunpack.c.l.s4 1983009808
      %v2225 = vunpack.c.0.s8 %v2224
      %v2226 = vlaneseq
      %v2227 = vshrl.u32 %v2226, 7
      %v2228 = vsub.s32 %v2225, %v2227
      %v2229 = vrot.slane %v2215, %v2228
      %v2230 = vcombine.high %v2222, %v2222
      %v2231 = vcombine.high %v2229, %v2229
      %v2233 = vunpack.c.l.s4 1983009808
      %v2234 = vunpack.c.0.s8 %v2233
      %v2235 = vlaneseq
      %v2236 = vshrl.u32 %v2235, 7
      %v2237 = vsub.s32 %v2234, %v2236
      %v2238 = vrot.slane %v2110, %v2237
      %v2239 = vcombine.high %v2111, %v2111
      %v2241 = vunpack.c.l.s4 1983009808
      %v2242 = vunpack.c.0.s8 %v2241
      %v2243 = vlaneseq
      %v2244 = vshrl.u32 %v2243, 7
      %v2245 = vsub.s32 %v2242, %v2244
      %v2246 = vrot.slane %v2111, %v2245
      %v2248 = vunpack.c.l.s4 1983009808
      %v2249 = vunpack.c.0.s8 %v2248
      %v2250 = vlaneseq
      %v2251 = vshrl.u32 %v2250, 7
      %v2252 = vsub.s32 %v2249, %v2251
      %v2253 = vrot.slane %v2239, %v2252
      %v2254 = vcombine.high %v2246, %v2246
      %v2255 = vcombine.high %v2253, %v2253
      %v2257 = vunpack.c.l.s4 1983009808
      %v2258 = vunpack.c.0.s8 %v2257
      %v2259 = vlaneseq
      %v2260 = vshrl.u32 %v2259, 7
      %v2261 = vsub.s32 %v2258, %v2260
      %v2262 = vrot.slane %v2112, %v2261
      %v2263 = vcombine.high %v2113, %v2113
      %v2265 = vunpack.c.l.s4 1983009808
      %v2266 = vunpack.c.0.s8 %v2265
      %v2267 = vlaneseq
      %v2268 = vshrl.u32 %v2267, 7
      %v2269 = vsub.s32 %v2266, %v2268
      %v2270 = vrot.slane %v2113, %v2269
      %v2272 = vunpack.c.l.s4 1983009808
      %v2273 = vunpack.c.0.s8 %v2272
      %v2274 = vlaneseq
      %v2275 = vshrl.u32 %v2274, 7
      %v2276 = vsub.s32 %v2273, %v2275
      %v2277 = vrot.slane %v2263, %v2276
      %v2278 = vcombine.high %v2270, %v2270
      %v2279 = vcombine.high %v2277, %v2277
      %v2281 = vunpack.c.l.s4 1983009808
      %v2282 = vunpack.c.0.s8 %v2281
      %v2283 = vlaneseq
      %v2284 = vshrl.u32 %v2283, 7
      %v2285 = vsub.s32 %v2282, %v2284
      %v2286 = vrot.slane %v2114, %v2285
      %v2287 = vcombine.high %v2115, %v2115
      %v2289 = vunpack.c.l.s4 1983009808
      %v2290 = vunpack.c.0.s8 %v2289
      %v2291 = vlaneseq
      %v2292 = vshrl.u32 %v2291, 7
      %v2293 = vsub.s32 %v2290, %v2292
      %v2294 = vrot.slane %v2115, %v2293
      %v2296 = vunpack.c.l.s4 1983009808
      %v2297 = vunpack.c.0.s8 %v2296
      %v2298 = vlaneseq
      %v2299 = vshrl.u32 %v2298, 7
      %v2300 = vsub.s32 %v2297, %v2299
      %v2301 = vrot.slane %v2287, %v2300
      %v2302 = vcombine.high %v2294, %v2294
      %v2303 = vcombine.high %v2301, %v2301
      %v2305 = vunpack.c.l.s4 1983009808
      %v2306 = vunpack.c.0.s8 %v2305
      %v2307 = vlaneseq
      %v2308 = vshrl.u32 %v2307, 7
      %v2309 = vsub.s32 %v2306, %v2308
      %v2310 = vrot.slane %v2116, %v2309
      %v2311 = vcombine.high %v2117, %v2117
      %v2313 = vunpack.c.l.s4 1983009808
      %v2314 = vunpack.c.0.s8 %v2313
      %v2315 = vlaneseq
      %v2316 = vshrl.u32 %v2315, 7
      %v2317 = vsub.s32 %v2314, %v2316
      %v2318 = vrot.slane %v2117, %v2317
      %v2320 = vunpack.c.l.s4 1983009808
      %v2321 = vunpack.c.0.s8 %v2320
      %v2322 = vlaneseq
      %v2323 = vshrl.u32 %v2322, 7
      %v2324 = vsub.s32 %v2321, %v2323
      %v2325 = vrot.slane %v2311, %v2324
      %v2326 = vcombine.high %v2318, %v2318
      %v2327 = vcombine.high %v2325, %v2325
      %v2329 = vunpack.c.l.s4 1983009808
      %v2330 = vunpack.c.0.s8 %v2329
      %v2331 = vlaneseq
      %v2332 = vshrl.u32 %v2331, 7
      %v2333 = vsub.s32 %v2330, %v2332
      %v2334 = vrot.slane %v2118, %v2333
      %v2335 = vcombine.high %v2119, %v2119
      %v2337 = vunpack.c.l.s4 1983009808
      %v2338 = vunpack.c.0.s8 %v2337
      %v2339 = vlaneseq
      %v2340 = vshrl.u32 %v2339, 7
      %v2341 = vsub.s32 %v2338, %v2340
      %v2342 = vrot.slane %v2119, %v2341
      %v2344 = vunpack.c.l.s4 1983009808
      %v2345 = vunpack.c.0.s8 %v2344
      %v2346 = vlaneseq
      %v2347 = vshrl.u32 %v2346, 7
      %v2348 = vsub.s32 %v2345, %v2347
      %v2349 = vrot.slane %v2335, %v2348
      %v2350 = vcombine.high %v2342, %v2342
      %v2351 = vcombine.high %v2349, %v2349
      %v2353 = vunpack.c.l.s4 1983009808
      %v2354 = vunpack.c.0.s8 %v2353
      %v2355 = vlaneseq
      %v2356 = vshrl.u32 %v2355, 7
      %v2357 = vsub.s32 %v2354, %v2356
      %v2358 = vrot.slane %v2120, %v2357
      %v2359 = vcombine.high %v2121, %v2121
      %v2361 = vunpack.c.l.s4 1983009808
      %v2362 = vunpack.c.0.s8 %v2361
      %v2363 = vlaneseq
      %v2364 = vshrl.u32 %v2363, 7
      %v2365 = vsub.s32 %v2362, %v2364
      %v2366 = vrot.slane %v2121, %v2365
      %v2368 = vunpack.c.l.s4 1983009808
      %v2369 = vunpack.c.0.s8 %v2368
      %v2370 = vlaneseq
      %v2371 = vshrl.u32 %v2370, 7
      %v2372 = vsub.s32 %v2369, %v2371
      %v2373 = vrot.slane %v2359, %v2372
      %v2374 = vcombine.high %v2366, %v2366
      %v2375 = vcombine.high %v2373, %v2373
      %v2377 = vunpack.c.l.s4 1983009808
      %v2378 = vunpack.c.0.s8 %v2377
      %v2379 = vlaneseq
      %v2380 = vshrl.u32 %v2379, 7
      %v2381 = vsub.s32 %v2378, %v2380
      %v2382 = vrot.slane %v2122, %v2381
      %s2383 = scalar_lea.vmem %s1, 256
      %v2384 = vld [vmem:[%s2383] sm:$0xff]
      %v2385 = vld [vmem:[%s2383 + $0x8] sm:$0xff]
      %v2386 = vld [vmem:[%s2383 + $0x10] sm:$0xff]
      %v2387 = vld [vmem:[%s2383 + $0x18] sm:$0xff]
      %v2388 = vld [vmem:[%s2383 + $0x20] sm:$0xff]
      %v2389 = vld [vmem:[%s2383 + $0x28] sm:$0xff]
      %v2390 = vld [vmem:[%s2383 + $0x30] sm:$0xff]
      %v2391 = vld [vmem:[%s2383 + $0x38] sm:$0xff]
      %v2392 = vld [vmem:[%s2383 + $0x40] sm:$0xff]
      %v2393 = vld [vmem:[%s2383 + $0x48] sm:$0xff]
      %v2394 = vld [vmem:[%s2383 + $0x50] sm:$0xff]
      %v2395 = vld [vmem:[%s2383 + $0x58] sm:$0xff]
      %v2396 = vld [vmem:[%s2383 + $0x60] sm:$0xff]
      %v2397 = vld [vmem:[%s2383 + $0x68] sm:$0xff]
      %v2398 = vld [vmem:[%s2383 + $0x70] sm:$0xff]
      %v2399 = vld [vmem:[%s2383 + $0x78] sm:$0xff]
      %v2400 = vcombine.low %v2150, %v2158
      %v2401 = vcombine.low %v2157, %v2159
      %v2403 = vunpack.c.l.s4 1983009808
      %v2404 = vunpack.c.0.s8 %v2403
      %v2405 = vlaneseq
      %v2406 = vshrl.u32 %v2405, 7
      %v2407 = vsub.s32 %v2404, %v2406
      %v2408 = vrot.slane %v2400, %v2407
      %v2410 = vunpack.c.l.s4 1983009808
      %v2411 = vunpack.c.0.s8 %v2410
      %v2412 = vlaneseq
      %v2413 = vshrl.u32 %v2412, 7
      %v2414 = vsub.s32 %v2411, %v2413
      %v2415 = vrot.slane %v2401, %v2414
      %v2416 = vcombine.low %v2408, %v2415
      %v2417 = vcombine.low %v2166, %v2174
      %v2418 = vcombine.low %v2182, %v2181
      %v2420 = vunpack.c.l.s4 1983009808
      %v2421 = vunpack.c.0.s8 %v2420
      %v2422 = vlaneseq
      %v2423 = vshrl.u32 %v2422, 7
      %v2424 = vsub.s32 %v2421, %v2423
      %v2425 = vrot.slane %v2417, %v2424
      %v2427 = vunpack.c.l.s4 1983009808
      %v2428 = vunpack.c.0.s8 %v2427
      %v2429 = vlaneseq
      %v2430 = vshrl.u32 %v2429, 7
      %v2431 = vsub.s32 %v2428, %v2430
      %v2432 = vrot.slane %v2418, %v2431
      %v2433 = vcombine.low %v2425, %v2432
      %v2434 = vcombine.low %v2183, %v2190
      %v2435 = vcombine.low %v2198, %v2206
      %v2437 = vunpack.c.l.s4 1983009808
      %v2438 = vunpack.c.0.s8 %v2437
      %v2439 = vlaneseq
      %v2440 = vshrl.u32 %v2439, 7
      %v2441 = vsub.s32 %v2438, %v2440
      %v2442 = vrot.slane %v2434, %v2441
      %v2444 = vunpack.c.l.s4 1983009808
      %v2445 = vunpack.c.0.s8 %v2444
      %v2446 = vlaneseq
      %v2447 = vshrl.u32 %v2446, 7
      %v2448 = vsub.s32 %v2445, %v2447
      %v2449 = vrot.slane %v2435, %v2448
      %v2450 = vcombine.low %v2442, %v2449
      %v2451 = vcombine.low %v2205, %v2207
      %v2452 = vcombine.low %v2214, %v2222
      %v2454 = vunpack.c.l.s4 1983009808
      %v2455 = vunpack.c.0.s8 %v2454
      %v2456 = vlaneseq
      %v2457 = vshrl.u32 %v2456, 7
      %v2458 = vsub.s32 %v2455, %v2457
      %v2459 = vrot.slane %v2451, %v2458
      %v2461 = vunpack.c.l.s4 1983009808
      %v2462 = vunpack.c.0.s8 %v2461
      %v2463 = vlaneseq
      %v2464 = vshrl.u32 %v2463, 7
      %v2465 = vsub.s32 %v2462, %v2464
      %v2466 = vrot.slane %v2452, %v2465
      %v2467 = vcombine.low %v2459, %v2466
      %v2468 = vcombine.low %v2230, %v2229
      %v2469 = vcombine.low %v2231, %v2238
      %v2471 = vunpack.c.l.s4 1983009808
      %v2472 = vunpack.c.0.s8 %v2471
      %v2473 = vlaneseq
      %v2474 = vshrl.u32 %v2473, 7
      %v2475 = vsub.s32 %v2472, %v2474
      %v2476 = vrot.slane %v2468, %v2475
      %v2478 = vunpack.c.l.s4 1983009808
      %v2479 = vunpack.c.0.s8 %v2478
      %v2480 = vlaneseq
      %v2481 = vshrl.u32 %v2480, 7
      %v2482 = vsub.s32 %v2479, %v2481
      %v2483 = vrot.slane %v2469, %v2482
      %v2484 = vcombine.low %v2476, %v2483
      %v2485 = vcombine.low %v2246, %v2254
      %v2486 = vcombine.low %v2253, %v2255
      %v2488 = vunpack.c.l.s4 1983009808
      %v2489 = vunpack.c.0.s8 %v2488
      %v2490 = vlaneseq
      %v2491 = vshrl.u32 %v2490, 7
      %v2492 = vsub.s32 %v2489, %v2491
      %v2493 = vrot.slane %v2485, %v2492
      %v2495 = vunpack.c.l.s4 1983009808
      %v2496 = vunpack.c.0.s8 %v2495
      %v2497 = vlaneseq
      %v2498 = vshrl.u32 %v2497, 7
      %v2499 = vsub.s32 %v2496, %v2498
      %v2500 = vrot.slane %v2486, %v2499
      %v2501 = vcombine.low %v2493, %v2500
      %v2502 = vcombine.low %v2262, %v2270
      %v2503 = vcombine.low %v2278, %v2277
      %v2505 = vunpack.c.l.s4 1983009808
      %v2506 = vunpack.c.0.s8 %v2505
      %v2507 = vlaneseq
      %v2508 = vshrl.u32 %v2507, 7
      %v2509 = vsub.s32 %v2506, %v2508
      %v2510 = vrot.slane %v2502, %v2509
      %v2512 = vunpack.c.l.s4 1983009808
      %v2513 = vunpack.c.0.s8 %v2512
      %v2514 = vlaneseq
      %v2515 = vshrl.u32 %v2514, 7
      %v2516 = vsub.s32 %v2513, %v2515
      %v2517 = vrot.slane %v2503, %v2516
      %v2518 = vcombine.low %v2510, %v2517
      %v2519 = vcombine.low %v2279, %v2286
      %v2520 = vcombine.low %v2294, %v2302
      %v2522 = vunpack.c.l.s4 1983009808
      %v2523 = vunpack.c.0.s8 %v2522
      %v2524 = vlaneseq
      %v2525 = vshrl.u32 %v2524, 7
      %v2526 = vsub.s32 %v2523, %v2525
      %v2527 = vrot.slane %v2519, %v2526
      %v2529 = vunpack.c.l.s4 1983009808
      %v2530 = vunpack.c.0.s8 %v2529
      %v2531 = vlaneseq
      %v2532 = vshrl.u32 %v2531, 7
      %v2533 = vsub.s32 %v2530, %v2532
      %v2534 = vrot.slane %v2520, %v2533
      %v2535 = vcombine.low %v2527, %v2534
      %v2536 = vcombine.low %v2301, %v2303
      %v2537 = vcombine.low %v2310, %v2318
      %v2539 = vunpack.c.l.s4 1983009808
      %v2540 = vunpack.c.0.s8 %v2539
      %v2541 = vlaneseq
      %v2542 = vshrl.u32 %v2541, 7
      %v2543 = vsub.s32 %v2540, %v2542
      %v2544 = vrot.slane %v2536, %v2543
      %v2546 = vunpack.c.l.s4 1983009808
      %v2547 = vunpack.c.0.s8 %v2546
      %v2548 = vlaneseq
      %v2549 = vshrl.u32 %v2548, 7
      %v2550 = vsub.s32 %v2547, %v2549
      %v2551 = vrot.slane %v2537, %v2550
      %v2552 = vcombine.low %v2544, %v2551
      %v2553 = vcombine.low %v2326, %v2325
      %v2554 = vcombine.low %v2327, %v2334
      %v2556 = vunpack.c.l.s4 1983009808
      %v2557 = vunpack.c.0.s8 %v2556
      %v2558 = vlaneseq
      %v2559 = vshrl.u32 %v2558, 7
      %v2560 = vsub.s32 %v2557, %v2559
      %v2561 = vrot.slane %v2553, %v2560
      %v2563 = vunpack.c.l.s4 1983009808
      %v2564 = vunpack.c.0.s8 %v2563
      %v2565 = vlaneseq
      %v2566 = vshrl.u32 %v2565, 7
      %v2567 = vsub.s32 %v2564, %v2566
      %v2568 = vrot.slane %v2554, %v2567
      %v2569 = vcombine.low %v2561, %v2568
      %v2570 = vcombine.low %v2342, %v2350
      %v2571 = vcombine.low %v2349, %v2351
      %v2573 = vunpack.c.l.s4 1983009808
      %v2574 = vunpack.c.0.s8 %v2573
      %v2575 = vlaneseq
      %v2576 = vshrl.u32 %v2575, 7
      %v2577 = vsub.s32 %v2574, %v2576
      %v2578 = vrot.slane %v2570, %v2577
      %v2580 = vunpack.c.l.s4 1983009808
      %v2581 = vunpack.c.0.s8 %v2580
      %v2582 = vlaneseq
      %v2583 = vshrl.u32 %v2582, 7
      %v2584 = vsub.s32 %v2581, %v2583
      %v2585 = vrot.slane %v2571, %v2584
      %v2586 = vcombine.low %v2578, %v2585
      %v2587 = vcombine.low %v2358, %v2366
      %v2588 = vcombine.low %v2374, %v2373
      %v2590 = vunpack.c.l.s4 1983009808
      %v2591 = vunpack.c.0.s8 %v2590
      %v2592 = vlaneseq
      %v2593 = vshrl.u32 %v2592, 7
      %v2594 = vsub.s32 %v2591, %v2593
      %v2595 = vrot.slane %v2587, %v2594
      %v2597 = vunpack.c.l.s4 1983009808
      %v2598 = vunpack.c.0.s8 %v2597
      %v2599 = vlaneseq
      %v2600 = vshrl.u32 %v2599, 7
      %v2601 = vsub.s32 %v2598, %v2600
      %v2602 = vrot.slane %v2588, %v2601
      %v2603 = vcombine.low %v2595, %v2602
      %v2604 = vcombine.low %v2375, %v2382
      %v2606 = vunpack.c.l.s4 1983009808
      %v2607 = vunpack.c.0.s8 %v2606
      %v2608 = vlaneseq
      %v2609 = vshrl.u32 %v2608, 7
      %v2610 = vsub.s32 %v2607, %v2609
      %v2611 = vrot.slane %v2604, %v2610
      %2625 = vmatprep.subr.mxu0 0.0
      %2626 = vmatpush1.msra.mxu0 %v2399
      %2627 = vmatprep.subr.mxu0 0.0
      %2628 = vmatpush1.msra.mxu0 %v2398
      %2629 = vmatprep.subr.mxu0 0.0
      %2630 = vmatpush1.msra.mxu0 %v2397
      %2631 = vmatprep.subr.mxu0 0.0
      %2632 = vmatpush1.msra.mxu0 %v2396
      %2633 = vmatprep.subr.mxu0 0.0
      %2634 = vmatpush1.msra.mxu0 %v2395
      %2635 = vmatprep.subr.mxu0 0.0
      %2636 = vmatpush1.msra.mxu0 %v2394
      %2637 = vmatprep.subr.mxu0 0.0
      %2638 = vmatpush1.msra.mxu0 %v2393
      %2639 = vmatprep.subr.mxu0 0.0
      %2640 = vmatpush1.msra.mxu0 %v2392
      %2641 = vmatprep.subr.mxu0 0.0
      %2642 = vmatpush1.msra.mxu0 %v2391
      %2643 = vmatprep.subr.mxu0 0.0
      %2644 = vmatpush1.msra.mxu0 %v2390
      %2645 = vmatprep.subr.mxu0 0.0
      %2646 = vmatpush1.msra.mxu0 %v2389
      %2647 = vmatprep.subr.mxu0 0.0
      %2648 = vmatpush1.msra.mxu0 %v2388
      %2649 = vmatprep.subr.mxu0 0.0
      %2650 = vmatpush1.msra.mxu0 %v2387
      %2651 = vmatprep.subr.mxu0 0.0
      %2652 = vmatpush1.msra.mxu0 %v2386
      %2653 = vmatprep.subr.mxu0 0.0
      %2654 = vmatpush1.msra.mxu0 %v2385
      %2655 = vmatprep.subr.mxu0 0.0
      %2656 = vmatpush1.msra.mxu0 %v2384
      %2657 = vmatprep.subr.mxu0 0.0
      %2658 = vmatpush2.msra.mxu0 0.0
      %2659 = vmatprep.subr.mxu0 0.0
      %2660 = vmatpush2.msra.mxu0 0.0
      %2661 = vmatprep.subr.mxu0 0.0
      %2662 = vmatpush2.msra.mxu0 0.0
      %2663 = vmatprep.subr.mxu0 0.0
      %2664 = vmatpush2.msra.mxu0 0.0
      %2665 = vmatprep.subr.mxu0 0.0
      %2666 = vmatpush2.msra.mxu0 0.0
      %2667 = vmatprep.subr.mxu0 0.0
      %2668 = vmatpush2.msra.mxu0 0.0
      %2669 = vmatprep.subr.mxu0 0.0
      %2670 = vmatpush2.msra.mxu0 0.0
      %2671 = vmatprep.subr.mxu0 0.0
      %2672 = vmatpush2.msra.mxu0 0.0
      %2673 = vmatprep.subr.mxu0 0.0
      %2674 = vmatpush2.msra.mxu0 0.0
      %2675 = vmatprep.subr.mxu0 0.0
      %2676 = vmatpush2.msra.mxu0 0.0
      %2677 = vmatprep.subr.mxu0 0.0
      %2678 = vmatpush2.msra.mxu0 0.0
      %2679 = vmatprep.subr.mxu0 0.0
      %2680 = vmatpush2.msra.mxu0 0.0
      %2681 = vmatprep.subr.mxu0 0.0
      %2682 = vmatpush2.msra.mxu0 0.0
      %2683 = vmatprep.subr.mxu0 0.0
      %2684 = vmatpush2.msra.mxu0 0.0
      %2685 = vmatprep.subr.mxu0 0.0
      %2686 = vmatpush2.msra.mxu0 0.0
      %2687 = vmatprep.subr.mxu0 0.0
      %2688 = vmatpush2.msra.mxu0 0.0
      %2689 = vmatprep.mubr.f32.mxu0 0.0
      %2690 = vmatmul.mubr.f32.gmra.mxu0 %v2416
      %v2691 = vpop.f32.mrf.mxu0
      %v2692 = vadd.f32 0.0, %v2691
      %v2693 = vpop.f32.mrf.mxu0
      %2694 = vmatprep.mubr.f32.mxu0 0.0
      %2695 = vmatmul.mubr.f32.gmra.mxu0 %v2433
      %v2696 = vpop.f32.mrf.mxu0
      %v2697 = vadd.f32 0.0, %v2696
      %v2698 = vpop.f32.mrf.mxu0
      %2699 = vmatprep.mubr.f32.mxu0 0.0
      %2700 = vmatmul.mubr.f32.gmra.mxu0 %v2450
      %v2701 = vpop.f32.mrf.mxu0
      %v2702 = vadd.f32 0.0, %v2701
      %v2703 = vpop.f32.mrf.mxu0
      %2704 = vmatprep.mubr.f32.mxu0 0.0
      %2705 = vmatmul.mubr.f32.gmra.mxu0 %v2467
      %v2706 = vpop.f32.mrf.mxu0
      %v2707 = vadd.f32 0.0, %v2706
      %v2708 = vpop.f32.mrf.mxu0
      %2709 = vmatprep.mubr.f32.mxu0 0.0
      %2710 = vmatmul.mubr.f32.gmra.mxu0 %v2484
      %v2711 = vpop.f32.mrf.mxu0
      %v2712 = vadd.f32 0.0, %v2711
      %v2713 = vpop.f32.mrf.mxu0
      %2714 = vmatprep.mubr.f32.mxu0 0.0
      %2715 = vmatmul.mubr.f32.gmra.mxu0 %v2501
      %v2716 = vpop.f32.mrf.mxu0
      %v2717 = vadd.f32 0.0, %v2716
      %v2718 = vpop.f32.mrf.mxu0
      %2719 = vmatprep.mubr.f32.mxu0 0.0
      %2720 = vmatmul.mubr.f32.gmra.mxu0 %v2518
      %v2721 = vpop.f32.mrf.mxu0
      %v2722 = vadd.f32 0.0, %v2721
      %v2723 = vpop.f32.mrf.mxu0
      %2724 = vmatprep.mubr.f32.mxu0 0.0
      %2725 = vmatmul.mubr.f32.gmra.mxu0 %v2535
      %v2726 = vpop.f32.mrf.mxu0
      %v2727 = vadd.f32 0.0, %v2726
      %v2728 = vpop.f32.mrf.mxu0
      %2729 = vmatprep.mubr.f32.mxu0 0.0
      %2730 = vmatmul.mubr.f32.gmra.mxu0 %v2552
      %v2731 = vpop.f32.mrf.mxu0
      %v2732 = vadd.f32 0.0, %v2731
      %v2733 = vpop.f32.mrf.mxu0
      %2734 = vmatprep.mubr.f32.mxu0 0.0
      %2735 = vmatmul.mubr.f32.gmra.mxu0 %v2569
      %v2736 = vpop.f32.mrf.mxu0
      %v2737 = vadd.f32 0.0, %v2736
      %v2738 = vpop.f32.mrf.mxu0
      %2739 = vmatprep.mubr.f32.mxu0 0.0
      %2740 = vmatmul.mubr.f32.gmra.mxu0 %v2586
      %v2741 = vpop.f32.mrf.mxu0
      %v2742 = vadd.f32 0.0, %v2741
      %v2743 = vpop.f32.mrf.mxu0
      %2744 = vmatprep.mubr.f32.mxu0 0.0
      %2745 = vmatmul.mubr.f32.gmra.mxu0 %v2603
      %v2746 = vpop.f32.mrf.mxu0
      %v2747 = vadd.f32 0.0, %v2746
      %v2748 = vpop.f32.mrf.mxu0
      %2749 = vmatprep.mubr.f32.mxu0 0.0
      %2750 = vmatmul.mubr.f32.gmra.mxu0 %v2611
      %v2751 = vpop.f32.mrf.mxu0
      %v2752 = vadd.f32 0.0, %v2751
      %v2753 = vpop.f32.mrf.mxu0
      %2754 = vdwg.mxu0
      %v2755 = vadd.f32 %v2040, %v2692
      %v2756 = vadd.f32 %v2045, %v2697
      %v2757 = vadd.f32 %v2050, %v2702
      %v2758 = vadd.f32 %v2055, %v2707
      %v2759 = vadd.f32 %v2060, %v2712
      %v2760 = vadd.f32 %v2065, %v2717
      %v2761 = vadd.f32 %v2070, %v2722
      %v2762 = vadd.f32 %v2075, %v2727
      %v2763 = vadd.f32 %v2080, %v2732
      %v2764 = vadd.f32 %v2085, %v2737
      %v2765 = vadd.f32 %v2090, %v2742
      %v2766 = vadd.f32 %v2095, %v2747
      %v2767 = vadd.f32 %v2100, %v2752
      %s2768 = scalar_lea.vmem [#allocation3], 16
      %v2769 = vld [vmem:[%s2768] sm:$0xff]
      %v2770 = vld [vmem:[%s2768 + $0x8] sm:$0x3]
      %v2771 = vld [vmem:[%s2768 + $0x10] sm:$0xff]
      %v2772 = vld [vmem:[%s2768 + $0x18] sm:$0x3]
      %v2773 = vld [vmem:[%s2768 + $0x20] sm:$0xff]
      %v2774 = vld [vmem:[%s2768 + $0x28] sm:$0x3]
      %v2775 = vld [vmem:[%s2768 + $0x30] sm:$0xff]
      %v2776 = vld [vmem:[%s2768 + $0x38] sm:$0x3]
      %v2777 = vld [vmem:[%s2768 + $0x40] sm:$0xff]
      %v2778 = vld [vmem:[%s2768 + $0x48] sm:$0x3]
      %v2779 = vld [vmem:[%s2768 + $0x50] sm:$0xff]
      %v2780 = vld [vmem:[%s2768 + $0x58] sm:$0x3]
      %v2781 = vld [vmem:[%s2768 + $0x60] sm:$0xff]
      %v2782 = vld [vmem:[%s2768 + $0x68] sm:$0x3]
      %v2783 = vld [vmem:[%s2768 + $0x70] sm:$0xff]
      %v2784 = vld [vmem:[%s2768 + $0x78] sm:$0x3]
      %v2785 = vld [vmem:[%s2768 + $0x80] sm:$0xff]
      %v2786 = vld [vmem:[%s2768 + $0x88] sm:$0x3]
      %v2787 = vld [vmem:[%s2768 + $0x90] sm:$0xff]
      %v2788 = vld [vmem:[%s2768 + $0x98] sm:$0x3]
      %v2809 = vcombine.high %v2769, %v2769
      %v2811 = vunpack.c.l.s4 1983009808
      %v2812 = vunpack.c.0.s8 %v2811
      %v2813 = vlaneseq
      %v2814 = vshrl.u32 %v2813, 7
      %v2815 = vsub.s32 %v2812, %v2814
      %v2816 = vrot.slane %v2769, %v2815
      %v2818 = vunpack.c.l.s4 1983009808
      %v2819 = vunpack.c.0.s8 %v2818
      %v2820 = vlaneseq
      %v2821 = vshrl.u32 %v2820, 7
      %v2822 = vsub.s32 %v2819, %v2821
      %v2823 = vrot.slane %v2809, %v2822
      %v2824 = vcombine.high %v2816, %v2816
      %v2825 = vcombine.high %v2823, %v2823
      %v2827 = vunpack.c.l.s4 1983009808
      %v2828 = vunpack.c.0.s8 %v2827
      %v2829 = vlaneseq
      %v2830 = vshrl.u32 %v2829, 7
      %v2831 = vsub.s32 %v2828, %v2830
      %v2832 = vrot.slane %v2770, %v2831
      %v2833 = vcombine.high %v2771, %v2771
      %v2835 = vunpack.c.l.s4 1983009808
      %v2836 = vunpack.c.0.s8 %v2835
      %v2837 = vlaneseq
      %v2838 = vshrl.u32 %v2837, 7
      %v2839 = vsub.s32 %v2836, %v2838
      %v2840 = vrot.slane %v2771, %v2839
      %v2842 = vunpack.c.l.s4 1983009808
      %v2843 = vunpack.c.0.s8 %v2842
      %v2844 = vlaneseq
      %v2845 = vshrl.u32 %v2844, 7
      %v2846 = vsub.s32 %v2843, %v2845
      %v2847 = vrot.slane %v2833, %v2846
      %v2848 = vcombine.high %v2840, %v2840
      %v2849 = vcombine.high %v2847, %v2847
      %v2851 = vunpack.c.l.s4 1983009808
      %v2852 = vunpack.c.0.s8 %v2851
      %v2853 = vlaneseq
      %v2854 = vshrl.u32 %v2853, 7
      %v2855 = vsub.s32 %v2852, %v2854
      %v2856 = vrot.slane %v2772, %v2855
      %v2857 = vcombine.high %v2773, %v2773
      %v2859 = vunpack.c.l.s4 1983009808
      %v2860 = vunpack.c.0.s8 %v2859
      %v2861 = vlaneseq
      %v2862 = vshrl.u32 %v2861, 7
      %v2863 = vsub.s32 %v2860, %v2862
      %v2864 = vrot.slane %v2773, %v2863
      %v2866 = vunpack.c.l.s4 1983009808
      %v2867 = vunpack.c.0.s8 %v2866
      %v2868 = vlaneseq
      %v2869 = vshrl.u32 %v2868, 7
      %v2870 = vsub.s32 %v2867, %v2869
      %v2871 = vrot.slane %v2857, %v2870
      %v2872 = vcombine.high %v2864, %v2864
      %v2873 = vcombine.high %v2871, %v2871
      %v2875 = vunpack.c.l.s4 1983009808
      %v2876 = vunpack.c.0.s8 %v2875
      %v2877 = vlaneseq
      %v2878 = vshrl.u32 %v2877, 7
      %v2879 = vsub.s32 %v2876, %v2878
      %v2880 = vrot.slane %v2774, %v2879
      %v2881 = vcombine.high %v2775, %v2775
      %v2883 = vunpack.c.l.s4 1983009808
      %v2884 = vunpack.c.0.s8 %v2883
      %v2885 = vlaneseq
      %v2886 = vshrl.u32 %v2885, 7
      %v2887 = vsub.s32 %v2884, %v2886
      %v2888 = vrot.slane %v2775, %v2887
      %v2890 = vunpack.c.l.s4 1983009808
      %v2891 = vunpack.c.0.s8 %v2890
      %v2892 = vlaneseq
      %v2893 = vshrl.u32 %v2892, 7
      %v2894 = vsub.s32 %v2891, %v2893
      %v2895 = vrot.slane %v2881, %v2894
      %v2896 = vcombine.high %v2888, %v2888
      %v2897 = vcombine.high %v2895, %v2895
      %v2899 = vunpack.c.l.s4 1983009808
      %v2900 = vunpack.c.0.s8 %v2899
      %v2901 = vlaneseq
      %v2902 = vshrl.u32 %v2901, 7
      %v2903 = vsub.s32 %v2900, %v2902
      %v2904 = vrot.slane %v2776, %v2903
      %v2905 = vcombine.high %v2777, %v2777
      %v2907 = vunpack.c.l.s4 1983009808
      %v2908 = vunpack.c.0.s8 %v2907
      %v2909 = vlaneseq
      %v2910 = vshrl.u32 %v2909, 7
      %v2911 = vsub.s32 %v2908, %v2910
      %v2912 = vrot.slane %v2777, %v2911
      %v2914 = vunpack.c.l.s4 1983009808
      %v2915 = vunpack.c.0.s8 %v2914
      %v2916 = vlaneseq
      %v2917 = vshrl.u32 %v2916, 7
      %v2918 = vsub.s32 %v2915, %v2917
      %v2919 = vrot.slane %v2905, %v2918
      %v2920 = vcombine.high %v2912, %v2912
      %v2921 = vcombine.high %v2919, %v2919
      %v2923 = vunpack.c.l.s4 1983009808
      %v2924 = vunpack.c.0.s8 %v2923
      %v2925 = vlaneseq
      %v2926 = vshrl.u32 %v2925, 7
      %v2927 = vsub.s32 %v2924, %v2926
      %v2928 = vrot.slane %v2778, %v2927
      %v2929 = vcombine.high %v2779, %v2779
      %v2931 = vunpack.c.l.s4 1983009808
      %v2932 = vunpack.c.0.s8 %v2931
      %v2933 = vlaneseq
      %v2934 = vshrl.u32 %v2933, 7
      %v2935 = vsub.s32 %v2932, %v2934
      %v2936 = vrot.slane %v2779, %v2935
      %v2938 = vunpack.c.l.s4 1983009808
      %v2939 = vunpack.c.0.s8 %v2938
      %v2940 = vlaneseq
      %v2941 = vshrl.u32 %v2940, 7
      %v2942 = vsub.s32 %v2939, %v2941
      %v2943 = vrot.slane %v2929, %v2942
      %v2944 = vcombine.high %v2936, %v2936
      %v2945 = vcombine.high %v2943, %v2943
      %v2947 = vunpack.c.l.s4 1983009808
      %v2948 = vunpack.c.0.s8 %v2947
      %v2949 = vlaneseq
      %v2950 = vshrl.u32 %v2949, 7
      %v2951 = vsub.s32 %v2948, %v2950
      %v2952 = vrot.slane %v2780, %v2951
      %v2953 = vcombine.high %v2781, %v2781
      %v2955 = vunpack.c.l.s4 1983009808
      %v2956 = vunpack.c.0.s8 %v2955
      %v2957 = vlaneseq
      %v2958 = vshrl.u32 %v2957, 7
      %v2959 = vsub.s32 %v2956, %v2958
      %v2960 = vrot.slane %v2781, %v2959
      %v2962 = vunpack.c.l.s4 1983009808
      %v2963 = vunpack.c.0.s8 %v2962
      %v2964 = vlaneseq
      %v2965 = vshrl.u32 %v2964, 7
      %v2966 = vsub.s32 %v2963, %v2965
      %v2967 = vrot.slane %v2953, %v2966
      %v2968 = vcombine.high %v2960, %v2960
      %v2969 = vcombine.high %v2967, %v2967
      %v2971 = vunpack.c.l.s4 1983009808
      %v2972 = vunpack.c.0.s8 %v2971
      %v2973 = vlaneseq
      %v2974 = vshrl.u32 %v2973, 7
      %v2975 = vsub.s32 %v2972, %v2974
      %v2976 = vrot.slane %v2782, %v2975
      %v2977 = vcombine.high %v2783, %v2783
      %v2979 = vunpack.c.l.s4 1983009808
      %v2980 = vunpack.c.0.s8 %v2979
      %v2981 = vlaneseq
      %v2982 = vshrl.u32 %v2981, 7
      %v2983 = vsub.s32 %v2980, %v2982
      %v2984 = vrot.slane %v2783, %v2983
      %v2986 = vunpack.c.l.s4 1983009808
      %v2987 = vunpack.c.0.s8 %v2986
      %v2988 = vlaneseq
      %v2989 = vshrl.u32 %v2988, 7
      %v2990 = vsub.s32 %v2987, %v2989
      %v2991 = vrot.slane %v2977, %v2990
      %v2992 = vcombine.high %v2984, %v2984
      %v2993 = vcombine.high %v2991, %v2991
      %v2995 = vunpack.c.l.s4 1983009808
      %v2996 = vunpack.c.0.s8 %v2995
      %v2997 = vlaneseq
      %v2998 = vshrl.u32 %v2997, 7
      %v2999 = vsub.s32 %v2996, %v2998
      %v3000 = vrot.slane %v2784, %v2999
      %v3001 = vcombine.high %v2785, %v2785
      %v3003 = vunpack.c.l.s4 1983009808
      %v3004 = vunpack.c.0.s8 %v3003
      %v3005 = vlaneseq
      %v3006 = vshrl.u32 %v3005, 7
      %v3007 = vsub.s32 %v3004, %v3006
      %v3008 = vrot.slane %v2785, %v3007
      %v3010 = vunpack.c.l.s4 1983009808
      %v3011 = vunpack.c.0.s8 %v3010
      %v3012 = vlaneseq
      %v3013 = vshrl.u32 %v3012, 7
      %v3014 = vsub.s32 %v3011, %v3013
      %v3015 = vrot.slane %v3001, %v3014
      %v3016 = vcombine.high %v3008, %v3008
      %v3017 = vcombine.high %v3015, %v3015
      %v3019 = vunpack.c.l.s4 1983009808
      %v3020 = vunpack.c.0.s8 %v3019
      %v3021 = vlaneseq
      %v3022 = vshrl.u32 %v3021, 7
      %v3023 = vsub.s32 %v3020, %v3022
      %v3024 = vrot.slane %v2786, %v3023
      %v3025 = vcombine.high %v2787, %v2787
      %v3027 = vunpack.c.l.s4 1983009808
      %v3028 = vunpack.c.0.s8 %v3027
      %v3029 = vlaneseq
      %v3030 = vshrl.u32 %v3029, 7
      %v3031 = vsub.s32 %v3028, %v3030
      %v3032 = vrot.slane %v2787, %v3031
      %v3034 = vunpack.c.l.s4 1983009808
      %v3035 = vunpack.c.0.s8 %v3034
      %v3036 = vlaneseq
      %v3037 = vshrl.u32 %v3036, 7
      %v3038 = vsub.s32 %v3035, %v3037
      %v3039 = vrot.slane %v3025, %v3038
      %v3040 = vcombine.high %v3032, %v3032
      %v3041 = vcombine.high %v3039, %v3039
      %v3043 = vunpack.c.l.s4 1983009808
      %v3044 = vunpack.c.0.s8 %v3043
      %v3045 = vlaneseq
      %v3046 = vshrl.u32 %v3045, 7
      %v3047 = vsub.s32 %v3044, %v3046
      %v3048 = vrot.slane %v2788, %v3047
      %s3049 = scalar_lea.vmem %s1, 384
      %v3050 = vld [vmem:[%s3049] sm:$0xff]
      %v3051 = vld [vmem:[%s3049 + $0x8] sm:$0xff]
      %v3052 = vld [vmem:[%s3049 + $0x10] sm:$0xff]
      %v3053 = vld [vmem:[%s3049 + $0x18] sm:$0xff]
      %v3054 = vld [vmem:[%s3049 + $0x20] sm:$0xff]
      %v3055 = vld [vmem:[%s3049 + $0x28] sm:$0xff]
      %v3056 = vld [vmem:[%s3049 + $0x30] sm:$0xff]
      %v3057 = vld [vmem:[%s3049 + $0x38] sm:$0xff]
      %v3058 = vld [vmem:[%s3049 + $0x40] sm:$0xff]
      %v3059 = vld [vmem:[%s3049 + $0x48] sm:$0xff]
      %v3060 = vld [vmem:[%s3049 + $0x50] sm:$0xff]
      %v3061 = vld [vmem:[%s3049 + $0x58] sm:$0xff]
      %v3062 = vld [vmem:[%s3049 + $0x60] sm:$0xff]
      %v3063 = vld [vmem:[%s3049 + $0x68] sm:$0xff]
      %v3064 = vld [vmem:[%s3049 + $0x70] sm:$0xff]
      %v3065 = vld [vmem:[%s3049 + $0x78] sm:$0xff]
      %v3066 = vcombine.low %v2816, %v2824
      %v3067 = vcombine.low %v2823, %v2825
      %v3069 = vunpack.c.l.s4 1983009808
      %v3070 = vunpack.c.0.s8 %v3069
      %v3071 = vlaneseq
      %v3072 = vshrl.u32 %v3071, 7
      %v3073 = vsub.s32 %v3070, %v3072
      %v3074 = vrot.slane %v3066, %v3073
      %v3076 = vunpack.c.l.s4 1983009808
      %v3077 = vunpack.c.0.s8 %v3076
      %v3078 = vlaneseq
      %v3079 = vshrl.u32 %v3078, 7
      %v3080 = vsub.s32 %v3077, %v3079
      %v3081 = vrot.slane %v3067, %v3080
      %v3082 = vcombine.low %v3074, %v3081
      %v3083 = vcombine.low %v2832, %v2840
      %v3084 = vcombine.low %v2848, %v2847
      %v3086 = vunpack.c.l.s4 1983009808
      %v3087 = vunpack.c.0.s8 %v3086
      %v3088 = vlaneseq
      %v3089 = vshrl.u32 %v3088, 7
      %v3090 = vsub.s32 %v3087, %v3089
      %v3091 = vrot.slane %v3083, %v3090
      %v3093 = vunpack.c.l.s4 1983009808
      %v3094 = vunpack.c.0.s8 %v3093
      %v3095 = vlaneseq
      %v3096 = vshrl.u32 %v3095, 7
      %v3097 = vsub.s32 %v3094, %v3096
      %v3098 = vrot.slane %v3084, %v3097
      %v3099 = vcombine.low %v3091, %v3098
      %v3100 = vcombine.low %v2849, %v2856
      %v3101 = vcombine.low %v2864, %v2872
      %v3103 = vunpack.c.l.s4 1983009808
      %v3104 = vunpack.c.0.s8 %v3103
      %v3105 = vlaneseq
      %v3106 = vshrl.u32 %v3105, 7
      %v3107 = vsub.s32 %v3104, %v3106
      %v3108 = vrot.slane %v3100, %v3107
      %v3110 = vunpack.c.l.s4 1983009808
      %v3111 = vunpack.c.0.s8 %v3110
      %v3112 = vlaneseq
      %v3113 = vshrl.u32 %v3112, 7
      %v3114 = vsub.s32 %v3111, %v3113
      %v3115 = vrot.slane %v3101, %v3114
      %v3116 = vcombine.low %v3108, %v3115
      %v3117 = vcombine.low %v2871, %v2873
      %v3118 = vcombine.low %v2880, %v2888
      %v3120 = vunpack.c.l.s4 1983009808
      %v3121 = vunpack.c.0.s8 %v3120
      %v3122 = vlaneseq
      %v3123 = vshrl.u32 %v3122, 7
      %v3124 = vsub.s32 %v3121, %v3123
      %v3125 = vrot.slane %v3117, %v3124
      %v3127 = vunpack.c.l.s4 1983009808
      %v3128 = vunpack.c.0.s8 %v3127
      %v3129 = vlaneseq
      %v3130 = vshrl.u32 %v3129, 7
      %v3131 = vsub.s32 %v3128, %v3130
      %v3132 = vrot.slane %v3118, %v3131
      %v3133 = vcombine.low %v3125, %v3132
      %v3134 = vcombine.low %v2896, %v2895
      %v3135 = vcombine.low %v2897, %v2904
      %v3137 = vunpack.c.l.s4 1983009808
      %v3138 = vunpack.c.0.s8 %v3137
      %v3139 = vlaneseq
      %v3140 = vshrl.u32 %v3139, 7
      %v3141 = vsub.s32 %v3138, %v3140
      %v3142 = vrot.slane %v3134, %v3141
      %v3144 = vunpack.c.l.s4 1983009808
      %v3145 = vunpack.c.0.s8 %v3144
      %v3146 = vlaneseq
      %v3147 = vshrl.u32 %v3146, 7
      %v3148 = vsub.s32 %v3145, %v3147
      %v3149 = vrot.slane %v3135, %v3148
      %v3150 = vcombine.low %v3142, %v3149
      %v3151 = vcombine.low %v2912, %v2920
      %v3152 = vcombine.low %v2919, %v2921
      %v3154 = vunpack.c.l.s4 1983009808
      %v3155 = vunpack.c.0.s8 %v3154
      %v3156 = vlaneseq
      %v3157 = vshrl.u32 %v3156, 7
      %v3158 = vsub.s32 %v3155, %v3157
      %v3159 = vrot.slane %v3151, %v3158
      %v3161 = vunpack.c.l.s4 1983009808
      %v3162 = vunpack.c.0.s8 %v3161
      %v3163 = vlaneseq
      %v3164 = vshrl.u32 %v3163, 7
      %v3165 = vsub.s32 %v3162, %v3164
      %v3166 = vrot.slane %v3152, %v3165
      %v3167 = vcombine.low %v3159, %v3166
      %v3168 = vcombine.low %v2928, %v2936
      %v3169 = vcombine.low %v2944, %v2943
      %v3171 = vunpack.c.l.s4 1983009808
      %v3172 = vunpack.c.0.s8 %v3171
      %v3173 = vlaneseq
      %v3174 = vshrl.u32 %v3173, 7
      %v3175 = vsub.s32 %v3172, %v3174
      %v3176 = vrot.slane %v3168, %v3175
      %v3178 = vunpack.c.l.s4 1983009808
      %v3179 = vunpack.c.0.s8 %v3178
      %v3180 = vlaneseq
      %v3181 = vshrl.u32 %v3180, 7
      %v3182 = vsub.s32 %v3179, %v3181
      %v3183 = vrot.slane %v3169, %v3182
      %v3184 = vcombine.low %v3176, %v3183
      %v3185 = vcombine.low %v2945, %v2952
      %v3186 = vcombine.low %v2960, %v2968
      %v3188 = vunpack.c.l.s4 1983009808
      %v3189 = vunpack.c.0.s8 %v3188
      %v3190 = vlaneseq
      %v3191 = vshrl.u32 %v3190, 7
      %v3192 = vsub.s32 %v3189, %v3191
      %v3193 = vrot.slane %v3185, %v3192
      %v3195 = vunpack.c.l.s4 1983009808
      %v3196 = vunpack.c.0.s8 %v3195
      %v3197 = vlaneseq
      %v3198 = vshrl.u32 %v3197, 7
      %v3199 = vsub.s32 %v3196, %v3198
      %v3200 = vrot.slane %v3186, %v3199
      %v3201 = vcombine.low %v3193, %v3200
      %v3202 = vcombine.low %v2967, %v2969
      %v3203 = vcombine.low %v2976, %v2984
      %v3205 = vunpack.c.l.s4 1983009808
      %v3206 = vunpack.c.0.s8 %v3205
      %v3207 = vlaneseq
      %v3208 = vshrl.u32 %v3207, 7
      %v3209 = vsub.s32 %v3206, %v3208
      %v3210 = vrot.slane %v3202, %v3209
      %v3212 = vunpack.c.l.s4 1983009808
      %v3213 = vunpack.c.0.s8 %v3212
      %v3214 = vlaneseq
      %v3215 = vshrl.u32 %v3214, 7
      %v3216 = vsub.s32 %v3213, %v3215
      %v3217 = vrot.slane %v3203, %v3216
      %v3218 = vcombine.low %v3210, %v3217
      %v3219 = vcombine.low %v2992, %v2991
      %v3220 = vcombine.low %v2993, %v3000
      %v3222 = vunpack.c.l.s4 1983009808
      %v3223 = vunpack.c.0.s8 %v3222
      %v3224 = vlaneseq
      %v3225 = vshrl.u32 %v3224, 7
      %v3226 = vsub.s32 %v3223, %v3225
      %v3227 = vrot.slane %v3219, %v3226
      %v3229 = vunpack.c.l.s4 1983009808
      %v3230 = vunpack.c.0.s8 %v3229
      %v3231 = vlaneseq
      %v3232 = vshrl.u32 %v3231, 7
      %v3233 = vsub.s32 %v3230, %v3232
      %v3234 = vrot.slane %v3220, %v3233
      %v3235 = vcombine.low %v3227, %v3234
      %v3236 = vcombine.low %v3008, %v3016
      %v3237 = vcombine.low %v3015, %v3017
      %v3239 = vunpack.c.l.s4 1983009808
      %v3240 = vunpack.c.0.s8 %v3239
      %v3241 = vlaneseq
      %v3242 = vshrl.u32 %v3241, 7
      %v3243 = vsub.s32 %v3240, %v3242
      %v3244 = vrot.slane %v3236, %v3243
      %v3246 = vunpack.c.l.s4 1983009808
      %v3247 = vunpack.c.0.s8 %v3246
      %v3248 = vlaneseq
      %v3249 = vshrl.u32 %v3248, 7
      %v3250 = vsub.s32 %v3247, %v3249
      %v3251 = vrot.slane %v3237, %v3250
      %v3252 = vcombine.low %v3244, %v3251
      %v3253 = vcombine.low %v3024, %v3032
      %v3254 = vcombine.low %v3040, %v3039
      %v3256 = vunpack.c.l.s4 1983009808
      %v3257 = vunpack.c.0.s8 %v3256
      %v3258 = vlaneseq
      %v3259 = vshrl.u32 %v3258, 7
      %v3260 = vsub.s32 %v3257, %v3259
      %v3261 = vrot.slane %v3253, %v3260
      %v3263 = vunpack.c.l.s4 1983009808
      %v3264 = vunpack.c.0.s8 %v3263
      %v3265 = vlaneseq
      %v3266 = vshrl.u32 %v3265, 7
      %v3267 = vsub.s32 %v3264, %v3266
      %v3268 = vrot.slane %v3254, %v3267
      %v3269 = vcombine.low %v3261, %v3268
      %v3270 = vcombine.low %v3041, %v3048
      %v3272 = vunpack.c.l.s4 1983009808
      %v3273 = vunpack.c.0.s8 %v3272
      %v3274 = vlaneseq
      %v3275 = vshrl.u32 %v3274, 7
      %v3276 = vsub.s32 %v3273, %v3275
      %v3277 = vrot.slane %v3270, %v3276
      %3291 = vmatprep.subr.mxu0 0.0
      %3292 = vmatpush1.msra.mxu0 %v3065
      %3293 = vmatprep.subr.mxu0 0.0
      %3294 = vmatpush1.msra.mxu0 %v3064
      %3295 = vmatprep.subr.mxu0 0.0
      %3296 = vmatpush1.msra.mxu0 %v3063
      %3297 = vmatprep.subr.mxu0 0.0
      %3298 = vmatpush1.msra.mxu0 %v3062
      %3299 = vmatprep.subr.mxu0 0.0
      %3300 = vmatpush1.msra.mxu0 %v3061
      %3301 = vmatprep.subr.mxu0 0.0
      %3302 = vmatpush1.msra.mxu0 %v3060
      %3303 = vmatprep.subr.mxu0 0.0
      %3304 = vmatpush1.msra.mxu0 %v3059
      %3305 = vmatprep.subr.mxu0 0.0
      %3306 = vmatpush1.msra.mxu0 %v3058
      %3307 = vmatprep.subr.mxu0 0.0
      %3308 = vmatpush1.msra.mxu0 %v3057
      %3309 = vmatprep.subr.mxu0 0.0
      %3310 = vmatpush1.msra.mxu0 %v3056
      %3311 = vmatprep.subr.mxu0 0.0
      %3312 = vmatpush1.msra.mxu0 %v3055
      %3313 = vmatprep.subr.mxu0 0.0
      %3314 = vmatpush1.msra.mxu0 %v3054
      %3315 = vmatprep.subr.mxu0 0.0
      %3316 = vmatpush1.msra.mxu0 %v3053
      %3317 = vmatprep.subr.mxu0 0.0
      %3318 = vmatpush1.msra.mxu0 %v3052
      %3319 = vmatprep.subr.mxu0 0.0
      %3320 = vmatpush1.msra.mxu0 %v3051
      %3321 = vmatprep.subr.mxu0 0.0
      %3322 = vmatpush1.msra.mxu0 %v3050
      %3323 = vmatprep.subr.mxu0 0.0
      %3324 = vmatpush2.msra.mxu0 0.0
      %3325 = vmatprep.subr.mxu0 0.0
      %3326 = vmatpush2.msra.mxu0 0.0
      %3327 = vmatprep.subr.mxu0 0.0
      %3328 = vmatpush2.msra.mxu0 0.0
      %3329 = vmatprep.subr.mxu0 0.0
      %3330 = vmatpush2.msra.mxu0 0.0
      %3331 = vmatprep.subr.mxu0 0.0
      %3332 = vmatpush2.msra.mxu0 0.0
      %3333 = vmatprep.subr.mxu0 0.0
      %3334 = vmatpush2.msra.mxu0 0.0
      %3335 = vmatprep.subr.mxu0 0.0
      %3336 = vmatpush2.msra.mxu0 0.0
      %3337 = vmatprep.subr.mxu0 0.0
      %3338 = vmatpush2.msra.mxu0 0.0
      %3339 = vmatprep.subr.mxu0 0.0
      %3340 = vmatpush2.msra.mxu0 0.0
      %3341 = vmatprep.subr.mxu0 0.0
      %3342 = vmatpush2.msra.mxu0 0.0
      %3343 = vmatprep.subr.mxu0 0.0
      %3344 = vmatpush2.msra.mxu0 0.0
      %3345 = vmatprep.subr.mxu0 0.0
      %3346 = vmatpush2.msra.mxu0 0.0
      %3347 = vmatprep.subr.mxu0 0.0
      %3348 = vmatpush2.msra.mxu0 0.0
      %3349 = vmatprep.subr.mxu0 0.0
      %3350 = vmatpush2.msra.mxu0 0.0
      %3351 = vmatprep.subr.mxu0 0.0
      %3352 = vmatpush2.msra.mxu0 0.0
      %3353 = vmatprep.subr.mxu0 0.0
      %3354 = vmatpush2.msra.mxu0 0.0
      %3355 = vmatprep.mubr.f32.mxu0 0.0
      %3356 = vmatmul.mubr.f32.gmra.mxu0 %v3082
      %v3357 = vpop.f32.mrf.mxu0
      %v3358 = vadd.f32 0.0, %v3357
      %v3359 = vpop.f32.mrf.mxu0
      %3360 = vmatprep.mubr.f32.mxu0 0.0
      %3361 = vmatmul.mubr.f32.gmra.mxu0 %v3099
      %v3362 = vpop.f32.mrf.mxu0
      %v3363 = vadd.f32 0.0, %v3362
      %v3364 = vpop.f32.mrf.mxu0
      %3365 = vmatprep.mubr.f32.mxu0 0.0
      %3366 = vmatmul.mubr.f32.gmra.mxu0 %v3116
      %v3367 = vpop.f32.mrf.mxu0
      %v3368 = vadd.f32 0.0, %v3367
      %v3369 = vpop.f32.mrf.mxu0
      %3370 = vmatprep.mubr.f32.mxu0 0.0
      %3371 = vmatmul.mubr.f32.gmra.mxu0 %v3133
      %v3372 = vpop.f32.mrf.mxu0
      %v3373 = vadd.f32 0.0, %v3372
      %v3374 = vpop.f32.mrf.mxu0
      %3375 = vmatprep.mubr.f32.mxu0 0.0
      %3376 = vmatmul.mubr.f32.gmra.mxu0 %v3150
      %v3377 = vpop.f32.mrf.mxu0
      %v3378 = vadd.f32 0.0, %v3377
      %v3379 = vpop.f32.mrf.mxu0
      %3380 = vmatprep.mubr.f32.mxu0 0.0
      %3381 = vmatmul.mubr.f32.gmra.mxu0 %v3167
      %v3382 = vpop.f32.mrf.mxu0
      %v3383 = vadd.f32 0.0, %v3382
      %v3384 = vpop.f32.mrf.mxu0
      %3385 = vmatprep.mubr.f32.mxu0 0.0
      %3386 = vmatmul.mubr.f32.gmra.mxu0 %v3184
      %v3387 = vpop.f32.mrf.mxu0
      %v3388 = vadd.f32 0.0, %v3387
      %v3389 = vpop.f32.mrf.mxu0
      %3390 = vmatprep.mubr.f32.mxu0 0.0
      %3391 = vmatmul.mubr.f32.gmra.mxu0 %v3201
      %v3392 = vpop.f32.mrf.mxu0
      %v3393 = vadd.f32 0.0, %v3392
      %v3394 = vpop.f32.mrf.mxu0
      %3395 = vmatprep.mubr.f32.mxu0 0.0
      %3396 = vmatmul.mubr.f32.gmra.mxu0 %v3218
      %v3397 = vpop.f32.mrf.mxu0
      %v3398 = vadd.f32 0.0, %v3397
      %v3399 = vpop.f32.mrf.mxu0
      %3400 = vmatprep.mubr.f32.mxu0 0.0
      %3401 = vmatmul.mubr.f32.gmra.mxu0 %v3235
      %v3402 = vpop.f32.mrf.mxu0
      %v3403 = vadd.f32 0.0, %v3402
      %v3404 = vpop.f32.mrf.mxu0
      %3405 = vmatprep.mubr.f32.mxu0 0.0
      %3406 = vmatmul.mubr.f32.gmra.mxu0 %v3252
      %v3407 = vpop.f32.mrf.mxu0
      %v3408 = vadd.f32 0.0, %v3407
      %v3409 = vpop.f32.mrf.mxu0
      %3410 = vmatprep.mubr.f32.mxu0 0.0
      %3411 = vmatmul.mubr.f32.gmra.mxu0 %v3269
      %v3412 = vpop.f32.mrf.mxu0
      %v3413 = vadd.f32 0.0, %v3412
      %v3414 = vpop.f32.mrf.mxu0
      %3415 = vmatprep.mubr.f32.mxu0 0.0
      %3416 = vmatmul.mubr.f32.gmra.mxu0 %v3277
      %v3417 = vpop.f32.mrf.mxu0
      %v3418 = vadd.f32 0.0, %v3417
      %v3419 = vpop.f32.mrf.mxu0
      %3420 = vdwg.mxu0
      %v3421 = vadd.f32 %v2755, %v3358
      %v3422 = vadd.f32 %v2756, %v3363
      %v3423 = vadd.f32 %v2757, %v3368
      %v3424 = vadd.f32 %v2758, %v3373
      %v3425 = vadd.f32 %v2759, %v3378
      %v3426 = vadd.f32 %v2760, %v3383
      %v3427 = vadd.f32 %v2761, %v3388
      %v3428 = vadd.f32 %v2762, %v3393
      %v3429 = vadd.f32 %v2763, %v3398
      %v3430 = vadd.f32 %v2764, %v3403
      %v3431 = vadd.f32 %v2765, %v3408
      %v3432 = vadd.f32 %v2766, %v3413
      %v3433 = vadd.f32 %v2767, %v3418
      %v3434 = vld [vmem:[%s2768 + $0x1] sm:$0xff]
      %v3435 = vld [vmem:[%s2768 + $0x9] sm:$0x3]
      %v3436 = vld [vmem:[%s2768 + $0x11] sm:$0xff]
      %v3437 = vld [vmem:[%s2768 + $0x19] sm:$0x3]
      %v3438 = vld [vmem:[%s2768 + $0x21] sm:$0xff]
      %v3439 = vld [vmem:[%s2768 + $0x29] sm:$0x3]
      %v3440 = vld [vmem:[%s2768 + $0x31] sm:$0xff]
      %v3441 = vld [vmem:[%s2768 + $0x39] sm:$0x3]
      %v3442 = vld [vmem:[%s2768 + $0x41] sm:$0xff]
      %v3443 = vld [vmem:[%s2768 + $0x49] sm:$0x3]
      %v3444 = vld [vmem:[%s2768 + $0x51] sm:$0xff]
      %v3445 = vld [vmem:[%s2768 + $0x59] sm:$0x3]
      %v3446 = vld [vmem:[%s2768 + $0x61] sm:$0xff]
      %v3447 = vld [vmem:[%s2768 + $0x69] sm:$0x3]
      %v3448 = vld [vmem:[%s2768 + $0x71] sm:$0xff]
      %v3449 = vld [vmem:[%s2768 + $0x79] sm:$0x3]
      %v3450 = vld [vmem:[%s2768 + $0x81] sm:$0xff]
      %v3451 = vld [vmem:[%s2768 + $0x89] sm:$0x3]
      %v3452 = vld [vmem:[%s2768 + $0x91] sm:$0xff]
      %v3453 = vld [vmem:[%s2768 + $0x99] sm:$0x3]
      %v3474 = vcombine.high %v3434, %v3434
      %v3476 = vunpack.c.l.s4 1983009808
      %v3477 = vunpack.c.0.s8 %v3476
      %v3478 = vlaneseq
      %v3479 = vshrl.u32 %v3478, 7
      %v3480 = vsub.s32 %v3477, %v3479
      %v3481 = vrot.slane %v3434, %v3480
      %v3483 = vunpack.c.l.s4 1983009808
      %v3484 = vunpack.c.0.s8 %v3483
      %v3485 = vlaneseq
      %v3486 = vshrl.u32 %v3485, 7
      %v3487 = vsub.s32 %v3484, %v3486
      %v3488 = vrot.slane %v3474, %v3487
      %v3489 = vcombine.high %v3481, %v3481
      %v3490 = vcombine.high %v3488, %v3488
      %v3492 = vunpack.c.l.s4 1983009808
      %v3493 = vunpack.c.0.s8 %v3492
      %v3494 = vlaneseq
      %v3495 = vshrl.u32 %v3494, 7
      %v3496 = vsub.s32 %v3493, %v3495
      %v3497 = vrot.slane %v3435, %v3496
      %v3498 = vcombine.high %v3436, %v3436
      %v3500 = vunpack.c.l.s4 1983009808
      %v3501 = vunpack.c.0.s8 %v3500
      %v3502 = vlaneseq
      %v3503 = vshrl.u32 %v3502, 7
      %v3504 = vsub.s32 %v3501, %v3503
      %v3505 = vrot.slane %v3436, %v3504
      %v3507 = vunpack.c.l.s4 1983009808
      %v3508 = vunpack.c.0.s8 %v3507
      %v3509 = vlaneseq
      %v3510 = vshrl.u32 %v3509, 7
      %v3511 = vsub.s32 %v3508, %v3510
      %v3512 = vrot.slane %v3498, %v3511
      %v3513 = vcombine.high %v3505, %v3505
      %v3514 = vcombine.high %v3512, %v3512
      %v3516 = vunpack.c.l.s4 1983009808
      %v3517 = vunpack.c.0.s8 %v3516
      %v3518 = vlaneseq
      %v3519 = vshrl.u32 %v3518, 7
      %v3520 = vsub.s32 %v3517, %v3519
      %v3521 = vrot.slane %v3437, %v3520
      %v3522 = vcombine.high %v3438, %v3438
      %v3524 = vunpack.c.l.s4 1983009808
      %v3525 = vunpack.c.0.s8 %v3524
      %v3526 = vlaneseq
      %v3527 = vshrl.u32 %v3526, 7
      %v3528 = vsub.s32 %v3525, %v3527
      %v3529 = vrot.slane %v3438, %v3528
      %v3531 = vunpack.c.l.s4 1983009808
      %v3532 = vunpack.c.0.s8 %v3531
      %v3533 = vlaneseq
      %v3534 = vshrl.u32 %v3533, 7
      %v3535 = vsub.s32 %v3532, %v3534
      %v3536 = vrot.slane %v3522, %v3535
      %v3537 = vcombine.high %v3529, %v3529
      %v3538 = vcombine.high %v3536, %v3536
      %v3540 = vunpack.c.l.s4 1983009808
      %v3541 = vunpack.c.0.s8 %v3540
      %v3542 = vlaneseq
      %v3543 = vshrl.u32 %v3542, 7
      %v3544 = vsub.s32 %v3541, %v3543
      %v3545 = vrot.slane %v3439, %v3544
      %v3546 = vcombine.high %v3440, %v3440
      %v3548 = vunpack.c.l.s4 1983009808
      %v3549 = vunpack.c.0.s8 %v3548
      %v3550 = vlaneseq
      %v3551 = vshrl.u32 %v3550, 7
      %v3552 = vsub.s32 %v3549, %v3551
      %v3553 = vrot.slane %v3440, %v3552
      %v3555 = vunpack.c.l.s4 1983009808
      %v3556 = vunpack.c.0.s8 %v3555
      %v3557 = vlaneseq
      %v3558 = vshrl.u32 %v3557, 7
      %v3559 = vsub.s32 %v3556, %v3558
      %v3560 = vrot.slane %v3546, %v3559
      %v3561 = vcombine.high %v3553, %v3553
      %v3562 = vcombine.high %v3560, %v3560
      %v3564 = vunpack.c.l.s4 1983009808
      %v3565 = vunpack.c.0.s8 %v3564
      %v3566 = vlaneseq
      %v3567 = vshrl.u32 %v3566, 7
      %v3568 = vsub.s32 %v3565, %v3567
      %v3569 = vrot.slane %v3441, %v3568
      %v3570 = vcombine.high %v3442, %v3442
      %v3572 = vunpack.c.l.s4 1983009808
      %v3573 = vunpack.c.0.s8 %v3572
      %v3574 = vlaneseq
      %v3575 = vshrl.u32 %v3574, 7
      %v3576 = vsub.s32 %v3573, %v3575
      %v3577 = vrot.slane %v3442, %v3576
      %v3579 = vunpack.c.l.s4 1983009808
      %v3580 = vunpack.c.0.s8 %v3579
      %v3581 = vlaneseq
      %v3582 = vshrl.u32 %v3581, 7
      %v3583 = vsub.s32 %v3580, %v3582
      %v3584 = vrot.slane %v3570, %v3583
      %v3585 = vcombine.high %v3577, %v3577
      %v3586 = vcombine.high %v3584, %v3584
      %v3588 = vunpack.c.l.s4 1983009808
      %v3589 = vunpack.c.0.s8 %v3588
      %v3590 = vlaneseq
      %v3591 = vshrl.u32 %v3590, 7
      %v3592 = vsub.s32 %v3589, %v3591
      %v3593 = vrot.slane %v3443, %v3592
      %v3594 = vcombine.high %v3444, %v3444
      %v3596 = vunpack.c.l.s4 1983009808
      %v3597 = vunpack.c.0.s8 %v3596
      %v3598 = vlaneseq
      %v3599 = vshrl.u32 %v3598, 7
      %v3600 = vsub.s32 %v3597, %v3599
      %v3601 = vrot.slane %v3444, %v3600
      %v3603 = vunpack.c.l.s4 1983009808
      %v3604 = vunpack.c.0.s8 %v3603
      %v3605 = vlaneseq
      %v3606 = vshrl.u32 %v3605, 7
      %v3607 = vsub.s32 %v3604, %v3606
      %v3608 = vrot.slane %v3594, %v3607
      %v3609 = vcombine.high %v3601, %v3601
      %v3610 = vcombine.high %v3608, %v3608
      %v3612 = vunpack.c.l.s4 1983009808
      %v3613 = vunpack.c.0.s8 %v3612
      %v3614 = vlaneseq
      %v3615 = vshrl.u32 %v3614, 7
      %v3616 = vsub.s32 %v3613, %v3615
      %v3617 = vrot.slane %v3445, %v3616
      %v3618 = vcombine.high %v3446, %v3446
      %v3620 = vunpack.c.l.s4 1983009808
      %v3621 = vunpack.c.0.s8 %v3620
      %v3622 = vlaneseq
      %v3623 = vshrl.u32 %v3622, 7
      %v3624 = vsub.s32 %v3621, %v3623
      %v3625 = vrot.slane %v3446, %v3624
      %v3627 = vunpack.c.l.s4 1983009808
      %v3628 = vunpack.c.0.s8 %v3627
      %v3629 = vlaneseq
      %v3630 = vshrl.u32 %v3629, 7
      %v3631 = vsub.s32 %v3628, %v3630
      %v3632 = vrot.slane %v3618, %v3631
      %v3633 = vcombine.high %v3625, %v3625
      %v3634 = vcombine.high %v3632, %v3632
      %v3636 = vunpack.c.l.s4 1983009808
      %v3637 = vunpack.c.0.s8 %v3636
      %v3638 = vlaneseq
      %v3639 = vshrl.u32 %v3638, 7
      %v3640 = vsub.s32 %v3637, %v3639
      %v3641 = vrot.slane %v3447, %v3640
      %v3642 = vcombine.high %v3448, %v3448
      %v3644 = vunpack.c.l.s4 1983009808
      %v3645 = vunpack.c.0.s8 %v3644
      %v3646 = vlaneseq
      %v3647 = vshrl.u32 %v3646, 7
      %v3648 = vsub.s32 %v3645, %v3647
      %v3649 = vrot.slane %v3448, %v3648
      %v3651 = vunpack.c.l.s4 1983009808
      %v3652 = vunpack.c.0.s8 %v3651
      %v3653 = vlaneseq
      %v3654 = vshrl.u32 %v3653, 7
      %v3655 = vsub.s32 %v3652, %v3654
      %v3656 = vrot.slane %v3642, %v3655
      %v3657 = vcombine.high %v3649, %v3649
      %v3658 = vcombine.high %v3656, %v3656
      %v3660 = vunpack.c.l.s4 1983009808
      %v3661 = vunpack.c.0.s8 %v3660
      %v3662 = vlaneseq
      %v3663 = vshrl.u32 %v3662, 7
      %v3664 = vsub.s32 %v3661, %v3663
      %v3665 = vrot.slane %v3449, %v3664
      %v3666 = vcombine.high %v3450, %v3450
      %v3668 = vunpack.c.l.s4 1983009808
      %v3669 = vunpack.c.0.s8 %v3668
      %v3670 = vlaneseq
      %v3671 = vshrl.u32 %v3670, 7
      %v3672 = vsub.s32 %v3669, %v3671
      %v3673 = vrot.slane %v3450, %v3672
      %v3675 = vunpack.c.l.s4 1983009808
      %v3676 = vunpack.c.0.s8 %v3675
      %v3677 = vlaneseq
      %v3678 = vshrl.u32 %v3677, 7
      %v3679 = vsub.s32 %v3676, %v3678
      %v3680 = vrot.slane %v3666, %v3679
      %v3681 = vcombine.high %v3673, %v3673
      %v3682 = vcombine.high %v3680, %v3680
      %v3684 = vunpack.c.l.s4 1983009808
      %v3685 = vunpack.c.0.s8 %v3684
      %v3686 = vlaneseq
      %v3687 = vshrl.u32 %v3686, 7
      %v3688 = vsub.s32 %v3685, %v3687
      %v3689 = vrot.slane %v3451, %v3688
      %v3690 = vcombine.high %v3452, %v3452
      %v3692 = vunpack.c.l.s4 1983009808
      %v3693 = vunpack.c.0.s8 %v3692
      %v3694 = vlaneseq
      %v3695 = vshrl.u32 %v3694, 7
      %v3696 = vsub.s32 %v3693, %v3695
      %v3697 = vrot.slane %v3452, %v3696
      %v3699 = vunpack.c.l.s4 1983009808
      %v3700 = vunpack.c.0.s8 %v3699
      %v3701 = vlaneseq
      %v3702 = vshrl.u32 %v3701, 7
      %v3703 = vsub.s32 %v3700, %v3702
      %v3704 = vrot.slane %v3690, %v3703
      %v3705 = vcombine.high %v3697, %v3697
      %v3706 = vcombine.high %v3704, %v3704
      %v3708 = vunpack.c.l.s4 1983009808
      %v3709 = vunpack.c.0.s8 %v3708
      %v3710 = vlaneseq
      %v3711 = vshrl.u32 %v3710, 7
      %v3712 = vsub.s32 %v3709, %v3711
      %v3713 = vrot.slane %v3453, %v3712
      %s3714 = scalar_lea.vmem %s1, 512
      %v3715 = vld [vmem:[%s3714] sm:$0xff]
      %v3716 = vld [vmem:[%s3714 + $0x8] sm:$0xff]
      %v3717 = vld [vmem:[%s3714 + $0x10] sm:$0xff]
      %v3718 = vld [vmem:[%s3714 + $0x18] sm:$0xff]
      %v3719 = vld [vmem:[%s3714 + $0x20] sm:$0xff]
      %v3720 = vld [vmem:[%s3714 + $0x28] sm:$0xff]
      %v3721 = vld [vmem:[%s3714 + $0x30] sm:$0xff]
      %v3722 = vld [vmem:[%s3714 + $0x38] sm:$0xff]
      %v3723 = vld [vmem:[%s3714 + $0x40] sm:$0xff]
      %v3724 = vld [vmem:[%s3714 + $0x48] sm:$0xff]
      %v3725 = vld [vmem:[%s3714 + $0x50] sm:$0xff]
      %v3726 = vld [vmem:[%s3714 + $0x58] sm:$0xff]
      %v3727 = vld [vmem:[%s3714 + $0x60] sm:$0xff]
      %v3728 = vld [vmem:[%s3714 + $0x68] sm:$0xff]
      %v3729 = vld [vmem:[%s3714 + $0x70] sm:$0xff]
      %v3730 = vld [vmem:[%s3714 + $0x78] sm:$0xff]
      %v3731 = vcombine.low %v3481, %v3489
      %v3732 = vcombine.low %v3488, %v3490
      %v3734 = vunpack.c.l.s4 1983009808
      %v3735 = vunpack.c.0.s8 %v3734
      %v3736 = vlaneseq
      %v3737 = vshrl.u32 %v3736, 7
      %v3738 = vsub.s32 %v3735, %v3737
      %v3739 = vrot.slane %v3731, %v3738
      %v3741 = vunpack.c.l.s4 1983009808
      %v3742 = vunpack.c.0.s8 %v3741
      %v3743 = vlaneseq
      %v3744 = vshrl.u32 %v3743, 7
      %v3745 = vsub.s32 %v3742, %v3744
      %v3746 = vrot.slane %v3732, %v3745
      %v3747 = vcombine.low %v3739, %v3746
      %v3748 = vcombine.low %v3497, %v3505
      %v3749 = vcombine.low %v3513, %v3512
      %v3751 = vunpack.c.l.s4 1983009808
      %v3752 = vunpack.c.0.s8 %v3751
      %v3753 = vlaneseq
      %v3754 = vshrl.u32 %v3753, 7
      %v3755 = vsub.s32 %v3752, %v3754
      %v3756 = vrot.slane %v3748, %v3755
      %v3758 = vunpack.c.l.s4 1983009808
      %v3759 = vunpack.c.0.s8 %v3758
      %v3760 = vlaneseq
      %v3761 = vshrl.u32 %v3760, 7
      %v3762 = vsub.s32 %v3759, %v3761
      %v3763 = vrot.slane %v3749, %v3762
      %v3764 = vcombine.low %v3756, %v3763
      %v3765 = vcombine.low %v3514, %v3521
      %v3766 = vcombine.low %v3529, %v3537
      %v3768 = vunpack.c.l.s4 1983009808
      %v3769 = vunpack.c.0.s8 %v3768
      %v3770 = vlaneseq
      %v3771 = vshrl.u32 %v3770, 7
      %v3772 = vsub.s32 %v3769, %v3771
      %v3773 = vrot.slane %v3765, %v3772
      %v3775 = vunpack.c.l.s4 1983009808
      %v3776 = vunpack.c.0.s8 %v3775
      %v3777 = vlaneseq
      %v3778 = vshrl.u32 %v3777, 7
      %v3779 = vsub.s32 %v3776, %v3778
      %v3780 = vrot.slane %v3766, %v3779
      %v3781 = vcombine.low %v3773, %v3780
      %v3782 = vcombine.low %v3536, %v3538
      %v3783 = vcombine.low %v3545, %v3553
      %v3785 = vunpack.c.l.s4 1983009808
      %v3786 = vunpack.c.0.s8 %v3785
      %v3787 = vlaneseq
      %v3788 = vshrl.u32 %v3787, 7
      %v3789 = vsub.s32 %v3786, %v3788
      %v3790 = vrot.slane %v3782, %v3789
      %v3792 = vunpack.c.l.s4 1983009808
      %v3793 = vunpack.c.0.s8 %v3792
      %v3794 = vlaneseq
      %v3795 = vshrl.u32 %v3794, 7
      %v3796 = vsub.s32 %v3793, %v3795
      %v3797 = vrot.slane %v3783, %v3796
      %v3798 = vcombine.low %v3790, %v3797
      %v3799 = vcombine.low %v3561, %v3560
      %v3800 = vcombine.low %v3562, %v3569
      %v3802 = vunpack.c.l.s4 1983009808
      %v3803 = vunpack.c.0.s8 %v3802
      %v3804 = vlaneseq
      %v3805 = vshrl.u32 %v3804, 7
      %v3806 = vsub.s32 %v3803, %v3805
      %v3807 = vrot.slane %v3799, %v3806
      %v3809 = vunpack.c.l.s4 1983009808
      %v3810 = vunpack.c.0.s8 %v3809
      %v3811 = vlaneseq
      %v3812 = vshrl.u32 %v3811, 7
      %v3813 = vsub.s32 %v3810, %v3812
      %v3814 = vrot.slane %v3800, %v3813
      %v3815 = vcombine.low %v3807, %v3814
      %v3816 = vcombine.low %v3577, %v3585
      %v3817 = vcombine.low %v3584, %v3586
      %v3819 = vunpack.c.l.s4 1983009808
      %v3820 = vunpack.c.0.s8 %v3819
      %v3821 = vlaneseq
      %v3822 = vshrl.u32 %v3821, 7
      %v3823 = vsub.s32 %v3820, %v3822
      %v3824 = vrot.slane %v3816, %v3823
      %v3826 = vunpack.c.l.s4 1983009808
      %v3827 = vunpack.c.0.s8 %v3826
      %v3828 = vlaneseq
      %v3829 = vshrl.u32 %v3828, 7
      %v3830 = vsub.s32 %v3827, %v3829
      %v3831 = vrot.slane %v3817, %v3830
      %v3832 = vcombine.low %v3824, %v3831
      %v3833 = vcombine.low %v3593, %v3601
      %v3834 = vcombine.low %v3609, %v3608
      %v3836 = vunpack.c.l.s4 1983009808
      %v3837 = vunpack.c.0.s8 %v3836
      %v3838 = vlaneseq
      %v3839 = vshrl.u32 %v3838, 7
      %v3840 = vsub.s32 %v3837, %v3839
      %v3841 = vrot.slane %v3833, %v3840
      %v3843 = vunpack.c.l.s4 1983009808
      %v3844 = vunpack.c.0.s8 %v3843
      %v3845 = vlaneseq
      %v3846 = vshrl.u32 %v3845, 7
      %v3847 = vsub.s32 %v3844, %v3846
      %v3848 = vrot.slane %v3834, %v3847
      %v3849 = vcombine.low %v3841, %v3848
      %v3850 = vcombine.low %v3610, %v3617
      %v3851 = vcombine.low %v3625, %v3633
      %v3853 = vunpack.c.l.s4 1983009808
      %v3854 = vunpack.c.0.s8 %v3853
      %v3855 = vlaneseq
      %v3856 = vshrl.u32 %v3855, 7
      %v3857 = vsub.s32 %v3854, %v3856
      %v3858 = vrot.slane %v3850, %v3857
      %v3860 = vunpack.c.l.s4 1983009808
      %v3861 = vunpack.c.0.s8 %v3860
      %v3862 = vlaneseq
      %v3863 = vshrl.u32 %v3862, 7
      %v3864 = vsub.s32 %v3861, %v3863
      %v3865 = vrot.slane %v3851, %v3864
      %v3866 = vcombine.low %v3858, %v3865
      %v3867 = vcombine.low %v3632, %v3634
      %v3868 = vcombine.low %v3641, %v3649
      %v3870 = vunpack.c.l.s4 1983009808
      %v3871 = vunpack.c.0.s8 %v3870
      %v3872 = vlaneseq
      %v3873 = vshrl.u32 %v3872, 7
      %v3874 = vsub.s32 %v3871, %v3873
      %v3875 = vrot.slane %v3867, %v3874
      %v3877 = vunpack.c.l.s4 1983009808
      %v3878 = vunpack.c.0.s8 %v3877
      %v3879 = vlaneseq
      %v3880 = vshrl.u32 %v3879, 7
      %v3881 = vsub.s32 %v3878, %v3880
      %v3882 = vrot.slane %v3868, %v3881
      %v3883 = vcombine.low %v3875, %v3882
      %v3884 = vcombine.low %v3657, %v3656
      %v3885 = vcombine.low %v3658, %v3665
      %v3887 = vunpack.c.l.s4 1983009808
      %v3888 = vunpack.c.0.s8 %v3887
      %v3889 = vlaneseq
      %v3890 = vshrl.u32 %v3889, 7
      %v3891 = vsub.s32 %v3888, %v3890
      %v3892 = vrot.slane %v3884, %v3891
      %v3894 = vunpack.c.l.s4 1983009808
      %v3895 = vunpack.c.0.s8 %v3894
      %v3896 = vlaneseq
      %v3897 = vshrl.u32 %v3896, 7
      %v3898 = vsub.s32 %v3895, %v3897
      %v3899 = vrot.slane %v3885, %v3898
      %v3900 = vcombine.low %v3892, %v3899
      %v3901 = vcombine.low %v3673, %v3681
      %v3902 = vcombine.low %v3680, %v3682
      %v3904 = vunpack.c.l.s4 1983009808
      %v3905 = vunpack.c.0.s8 %v3904
      %v3906 = vlaneseq
      %v3907 = vshrl.u32 %v3906, 7
      %v3908 = vsub.s32 %v3905, %v3907
      %v3909 = vrot.slane %v3901, %v3908
      %v3911 = vunpack.c.l.s4 1983009808
      %v3912 = vunpack.c.0.s8 %v3911
      %v3913 = vlaneseq
      %v3914 = vshrl.u32 %v3913, 7
      %v3915 = vsub.s32 %v3912, %v3914
      %v3916 = vrot.slane %v3902, %v3915
      %v3917 = vcombine.low %v3909, %v3916
      %v3918 = vcombine.low %v3689, %v3697
      %v3919 = vcombine.low %v3705, %v3704
      %v3921 = vunpack.c.l.s4 1983009808
      %v3922 = vunpack.c.0.s8 %v3921
      %v3923 = vlaneseq
      %v3924 = vshrl.u32 %v3923, 7
      %v3925 = vsub.s32 %v3922, %v3924
      %v3926 = vrot.slane %v3918, %v3925
      %v3928 = vunpack.c.l.s4 1983009808
      %v3929 = vunpack.c.0.s8 %v3928
      %v3930 = vlaneseq
      %v3931 = vshrl.u32 %v3930, 7
      %v3932 = vsub.s32 %v3929, %v3931
      %v3933 = vrot.slane %v3919, %v3932
      %v3934 = vcombine.low %v3926, %v3933
      %v3935 = vcombine.low %v3706, %v3713
      %v3937 = vunpack.c.l.s4 1983009808
      %v3938 = vunpack.c.0.s8 %v3937
      %v3939 = vlaneseq
      %v3940 = vshrl.u32 %v3939, 7
      %v3941 = vsub.s32 %v3938, %v3940
      %v3942 = vrot.slane %v3935, %v3941
      %3956 = vmatprep.subr.mxu0 0.0
      %3957 = vmatpush1.msra.mxu0 %v3730
      %3958 = vmatprep.subr.mxu0 0.0
      %3959 = vmatpush1.msra.mxu0 %v3729
      %3960 = vmatprep.subr.mxu0 0.0
      %3961 = vmatpush1.msra.mxu0 %v3728
      %3962 = vmatprep.subr.mxu0 0.0
      %3963 = vmatpush1.msra.mxu0 %v3727
      %3964 = vmatprep.subr.mxu0 0.0
      %3965 = vmatpush1.msra.mxu0 %v3726
      %3966 = vmatprep.subr.mxu0 0.0
      %3967 = vmatpush1.msra.mxu0 %v3725
      %3968 = vmatprep.subr.mxu0 0.0
      %3969 = vmatpush1.msra.mxu0 %v3724
      %3970 = vmatprep.subr.mxu0 0.0
      %3971 = vmatpush1.msra.mxu0 %v3723
      %3972 = vmatprep.subr.mxu0 0.0
      %3973 = vmatpush1.msra.mxu0 %v3722
      %3974 = vmatprep.subr.mxu0 0.0
      %3975 = vmatpush1.msra.mxu0 %v3721
      %3976 = vmatprep.subr.mxu0 0.0
      %3977 = vmatpush1.msra.mxu0 %v3720
      %3978 = vmatprep.subr.mxu0 0.0
      %3979 = vmatpush1.msra.mxu0 %v3719
      %3980 = vmatprep.subr.mxu0 0.0
      %3981 = vmatpush1.msra.mxu0 %v3718
      %3982 = vmatprep.subr.mxu0 0.0
      %3983 = vmatpush1.msra.mxu0 %v3717
      %3984 = vmatprep.subr.mxu0 0.0
      %3985 = vmatpush1.msra.mxu0 %v3716
      %3986 = vmatprep.subr.mxu0 0.0
      %3987 = vmatpush1.msra.mxu0 %v3715
      %3988 = vmatprep.subr.mxu0 0.0
      %3989 = vmatpush2.msra.mxu0 0.0
      %3990 = vmatprep.subr.mxu0 0.0
      %3991 = vmatpush2.msra.mxu0 0.0
      %3992 = vmatprep.subr.mxu0 0.0
      %3993 = vmatpush2.msra.mxu0 0.0
      %3994 = vmatprep.subr.mxu0 0.0
      %3995 = vmatpush2.msra.mxu0 0.0
      %3996 = vmatprep.subr.mxu0 0.0
      %3997 = vmatpush2.msra.mxu0 0.0
      %3998 = vmatprep.subr.mxu0 0.0
      %3999 = vmatpush2.msra.mxu0 0.0
      %4000 = vmatprep.subr.mxu0 0.0
      %4001 = vmatpush2.msra.mxu0 0.0
      %4002 = vmatprep.subr.mxu0 0.0
      %4003 = vmatpush2.msra.mxu0 0.0
      %4004 = vmatprep.subr.mxu0 0.0
      %4005 = vmatpush2.msra.mxu0 0.0
      %4006 = vmatprep.subr.mxu0 0.0
      %4007 = vmatpush2.msra.mxu0 0.0
      %4008 = vmatprep.subr.mxu0 0.0
      %4009 = vmatpush2.msra.mxu0 0.0
      %4010 = vmatprep.subr.mxu0 0.0
      %4011 = vmatpush2.msra.mxu0 0.0
      %4012 = vmatprep.subr.mxu0 0.0
      %4013 = vmatpush2.msra.mxu0 0.0
      %4014 = vmatprep.subr.mxu0 0.0
      %4015 = vmatpush2.msra.mxu0 0.0
      %4016 = vmatprep.subr.mxu0 0.0
      %4017 = vmatpush2.msra.mxu0 0.0
      %4018 = vmatprep.subr.mxu0 0.0
      %4019 = vmatpush2.msra.mxu0 0.0
      %4020 = vmatprep.mubr.f32.mxu0 0.0
      %4021 = vmatmul.mubr.f32.gmra.mxu0 %v3747
      %v4022 = vpop.f32.mrf.mxu0
      %v4023 = vadd.f32 0.0, %v4022
      %v4024 = vpop.f32.mrf.mxu0
      %4025 = vmatprep.mubr.f32.mxu0 0.0
      %4026 = vmatmul.mubr.f32.gmra.mxu0 %v3764
      %v4027 = vpop.f32.mrf.mxu0
      %v4028 = vadd.f32 0.0, %v4027
      %v4029 = vpop.f32.mrf.mxu0
      %4030 = vmatprep.mubr.f32.mxu0 0.0
      %4031 = vmatmul.mubr.f32.gmra.mxu0 %v3781
      %v4032 = vpop.f32.mrf.mxu0
      %v4033 = vadd.f32 0.0, %v4032
      %v4034 = vpop.f32.mrf.mxu0
      %4035 = vmatprep.mubr.f32.mxu0 0.0
      %4036 = vmatmul.mubr.f32.gmra.mxu0 %v3798
      %v4037 = vpop.f32.mrf.mxu0
      %v4038 = vadd.f32 0.0, %v4037
      %v4039 = vpop.f32.mrf.mxu0
      %4040 = vmatprep.mubr.f32.mxu0 0.0
      %4041 = vmatmul.mubr.f32.gmra.mxu0 %v3815
      %v4042 = vpop.f32.mrf.mxu0
      %v4043 = vadd.f32 0.0, %v4042
      %v4044 = vpop.f32.mrf.mxu0
      %4045 = vmatprep.mubr.f32.mxu0 0.0
      %4046 = vmatmul.mubr.f32.gmra.mxu0 %v3832
      %v4047 = vpop.f32.mrf.mxu0
      %v4048 = vadd.f32 0.0, %v4047
      %v4049 = vpop.f32.mrf.mxu0
      %4050 = vmatprep.mubr.f32.mxu0 0.0
      %4051 = vmatmul.mubr.f32.gmra.mxu0 %v3849
      %v4052 = vpop.f32.mrf.mxu0
      %v4053 = vadd.f32 0.0, %v4052
      %v4054 = vpop.f32.mrf.mxu0
      %4055 = vmatprep.mubr.f32.mxu0 0.0
      %4056 = vmatmul.mubr.f32.gmra.mxu0 %v3866
      %v4057 = vpop.f32.mrf.mxu0
      %v4058 = vadd.f32 0.0, %v4057
      %v4059 = vpop.f32.mrf.mxu0
      %4060 = vmatprep.mubr.f32.mxu0 0.0
      %4061 = vmatmul.mubr.f32.gmra.mxu0 %v3883
      %v4062 = vpop.f32.mrf.mxu0
      %v4063 = vadd.f32 0.0, %v4062
      %v4064 = vpop.f32.mrf.mxu0
      %4065 = vmatprep.mubr.f32.mxu0 0.0
      %4066 = vmatmul.mubr.f32.gmra.mxu0 %v3900
      %v4067 = vpop.f32.mrf.mxu0
      %v4068 = vadd.f32 0.0, %v4067
      %v4069 = vpop.f32.mrf.mxu0
      %4070 = vmatprep.mubr.f32.mxu0 0.0
      %4071 = vmatmul.mubr.f32.gmra.mxu0 %v3917
      %v4072 = vpop.f32.mrf.mxu0
      %v4073 = vadd.f32 0.0, %v4072
      %v4074 = vpop.f32.mrf.mxu0
      %4075 = vmatprep.mubr.f32.mxu0 0.0
      %4076 = vmatmul.mubr.f32.gmra.mxu0 %v3934
      %v4077 = vpop.f32.mrf.mxu0
      %v4078 = vadd.f32 0.0, %v4077
      %v4079 = vpop.f32.mrf.mxu0
      %4080 = vmatprep.mubr.f32.mxu0 0.0
      %4081 = vmatmul.mubr.f32.gmra.mxu0 %v3942
      %v4082 = vpop.f32.mrf.mxu0
      %v4083 = vadd.f32 0.0, %v4082
      %v4084 = vpop.f32.mrf.mxu0
      %4085 = vdwg.mxu0
      %v4086 = vadd.f32 %v3421, %v4023
      %v4087 = vadd.f32 %v3422, %v4028
      %v4088 = vadd.f32 %v3423, %v4033
      %v4089 = vadd.f32 %v3424, %v4038
      %v4090 = vadd.f32 %v3425, %v4043
      %v4091 = vadd.f32 %v3426, %v4048
      %v4092 = vadd.f32 %v3427, %v4053
      %v4093 = vadd.f32 %v3428, %v4058
      %v4094 = vadd.f32 %v3429, %v4063
      %v4095 = vadd.f32 %v3430, %v4068
      %v4096 = vadd.f32 %v3431, %v4073
      %v4097 = vadd.f32 %v3432, %v4078
      %v4098 = vadd.f32 %v3433, %v4083
      %v4099 = vld [vmem:[%s2768 + $0x2] sm:$0xff]
      %v4100 = vld [vmem:[%s2768 + $0xa] sm:$0x3]
      %v4101 = vld [vmem:[%s2768 + $0x12] sm:$0xff]
      %v4102 = vld [vmem:[%s2768 + $0x1a] sm:$0x3]
      %v4103 = vld [vmem:[%s2768 + $0x22] sm:$0xff]
      %v4104 = vld [vmem:[%s2768 + $0x2a] sm:$0x3]
      %v4105 = vld [vmem:[%s2768 + $0x32] sm:$0xff]
      %v4106 = vld [vmem:[%s2768 + $0x3a] sm:$0x3]
      %v4107 = vld [vmem:[%s2768 + $0x42] sm:$0xff]
      %v4108 = vld [vmem:[%s2768 + $0x4a] sm:$0x3]
      %v4109 = vld [vmem:[%s2768 + $0x52] sm:$0xff]
      %v4110 = vld [vmem:[%s2768 + $0x5a] sm:$0x3]
      %v4111 = vld [vmem:[%s2768 + $0x62] sm:$0xff]
      %v4112 = vld [vmem:[%s2768 + $0x6a] sm:$0x3]
      %v4113 = vld [vmem:[%s2768 + $0x72] sm:$0xff]
      %v4114 = vld [vmem:[%s2768 + $0x7a] sm:$0x3]
      %v4115 = vld [vmem:[%s2768 + $0x82] sm:$0xff]
      %v4116 = vld [vmem:[%s2768 + $0x8a] sm:$0x3]
      %v4117 = vld [vmem:[%s2768 + $0x92] sm:$0xff]
      %v4118 = vld [vmem:[%s2768 + $0x9a] sm:$0x3]
      %v4139 = vcombine.high %v4099, %v4099
      %v4141 = vunpack.c.l.s4 1983009808
      %v4142 = vunpack.c.0.s8 %v4141
      %v4143 = vlaneseq
      %v4144 = vshrl.u32 %v4143, 7
      %v4145 = vsub.s32 %v4142, %v4144
      %v4146 = vrot.slane %v4099, %v4145
      %v4148 = vunpack.c.l.s4 1983009808
      %v4149 = vunpack.c.0.s8 %v4148
      %v4150 = vlaneseq
      %v4151 = vshrl.u32 %v4150, 7
      %v4152 = vsub.s32 %v4149, %v4151
      %v4153 = vrot.slane %v4139, %v4152
      %v4154 = vcombine.high %v4146, %v4146
      %v4155 = vcombine.high %v4153, %v4153
      %v4157 = vunpack.c.l.s4 1983009808
      %v4158 = vunpack.c.0.s8 %v4157
      %v4159 = vlaneseq
      %v4160 = vshrl.u32 %v4159, 7
      %v4161 = vsub.s32 %v4158, %v4160
      %v4162 = vrot.slane %v4100, %v4161
      %v4163 = vcombine.high %v4101, %v4101
      %v4165 = vunpack.c.l.s4 1983009808
      %v4166 = vunpack.c.0.s8 %v4165
      %v4167 = vlaneseq
      %v4168 = vshrl.u32 %v4167, 7
      %v4169 = vsub.s32 %v4166, %v4168
      %v4170 = vrot.slane %v4101, %v4169
      %v4172 = vunpack.c.l.s4 1983009808
      %v4173 = vunpack.c.0.s8 %v4172
      %v4174 = vlaneseq
      %v4175 = vshrl.u32 %v4174, 7
      %v4176 = vsub.s32 %v4173, %v4175
      %v4177 = vrot.slane %v4163, %v4176
      %v4178 = vcombine.high %v4170, %v4170
      %v4179 = vcombine.high %v4177, %v4177
      %v4181 = vunpack.c.l.s4 1983009808
      %v4182 = vunpack.c.0.s8 %v4181
      %v4183 = vlaneseq
      %v4184 = vshrl.u32 %v4183, 7
      %v4185 = vsub.s32 %v4182, %v4184
      %v4186 = vrot.slane %v4102, %v4185
      %v4187 = vcombine.high %v4103, %v4103
      %v4189 = vunpack.c.l.s4 1983009808
      %v4190 = vunpack.c.0.s8 %v4189
      %v4191 = vlaneseq
      %v4192 = vshrl.u32 %v4191, 7
      %v4193 = vsub.s32 %v4190, %v4192
      %v4194 = vrot.slane %v4103, %v4193
      %v4196 = vunpack.c.l.s4 1983009808
      %v4197 = vunpack.c.0.s8 %v4196
      %v4198 = vlaneseq
      %v4199 = vshrl.u32 %v4198, 7
      %v4200 = vsub.s32 %v4197, %v4199
      %v4201 = vrot.slane %v4187, %v4200
      %v4202 = vcombine.high %v4194, %v4194
      %v4203 = vcombine.high %v4201, %v4201
      %v4205 = vunpack.c.l.s4 1983009808
      %v4206 = vunpack.c.0.s8 %v4205
      %v4207 = vlaneseq
      %v4208 = vshrl.u32 %v4207, 7
      %v4209 = vsub.s32 %v4206, %v4208
      %v4210 = vrot.slane %v4104, %v4209
      %v4211 = vcombine.high %v4105, %v4105
      %v4213 = vunpack.c.l.s4 1983009808
      %v4214 = vunpack.c.0.s8 %v4213
      %v4215 = vlaneseq
      %v4216 = vshrl.u32 %v4215, 7
      %v4217 = vsub.s32 %v4214, %v4216
      %v4218 = vrot.slane %v4105, %v4217
      %v4220 = vunpack.c.l.s4 1983009808
      %v4221 = vunpack.c.0.s8 %v4220
      %v4222 = vlaneseq
      %v4223 = vshrl.u32 %v4222, 7
      %v4224 = vsub.s32 %v4221, %v4223
      %v4225 = vrot.slane %v4211, %v4224
      %v4226 = vcombine.high %v4218, %v4218
      %v4227 = vcombine.high %v4225, %v4225
      %v4229 = vunpack.c.l.s4 1983009808
      %v4230 = vunpack.c.0.s8 %v4229
      %v4231 = vlaneseq
      %v4232 = vshrl.u32 %v4231, 7
      %v4233 = vsub.s32 %v4230, %v4232
      %v4234 = vrot.slane %v4106, %v4233
      %v4235 = vcombine.high %v4107, %v4107
      %v4237 = vunpack.c.l.s4 1983009808
      %v4238 = vunpack.c.0.s8 %v4237
      %v4239 = vlaneseq
      %v4240 = vshrl.u32 %v4239, 7
      %v4241 = vsub.s32 %v4238, %v4240
      %v4242 = vrot.slane %v4107, %v4241
      %v4244 = vunpack.c.l.s4 1983009808
      %v4245 = vunpack.c.0.s8 %v4244
      %v4246 = vlaneseq
      %v4247 = vshrl.u32 %v4246, 7
      %v4248 = vsub.s32 %v4245, %v4247
      %v4249 = vrot.slane %v4235, %v4248
      %v4250 = vcombine.high %v4242, %v4242
      %v4251 = vcombine.high %v4249, %v4249
      %v4253 = vunpack.c.l.s4 1983009808
      %v4254 = vunpack.c.0.s8 %v4253
      %v4255 = vlaneseq
      %v4256 = vshrl.u32 %v4255, 7
      %v4257 = vsub.s32 %v4254, %v4256
      %v4258 = vrot.slane %v4108, %v4257
      %v4259 = vcombine.high %v4109, %v4109
      %v4261 = vunpack.c.l.s4 1983009808
      %v4262 = vunpack.c.0.s8 %v4261
      %v4263 = vlaneseq
      %v4264 = vshrl.u32 %v4263, 7
      %v4265 = vsub.s32 %v4262, %v4264
      %v4266 = vrot.slane %v4109, %v4265
      %v4268 = vunpack.c.l.s4 1983009808
      %v4269 = vunpack.c.0.s8 %v4268
      %v4270 = vlaneseq
      %v4271 = vshrl.u32 %v4270, 7
      %v4272 = vsub.s32 %v4269, %v4271
      %v4273 = vrot.slane %v4259, %v4272
      %v4274 = vcombine.high %v4266, %v4266
      %v4275 = vcombine.high %v4273, %v4273
      %v4277 = vunpack.c.l.s4 1983009808
      %v4278 = vunpack.c.0.s8 %v4277
      %v4279 = vlaneseq
      %v4280 = vshrl.u32 %v4279, 7
      %v4281 = vsub.s32 %v4278, %v4280
      %v4282 = vrot.slane %v4110, %v4281
      %v4283 = vcombine.high %v4111, %v4111
      %v4285 = vunpack.c.l.s4 1983009808
      %v4286 = vunpack.c.0.s8 %v4285
      %v4287 = vlaneseq
      %v4288 = vshrl.u32 %v4287, 7
      %v4289 = vsub.s32 %v4286, %v4288
      %v4290 = vrot.slane %v4111, %v4289
      %v4292 = vunpack.c.l.s4 1983009808
      %v4293 = vunpack.c.0.s8 %v4292
      %v4294 = vlaneseq
      %v4295 = vshrl.u32 %v4294, 7
      %v4296 = vsub.s32 %v4293, %v4295
      %v4297 = vrot.slane %v4283, %v4296
      %v4298 = vcombine.high %v4290, %v4290
      %v4299 = vcombine.high %v4297, %v4297
      %v4301 = vunpack.c.l.s4 1983009808
      %v4302 = vunpack.c.0.s8 %v4301
      %v4303 = vlaneseq
      %v4304 = vshrl.u32 %v4303, 7
      %v4305 = vsub.s32 %v4302, %v4304
      %v4306 = vrot.slane %v4112, %v4305
      %v4307 = vcombine.high %v4113, %v4113
      %v4309 = vunpack.c.l.s4 1983009808
      %v4310 = vunpack.c.0.s8 %v4309
      %v4311 = vlaneseq
      %v4312 = vshrl.u32 %v4311, 7
      %v4313 = vsub.s32 %v4310, %v4312
      %v4314 = vrot.slane %v4113, %v4313
      %v4316 = vunpack.c.l.s4 1983009808
      %v4317 = vunpack.c.0.s8 %v4316
      %v4318 = vlaneseq
      %v4319 = vshrl.u32 %v4318, 7
      %v4320 = vsub.s32 %v4317, %v4319
      %v4321 = vrot.slane %v4307, %v4320
      %v4322 = vcombine.high %v4314, %v4314
      %v4323 = vcombine.high %v4321, %v4321
      %v4325 = vunpack.c.l.s4 1983009808
      %v4326 = vunpack.c.0.s8 %v4325
      %v4327 = vlaneseq
      %v4328 = vshrl.u32 %v4327, 7
      %v4329 = vsub.s32 %v4326, %v4328
      %v4330 = vrot.slane %v4114, %v4329
      %v4331 = vcombine.high %v4115, %v4115
      %v4333 = vunpack.c.l.s4 1983009808
      %v4334 = vunpack.c.0.s8 %v4333
      %v4335 = vlaneseq
      %v4336 = vshrl.u32 %v4335, 7
      %v4337 = vsub.s32 %v4334, %v4336
      %v4338 = vrot.slane %v4115, %v4337
      %v4340 = vunpack.c.l.s4 1983009808
      %v4341 = vunpack.c.0.s8 %v4340
      %v4342 = vlaneseq
      %v4343 = vshrl.u32 %v4342, 7
      %v4344 = vsub.s32 %v4341, %v4343
      %v4345 = vrot.slane %v4331, %v4344
      %v4346 = vcombine.high %v4338, %v4338
      %v4347 = vcombine.high %v4345, %v4345
      %v4349 = vunpack.c.l.s4 1983009808
      %v4350 = vunpack.c.0.s8 %v4349
      %v4351 = vlaneseq
      %v4352 = vshrl.u32 %v4351, 7
      %v4353 = vsub.s32 %v4350, %v4352
      %v4354 = vrot.slane %v4116, %v4353
      %v4355 = vcombine.high %v4117, %v4117
      %v4357 = vunpack.c.l.s4 1983009808
      %v4358 = vunpack.c.0.s8 %v4357
      %v4359 = vlaneseq
      %v4360 = vshrl.u32 %v4359, 7
      %v4361 = vsub.s32 %v4358, %v4360
      %v4362 = vrot.slane %v4117, %v4361
      %v4364 = vunpack.c.l.s4 1983009808
      %v4365 = vunpack.c.0.s8 %v4364
      %v4366 = vlaneseq
      %v4367 = vshrl.u32 %v4366, 7
      %v4368 = vsub.s32 %v4365, %v4367
      %v4369 = vrot.slane %v4355, %v4368
      %v4370 = vcombine.high %v4362, %v4362
      %v4371 = vcombine.high %v4369, %v4369
      %v4373 = vunpack.c.l.s4 1983009808
      %v4374 = vunpack.c.0.s8 %v4373
      %v4375 = vlaneseq
      %v4376 = vshrl.u32 %v4375, 7
      %v4377 = vsub.s32 %v4374, %v4376
      %v4378 = vrot.slane %v4118, %v4377
      %s4379 = scalar_lea.vmem %s1, 640
      %v4380 = vld [vmem:[%s4379] sm:$0xff]
      %v4381 = vld [vmem:[%s4379 + $0x8] sm:$0xff]
      %v4382 = vld [vmem:[%s4379 + $0x10] sm:$0xff]
      %v4383 = vld [vmem:[%s4379 + $0x18] sm:$0xff]
      %v4384 = vld [vmem:[%s4379 + $0x20] sm:$0xff]
      %v4385 = vld [vmem:[%s4379 + $0x28] sm:$0xff]
      %v4386 = vld [vmem:[%s4379 + $0x30] sm:$0xff]
      %v4387 = vld [vmem:[%s4379 + $0x38] sm:$0xff]
      %v4388 = vld [vmem:[%s4379 + $0x40] sm:$0xff]
      %v4389 = vld [vmem:[%s4379 + $0x48] sm:$0xff]
      %v4390 = vld [vmem:[%s4379 + $0x50] sm:$0xff]
      %v4391 = vld [vmem:[%s4379 + $0x58] sm:$0xff]
      %v4392 = vld [vmem:[%s4379 + $0x60] sm:$0xff]
      %v4393 = vld [vmem:[%s4379 + $0x68] sm:$0xff]
      %v4394 = vld [vmem:[%s4379 + $0x70] sm:$0xff]
      %v4395 = vld [vmem:[%s4379 + $0x78] sm:$0xff]
      %v4396 = vcombine.low %v4146, %v4154
      %v4397 = vcombine.low %v4153, %v4155
      %v4399 = vunpack.c.l.s4 1983009808
      %v4400 = vunpack.c.0.s8 %v4399
      %v4401 = vlaneseq
      %v4402 = vshrl.u32 %v4401, 7
      %v4403 = vsub.s32 %v4400, %v4402
      %v4404 = vrot.slane %v4396, %v4403
      %v4406 = vunpack.c.l.s4 1983009808
      %v4407 = vunpack.c.0.s8 %v4406
      %v4408 = vlaneseq
      %v4409 = vshrl.u32 %v4408, 7
      %v4410 = vsub.s32 %v4407, %v4409
      %v4411 = vrot.slane %v4397, %v4410
      %v4412 = vcombine.low %v4404, %v4411
      %v4413 = vcombine.low %v4162, %v4170
      %v4414 = vcombine.low %v4178, %v4177
      %v4416 = vunpack.c.l.s4 1983009808
      %v4417 = vunpack.c.0.s8 %v4416
      %v4418 = vlaneseq
      %v4419 = vshrl.u32 %v4418, 7
      %v4420 = vsub.s32 %v4417, %v4419
      %v4421 = vrot.slane %v4413, %v4420
      %v4423 = vunpack.c.l.s4 1983009808
      %v4424 = vunpack.c.0.s8 %v4423
      %v4425 = vlaneseq
      %v4426 = vshrl.u32 %v4425, 7
      %v4427 = vsub.s32 %v4424, %v4426
      %v4428 = vrot.slane %v4414, %v4427
      %v4429 = vcombine.low %v4421, %v4428
      %v4430 = vcombine.low %v4179, %v4186
      %v4431 = vcombine.low %v4194, %v4202
      %v4433 = vunpack.c.l.s4 1983009808
      %v4434 = vunpack.c.0.s8 %v4433
      %v4435 = vlaneseq
      %v4436 = vshrl.u32 %v4435, 7
      %v4437 = vsub.s32 %v4434, %v4436
      %v4438 = vrot.slane %v4430, %v4437
      %v4440 = vunpack.c.l.s4 1983009808
      %v4441 = vunpack.c.0.s8 %v4440
      %v4442 = vlaneseq
      %v4443 = vshrl.u32 %v4442, 7
      %v4444 = vsub.s32 %v4441, %v4443
      %v4445 = vrot.slane %v4431, %v4444
      %v4446 = vcombine.low %v4438, %v4445
      %v4447 = vcombine.low %v4201, %v4203
      %v4448 = vcombine.low %v4210, %v4218
      %v4450 = vunpack.c.l.s4 1983009808
      %v4451 = vunpack.c.0.s8 %v4450
      %v4452 = vlaneseq
      %v4453 = vshrl.u32 %v4452, 7
      %v4454 = vsub.s32 %v4451, %v4453
      %v4455 = vrot.slane %v4447, %v4454
      %v4457 = vunpack.c.l.s4 1983009808
      %v4458 = vunpack.c.0.s8 %v4457
      %v4459 = vlaneseq
      %v4460 = vshrl.u32 %v4459, 7
      %v4461 = vsub.s32 %v4458, %v4460
      %v4462 = vrot.slane %v4448, %v4461
      %v4463 = vcombine.low %v4455, %v4462
      %v4464 = vcombine.low %v4226, %v4225
      %v4465 = vcombine.low %v4227, %v4234
      %v4467 = vunpack.c.l.s4 1983009808
      %v4468 = vunpack.c.0.s8 %v4467
      %v4469 = vlaneseq
      %v4470 = vshrl.u32 %v4469, 7
      %v4471 = vsub.s32 %v4468, %v4470
      %v4472 = vrot.slane %v4464, %v4471
      %v4474 = vunpack.c.l.s4 1983009808
      %v4475 = vunpack.c.0.s8 %v4474
      %v4476 = vlaneseq
      %v4477 = vshrl.u32 %v4476, 7
      %v4478 = vsub.s32 %v4475, %v4477
      %v4479 = vrot.slane %v4465, %v4478
      %v4480 = vcombine.low %v4472, %v4479
      %v4481 = vcombine.low %v4242, %v4250
      %v4482 = vcombine.low %v4249, %v4251
      %v4484 = vunpack.c.l.s4 1983009808
      %v4485 = vunpack.c.0.s8 %v4484
      %v4486 = vlaneseq
      %v4487 = vshrl.u32 %v4486, 7
      %v4488 = vsub.s32 %v4485, %v4487
      %v4489 = vrot.slane %v4481, %v4488
      %v4491 = vunpack.c.l.s4 1983009808
      %v4492 = vunpack.c.0.s8 %v4491
      %v4493 = vlaneseq
      %v4494 = vshrl.u32 %v4493, 7
      %v4495 = vsub.s32 %v4492, %v4494
      %v4496 = vrot.slane %v4482, %v4495
      %v4497 = vcombine.low %v4489, %v4496
      %v4498 = vcombine.low %v4258, %v4266
      %v4499 = vcombine.low %v4274, %v4273
      %v4501 = vunpack.c.l.s4 1983009808
      %v4502 = vunpack.c.0.s8 %v4501
      %v4503 = vlaneseq
      %v4504 = vshrl.u32 %v4503, 7
      %v4505 = vsub.s32 %v4502, %v4504
      %v4506 = vrot.slane %v4498, %v4505
      %v4508 = vunpack.c.l.s4 1983009808
      %v4509 = vunpack.c.0.s8 %v4508
      %v4510 = vlaneseq
      %v4511 = vshrl.u32 %v4510, 7
      %v4512 = vsub.s32 %v4509, %v4511
      %v4513 = vrot.slane %v4499, %v4512
      %v4514 = vcombine.low %v4506, %v4513
      %v4515 = vcombine.low %v4275, %v4282
      %v4516 = vcombine.low %v4290, %v4298
      %v4518 = vunpack.c.l.s4 1983009808
      %v4519 = vunpack.c.0.s8 %v4518
      %v4520 = vlaneseq
      %v4521 = vshrl.u32 %v4520, 7
      %v4522 = vsub.s32 %v4519, %v4521
      %v4523 = vrot.slane %v4515, %v4522
      %v4525 = vunpack.c.l.s4 1983009808
      %v4526 = vunpack.c.0.s8 %v4525
      %v4527 = vlaneseq
      %v4528 = vshrl.u32 %v4527, 7
      %v4529 = vsub.s32 %v4526, %v4528
      %v4530 = vrot.slane %v4516, %v4529
      %v4531 = vcombine.low %v4523, %v4530
      %v4532 = vcombine.low %v4297, %v4299
      %v4533 = vcombine.low %v4306, %v4314
      %v4535 = vunpack.c.l.s4 1983009808
      %v4536 = vunpack.c.0.s8 %v4535
      %v4537 = vlaneseq
      %v4538 = vshrl.u32 %v4537, 7
      %v4539 = vsub.s32 %v4536, %v4538
      %v4540 = vrot.slane %v4532, %v4539
      %v4542 = vunpack.c.l.s4 1983009808
      %v4543 = vunpack.c.0.s8 %v4542
      %v4544 = vlaneseq
      %v4545 = vshrl.u32 %v4544, 7
      %v4546 = vsub.s32 %v4543, %v4545
      %v4547 = vrot.slane %v4533, %v4546
      %v4548 = vcombine.low %v4540, %v4547
      %v4549 = vcombine.low %v4322, %v4321
      %v4550 = vcombine.low %v4323, %v4330
      %v4552 = vunpack.c.l.s4 1983009808
      %v4553 = vunpack.c.0.s8 %v4552
      %v4554 = vlaneseq
      %v4555 = vshrl.u32 %v4554, 7
      %v4556 = vsub.s32 %v4553, %v4555
      %v4557 = vrot.slane %v4549, %v4556
      %v4559 = vunpack.c.l.s4 1983009808
      %v4560 = vunpack.c.0.s8 %v4559
      %v4561 = vlaneseq
      %v4562 = vshrl.u32 %v4561, 7
      %v4563 = vsub.s32 %v4560, %v4562
      %v4564 = vrot.slane %v4550, %v4563
      %v4565 = vcombine.low %v4557, %v4564
      %v4566 = vcombine.low %v4338, %v4346
      %v4567 = vcombine.low %v4345, %v4347
      %v4569 = vunpack.c.l.s4 1983009808
      %v4570 = vunpack.c.0.s8 %v4569
      %v4571 = vlaneseq
      %v4572 = vshrl.u32 %v4571, 7
      %v4573 = vsub.s32 %v4570, %v4572
      %v4574 = vrot.slane %v4566, %v4573
      %v4576 = vunpack.c.l.s4 1983009808
      %v4577 = vunpack.c.0.s8 %v4576
      %v4578 = vlaneseq
      %v4579 = vshrl.u32 %v4578, 7
      %v4580 = vsub.s32 %v4577, %v4579
      %v4581 = vrot.slane %v4567, %v4580
      %v4582 = vcombine.low %v4574, %v4581
      %v4583 = vcombine.low %v4354, %v4362
      %v4584 = vcombine.low %v4370, %v4369
      %v4586 = vunpack.c.l.s4 1983009808
      %v4587 = vunpack.c.0.s8 %v4586
      %v4588 = vlaneseq
      %v4589 = vshrl.u32 %v4588, 7
      %v4590 = vsub.s32 %v4587, %v4589
      %v4591 = vrot.slane %v4583, %v4590
      %v4593 = vunpack.c.l.s4 1983009808
      %v4594 = vunpack.c.0.s8 %v4593
      %v4595 = vlaneseq
      %v4596 = vshrl.u32 %v4595, 7
      %v4597 = vsub.s32 %v4594, %v4596
      %v4598 = vrot.slane %v4584, %v4597
      %v4599 = vcombine.low %v4591, %v4598
      %v4600 = vcombine.low %v4371, %v4378
      %v4602 = vunpack.c.l.s4 1983009808
      %v4603 = vunpack.c.0.s8 %v4602
      %v4604 = vlaneseq
      %v4605 = vshrl.u32 %v4604, 7
      %v4606 = vsub.s32 %v4603, %v4605
      %v4607 = vrot.slane %v4600, %v4606
      %4621 = vmatprep.subr.mxu0 0.0
      %4622 = vmatpush1.msra.mxu0 %v4395
      %4623 = vmatprep.subr.mxu0 0.0
      %4624 = vmatpush1.msra.mxu0 %v4394
      %4625 = vmatprep.subr.mxu0 0.0
      %4626 = vmatpush1.msra.mxu0 %v4393
      %4627 = vmatprep.subr.mxu0 0.0
      %4628 = vmatpush1.msra.mxu0 %v4392
      %4629 = vmatprep.subr.mxu0 0.0
      %4630 = vmatpush1.msra.mxu0 %v4391
      %4631 = vmatprep.subr.mxu0 0.0
      %4632 = vmatpush1.msra.mxu0 %v4390
      %4633 = vmatprep.subr.mxu0 0.0
      %4634 = vmatpush1.msra.mxu0 %v4389
      %4635 = vmatprep.subr.mxu0 0.0
      %4636 = vmatpush1.msra.mxu0 %v4388
      %4637 = vmatprep.subr.mxu0 0.0
      %4638 = vmatpush1.msra.mxu0 %v4387
      %4639 = vmatprep.subr.mxu0 0.0
      %4640 = vmatpush1.msra.mxu0 %v4386
      %4641 = vmatprep.subr.mxu0 0.0
      %4642 = vmatpush1.msra.mxu0 %v4385
      %4643 = vmatprep.subr.mxu0 0.0
      %4644 = vmatpush1.msra.mxu0 %v4384
      %4645 = vmatprep.subr.mxu0 0.0
      %4646 = vmatpush1.msra.mxu0 %v4383
      %4647 = vmatprep.subr.mxu0 0.0
      %4648 = vmatpush1.msra.mxu0 %v4382
      %4649 = vmatprep.subr.mxu0 0.0
      %4650 = vmatpush1.msra.mxu0 %v4381
      %4651 = vmatprep.subr.mxu0 0.0
      %4652 = vmatpush1.msra.mxu0 %v4380
      %4653 = vmatprep.subr.mxu0 0.0
      %4654 = vmatpush2.msra.mxu0 0.0
      %4655 = vmatprep.subr.mxu0 0.0
      %4656 = vmatpush2.msra.mxu0 0.0
      %4657 = vmatprep.subr.mxu0 0.0
      %4658 = vmatpush2.msra.mxu0 0.0
      %4659 = vmatprep.subr.mxu0 0.0
      %4660 = vmatpush2.msra.mxu0 0.0
      %4661 = vmatprep.subr.mxu0 0.0
      %4662 = vmatpush2.msra.mxu0 0.0
      %4663 = vmatprep.subr.mxu0 0.0
      %4664 = vmatpush2.msra.mxu0 0.0
      %4665 = vmatprep.subr.mxu0 0.0
      %4666 = vmatpush2.msra.mxu0 0.0
      %4667 = vmatprep.subr.mxu0 0.0
      %4668 = vmatpush2.msra.mxu0 0.0
      %4669 = vmatprep.subr.mxu0 0.0
      %4670 = vmatpush2.msra.mxu0 0.0
      %4671 = vmatprep.subr.mxu0 0.0
      %4672 = vmatpush2.msra.mxu0 0.0
      %4673 = vmatprep.subr.mxu0 0.0
      %4674 = vmatpush2.msra.mxu0 0.0
      %4675 = vmatprep.subr.mxu0 0.0
      %4676 = vmatpush2.msra.mxu0 0.0
      %4677 = vmatprep.subr.mxu0 0.0
      %4678 = vmatpush2.msra.mxu0 0.0
      %4679 = vmatprep.subr.mxu0 0.0
      %4680 = vmatpush2.msra.mxu0 0.0
      %4681 = vmatprep.subr.mxu0 0.0
      %4682 = vmatpush2.msra.mxu0 0.0
      %4683 = vmatprep.subr.mxu0 0.0
      %4684 = vmatpush2.msra.mxu0 0.0
      %4685 = vmatprep.mubr.f32.mxu0 0.0
      %4686 = vmatmul.mubr.f32.gmra.mxu0 %v4412
      %v4687 = vpop.f32.mrf.mxu0
      %v4688 = vadd.f32 0.0, %v4687
      %v4689 = vpop.f32.mrf.mxu0
      %4690 = vmatprep.mubr.f32.mxu0 0.0
      %4691 = vmatmul.mubr.f32.gmra.mxu0 %v4429
      %v4692 = vpop.f32.mrf.mxu0
      %v4693 = vadd.f32 0.0, %v4692
      %v4694 = vpop.f32.mrf.mxu0
      %4695 = vmatprep.mubr.f32.mxu0 0.0
      %4696 = vmatmul.mubr.f32.gmra.mxu0 %v4446
      %v4697 = vpop.f32.mrf.mxu0
      %v4698 = vadd.f32 0.0, %v4697
      %v4699 = vpop.f32.mrf.mxu0
      %4700 = vmatprep.mubr.f32.mxu0 0.0
      %4701 = vmatmul.mubr.f32.gmra.mxu0 %v4463
      %v4702 = vpop.f32.mrf.mxu0
      %v4703 = vadd.f32 0.0, %v4702
      %v4704 = vpop.f32.mrf.mxu0
      %4705 = vmatprep.mubr.f32.mxu0 0.0
      %4706 = vmatmul.mubr.f32.gmra.mxu0 %v4480
      %v4707 = vpop.f32.mrf.mxu0
      %v4708 = vadd.f32 0.0, %v4707
      %v4709 = vpop.f32.mrf.mxu0
      %4710 = vmatprep.mubr.f32.mxu0 0.0
      %4711 = vmatmul.mubr.f32.gmra.mxu0 %v4497
      %v4712 = vpop.f32.mrf.mxu0
      %v4713 = vadd.f32 0.0, %v4712
      %v4714 = vpop.f32.mrf.mxu0
      %4715 = vmatprep.mubr.f32.mxu0 0.0
      %4716 = vmatmul.mubr.f32.gmra.mxu0 %v4514
      %v4717 = vpop.f32.mrf.mxu0
      %v4718 = vadd.f32 0.0, %v4717
      %v4719 = vpop.f32.mrf.mxu0
      %4720 = vmatprep.mubr.f32.mxu0 0.0
      %4721 = vmatmul.mubr.f32.gmra.mxu0 %v4531
      %v4722 = vpop.f32.mrf.mxu0
      %v4723 = vadd.f32 0.0, %v4722
      %v4724 = vpop.f32.mrf.mxu0
      %4725 = vmatprep.mubr.f32.mxu0 0.0
      %4726 = vmatmul.mubr.f32.gmra.mxu0 %v4548
      %v4727 = vpop.f32.mrf.mxu0
      %v4728 = vadd.f32 0.0, %v4727
      %v4729 = vpop.f32.mrf.mxu0
      %4730 = vmatprep.mubr.f32.mxu0 0.0
      %4731 = vmatmul.mubr.f32.gmra.mxu0 %v4565
      %v4732 = vpop.f32.mrf.mxu0
      %v4733 = vadd.f32 0.0, %v4732
      %v4734 = vpop.f32.mrf.mxu0
      %4735 = vmatprep.mubr.f32.mxu0 0.0
      %4736 = vmatmul.mubr.f32.gmra.mxu0 %v4582
      %v4737 = vpop.f32.mrf.mxu0
      %v4738 = vadd.f32 0.0, %v4737
      %v4739 = vpop.f32.mrf.mxu0
      %4740 = vmatprep.mubr.f32.mxu0 0.0
      %4741 = vmatmul.mubr.f32.gmra.mxu0 %v4599
      %v4742 = vpop.f32.mrf.mxu0
      %v4743 = vadd.f32 0.0, %v4742
      %v4744 = vpop.f32.mrf.mxu0
      %4745 = vmatprep.mubr.f32.mxu0 0.0
      %4746 = vmatmul.mubr.f32.gmra.mxu0 %v4607
      %v4747 = vpop.f32.mrf.mxu0
      %v4748 = vadd.f32 0.0, %v4747
      %v4749 = vpop.f32.mrf.mxu0
      %4750 = vdwg.mxu0
      %v4751 = vadd.f32 %v4086, %v4688
      %v4752 = vadd.f32 %v4087, %v4693
      %v4753 = vadd.f32 %v4088, %v4698
      %v4754 = vadd.f32 %v4089, %v4703
      %v4755 = vadd.f32 %v4090, %v4708
      %v4756 = vadd.f32 %v4091, %v4713
      %v4757 = vadd.f32 %v4092, %v4718
      %v4758 = vadd.f32 %v4093, %v4723
      %v4759 = vadd.f32 %v4094, %v4728
      %v4760 = vadd.f32 %v4095, %v4733
      %v4761 = vadd.f32 %v4096, %v4738
      %v4762 = vadd.f32 %v4097, %v4743
      %v4763 = vadd.f32 %v4098, %v4748
      %s4764 = scalar_lea.vmem [#allocation3], 32
      %v4765 = vld [vmem:[%s4764] sm:$0xff]
      %v4766 = vld [vmem:[%s4764 + $0x8] sm:$0x3]
      %v4767 = vld [vmem:[%s4764 + $0x10] sm:$0xff]
      %v4768 = vld [vmem:[%s4764 + $0x18] sm:$0x3]
      %v4769 = vld [vmem:[%s4764 + $0x20] sm:$0xff]
      %v4770 = vld [vmem:[%s4764 + $0x28] sm:$0x3]
      %v4771 = vld [vmem:[%s4764 + $0x30] sm:$0xff]
      %v4772 = vld [vmem:[%s4764 + $0x38] sm:$0x3]
      %v4773 = vld [vmem:[%s4764 + $0x40] sm:$0xff]
      %v4774 = vld [vmem:[%s4764 + $0x48] sm:$0x3]
      %v4775 = vld [vmem:[%s4764 + $0x50] sm:$0xff]
      %v4776 = vld [vmem:[%s4764 + $0x58] sm:$0x3]
      %v4777 = vld [vmem:[%s4764 + $0x60] sm:$0xff]
      %v4778 = vld [vmem:[%s4764 + $0x68] sm:$0x3]
      %v4779 = vld [vmem:[%s4764 + $0x70] sm:$0xff]
      %v4780 = vld [vmem:[%s4764 + $0x78] sm:$0x3]
      %v4781 = vld [vmem:[%s4764 + $0x80] sm:$0xff]
      %v4782 = vld [vmem:[%s4764 + $0x88] sm:$0x3]
      %v4783 = vld [vmem:[%s4764 + $0x90] sm:$0xff]
      %v4784 = vld [vmem:[%s4764 + $0x98] sm:$0x3]
      %v4805 = vcombine.high %v4765, %v4765
      %v4807 = vunpack.c.l.s4 1983009808
      %v4808 = vunpack.c.0.s8 %v4807
      %v4809 = vlaneseq
      %v4810 = vshrl.u32 %v4809, 7
      %v4811 = vsub.s32 %v4808, %v4810
      %v4812 = vrot.slane %v4765, %v4811
      %v4814 = vunpack.c.l.s4 1983009808
      %v4815 = vunpack.c.0.s8 %v4814
      %v4816 = vlaneseq
      %v4817 = vshrl.u32 %v4816, 7
      %v4818 = vsub.s32 %v4815, %v4817
      %v4819 = vrot.slane %v4805, %v4818
      %v4820 = vcombine.high %v4812, %v4812
      %v4821 = vcombine.high %v4819, %v4819
      %v4823 = vunpack.c.l.s4 1983009808
      %v4824 = vunpack.c.0.s8 %v4823
      %v4825 = vlaneseq
      %v4826 = vshrl.u32 %v4825, 7
      %v4827 = vsub.s32 %v4824, %v4826
      %v4828 = vrot.slane %v4766, %v4827
      %v4829 = vcombine.high %v4767, %v4767
      %v4831 = vunpack.c.l.s4 1983009808
      %v4832 = vunpack.c.0.s8 %v4831
      %v4833 = vlaneseq
      %v4834 = vshrl.u32 %v4833, 7
      %v4835 = vsub.s32 %v4832, %v4834
      %v4836 = vrot.slane %v4767, %v4835
      %v4838 = vunpack.c.l.s4 1983009808
      %v4839 = vunpack.c.0.s8 %v4838
      %v4840 = vlaneseq
      %v4841 = vshrl.u32 %v4840, 7
      %v4842 = vsub.s32 %v4839, %v4841
      %v4843 = vrot.slane %v4829, %v4842
      %v4844 = vcombine.high %v4836, %v4836
      %v4845 = vcombine.high %v4843, %v4843
      %v4847 = vunpack.c.l.s4 1983009808
      %v4848 = vunpack.c.0.s8 %v4847
      %v4849 = vlaneseq
      %v4850 = vshrl.u32 %v4849, 7
      %v4851 = vsub.s32 %v4848, %v4850
      %v4852 = vrot.slane %v4768, %v4851
      %v4853 = vcombine.high %v4769, %v4769
      %v4855 = vunpack.c.l.s4 1983009808
      %v4856 = vunpack.c.0.s8 %v4855
      %v4857 = vlaneseq
      %v4858 = vshrl.u32 %v4857, 7
      %v4859 = vsub.s32 %v4856, %v4858
      %v4860 = vrot.slane %v4769, %v4859
      %v4862 = vunpack.c.l.s4 1983009808
      %v4863 = vunpack.c.0.s8 %v4862
      %v4864 = vlaneseq
      %v4865 = vshrl.u32 %v4864, 7
      %v4866 = vsub.s32 %v4863, %v4865
      %v4867 = vrot.slane %v4853, %v4866
      %v4868 = vcombine.high %v4860, %v4860
      %v4869 = vcombine.high %v4867, %v4867
      %v4871 = vunpack.c.l.s4 1983009808
      %v4872 = vunpack.c.0.s8 %v4871
      %v4873 = vlaneseq
      %v4874 = vshrl.u32 %v4873, 7
      %v4875 = vsub.s32 %v4872, %v4874
      %v4876 = vrot.slane %v4770, %v4875
      %v4877 = vcombine.high %v4771, %v4771
      %v4879 = vunpack.c.l.s4 1983009808
      %v4880 = vunpack.c.0.s8 %v4879
      %v4881 = vlaneseq
      %v4882 = vshrl.u32 %v4881, 7
      %v4883 = vsub.s32 %v4880, %v4882
      %v4884 = vrot.slane %v4771, %v4883
      %v4886 = vunpack.c.l.s4 1983009808
      %v4887 = vunpack.c.0.s8 %v4886
      %v4888 = vlaneseq
      %v4889 = vshrl.u32 %v4888, 7
      %v4890 = vsub.s32 %v4887, %v4889
      %v4891 = vrot.slane %v4877, %v4890
      %v4892 = vcombine.high %v4884, %v4884
      %v4893 = vcombine.high %v4891, %v4891
      %v4895 = vunpack.c.l.s4 1983009808
      %v4896 = vunpack.c.0.s8 %v4895
      %v4897 = vlaneseq
      %v4898 = vshrl.u32 %v4897, 7
      %v4899 = vsub.s32 %v4896, %v4898
      %v4900 = vrot.slane %v4772, %v4899
      %v4901 = vcombine.high %v4773, %v4773
      %v4903 = vunpack.c.l.s4 1983009808
      %v4904 = vunpack.c.0.s8 %v4903
      %v4905 = vlaneseq
      %v4906 = vshrl.u32 %v4905, 7
      %v4907 = vsub.s32 %v4904, %v4906
      %v4908 = vrot.slane %v4773, %v4907
      %v4910 = vunpack.c.l.s4 1983009808
      %v4911 = vunpack.c.0.s8 %v4910
      %v4912 = vlaneseq
      %v4913 = vshrl.u32 %v4912, 7
      %v4914 = vsub.s32 %v4911, %v4913
      %v4915 = vrot.slane %v4901, %v4914
      %v4916 = vcombine.high %v4908, %v4908
      %v4917 = vcombine.high %v4915, %v4915
      %v4919 = vunpack.c.l.s4 1983009808
      %v4920 = vunpack.c.0.s8 %v4919
      %v4921 = vlaneseq
      %v4922 = vshrl.u32 %v4921, 7
      %v4923 = vsub.s32 %v4920, %v4922
      %v4924 = vrot.slane %v4774, %v4923
      %v4925 = vcombine.high %v4775, %v4775
      %v4927 = vunpack.c.l.s4 1983009808
      %v4928 = vunpack.c.0.s8 %v4927
      %v4929 = vlaneseq
      %v4930 = vshrl.u32 %v4929, 7
      %v4931 = vsub.s32 %v4928, %v4930
      %v4932 = vrot.slane %v4775, %v4931
      %v4934 = vunpack.c.l.s4 1983009808
      %v4935 = vunpack.c.0.s8 %v4934
      %v4936 = vlaneseq
      %v4937 = vshrl.u32 %v4936, 7
      %v4938 = vsub.s32 %v4935, %v4937
      %v4939 = vrot.slane %v4925, %v4938
      %v4940 = vcombine.high %v4932, %v4932
      %v4941 = vcombine.high %v4939, %v4939
      %v4943 = vunpack.c.l.s4 1983009808
      %v4944 = vunpack.c.0.s8 %v4943
      %v4945 = vlaneseq
      %v4946 = vshrl.u32 %v4945, 7
      %v4947 = vsub.s32 %v4944, %v4946
      %v4948 = vrot.slane %v4776, %v4947
      %v4949 = vcombine.high %v4777, %v4777
      %v4951 = vunpack.c.l.s4 1983009808
      %v4952 = vunpack.c.0.s8 %v4951
      %v4953 = vlaneseq
      %v4954 = vshrl.u32 %v4953, 7
      %v4955 = vsub.s32 %v4952, %v4954
      %v4956 = vrot.slane %v4777, %v4955
      %v4958 = vunpack.c.l.s4 1983009808
      %v4959 = vunpack.c.0.s8 %v4958
      %v4960 = vlaneseq
      %v4961 = vshrl.u32 %v4960, 7
      %v4962 = vsub.s32 %v4959, %v4961
      %v4963 = vrot.slane %v4949, %v4962
      %v4964 = vcombine.high %v4956, %v4956
      %v4965 = vcombine.high %v4963, %v4963
      %v4967 = vunpack.c.l.s4 1983009808
      %v4968 = vunpack.c.0.s8 %v4967
      %v4969 = vlaneseq
      %v4970 = vshrl.u32 %v4969, 7
      %v4971 = vsub.s32 %v4968, %v4970
      %v4972 = vrot.slane %v4778, %v4971
      %v4973 = vcombine.high %v4779, %v4779
      %v4975 = vunpack.c.l.s4 1983009808
      %v4976 = vunpack.c.0.s8 %v4975
      %v4977 = vlaneseq
      %v4978 = vshrl.u32 %v4977, 7
      %v4979 = vsub.s32 %v4976, %v4978
      %v4980 = vrot.slane %v4779, %v4979
      %v4982 = vunpack.c.l.s4 1983009808
      %v4983 = vunpack.c.0.s8 %v4982
      %v4984 = vlaneseq
      %v4985 = vshrl.u32 %v4984, 7
      %v4986 = vsub.s32 %v4983, %v4985
      %v4987 = vrot.slane %v4973, %v4986
      %v4988 = vcombine.high %v4980, %v4980
      %v4989 = vcombine.high %v4987, %v4987
      %v4991 = vunpack.c.l.s4 1983009808
      %v4992 = vunpack.c.0.s8 %v4991
      %v4993 = vlaneseq
      %v4994 = vshrl.u32 %v4993, 7
      %v4995 = vsub.s32 %v4992, %v4994
      %v4996 = vrot.slane %v4780, %v4995
      %v4997 = vcombine.high %v4781, %v4781
      %v4999 = vunpack.c.l.s4 1983009808
      %v5000 = vunpack.c.0.s8 %v4999
      %v5001 = vlaneseq
      %v5002 = vshrl.u32 %v5001, 7
      %v5003 = vsub.s32 %v5000, %v5002
      %v5004 = vrot.slane %v4781, %v5003
      %v5006 = vunpack.c.l.s4 1983009808
      %v5007 = vunpack.c.0.s8 %v5006
      %v5008 = vlaneseq
      %v5009 = vshrl.u32 %v5008, 7
      %v5010 = vsub.s32 %v5007, %v5009
      %v5011 = vrot.slane %v4997, %v5010
      %v5012 = vcombine.high %v5004, %v5004
      %v5013 = vcombine.high %v5011, %v5011
      %v5015 = vunpack.c.l.s4 1983009808
      %v5016 = vunpack.c.0.s8 %v5015
      %v5017 = vlaneseq
      %v5018 = vshrl.u32 %v5017, 7
      %v5019 = vsub.s32 %v5016, %v5018
      %v5020 = vrot.slane %v4782, %v5019
      %v5021 = vcombine.high %v4783, %v4783
      %v5023 = vunpack.c.l.s4 1983009808
      %v5024 = vunpack.c.0.s8 %v5023
      %v5025 = vlaneseq
      %v5026 = vshrl.u32 %v5025, 7
      %v5027 = vsub.s32 %v5024, %v5026
      %v5028 = vrot.slane %v4783, %v5027
      %v5030 = vunpack.c.l.s4 1983009808
      %v5031 = vunpack.c.0.s8 %v5030
      %v5032 = vlaneseq
      %v5033 = vshrl.u32 %v5032, 7
      %v5034 = vsub.s32 %v5031, %v5033
      %v5035 = vrot.slane %v5021, %v5034
      %v5036 = vcombine.high %v5028, %v5028
      %v5037 = vcombine.high %v5035, %v5035
      %v5039 = vunpack.c.l.s4 1983009808
      %v5040 = vunpack.c.0.s8 %v5039
      %v5041 = vlaneseq
      %v5042 = vshrl.u32 %v5041, 7
      %v5043 = vsub.s32 %v5040, %v5042
      %v5044 = vrot.slane %v4784, %v5043
      %s5045 = scalar_lea.vmem %s1, 768
      %v5046 = vld [vmem:[%s5045] sm:$0xff]
      %v5047 = vld [vmem:[%s5045 + $0x8] sm:$0xff]
      %v5048 = vld [vmem:[%s5045 + $0x10] sm:$0xff]
      %v5049 = vld [vmem:[%s5045 + $0x18] sm:$0xff]
      %v5050 = vld [vmem:[%s5045 + $0x20] sm:$0xff]
      %v5051 = vld [vmem:[%s5045 + $0x28] sm:$0xff]
      %v5052 = vld [vmem:[%s5045 + $0x30] sm:$0xff]
      %v5053 = vld [vmem:[%s5045 + $0x38] sm:$0xff]
      %v5054 = vld [vmem:[%s5045 + $0x40] sm:$0xff]
      %v5055 = vld [vmem:[%s5045 + $0x48] sm:$0xff]
      %v5056 = vld [vmem:[%s5045 + $0x50] sm:$0xff]
      %v5057 = vld [vmem:[%s5045 + $0x58] sm:$0xff]
      %v5058 = vld [vmem:[%s5045 + $0x60] sm:$0xff]
      %v5059 = vld [vmem:[%s5045 + $0x68] sm:$0xff]
      %v5060 = vld [vmem:[%s5045 + $0x70] sm:$0xff]
      %v5061 = vld [vmem:[%s5045 + $0x78] sm:$0xff]
      %v5062 = vcombine.low %v4812, %v4820
      %v5063 = vcombine.low %v4819, %v4821
      %v5065 = vunpack.c.l.s4 1983009808
      %v5066 = vunpack.c.0.s8 %v5065
      %v5067 = vlaneseq
      %v5068 = vshrl.u32 %v5067, 7
      %v5069 = vsub.s32 %v5066, %v5068
      %v5070 = vrot.slane %v5062, %v5069
      %v5072 = vunpack.c.l.s4 1983009808
      %v5073 = vunpack.c.0.s8 %v5072
      %v5074 = vlaneseq
      %v5075 = vshrl.u32 %v5074, 7
      %v5076 = vsub.s32 %v5073, %v5075
      %v5077 = vrot.slane %v5063, %v5076
      %v5078 = vcombine.low %v5070, %v5077
      %v5079 = vcombine.low %v4828, %v4836
      %v5080 = vcombine.low %v4844, %v4843
      %v5082 = vunpack.c.l.s4 1983009808
      %v5083 = vunpack.c.0.s8 %v5082
      %v5084 = vlaneseq
      %v5085 = vshrl.u32 %v5084, 7
      %v5086 = vsub.s32 %v5083, %v5085
      %v5087 = vrot.slane %v5079, %v5086
      %v5089 = vunpack.c.l.s4 1983009808
      %v5090 = vunpack.c.0.s8 %v5089
      %v5091 = vlaneseq
      %v5092 = vshrl.u32 %v5091, 7
      %v5093 = vsub.s32 %v5090, %v5092
      %v5094 = vrot.slane %v5080, %v5093
      %v5095 = vcombine.low %v5087, %v5094
      %v5096 = vcombine.low %v4845, %v4852
      %v5097 = vcombine.low %v4860, %v4868
      %v5099 = vunpack.c.l.s4 1983009808
      %v5100 = vunpack.c.0.s8 %v5099
      %v5101 = vlaneseq
      %v5102 = vshrl.u32 %v5101, 7
      %v5103 = vsub.s32 %v5100, %v5102
      %v5104 = vrot.slane %v5096, %v5103
      %v5106 = vunpack.c.l.s4 1983009808
      %v5107 = vunpack.c.0.s8 %v5106
      %v5108 = vlaneseq
      %v5109 = vshrl.u32 %v5108, 7
      %v5110 = vsub.s32 %v5107, %v5109
      %v5111 = vrot.slane %v5097, %v5110
      %v5112 = vcombine.low %v5104, %v5111
      %v5113 = vcombine.low %v4867, %v4869
      %v5114 = vcombine.low %v4876, %v4884
      %v5116 = vunpack.c.l.s4 1983009808
      %v5117 = vunpack.c.0.s8 %v5116
      %v5118 = vlaneseq
      %v5119 = vshrl.u32 %v5118, 7
      %v5120 = vsub.s32 %v5117, %v5119
      %v5121 = vrot.slane %v5113, %v5120
      %v5123 = vunpack.c.l.s4 1983009808
      %v5124 = vunpack.c.0.s8 %v5123
      %v5125 = vlaneseq
      %v5126 = vshrl.u32 %v5125, 7
      %v5127 = vsub.s32 %v5124, %v5126
      %v5128 = vrot.slane %v5114, %v5127
      %v5129 = vcombine.low %v5121, %v5128
      %v5130 = vcombine.low %v4892, %v4891
      %v5131 = vcombine.low %v4893, %v4900
      %v5133 = vunpack.c.l.s4 1983009808
      %v5134 = vunpack.c.0.s8 %v5133
      %v5135 = vlaneseq
      %v5136 = vshrl.u32 %v5135, 7
      %v5137 = vsub.s32 %v5134, %v5136
      %v5138 = vrot.slane %v5130, %v5137
      %v5140 = vunpack.c.l.s4 1983009808
      %v5141 = vunpack.c.0.s8 %v5140
      %v5142 = vlaneseq
      %v5143 = vshrl.u32 %v5142, 7
      %v5144 = vsub.s32 %v5141, %v5143
      %v5145 = vrot.slane %v5131, %v5144
      %v5146 = vcombine.low %v5138, %v5145
      %v5147 = vcombine.low %v4908, %v4916
      %v5148 = vcombine.low %v4915, %v4917
      %v5150 = vunpack.c.l.s4 1983009808
      %v5151 = vunpack.c.0.s8 %v5150
      %v5152 = vlaneseq
      %v5153 = vshrl.u32 %v5152, 7
      %v5154 = vsub.s32 %v5151, %v5153
      %v5155 = vrot.slane %v5147, %v5154
      %v5157 = vunpack.c.l.s4 1983009808
      %v5158 = vunpack.c.0.s8 %v5157
      %v5159 = vlaneseq
      %v5160 = vshrl.u32 %v5159, 7
      %v5161 = vsub.s32 %v5158, %v5160
      %v5162 = vrot.slane %v5148, %v5161
      %v5163 = vcombine.low %v5155, %v5162
      %v5164 = vcombine.low %v4924, %v4932
      %v5165 = vcombine.low %v4940, %v4939
      %v5167 = vunpack.c.l.s4 1983009808
      %v5168 = vunpack.c.0.s8 %v5167
      %v5169 = vlaneseq
      %v5170 = vshrl.u32 %v5169, 7
      %v5171 = vsub.s32 %v5168, %v5170
      %v5172 = vrot.slane %v5164, %v5171
      %v5174 = vunpack.c.l.s4 1983009808
      %v5175 = vunpack.c.0.s8 %v5174
      %v5176 = vlaneseq
      %v5177 = vshrl.u32 %v5176, 7
      %v5178 = vsub.s32 %v5175, %v5177
      %v5179 = vrot.slane %v5165, %v5178
      %v5180 = vcombine.low %v5172, %v5179
      %v5181 = vcombine.low %v4941, %v4948
      %v5182 = vcombine.low %v4956, %v4964
      %v5184 = vunpack.c.l.s4 1983009808
      %v5185 = vunpack.c.0.s8 %v5184
      %v5186 = vlaneseq
      %v5187 = vshrl.u32 %v5186, 7
      %v5188 = vsub.s32 %v5185, %v5187
      %v5189 = vrot.slane %v5181, %v5188
      %v5191 = vunpack.c.l.s4 1983009808
      %v5192 = vunpack.c.0.s8 %v5191
      %v5193 = vlaneseq
      %v5194 = vshrl.u32 %v5193, 7
      %v5195 = vsub.s32 %v5192, %v5194
      %v5196 = vrot.slane %v5182, %v5195
      %v5197 = vcombine.low %v5189, %v5196
      %v5198 = vcombine.low %v4963, %v4965
      %v5199 = vcombine.low %v4972, %v4980
      %v5201 = vunpack.c.l.s4 1983009808
      %v5202 = vunpack.c.0.s8 %v5201
      %v5203 = vlaneseq
      %v5204 = vshrl.u32 %v5203, 7
      %v5205 = vsub.s32 %v5202, %v5204
      %v5206 = vrot.slane %v5198, %v5205
      %v5208 = vunpack.c.l.s4 1983009808
      %v5209 = vunpack.c.0.s8 %v5208
      %v5210 = vlaneseq
      %v5211 = vshrl.u32 %v5210, 7
      %v5212 = vsub.s32 %v5209, %v5211
      %v5213 = vrot.slane %v5199, %v5212
      %v5214 = vcombine.low %v5206, %v5213
      %v5215 = vcombine.low %v4988, %v4987
      %v5216 = vcombine.low %v4989, %v4996
      %v5218 = vunpack.c.l.s4 1983009808
      %v5219 = vunpack.c.0.s8 %v5218
      %v5220 = vlaneseq
      %v5221 = vshrl.u32 %v5220, 7
      %v5222 = vsub.s32 %v5219, %v5221
      %v5223 = vrot.slane %v5215, %v5222
      %v5225 = vunpack.c.l.s4 1983009808
      %v5226 = vunpack.c.0.s8 %v5225
      %v5227 = vlaneseq
      %v5228 = vshrl.u32 %v5227, 7
      %v5229 = vsub.s32 %v5226, %v5228
      %v5230 = vrot.slane %v5216, %v5229
      %v5231 = vcombine.low %v5223, %v5230
      %v5232 = vcombine.low %v5004, %v5012
      %v5233 = vcombine.low %v5011, %v5013
      %v5235 = vunpack.c.l.s4 1983009808
      %v5236 = vunpack.c.0.s8 %v5235
      %v5237 = vlaneseq
      %v5238 = vshrl.u32 %v5237, 7
      %v5239 = vsub.s32 %v5236, %v5238
      %v5240 = vrot.slane %v5232, %v5239
      %v5242 = vunpack.c.l.s4 1983009808
      %v5243 = vunpack.c.0.s8 %v5242
      %v5244 = vlaneseq
      %v5245 = vshrl.u32 %v5244, 7
      %v5246 = vsub.s32 %v5243, %v5245
      %v5247 = vrot.slane %v5233, %v5246
      %v5248 = vcombine.low %v5240, %v5247
      %v5249 = vcombine.low %v5020, %v5028
      %v5250 = vcombine.low %v5036, %v5035
      %v5252 = vunpack.c.l.s4 1983009808
      %v5253 = vunpack.c.0.s8 %v5252
      %v5254 = vlaneseq
      %v5255 = vshrl.u32 %v5254, 7
      %v5256 = vsub.s32 %v5253, %v5255
      %v5257 = vrot.slane %v5249, %v5256
      %v5259 = vunpack.c.l.s4 1983009808
      %v5260 = vunpack.c.0.s8 %v5259
      %v5261 = vlaneseq
      %v5262 = vshrl.u32 %v5261, 7
      %v5263 = vsub.s32 %v5260, %v5262
      %v5264 = vrot.slane %v5250, %v5263
      %v5265 = vcombine.low %v5257, %v5264
      %v5266 = vcombine.low %v5037, %v5044
      %v5268 = vunpack.c.l.s4 1983009808
      %v5269 = vunpack.c.0.s8 %v5268
      %v5270 = vlaneseq
      %v5271 = vshrl.u32 %v5270, 7
      %v5272 = vsub.s32 %v5269, %v5271
      %v5273 = vrot.slane %v5266, %v5272
      %5287 = vmatprep.subr.mxu0 0.0
      %5288 = vmatpush1.msra.mxu0 %v5061
      %5289 = vmatprep.subr.mxu0 0.0
      %5290 = vmatpush1.msra.mxu0 %v5060
      %5291 = vmatprep.subr.mxu0 0.0
      %5292 = vmatpush1.msra.mxu0 %v5059
      %5293 = vmatprep.subr.mxu0 0.0
      %5294 = vmatpush1.msra.mxu0 %v5058
      %5295 = vmatprep.subr.mxu0 0.0
      %5296 = vmatpush1.msra.mxu0 %v5057
      %5297 = vmatprep.subr.mxu0 0.0
      %5298 = vmatpush1.msra.mxu0 %v5056
      %5299 = vmatprep.subr.mxu0 0.0
      %5300 = vmatpush1.msra.mxu0 %v5055
      %5301 = vmatprep.subr.mxu0 0.0
      %5302 = vmatpush1.msra.mxu0 %v5054
      %5303 = vmatprep.subr.mxu0 0.0
      %5304 = vmatpush1.msra.mxu0 %v5053
      %5305 = vmatprep.subr.mxu0 0.0
      %5306 = vmatpush1.msra.mxu0 %v5052
      %5307 = vmatprep.subr.mxu0 0.0
      %5308 = vmatpush1.msra.mxu0 %v5051
      %5309 = vmatprep.subr.mxu0 0.0
      %5310 = vmatpush1.msra.mxu0 %v5050
      %5311 = vmatprep.subr.mxu0 0.0
      %5312 = vmatpush1.msra.mxu0 %v5049
      %5313 = vmatprep.subr.mxu0 0.0
      %5314 = vmatpush1.msra.mxu0 %v5048
      %5315 = vmatprep.subr.mxu0 0.0
      %5316 = vmatpush1.msra.mxu0 %v5047
      %5317 = vmatprep.subr.mxu0 0.0
      %5318 = vmatpush1.msra.mxu0 %v5046
      %5319 = vmatprep.subr.mxu0 0.0
      %5320 = vmatpush2.msra.mxu0 0.0
      %5321 = vmatprep.subr.mxu0 0.0
      %5322 = vmatpush2.msra.mxu0 0.0
      %5323 = vmatprep.subr.mxu0 0.0
      %5324 = vmatpush2.msra.mxu0 0.0
      %5325 = vmatprep.subr.mxu0 0.0
      %5326 = vmatpush2.msra.mxu0 0.0
      %5327 = vmatprep.subr.mxu0 0.0
      %5328 = vmatpush2.msra.mxu0 0.0
      %5329 = vmatprep.subr.mxu0 0.0
      %5330 = vmatpush2.msra.mxu0 0.0
      %5331 = vmatprep.subr.mxu0 0.0
      %5332 = vmatpush2.msra.mxu0 0.0
      %5333 = vmatprep.subr.mxu0 0.0
      %5334 = vmatpush2.msra.mxu0 0.0
      %5335 = vmatprep.subr.mxu0 0.0
      %5336 = vmatpush2.msra.mxu0 0.0
      %5337 = vmatprep.subr.mxu0 0.0
      %5338 = vmatpush2.msra.mxu0 0.0
      %5339 = vmatprep.subr.mxu0 0.0
      %5340 = vmatpush2.msra.mxu0 0.0
      %5341 = vmatprep.subr.mxu0 0.0
      %5342 = vmatpush2.msra.mxu0 0.0
      %5343 = vmatprep.subr.mxu0 0.0
      %5344 = vmatpush2.msra.mxu0 0.0
      %5345 = vmatprep.subr.mxu0 0.0
      %5346 = vmatpush2.msra.mxu0 0.0
      %5347 = vmatprep.subr.mxu0 0.0
      %5348 = vmatpush2.msra.mxu0 0.0
      %5349 = vmatprep.subr.mxu0 0.0
      %5350 = vmatpush2.msra.mxu0 0.0
      %5351 = vmatprep.mubr.f32.mxu0 0.0
      %5352 = vmatmul.mubr.f32.gmra.mxu0 %v5078
      %v5353 = vpop.f32.mrf.mxu0
      %v5354 = vadd.f32 0.0, %v5353
      %v5355 = vpop.f32.mrf.mxu0
      %5356 = vmatprep.mubr.f32.mxu0 0.0
      %5357 = vmatmul.mubr.f32.gmra.mxu0 %v5095
      %v5358 = vpop.f32.mrf.mxu0
      %v5359 = vadd.f32 0.0, %v5358
      %v5360 = vpop.f32.mrf.mxu0
      %5361 = vmatprep.mubr.f32.mxu0 0.0
      %5362 = vmatmul.mubr.f32.gmra.mxu0 %v5112
      %v5363 = vpop.f32.mrf.mxu0
      %v5364 = vadd.f32 0.0, %v5363
      %v5365 = vpop.f32.mrf.mxu0
      %5366 = vmatprep.mubr.f32.mxu0 0.0
      %5367 = vmatmul.mubr.f32.gmra.mxu0 %v5129
      %v5368 = vpop.f32.mrf.mxu0
      %v5369 = vadd.f32 0.0, %v5368
      %v5370 = vpop.f32.mrf.mxu0
      %5371 = vmatprep.mubr.f32.mxu0 0.0
      %5372 = vmatmul.mubr.f32.gmra.mxu0 %v5146
      %v5373 = vpop.f32.mrf.mxu0
      %v5374 = vadd.f32 0.0, %v5373
      %v5375 = vpop.f32.mrf.mxu0
      %5376 = vmatprep.mubr.f32.mxu0 0.0
      %5377 = vmatmul.mubr.f32.gmra.mxu0 %v5163
      %v5378 = vpop.f32.mrf.mxu0
      %v5379 = vadd.f32 0.0, %v5378
      %v5380 = vpop.f32.mrf.mxu0
      %5381 = vmatprep.mubr.f32.mxu0 0.0
      %5382 = vmatmul.mubr.f32.gmra.mxu0 %v5180
      %v5383 = vpop.f32.mrf.mxu0
      %v5384 = vadd.f32 0.0, %v5383
      %v5385 = vpop.f32.mrf.mxu0
      %5386 = vmatprep.mubr.f32.mxu0 0.0
      %5387 = vmatmul.mubr.f32.gmra.mxu0 %v5197
      %v5388 = vpop.f32.mrf.mxu0
      %v5389 = vadd.f32 0.0, %v5388
      %v5390 = vpop.f32.mrf.mxu0
      %5391 = vmatprep.mubr.f32.mxu0 0.0
      %5392 = vmatmul.mubr.f32.gmra.mxu0 %v5214
      %v5393 = vpop.f32.mrf.mxu0
      %v5394 = vadd.f32 0.0, %v5393
      %v5395 = vpop.f32.mrf.mxu0
      %5396 = vmatprep.mubr.f32.mxu0 0.0
      %5397 = vmatmul.mubr.f32.gmra.mxu0 %v5231
      %v5398 = vpop.f32.mrf.mxu0
      %v5399 = vadd.f32 0.0, %v5398
      %v5400 = vpop.f32.mrf.mxu0
      %5401 = vmatprep.mubr.f32.mxu0 0.0
      %5402 = vmatmul.mubr.f32.gmra.mxu0 %v5248
      %v5403 = vpop.f32.mrf.mxu0
      %v5404 = vadd.f32 0.0, %v5403
      %v5405 = vpop.f32.mrf.mxu0
      %5406 = vmatprep.mubr.f32.mxu0 0.0
      %5407 = vmatmul.mubr.f32.gmra.mxu0 %v5265
      %v5408 = vpop.f32.mrf.mxu0
      %v5409 = vadd.f32 0.0, %v5408
      %v5410 = vpop.f32.mrf.mxu0
      %5411 = vmatprep.mubr.f32.mxu0 0.0
      %5412 = vmatmul.mubr.f32.gmra.mxu0 %v5273
      %v5413 = vpop.f32.mrf.mxu0
      %v5414 = vadd.f32 0.0, %v5413
      %v5415 = vpop.f32.mrf.mxu0
      %5416 = vdwg.mxu0
      %v5417 = vadd.f32 %v4751, %v5354
      %v5418 = vadd.f32 %v4752, %v5359
      %v5419 = vadd.f32 %v4753, %v5364
      %v5420 = vadd.f32 %v4754, %v5369
      %v5421 = vadd.f32 %v4755, %v5374
      %v5422 = vadd.f32 %v4756, %v5379
      %v5423 = vadd.f32 %v4757, %v5384
      %v5424 = vadd.f32 %v4758, %v5389
      %v5425 = vadd.f32 %v4759, %v5394
      %v5426 = vadd.f32 %v4760, %v5399
      %v5427 = vadd.f32 %v4761, %v5404
      %v5428 = vadd.f32 %v4762, %v5409
      %v5429 = vadd.f32 %v4763, %v5414
      %v5430 = vld [vmem:[%s4764 + $0x1] sm:$0xff]
      %v5431 = vld [vmem:[%s4764 + $0x9] sm:$0x3]
      %v5432 = vld [vmem:[%s4764 + $0x11] sm:$0xff]
      %v5433 = vld [vmem:[%s4764 + $0x19] sm:$0x3]
      %v5434 = vld [vmem:[%s4764 + $0x21] sm:$0xff]
      %v5435 = vld [vmem:[%s4764 + $0x29] sm:$0x3]
      %v5436 = vld [vmem:[%s4764 + $0x31] sm:$0xff]
      %v5437 = vld [vmem:[%s4764 + $0x39] sm:$0x3]
      %v5438 = vld [vmem:[%s4764 + $0x41] sm:$0xff]
      %v5439 = vld [vmem:[%s4764 + $0x49] sm:$0x3]
      %v5440 = vld [vmem:[%s4764 + $0x51] sm:$0xff]
      %v5441 = vld [vmem:[%s4764 + $0x59] sm:$0x3]
      %v5442 = vld [vmem:[%s4764 + $0x61] sm:$0xff]
      %v5443 = vld [vmem:[%s4764 + $0x69] sm:$0x3]
      %v5444 = vld [vmem:[%s4764 + $0x71] sm:$0xff]
      %v5445 = vld [vmem:[%s4764 + $0x79] sm:$0x3]
      %v5446 = vld [vmem:[%s4764 + $0x81] sm:$0xff]
      %v5447 = vld [vmem:[%s4764 + $0x89] sm:$0x3]
      %v5448 = vld [vmem:[%s4764 + $0x91] sm:$0xff]
      %v5449 = vld [vmem:[%s4764 + $0x99] sm:$0x3]
      %v5470 = vcombine.high %v5430, %v5430
      %v5472 = vunpack.c.l.s4 1983009808
      %v5473 = vunpack.c.0.s8 %v5472
      %v5474 = vlaneseq
      %v5475 = vshrl.u32 %v5474, 7
      %v5476 = vsub.s32 %v5473, %v5475
      %v5477 = vrot.slane %v5430, %v5476
      %v5479 = vunpack.c.l.s4 1983009808
      %v5480 = vunpack.c.0.s8 %v5479
      %v5481 = vlaneseq
      %v5482 = vshrl.u32 %v5481, 7
      %v5483 = vsub.s32 %v5480, %v5482
      %v5484 = vrot.slane %v5470, %v5483
      %v5485 = vcombine.high %v5477, %v5477
      %v5486 = vcombine.high %v5484, %v5484
      %v5488 = vunpack.c.l.s4 1983009808
      %v5489 = vunpack.c.0.s8 %v5488
      %v5490 = vlaneseq
      %v5491 = vshrl.u32 %v5490, 7
      %v5492 = vsub.s32 %v5489, %v5491
      %v5493 = vrot.slane %v5431, %v5492
      %v5494 = vcombine.high %v5432, %v5432
      %v5496 = vunpack.c.l.s4 1983009808
      %v5497 = vunpack.c.0.s8 %v5496
      %v5498 = vlaneseq
      %v5499 = vshrl.u32 %v5498, 7
      %v5500 = vsub.s32 %v5497, %v5499
      %v5501 = vrot.slane %v5432, %v5500
      %v5503 = vunpack.c.l.s4 1983009808
      %v5504 = vunpack.c.0.s8 %v5503
      %v5505 = vlaneseq
      %v5506 = vshrl.u32 %v5505, 7
      %v5507 = vsub.s32 %v5504, %v5506
      %v5508 = vrot.slane %v5494, %v5507
      %v5509 = vcombine.high %v5501, %v5501
      %v5510 = vcombine.high %v5508, %v5508
      %v5512 = vunpack.c.l.s4 1983009808
      %v5513 = vunpack.c.0.s8 %v5512
      %v5514 = vlaneseq
      %v5515 = vshrl.u32 %v5514, 7
      %v5516 = vsub.s32 %v5513, %v5515
      %v5517 = vrot.slane %v5433, %v5516
      %v5518 = vcombine.high %v5434, %v5434
      %v5520 = vunpack.c.l.s4 1983009808
      %v5521 = vunpack.c.0.s8 %v5520
      %v5522 = vlaneseq
      %v5523 = vshrl.u32 %v5522, 7
      %v5524 = vsub.s32 %v5521, %v5523
      %v5525 = vrot.slane %v5434, %v5524
      %v5527 = vunpack.c.l.s4 1983009808
      %v5528 = vunpack.c.0.s8 %v5527
      %v5529 = vlaneseq
      %v5530 = vshrl.u32 %v5529, 7
      %v5531 = vsub.s32 %v5528, %v5530
      %v5532 = vrot.slane %v5518, %v5531
      %v5533 = vcombine.high %v5525, %v5525
      %v5534 = vcombine.high %v5532, %v5532
      %v5536 = vunpack.c.l.s4 1983009808
      %v5537 = vunpack.c.0.s8 %v5536
      %v5538 = vlaneseq
      %v5539 = vshrl.u32 %v5538, 7
      %v5540 = vsub.s32 %v5537, %v5539
      %v5541 = vrot.slane %v5435, %v5540
      %v5542 = vcombine.high %v5436, %v5436
      %v5544 = vunpack.c.l.s4 1983009808
      %v5545 = vunpack.c.0.s8 %v5544
      %v5546 = vlaneseq
      %v5547 = vshrl.u32 %v5546, 7
      %v5548 = vsub.s32 %v5545, %v5547
      %v5549 = vrot.slane %v5436, %v5548
      %v5551 = vunpack.c.l.s4 1983009808
      %v5552 = vunpack.c.0.s8 %v5551
      %v5553 = vlaneseq
      %v5554 = vshrl.u32 %v5553, 7
      %v5555 = vsub.s32 %v5552, %v5554
      %v5556 = vrot.slane %v5542, %v5555
      %v5557 = vcombine.high %v5549, %v5549
      %v5558 = vcombine.high %v5556, %v5556
      %v5560 = vunpack.c.l.s4 1983009808
      %v5561 = vunpack.c.0.s8 %v5560
      %v5562 = vlaneseq
      %v5563 = vshrl.u32 %v5562, 7
      %v5564 = vsub.s32 %v5561, %v5563
      %v5565 = vrot.slane %v5437, %v5564
      %v5566 = vcombine.high %v5438, %v5438
      %v5568 = vunpack.c.l.s4 1983009808
      %v5569 = vunpack.c.0.s8 %v5568
      %v5570 = vlaneseq
      %v5571 = vshrl.u32 %v5570, 7
      %v5572 = vsub.s32 %v5569, %v5571
      %v5573 = vrot.slane %v5438, %v5572
      %v5575 = vunpack.c.l.s4 1983009808
      %v5576 = vunpack.c.0.s8 %v5575
      %v5577 = vlaneseq
      %v5578 = vshrl.u32 %v5577, 7
      %v5579 = vsub.s32 %v5576, %v5578
      %v5580 = vrot.slane %v5566, %v5579
      %v5581 = vcombine.high %v5573, %v5573
      %v5582 = vcombine.high %v5580, %v5580
      %v5584 = vunpack.c.l.s4 1983009808
      %v5585 = vunpack.c.0.s8 %v5584
      %v5586 = vlaneseq
      %v5587 = vshrl.u32 %v5586, 7
      %v5588 = vsub.s32 %v5585, %v5587
      %v5589 = vrot.slane %v5439, %v5588
      %v5590 = vcombine.high %v5440, %v5440
      %v5592 = vunpack.c.l.s4 1983009808
      %v5593 = vunpack.c.0.s8 %v5592
      %v5594 = vlaneseq
      %v5595 = vshrl.u32 %v5594, 7
      %v5596 = vsub.s32 %v5593, %v5595
      %v5597 = vrot.slane %v5440, %v5596
      %v5599 = vunpack.c.l.s4 1983009808
      %v5600 = vunpack.c.0.s8 %v5599
      %v5601 = vlaneseq
      %v5602 = vshrl.u32 %v5601, 7
      %v5603 = vsub.s32 %v5600, %v5602
      %v5604 = vrot.slane %v5590, %v5603
      %v5605 = vcombine.high %v5597, %v5597
      %v5606 = vcombine.high %v5604, %v5604
      %v5608 = vunpack.c.l.s4 1983009808
      %v5609 = vunpack.c.0.s8 %v5608
      %v5610 = vlaneseq
      %v5611 = vshrl.u32 %v5610, 7
      %v5612 = vsub.s32 %v5609, %v5611
      %v5613 = vrot.slane %v5441, %v5612
      %v5614 = vcombine.high %v5442, %v5442
      %v5616 = vunpack.c.l.s4 1983009808
      %v5617 = vunpack.c.0.s8 %v5616
      %v5618 = vlaneseq
      %v5619 = vshrl.u32 %v5618, 7
      %v5620 = vsub.s32 %v5617, %v5619
      %v5621 = vrot.slane %v5442, %v5620
      %v5623 = vunpack.c.l.s4 1983009808
      %v5624 = vunpack.c.0.s8 %v5623
      %v5625 = vlaneseq
      %v5626 = vshrl.u32 %v5625, 7
      %v5627 = vsub.s32 %v5624, %v5626
      %v5628 = vrot.slane %v5614, %v5627
      %v5629 = vcombine.high %v5621, %v5621
      %v5630 = vcombine.high %v5628, %v5628
      %v5632 = vunpack.c.l.s4 1983009808
      %v5633 = vunpack.c.0.s8 %v5632
      %v5634 = vlaneseq
      %v5635 = vshrl.u32 %v5634, 7
      %v5636 = vsub.s32 %v5633, %v5635
      %v5637 = vrot.slane %v5443, %v5636
      %v5638 = vcombine.high %v5444, %v5444
      %v5640 = vunpack.c.l.s4 1983009808
      %v5641 = vunpack.c.0.s8 %v5640
      %v5642 = vlaneseq
      %v5643 = vshrl.u32 %v5642, 7
      %v5644 = vsub.s32 %v5641, %v5643
      %v5645 = vrot.slane %v5444, %v5644
      %v5647 = vunpack.c.l.s4 1983009808
      %v5648 = vunpack.c.0.s8 %v5647
      %v5649 = vlaneseq
      %v5650 = vshrl.u32 %v5649, 7
      %v5651 = vsub.s32 %v5648, %v5650
      %v5652 = vrot.slane %v5638, %v5651
      %v5653 = vcombine.high %v5645, %v5645
      %v5654 = vcombine.high %v5652, %v5652
      %v5656 = vunpack.c.l.s4 1983009808
      %v5657 = vunpack.c.0.s8 %v5656
      %v5658 = vlaneseq
      %v5659 = vshrl.u32 %v5658, 7
      %v5660 = vsub.s32 %v5657, %v5659
      %v5661 = vrot.slane %v5445, %v5660
      %v5662 = vcombine.high %v5446, %v5446
      %v5664 = vunpack.c.l.s4 1983009808
      %v5665 = vunpack.c.0.s8 %v5664
      %v5666 = vlaneseq
      %v5667 = vshrl.u32 %v5666, 7
      %v5668 = vsub.s32 %v5665, %v5667
      %v5669 = vrot.slane %v5446, %v5668
      %v5671 = vunpack.c.l.s4 1983009808
      %v5672 = vunpack.c.0.s8 %v5671
      %v5673 = vlaneseq
      %v5674 = vshrl.u32 %v5673, 7
      %v5675 = vsub.s32 %v5672, %v5674
      %v5676 = vrot.slane %v5662, %v5675
      %v5677 = vcombine.high %v5669, %v5669
      %v5678 = vcombine.high %v5676, %v5676
      %v5680 = vunpack.c.l.s4 1983009808
      %v5681 = vunpack.c.0.s8 %v5680
      %v5682 = vlaneseq
      %v5683 = vshrl.u32 %v5682, 7
      %v5684 = vsub.s32 %v5681, %v5683
      %v5685 = vrot.slane %v5447, %v5684
      %v5686 = vcombine.high %v5448, %v5448
      %v5688 = vunpack.c.l.s4 1983009808
      %v5689 = vunpack.c.0.s8 %v5688
      %v5690 = vlaneseq
      %v5691 = vshrl.u32 %v5690, 7
      %v5692 = vsub.s32 %v5689, %v5691
      %v5693 = vrot.slane %v5448, %v5692
      %v5695 = vunpack.c.l.s4 1983009808
      %v5696 = vunpack.c.0.s8 %v5695
      %v5697 = vlaneseq
      %v5698 = vshrl.u32 %v5697, 7
      %v5699 = vsub.s32 %v5696, %v5698
      %v5700 = vrot.slane %v5686, %v5699
      %v5701 = vcombine.high %v5693, %v5693
      %v5702 = vcombine.high %v5700, %v5700
      %v5704 = vunpack.c.l.s4 1983009808
      %v5705 = vunpack.c.0.s8 %v5704
      %v5706 = vlaneseq
      %v5707 = vshrl.u32 %v5706, 7
      %v5708 = vsub.s32 %v5705, %v5707
      %v5709 = vrot.slane %v5449, %v5708
      %s5710 = scalar_lea.vmem %s1, 896
      %v5711 = vld [vmem:[%s5710] sm:$0xff]
      %v5712 = vld [vmem:[%s5710 + $0x8] sm:$0xff]
      %v5713 = vld [vmem:[%s5710 + $0x10] sm:$0xff]
      %v5714 = vld [vmem:[%s5710 + $0x18] sm:$0xff]
      %v5715 = vld [vmem:[%s5710 + $0x20] sm:$0xff]
      %v5716 = vld [vmem:[%s5710 + $0x28] sm:$0xff]
      %v5717 = vld [vmem:[%s5710 + $0x30] sm:$0xff]
      %v5718 = vld [vmem:[%s5710 + $0x38] sm:$0xff]
      %v5719 = vld [vmem:[%s5710 + $0x40] sm:$0xff]
      %v5720 = vld [vmem:[%s5710 + $0x48] sm:$0xff]
      %v5721 = vld [vmem:[%s5710 + $0x50] sm:$0xff]
      %v5722 = vld [vmem:[%s5710 + $0x58] sm:$0xff]
      %v5723 = vld [vmem:[%s5710 + $0x60] sm:$0xff]
      %v5724 = vld [vmem:[%s5710 + $0x68] sm:$0xff]
      %v5725 = vld [vmem:[%s5710 + $0x70] sm:$0xff]
      %v5726 = vld [vmem:[%s5710 + $0x78] sm:$0xff]
      %v5727 = vcombine.low %v5477, %v5485
      %v5728 = vcombine.low %v5484, %v5486
      %v5730 = vunpack.c.l.s4 1983009808
      %v5731 = vunpack.c.0.s8 %v5730
      %v5732 = vlaneseq
      %v5733 = vshrl.u32 %v5732, 7
      %v5734 = vsub.s32 %v5731, %v5733
      %v5735 = vrot.slane %v5727, %v5734
      %v5737 = vunpack.c.l.s4 1983009808
      %v5738 = vunpack.c.0.s8 %v5737
      %v5739 = vlaneseq
      %v5740 = vshrl.u32 %v5739, 7
      %v5741 = vsub.s32 %v5738, %v5740
      %v5742 = vrot.slane %v5728, %v5741
      %v5743 = vcombine.low %v5735, %v5742
      %v5744 = vcombine.low %v5493, %v5501
      %v5745 = vcombine.low %v5509, %v5508
      %v5747 = vunpack.c.l.s4 1983009808
      %v5748 = vunpack.c.0.s8 %v5747
      %v5749 = vlaneseq
      %v5750 = vshrl.u32 %v5749, 7
      %v5751 = vsub.s32 %v5748, %v5750
      %v5752 = vrot.slane %v5744, %v5751
      %v5754 = vunpack.c.l.s4 1983009808
      %v5755 = vunpack.c.0.s8 %v5754
      %v5756 = vlaneseq
      %v5757 = vshrl.u32 %v5756, 7
      %v5758 = vsub.s32 %v5755, %v5757
      %v5759 = vrot.slane %v5745, %v5758
      %v5760 = vcombine.low %v5752, %v5759
      %v5761 = vcombine.low %v5510, %v5517
      %v5762 = vcombine.low %v5525, %v5533
      %v5764 = vunpack.c.l.s4 1983009808
      %v5765 = vunpack.c.0.s8 %v5764
      %v5766 = vlaneseq
      %v5767 = vshrl.u32 %v5766, 7
      %v5768 = vsub.s32 %v5765, %v5767
      %v5769 = vrot.slane %v5761, %v5768
      %v5771 = vunpack.c.l.s4 1983009808
      %v5772 = vunpack.c.0.s8 %v5771
      %v5773 = vlaneseq
      %v5774 = vshrl.u32 %v5773, 7
      %v5775 = vsub.s32 %v5772, %v5774
      %v5776 = vrot.slane %v5762, %v5775
      %v5777 = vcombine.low %v5769, %v5776
      %v5778 = vcombine.low %v5532, %v5534
      %v5779 = vcombine.low %v5541, %v5549
      %v5781 = vunpack.c.l.s4 1983009808
      %v5782 = vunpack.c.0.s8 %v5781
      %v5783 = vlaneseq
      %v5784 = vshrl.u32 %v5783, 7
      %v5785 = vsub.s32 %v5782, %v5784
      %v5786 = vrot.slane %v5778, %v5785
      %v5788 = vunpack.c.l.s4 1983009808
      %v5789 = vunpack.c.0.s8 %v5788
      %v5790 = vlaneseq
      %v5791 = vshrl.u32 %v5790, 7
      %v5792 = vsub.s32 %v5789, %v5791
      %v5793 = vrot.slane %v5779, %v5792
      %v5794 = vcombine.low %v5786, %v5793
      %v5795 = vcombine.low %v5557, %v5556
      %v5796 = vcombine.low %v5558, %v5565
      %v5798 = vunpack.c.l.s4 1983009808
      %v5799 = vunpack.c.0.s8 %v5798
      %v5800 = vlaneseq
      %v5801 = vshrl.u32 %v5800, 7
      %v5802 = vsub.s32 %v5799, %v5801
      %v5803 = vrot.slane %v5795, %v5802
      %v5805 = vunpack.c.l.s4 1983009808
      %v5806 = vunpack.c.0.s8 %v5805
      %v5807 = vlaneseq
      %v5808 = vshrl.u32 %v5807, 7
      %v5809 = vsub.s32 %v5806, %v5808
      %v5810 = vrot.slane %v5796, %v5809
      %v5811 = vcombine.low %v5803, %v5810
      %v5812 = vcombine.low %v5573, %v5581
      %v5813 = vcombine.low %v5580, %v5582
      %v5815 = vunpack.c.l.s4 1983009808
      %v5816 = vunpack.c.0.s8 %v5815
      %v5817 = vlaneseq
      %v5818 = vshrl.u32 %v5817, 7
      %v5819 = vsub.s32 %v5816, %v5818
      %v5820 = vrot.slane %v5812, %v5819
      %v5822 = vunpack.c.l.s4 1983009808
      %v5823 = vunpack.c.0.s8 %v5822
      %v5824 = vlaneseq
      %v5825 = vshrl.u32 %v5824, 7
      %v5826 = vsub.s32 %v5823, %v5825
      %v5827 = vrot.slane %v5813, %v5826
      %v5828 = vcombine.low %v5820, %v5827
      %v5829 = vcombine.low %v5589, %v5597
      %v5830 = vcombine.low %v5605, %v5604
      %v5832 = vunpack.c.l.s4 1983009808
      %v5833 = vunpack.c.0.s8 %v5832
      %v5834 = vlaneseq
      %v5835 = vshrl.u32 %v5834, 7
      %v5836 = vsub.s32 %v5833, %v5835
      %v5837 = vrot.slane %v5829, %v5836
      %v5839 = vunpack.c.l.s4 1983009808
      %v5840 = vunpack.c.0.s8 %v5839
      %v5841 = vlaneseq
      %v5842 = vshrl.u32 %v5841, 7
      %v5843 = vsub.s32 %v5840, %v5842
      %v5844 = vrot.slane %v5830, %v5843
      %v5845 = vcombine.low %v5837, %v5844
      %v5846 = vcombine.low %v5606, %v5613
      %v5847 = vcombine.low %v5621, %v5629
      %v5849 = vunpack.c.l.s4 1983009808
      %v5850 = vunpack.c.0.s8 %v5849
      %v5851 = vlaneseq
      %v5852 = vshrl.u32 %v5851, 7
      %v5853 = vsub.s32 %v5850, %v5852
      %v5854 = vrot.slane %v5846, %v5853
      %v5856 = vunpack.c.l.s4 1983009808
      %v5857 = vunpack.c.0.s8 %v5856
      %v5858 = vlaneseq
      %v5859 = vshrl.u32 %v5858, 7
      %v5860 = vsub.s32 %v5857, %v5859
      %v5861 = vrot.slane %v5847, %v5860
      %v5862 = vcombine.low %v5854, %v5861
      %v5863 = vcombine.low %v5628, %v5630
      %v5864 = vcombine.low %v5637, %v5645
      %v5866 = vunpack.c.l.s4 1983009808
      %v5867 = vunpack.c.0.s8 %v5866
      %v5868 = vlaneseq
      %v5869 = vshrl.u32 %v5868, 7
      %v5870 = vsub.s32 %v5867, %v5869
      %v5871 = vrot.slane %v5863, %v5870
      %v5873 = vunpack.c.l.s4 1983009808
      %v5874 = vunpack.c.0.s8 %v5873
      %v5875 = vlaneseq
      %v5876 = vshrl.u32 %v5875, 7
      %v5877 = vsub.s32 %v5874, %v5876
      %v5878 = vrot.slane %v5864, %v5877
      %v5879 = vcombine.low %v5871, %v5878
      %v5880 = vcombine.low %v5653, %v5652
      %v5881 = vcombine.low %v5654, %v5661
      %v5883 = vunpack.c.l.s4 1983009808
      %v5884 = vunpack.c.0.s8 %v5883
      %v5885 = vlaneseq
      %v5886 = vshrl.u32 %v5885, 7
      %v5887 = vsub.s32 %v5884, %v5886
      %v5888 = vrot.slane %v5880, %v5887
      %v5890 = vunpack.c.l.s4 1983009808
      %v5891 = vunpack.c.0.s8 %v5890
      %v5892 = vlaneseq
      %v5893 = vshrl.u32 %v5892, 7
      %v5894 = vsub.s32 %v5891, %v5893
      %v5895 = vrot.slane %v5881, %v5894
      %v5896 = vcombine.low %v5888, %v5895
      %v5897 = vcombine.low %v5669, %v5677
      %v5898 = vcombine.low %v5676, %v5678
      %v5900 = vunpack.c.l.s4 1983009808
      %v5901 = vunpack.c.0.s8 %v5900
      %v5902 = vlaneseq
      %v5903 = vshrl.u32 %v5902, 7
      %v5904 = vsub.s32 %v5901, %v5903
      %v5905 = vrot.slane %v5897, %v5904
      %v5907 = vunpack.c.l.s4 1983009808
      %v5908 = vunpack.c.0.s8 %v5907
      %v5909 = vlaneseq
      %v5910 = vshrl.u32 %v5909, 7
      %v5911 = vsub.s32 %v5908, %v5910
      %v5912 = vrot.slane %v5898, %v5911
      %v5913 = vcombine.low %v5905, %v5912
      %v5914 = vcombine.low %v5685, %v5693
      %v5915 = vcombine.low %v5701, %v5700
      %v5917 = vunpack.c.l.s4 1983009808
      %v5918 = vunpack.c.0.s8 %v5917
      %v5919 = vlaneseq
      %v5920 = vshrl.u32 %v5919, 7
      %v5921 = vsub.s32 %v5918, %v5920
      %v5922 = vrot.slane %v5914, %v5921
      %v5924 = vunpack.c.l.s4 1983009808
      %v5925 = vunpack.c.0.s8 %v5924
      %v5926 = vlaneseq
      %v5927 = vshrl.u32 %v5926, 7
      %v5928 = vsub.s32 %v5925, %v5927
      %v5929 = vrot.slane %v5915, %v5928
      %v5930 = vcombine.low %v5922, %v5929
      %v5931 = vcombine.low %v5702, %v5709
      %v5933 = vunpack.c.l.s4 1983009808
      %v5934 = vunpack.c.0.s8 %v5933
      %v5935 = vlaneseq
      %v5936 = vshrl.u32 %v5935, 7
      %v5937 = vsub.s32 %v5934, %v5936
      %v5938 = vrot.slane %v5931, %v5937
      %5952 = vmatprep.subr.mxu0 0.0
      %5953 = vmatpush1.msra.mxu0 %v5726
      %5954 = vmatprep.subr.mxu0 0.0
      %5955 = vmatpush1.msra.mxu0 %v5725
      %5956 = vmatprep.subr.mxu0 0.0
      %5957 = vmatpush1.msra.mxu0 %v5724
      %5958 = vmatprep.subr.mxu0 0.0
      %5959 = vmatpush1.msra.mxu0 %v5723
      %5960 = vmatprep.subr.mxu0 0.0
      %5961 = vmatpush1.msra.mxu0 %v5722
      %5962 = vmatprep.subr.mxu0 0.0
      %5963 = vmatpush1.msra.mxu0 %v5721
      %5964 = vmatprep.subr.mxu0 0.0
      %5965 = vmatpush1.msra.mxu0 %v5720
      %5966 = vmatprep.subr.mxu0 0.0
      %5967 = vmatpush1.msra.mxu0 %v5719
      %5968 = vmatprep.subr.mxu0 0.0
      %5969 = vmatpush1.msra.mxu0 %v5718
      %5970 = vmatprep.subr.mxu0 0.0
      %5971 = vmatpush1.msra.mxu0 %v5717
      %5972 = vmatprep.subr.mxu0 0.0
      %5973 = vmatpush1.msra.mxu0 %v5716
      %5974 = vmatprep.subr.mxu0 0.0
      %5975 = vmatpush1.msra.mxu0 %v5715
      %5976 = vmatprep.subr.mxu0 0.0
      %5977 = vmatpush1.msra.mxu0 %v5714
      %5978 = vmatprep.subr.mxu0 0.0
      %5979 = vmatpush1.msra.mxu0 %v5713
      %5980 = vmatprep.subr.mxu0 0.0
      %5981 = vmatpush1.msra.mxu0 %v5712
      %5982 = vmatprep.subr.mxu0 0.0
      %5983 = vmatpush1.msra.mxu0 %v5711
      %5984 = vmatprep.subr.mxu0 0.0
      %5985 = vmatpush2.msra.mxu0 0.0
      %5986 = vmatprep.subr.mxu0 0.0
      %5987 = vmatpush2.msra.mxu0 0.0
      %5988 = vmatprep.subr.mxu0 0.0
      %5989 = vmatpush2.msra.mxu0 0.0
      %5990 = vmatprep.subr.mxu0 0.0
      %5991 = vmatpush2.msra.mxu0 0.0
      %5992 = vmatprep.subr.mxu0 0.0
      %5993 = vmatpush2.msra.mxu0 0.0
      %5994 = vmatprep.subr.mxu0 0.0
      %5995 = vmatpush2.msra.mxu0 0.0
      %5996 = vmatprep.subr.mxu0 0.0
      %5997 = vmatpush2.msra.mxu0 0.0
      %5998 = vmatprep.subr.mxu0 0.0
      %5999 = vmatpush2.msra.mxu0 0.0
      %6000 = vmatprep.subr.mxu0 0.0
      %6001 = vmatpush2.msra.mxu0 0.0
      %6002 = vmatprep.subr.mxu0 0.0
      %6003 = vmatpush2.msra.mxu0 0.0
      %6004 = vmatprep.subr.mxu0 0.0
      %6005 = vmatpush2.msra.mxu0 0.0
      %6006 = vmatprep.subr.mxu0 0.0
      %6007 = vmatpush2.msra.mxu0 0.0
      %6008 = vmatprep.subr.mxu0 0.0
      %6009 = vmatpush2.msra.mxu0 0.0
      %6010 = vmatprep.subr.mxu0 0.0
      %6011 = vmatpush2.msra.mxu0 0.0
      %6012 = vmatprep.subr.mxu0 0.0
      %6013 = vmatpush2.msra.mxu0 0.0
      %6014 = vmatprep.subr.mxu0 0.0
      %6015 = vmatpush2.msra.mxu0 0.0
      %6016 = vmatprep.mubr.f32.mxu0 0.0
      %6017 = vmatmul.mubr.f32.gmra.mxu0 %v5743
      %v6018 = vpop.f32.mrf.mxu0
      %v6019 = vadd.f32 0.0, %v6018
      %v6020 = vpop.f32.mrf.mxu0
      %6021 = vmatprep.mubr.f32.mxu0 0.0
      %6022 = vmatmul.mubr.f32.gmra.mxu0 %v5760
      %v6023 = vpop.f32.mrf.mxu0
      %v6024 = vadd.f32 0.0, %v6023
      %v6025 = vpop.f32.mrf.mxu0
      %6026 = vmatprep.mubr.f32.mxu0 0.0
      %6027 = vmatmul.mubr.f32.gmra.mxu0 %v5777
      %v6028 = vpop.f32.mrf.mxu0
      %v6029 = vadd.f32 0.0, %v6028
      %v6030 = vpop.f32.mrf.mxu0
      %6031 = vmatprep.mubr.f32.mxu0 0.0
      %6032 = vmatmul.mubr.f32.gmra.mxu0 %v5794
      %v6033 = vpop.f32.mrf.mxu0
      %v6034 = vadd.f32 0.0, %v6033
      %v6035 = vpop.f32.mrf.mxu0
      %6036 = vmatprep.mubr.f32.mxu0 0.0
      %6037 = vmatmul.mubr.f32.gmra.mxu0 %v5811
      %v6038 = vpop.f32.mrf.mxu0
      %v6039 = vadd.f32 0.0, %v6038
      %v6040 = vpop.f32.mrf.mxu0
      %6041 = vmatprep.mubr.f32.mxu0 0.0
      %6042 = vmatmul.mubr.f32.gmra.mxu0 %v5828
      %v6043 = vpop.f32.mrf.mxu0
      %v6044 = vadd.f32 0.0, %v6043
      %v6045 = vpop.f32.mrf.mxu0
      %6046 = vmatprep.mubr.f32.mxu0 0.0
      %6047 = vmatmul.mubr.f32.gmra.mxu0 %v5845
      %v6048 = vpop.f32.mrf.mxu0
      %v6049 = vadd.f32 0.0, %v6048
      %v6050 = vpop.f32.mrf.mxu0
      %6051 = vmatprep.mubr.f32.mxu0 0.0
      %6052 = vmatmul.mubr.f32.gmra.mxu0 %v5862
      %v6053 = vpop.f32.mrf.mxu0
      %v6054 = vadd.f32 0.0, %v6053
      %v6055 = vpop.f32.mrf.mxu0
      %6056 = vmatprep.mubr.f32.mxu0 0.0
      %6057 = vmatmul.mubr.f32.gmra.mxu0 %v5879
      %v6058 = vpop.f32.mrf.mxu0
      %v6059 = vadd.f32 0.0, %v6058
      %v6060 = vpop.f32.mrf.mxu0
      %6061 = vmatprep.mubr.f32.mxu0 0.0
      %6062 = vmatmul.mubr.f32.gmra.mxu0 %v5896
      %v6063 = vpop.f32.mrf.mxu0
      %v6064 = vadd.f32 0.0, %v6063
      %v6065 = vpop.f32.mrf.mxu0
      %6066 = vmatprep.mubr.f32.mxu0 0.0
      %6067 = vmatmul.mubr.f32.gmra.mxu0 %v5913
      %v6068 = vpop.f32.mrf.mxu0
      %v6069 = vadd.f32 0.0, %v6068
      %v6070 = vpop.f32.mrf.mxu0
      %6071 = vmatprep.mubr.f32.mxu0 0.0
      %6072 = vmatmul.mubr.f32.gmra.mxu0 %v5930
      %v6073 = vpop.f32.mrf.mxu0
      %v6074 = vadd.f32 0.0, %v6073
      %v6075 = vpop.f32.mrf.mxu0
      %6076 = vmatprep.mubr.f32.mxu0 0.0
      %6077 = vmatmul.mubr.f32.gmra.mxu0 %v5938
      %v6078 = vpop.f32.mrf.mxu0
      %v6079 = vadd.f32 0.0, %v6078
      %v6080 = vpop.f32.mrf.mxu0
      %6081 = vdwg.mxu0
      %v6082 = vadd.f32 %v5417, %v6019
      %v6083 = vadd.f32 %v5418, %v6024
      %v6084 = vadd.f32 %v5419, %v6029
      %v6085 = vadd.f32 %v5420, %v6034
      %v6086 = vadd.f32 %v5421, %v6039
      %v6087 = vadd.f32 %v5422, %v6044
      %v6088 = vadd.f32 %v5423, %v6049
      %v6089 = vadd.f32 %v5424, %v6054
      %v6090 = vadd.f32 %v5425, %v6059
      %v6091 = vadd.f32 %v5426, %v6064
      %v6092 = vadd.f32 %v5427, %v6069
      %v6093 = vadd.f32 %v5428, %v6074
      %v6094 = vadd.f32 %v5429, %v6079
      %v6095 = vld [vmem:[%s4764 + $0x2] sm:$0xff]
      %v6096 = vld [vmem:[%s4764 + $0xa] sm:$0x3]
      %v6097 = vld [vmem:[%s4764 + $0x12] sm:$0xff]
      %v6098 = vld [vmem:[%s4764 + $0x1a] sm:$0x3]
      %v6099 = vld [vmem:[%s4764 + $0x22] sm:$0xff]
      %v6100 = vld [vmem:[%s4764 + $0x2a] sm:$0x3]
      %v6101 = vld [vmem:[%s4764 + $0x32] sm:$0xff]
      %v6102 = vld [vmem:[%s4764 + $0x3a] sm:$0x3]
      %v6103 = vld [vmem:[%s4764 + $0x42] sm:$0xff]
      %v6104 = vld [vmem:[%s4764 + $0x4a] sm:$0x3]
      %v6105 = vld [vmem:[%s4764 + $0x52] sm:$0xff]
      %v6106 = vld [vmem:[%s4764 + $0x5a] sm:$0x3]
      %v6107 = vld [vmem:[%s4764 + $0x62] sm:$0xff]
      %v6108 = vld [vmem:[%s4764 + $0x6a] sm:$0x3]
      %v6109 = vld [vmem:[%s4764 + $0x72] sm:$0xff]
      %v6110 = vld [vmem:[%s4764 + $0x7a] sm:$0x3]
      %v6111 = vld [vmem:[%s4764 + $0x82] sm:$0xff]
      %v6112 = vld [vmem:[%s4764 + $0x8a] sm:$0x3]
      %v6113 = vld [vmem:[%s4764 + $0x92] sm:$0xff]
      %v6114 = vld [vmem:[%s4764 + $0x9a] sm:$0x3]
      %v6135 = vcombine.high %v6095, %v6095
      %v6137 = vunpack.c.l.s4 1983009808
      %v6138 = vunpack.c.0.s8 %v6137
      %v6139 = vlaneseq
      %v6140 = vshrl.u32 %v6139, 7
      %v6141 = vsub.s32 %v6138, %v6140
      %v6142 = vrot.slane %v6095, %v6141
      %v6144 = vunpack.c.l.s4 1983009808
      %v6145 = vunpack.c.0.s8 %v6144
      %v6146 = vlaneseq
      %v6147 = vshrl.u32 %v6146, 7
      %v6148 = vsub.s32 %v6145, %v6147
      %v6149 = vrot.slane %v6135, %v6148
      %v6150 = vcombine.high %v6142, %v6142
      %v6151 = vcombine.high %v6149, %v6149
      %v6153 = vunpack.c.l.s4 1983009808
      %v6154 = vunpack.c.0.s8 %v6153
      %v6155 = vlaneseq
      %v6156 = vshrl.u32 %v6155, 7
      %v6157 = vsub.s32 %v6154, %v6156
      %v6158 = vrot.slane %v6096, %v6157
      %v6159 = vcombine.high %v6097, %v6097
      %v6161 = vunpack.c.l.s4 1983009808
      %v6162 = vunpack.c.0.s8 %v6161
      %v6163 = vlaneseq
      %v6164 = vshrl.u32 %v6163, 7
      %v6165 = vsub.s32 %v6162, %v6164
      %v6166 = vrot.slane %v6097, %v6165
      %v6168 = vunpack.c.l.s4 1983009808
      %v6169 = vunpack.c.0.s8 %v6168
      %v6170 = vlaneseq
      %v6171 = vshrl.u32 %v6170, 7
      %v6172 = vsub.s32 %v6169, %v6171
      %v6173 = vrot.slane %v6159, %v6172
      %v6174 = vcombine.high %v6166, %v6166
      %v6175 = vcombine.high %v6173, %v6173
      %v6177 = vunpack.c.l.s4 1983009808
      %v6178 = vunpack.c.0.s8 %v6177
      %v6179 = vlaneseq
      %v6180 = vshrl.u32 %v6179, 7
      %v6181 = vsub.s32 %v6178, %v6180
      %v6182 = vrot.slane %v6098, %v6181
      %v6183 = vcombine.high %v6099, %v6099
      %v6185 = vunpack.c.l.s4 1983009808
      %v6186 = vunpack.c.0.s8 %v6185
      %v6187 = vlaneseq
      %v6188 = vshrl.u32 %v6187, 7
      %v6189 = vsub.s32 %v6186, %v6188
      %v6190 = vrot.slane %v6099, %v6189
      %v6192 = vunpack.c.l.s4 1983009808
      %v6193 = vunpack.c.0.s8 %v6192
      %v6194 = vlaneseq
      %v6195 = vshrl.u32 %v6194, 7
      %v6196 = vsub.s32 %v6193, %v6195
      %v6197 = vrot.slane %v6183, %v6196
      %v6198 = vcombine.high %v6190, %v6190
      %v6199 = vcombine.high %v6197, %v6197
      %v6201 = vunpack.c.l.s4 1983009808
      %v6202 = vunpack.c.0.s8 %v6201
      %v6203 = vlaneseq
      %v6204 = vshrl.u32 %v6203, 7
      %v6205 = vsub.s32 %v6202, %v6204
      %v6206 = vrot.slane %v6100, %v6205
      %v6207 = vcombine.high %v6101, %v6101
      %v6209 = vunpack.c.l.s4 1983009808
      %v6210 = vunpack.c.0.s8 %v6209
      %v6211 = vlaneseq
      %v6212 = vshrl.u32 %v6211, 7
      %v6213 = vsub.s32 %v6210, %v6212
      %v6214 = vrot.slane %v6101, %v6213
      %v6216 = vunpack.c.l.s4 1983009808
      %v6217 = vunpack.c.0.s8 %v6216
      %v6218 = vlaneseq
      %v6219 = vshrl.u32 %v6218, 7
      %v6220 = vsub.s32 %v6217, %v6219
      %v6221 = vrot.slane %v6207, %v6220
      %v6222 = vcombine.high %v6214, %v6214
      %v6223 = vcombine.high %v6221, %v6221
      %v6225 = vunpack.c.l.s4 1983009808
      %v6226 = vunpack.c.0.s8 %v6225
      %v6227 = vlaneseq
      %v6228 = vshrl.u32 %v6227, 7
      %v6229 = vsub.s32 %v6226, %v6228
      %v6230 = vrot.slane %v6102, %v6229
      %v6231 = vcombine.high %v6103, %v6103
      %v6233 = vunpack.c.l.s4 1983009808
      %v6234 = vunpack.c.0.s8 %v6233
      %v6235 = vlaneseq
      %v6236 = vshrl.u32 %v6235, 7
      %v6237 = vsub.s32 %v6234, %v6236
      %v6238 = vrot.slane %v6103, %v6237
      %v6240 = vunpack.c.l.s4 1983009808
      %v6241 = vunpack.c.0.s8 %v6240
      %v6242 = vlaneseq
      %v6243 = vshrl.u32 %v6242, 7
      %v6244 = vsub.s32 %v6241, %v6243
      %v6245 = vrot.slane %v6231, %v6244
      %v6246 = vcombine.high %v6238, %v6238
      %v6247 = vcombine.high %v6245, %v6245
      %v6249 = vunpack.c.l.s4 1983009808
      %v6250 = vunpack.c.0.s8 %v6249
      %v6251 = vlaneseq
      %v6252 = vshrl.u32 %v6251, 7
      %v6253 = vsub.s32 %v6250, %v6252
      %v6254 = vrot.slane %v6104, %v6253
      %v6255 = vcombine.high %v6105, %v6105
      %v6257 = vunpack.c.l.s4 1983009808
      %v6258 = vunpack.c.0.s8 %v6257
      %v6259 = vlaneseq
      %v6260 = vshrl.u32 %v6259, 7
      %v6261 = vsub.s32 %v6258, %v6260
      %v6262 = vrot.slane %v6105, %v6261
      %v6264 = vunpack.c.l.s4 1983009808
      %v6265 = vunpack.c.0.s8 %v6264
      %v6266 = vlaneseq
      %v6267 = vshrl.u32 %v6266, 7
      %v6268 = vsub.s32 %v6265, %v6267
      %v6269 = vrot.slane %v6255, %v6268
      %v6270 = vcombine.high %v6262, %v6262
      %v6271 = vcombine.high %v6269, %v6269
      %v6273 = vunpack.c.l.s4 1983009808
      %v6274 = vunpack.c.0.s8 %v6273
      %v6275 = vlaneseq
      %v6276 = vshrl.u32 %v6275, 7
      %v6277 = vsub.s32 %v6274, %v6276
      %v6278 = vrot.slane %v6106, %v6277
      %v6279 = vcombine.high %v6107, %v6107
      %v6281 = vunpack.c.l.s4 1983009808
      %v6282 = vunpack.c.0.s8 %v6281
      %v6283 = vlaneseq
      %v6284 = vshrl.u32 %v6283, 7
      %v6285 = vsub.s32 %v6282, %v6284
      %v6286 = vrot.slane %v6107, %v6285
      %v6288 = vunpack.c.l.s4 1983009808
      %v6289 = vunpack.c.0.s8 %v6288
      %v6290 = vlaneseq
      %v6291 = vshrl.u32 %v6290, 7
      %v6292 = vsub.s32 %v6289, %v6291
      %v6293 = vrot.slane %v6279, %v6292
      %v6294 = vcombine.high %v6286, %v6286
      %v6295 = vcombine.high %v6293, %v6293
      %v6297 = vunpack.c.l.s4 1983009808
      %v6298 = vunpack.c.0.s8 %v6297
      %v6299 = vlaneseq
      %v6300 = vshrl.u32 %v6299, 7
      %v6301 = vsub.s32 %v6298, %v6300
      %v6302 = vrot.slane %v6108, %v6301
      %v6303 = vcombine.high %v6109, %v6109
      %v6305 = vunpack.c.l.s4 1983009808
      %v6306 = vunpack.c.0.s8 %v6305
      %v6307 = vlaneseq
      %v6308 = vshrl.u32 %v6307, 7
      %v6309 = vsub.s32 %v6306, %v6308
      %v6310 = vrot.slane %v6109, %v6309
      %v6312 = vunpack.c.l.s4 1983009808
      %v6313 = vunpack.c.0.s8 %v6312
      %v6314 = vlaneseq
      %v6315 = vshrl.u32 %v6314, 7
      %v6316 = vsub.s32 %v6313, %v6315
      %v6317 = vrot.slane %v6303, %v6316
      %v6318 = vcombine.high %v6310, %v6310
      %v6319 = vcombine.high %v6317, %v6317
      %v6321 = vunpack.c.l.s4 1983009808
      %v6322 = vunpack.c.0.s8 %v6321
      %v6323 = vlaneseq
      %v6324 = vshrl.u32 %v6323, 7
      %v6325 = vsub.s32 %v6322, %v6324
      %v6326 = vrot.slane %v6110, %v6325
      %v6327 = vcombine.high %v6111, %v6111
      %v6329 = vunpack.c.l.s4 1983009808
      %v6330 = vunpack.c.0.s8 %v6329
      %v6331 = vlaneseq
      %v6332 = vshrl.u32 %v6331, 7
      %v6333 = vsub.s32 %v6330, %v6332
      %v6334 = vrot.slane %v6111, %v6333
      %v6336 = vunpack.c.l.s4 1983009808
      %v6337 = vunpack.c.0.s8 %v6336
      %v6338 = vlaneseq
      %v6339 = vshrl.u32 %v6338, 7
      %v6340 = vsub.s32 %v6337, %v6339
      %v6341 = vrot.slane %v6327, %v6340
      %v6342 = vcombine.high %v6334, %v6334
      %v6343 = vcombine.high %v6341, %v6341
      %v6345 = vunpack.c.l.s4 1983009808
      %v6346 = vunpack.c.0.s8 %v6345
      %v6347 = vlaneseq
      %v6348 = vshrl.u32 %v6347, 7
      %v6349 = vsub.s32 %v6346, %v6348
      %v6350 = vrot.slane %v6112, %v6349
      %v6351 = vcombine.high %v6113, %v6113
      %v6353 = vunpack.c.l.s4 1983009808
      %v6354 = vunpack.c.0.s8 %v6353
      %v6355 = vlaneseq
      %v6356 = vshrl.u32 %v6355, 7
      %v6357 = vsub.s32 %v6354, %v6356
      %v6358 = vrot.slane %v6113, %v6357
      %v6360 = vunpack.c.l.s4 1983009808
      %v6361 = vunpack.c.0.s8 %v6360
      %v6362 = vlaneseq
      %v6363 = vshrl.u32 %v6362, 7
      %v6364 = vsub.s32 %v6361, %v6363
      %v6365 = vrot.slane %v6351, %v6364
      %v6366 = vcombine.high %v6358, %v6358
      %v6367 = vcombine.high %v6365, %v6365
      %v6369 = vunpack.c.l.s4 1983009808
      %v6370 = vunpack.c.0.s8 %v6369
      %v6371 = vlaneseq
      %v6372 = vshrl.u32 %v6371, 7
      %v6373 = vsub.s32 %v6370, %v6372
      %v6374 = vrot.slane %v6114, %v6373
      %s6375 = scalar_lea.vmem %s1, 1024
      %v6376 = vld [vmem:[%s6375] sm:$0xff]
      %v6377 = vld [vmem:[%s6375 + $0x8] sm:$0xff]
      %v6378 = vld [vmem:[%s6375 + $0x10] sm:$0xff]
      %v6379 = vld [vmem:[%s6375 + $0x18] sm:$0xff]
      %v6380 = vld [vmem:[%s6375 + $0x20] sm:$0xff]
      %v6381 = vld [vmem:[%s6375 + $0x28] sm:$0xff]
      %v6382 = vld [vmem:[%s6375 + $0x30] sm:$0xff]
      %v6383 = vld [vmem:[%s6375 + $0x38] sm:$0xff]
      %v6384 = vld [vmem:[%s6375 + $0x40] sm:$0xff]
      %v6385 = vld [vmem:[%s6375 + $0x48] sm:$0xff]
      %v6386 = vld [vmem:[%s6375 + $0x50] sm:$0xff]
      %v6387 = vld [vmem:[%s6375 + $0x58] sm:$0xff]
      %v6388 = vld [vmem:[%s6375 + $0x60] sm:$0xff]
      %v6389 = vld [vmem:[%s6375 + $0x68] sm:$0xff]
      %v6390 = vld [vmem:[%s6375 + $0x70] sm:$0xff]
      %v6391 = vld [vmem:[%s6375 + $0x78] sm:$0xff]
      %v6392 = vcombine.low %v6142, %v6150
      %v6393 = vcombine.low %v6149, %v6151
      %v6395 = vunpack.c.l.s4 1983009808
      %v6396 = vunpack.c.0.s8 %v6395
      %v6397 = vlaneseq
      %v6398 = vshrl.u32 %v6397, 7
      %v6399 = vsub.s32 %v6396, %v6398
      %v6400 = vrot.slane %v6392, %v6399
      %v6402 = vunpack.c.l.s4 1983009808
      %v6403 = vunpack.c.0.s8 %v6402
      %v6404 = vlaneseq
      %v6405 = vshrl.u32 %v6404, 7
      %v6406 = vsub.s32 %v6403, %v6405
      %v6407 = vrot.slane %v6393, %v6406
      %v6408 = vcombine.low %v6400, %v6407
      %v6409 = vcombine.low %v6158, %v6166
      %v6410 = vcombine.low %v6174, %v6173
      %v6412 = vunpack.c.l.s4 1983009808
      %v6413 = vunpack.c.0.s8 %v6412
      %v6414 = vlaneseq
      %v6415 = vshrl.u32 %v6414, 7
      %v6416 = vsub.s32 %v6413, %v6415
      %v6417 = vrot.slane %v6409, %v6416
      %v6419 = vunpack.c.l.s4 1983009808
      %v6420 = vunpack.c.0.s8 %v6419
      %v6421 = vlaneseq
      %v6422 = vshrl.u32 %v6421, 7
      %v6423 = vsub.s32 %v6420, %v6422
      %v6424 = vrot.slane %v6410, %v6423
      %v6425 = vcombine.low %v6417, %v6424
      %v6426 = vcombine.low %v6175, %v6182
      %v6427 = vcombine.low %v6190, %v6198
      %v6429 = vunpack.c.l.s4 1983009808
      %v6430 = vunpack.c.0.s8 %v6429
      %v6431 = vlaneseq
      %v6432 = vshrl.u32 %v6431, 7
      %v6433 = vsub.s32 %v6430, %v6432
      %v6434 = vrot.slane %v6426, %v6433
      %v6436 = vunpack.c.l.s4 1983009808
      %v6437 = vunpack.c.0.s8 %v6436
      %v6438 = vlaneseq
      %v6439 = vshrl.u32 %v6438, 7
      %v6440 = vsub.s32 %v6437, %v6439
      %v6441 = vrot.slane %v6427, %v6440
      %v6442 = vcombine.low %v6434, %v6441
      %v6443 = vcombine.low %v6197, %v6199
      %v6444 = vcombine.low %v6206, %v6214
      %v6446 = vunpack.c.l.s4 1983009808
      %v6447 = vunpack.c.0.s8 %v6446
      %v6448 = vlaneseq
      %v6449 = vshrl.u32 %v6448, 7
      %v6450 = vsub.s32 %v6447, %v6449
      %v6451 = vrot.slane %v6443, %v6450
      %v6453 = vunpack.c.l.s4 1983009808
      %v6454 = vunpack.c.0.s8 %v6453
      %v6455 = vlaneseq
      %v6456 = vshrl.u32 %v6455, 7
      %v6457 = vsub.s32 %v6454, %v6456
      %v6458 = vrot.slane %v6444, %v6457
      %v6459 = vcombine.low %v6451, %v6458
      %v6460 = vcombine.low %v6222, %v6221
      %v6461 = vcombine.low %v6223, %v6230
      %v6463 = vunpack.c.l.s4 1983009808
      %v6464 = vunpack.c.0.s8 %v6463
      %v6465 = vlaneseq
      %v6466 = vshrl.u32 %v6465, 7
      %v6467 = vsub.s32 %v6464, %v6466
      %v6468 = vrot.slane %v6460, %v6467
      %v6470 = vunpack.c.l.s4 1983009808
      %v6471 = vunpack.c.0.s8 %v6470
      %v6472 = vlaneseq
      %v6473 = vshrl.u32 %v6472, 7
      %v6474 = vsub.s32 %v6471, %v6473
      %v6475 = vrot.slane %v6461, %v6474
      %v6476 = vcombine.low %v6468, %v6475
      %v6477 = vcombine.low %v6238, %v6246
      %v6478 = vcombine.low %v6245, %v6247
      %v6480 = vunpack.c.l.s4 1983009808
      %v6481 = vunpack.c.0.s8 %v6480
      %v6482 = vlaneseq
      %v6483 = vshrl.u32 %v6482, 7
      %v6484 = vsub.s32 %v6481, %v6483
      %v6485 = vrot.slane %v6477, %v6484
      %v6487 = vunpack.c.l.s4 1983009808
      %v6488 = vunpack.c.0.s8 %v6487
      %v6489 = vlaneseq
      %v6490 = vshrl.u32 %v6489, 7
      %v6491 = vsub.s32 %v6488, %v6490
      %v6492 = vrot.slane %v6478, %v6491
      %v6493 = vcombine.low %v6485, %v6492
      %v6494 = vcombine.low %v6254, %v6262
      %v6495 = vcombine.low %v6270, %v6269
      %v6497 = vunpack.c.l.s4 1983009808
      %v6498 = vunpack.c.0.s8 %v6497
      %v6499 = vlaneseq
      %v6500 = vshrl.u32 %v6499, 7
      %v6501 = vsub.s32 %v6498, %v6500
      %v6502 = vrot.slane %v6494, %v6501
      %v6504 = vunpack.c.l.s4 1983009808
      %v6505 = vunpack.c.0.s8 %v6504
      %v6506 = vlaneseq
      %v6507 = vshrl.u32 %v6506, 7
      %v6508 = vsub.s32 %v6505, %v6507
      %v6509 = vrot.slane %v6495, %v6508
      %v6510 = vcombine.low %v6502, %v6509
      %v6511 = vcombine.low %v6271, %v6278
      %v6512 = vcombine.low %v6286, %v6294
      %v6514 = vunpack.c.l.s4 1983009808
      %v6515 = vunpack.c.0.s8 %v6514
      %v6516 = vlaneseq
      %v6517 = vshrl.u32 %v6516, 7
      %v6518 = vsub.s32 %v6515, %v6517
      %v6519 = vrot.slane %v6511, %v6518
      %v6521 = vunpack.c.l.s4 1983009808
      %v6522 = vunpack.c.0.s8 %v6521
      %v6523 = vlaneseq
      %v6524 = vshrl.u32 %v6523, 7
      %v6525 = vsub.s32 %v6522, %v6524
      %v6526 = vrot.slane %v6512, %v6525
      %v6527 = vcombine.low %v6519, %v6526
      %v6528 = vcombine.low %v6293, %v6295
      %v6529 = vcombine.low %v6302, %v6310
      %v6531 = vunpack.c.l.s4 1983009808
      %v6532 = vunpack.c.0.s8 %v6531
      %v6533 = vlaneseq
      %v6534 = vshrl.u32 %v6533, 7
      %v6535 = vsub.s32 %v6532, %v6534
      %v6536 = vrot.slane %v6528, %v6535
      %v6538 = vunpack.c.l.s4 1983009808
      %v6539 = vunpack.c.0.s8 %v6538
      %v6540 = vlaneseq
      %v6541 = vshrl.u32 %v6540, 7
      %v6542 = vsub.s32 %v6539, %v6541
      %v6543 = vrot.slane %v6529, %v6542
      %v6544 = vcombine.low %v6536, %v6543
      %v6545 = vcombine.low %v6318, %v6317
      %v6546 = vcombine.low %v6319, %v6326
      %v6548 = vunpack.c.l.s4 1983009808
      %v6549 = vunpack.c.0.s8 %v6548
      %v6550 = vlaneseq
      %v6551 = vshrl.u32 %v6550, 7
      %v6552 = vsub.s32 %v6549, %v6551
      %v6553 = vrot.slane %v6545, %v6552
      %v6555 = vunpack.c.l.s4 1983009808
      %v6556 = vunpack.c.0.s8 %v6555
      %v6557 = vlaneseq
      %v6558 = vshrl.u32 %v6557, 7
      %v6559 = vsub.s32 %v6556, %v6558
      %v6560 = vrot.slane %v6546, %v6559
      %v6561 = vcombine.low %v6553, %v6560
      %v6562 = vcombine.low %v6334, %v6342
      %v6563 = vcombine.low %v6341, %v6343
      %v6565 = vunpack.c.l.s4 1983009808
      %v6566 = vunpack.c.0.s8 %v6565
      %v6567 = vlaneseq
      %v6568 = vshrl.u32 %v6567, 7
      %v6569 = vsub.s32 %v6566, %v6568
      %v6570 = vrot.slane %v6562, %v6569
      %v6572 = vunpack.c.l.s4 1983009808
      %v6573 = vunpack.c.0.s8 %v6572
      %v6574 = vlaneseq
      %v6575 = vshrl.u32 %v6574, 7
      %v6576 = vsub.s32 %v6573, %v6575
      %v6577 = vrot.slane %v6563, %v6576
      %v6578 = vcombine.low %v6570, %v6577
      %v6579 = vcombine.low %v6350, %v6358
      %v6580 = vcombine.low %v6366, %v6365
      %v6582 = vunpack.c.l.s4 1983009808
      %v6583 = vunpack.c.0.s8 %v6582
      %v6584 = vlaneseq
      %v6585 = vshrl.u32 %v6584, 7
      %v6586 = vsub.s32 %v6583, %v6585
      %v6587 = vrot.slane %v6579, %v6586
      %v6589 = vunpack.c.l.s4 1983009808
      %v6590 = vunpack.c.0.s8 %v6589
      %v6591 = vlaneseq
      %v6592 = vshrl.u32 %v6591, 7
      %v6593 = vsub.s32 %v6590, %v6592
      %v6594 = vrot.slane %v6580, %v6593
      %v6595 = vcombine.low %v6587, %v6594
      %v6596 = vcombine.low %v6367, %v6374
      %v6598 = vunpack.c.l.s4 1983009808
      %v6599 = vunpack.c.0.s8 %v6598
      %v6600 = vlaneseq
      %v6601 = vshrl.u32 %v6600, 7
      %v6602 = vsub.s32 %v6599, %v6601
      %v6603 = vrot.slane %v6596, %v6602
      %6617 = vmatprep.subr.mxu0 0.0
      %6618 = vmatpush1.msra.mxu0 %v6391
      %6619 = vmatprep.subr.mxu0 0.0
      %6620 = vmatpush1.msra.mxu0 %v6390
      %6621 = vmatprep.subr.mxu0 0.0
      %6622 = vmatpush1.msra.mxu0 %v6389
      %6623 = vmatprep.subr.mxu0 0.0
      %6624 = vmatpush1.msra.mxu0 %v6388
      %6625 = vmatprep.subr.mxu0 0.0
      %6626 = vmatpush1.msra.mxu0 %v6387
      %6627 = vmatprep.subr.mxu0 0.0
      %6628 = vmatpush1.msra.mxu0 %v6386
      %6629 = vmatprep.subr.mxu0 0.0
      %6630 = vmatpush1.msra.mxu0 %v6385
      %6631 = vmatprep.subr.mxu0 0.0
      %6632 = vmatpush1.msra.mxu0 %v6384
      %6633 = vmatprep.subr.mxu0 0.0
      %6634 = vmatpush1.msra.mxu0 %v6383
      %6635 = vmatprep.subr.mxu0 0.0
      %6636 = vmatpush1.msra.mxu0 %v6382
      %6637 = vmatprep.subr.mxu0 0.0
      %6638 = vmatpush1.msra.mxu0 %v6381
      %6639 = vmatprep.subr.mxu0 0.0
      %6640 = vmatpush1.msra.mxu0 %v6380
      %6641 = vmatprep.subr.mxu0 0.0
      %6642 = vmatpush1.msra.mxu0 %v6379
      %6643 = vmatprep.subr.mxu0 0.0
      %6644 = vmatpush1.msra.mxu0 %v6378
      %6645 = vmatprep.subr.mxu0 0.0
      %6646 = vmatpush1.msra.mxu0 %v6377
      %6647 = vmatprep.subr.mxu0 0.0
      %6648 = vmatpush1.msra.mxu0 %v6376
      %6649 = vmatprep.subr.mxu0 0.0
      %6650 = vmatpush2.msra.mxu0 0.0
      %6651 = vmatprep.subr.mxu0 0.0
      %6652 = vmatpush2.msra.mxu0 0.0
      %6653 = vmatprep.subr.mxu0 0.0
      %6654 = vmatpush2.msra.mxu0 0.0
      %6655 = vmatprep.subr.mxu0 0.0
      %6656 = vmatpush2.msra.mxu0 0.0
      %6657 = vmatprep.subr.mxu0 0.0
      %6658 = vmatpush2.msra.mxu0 0.0
      %6659 = vmatprep.subr.mxu0 0.0
      %6660 = vmatpush2.msra.mxu0 0.0
      %6661 = vmatprep.subr.mxu0 0.0
      %6662 = vmatpush2.msra.mxu0 0.0
      %6663 = vmatprep.subr.mxu0 0.0
      %6664 = vmatpush2.msra.mxu0 0.0
      %6665 = vmatprep.subr.mxu0 0.0
      %6666 = vmatpush2.msra.mxu0 0.0
      %6667 = vmatprep.subr.mxu0 0.0
      %6668 = vmatpush2.msra.mxu0 0.0
      %6669 = vmatprep.subr.mxu0 0.0
      %6670 = vmatpush2.msra.mxu0 0.0
      %6671 = vmatprep.subr.mxu0 0.0
      %6672 = vmatpush2.msra.mxu0 0.0
      %6673 = vmatprep.subr.mxu0 0.0
      %6674 = vmatpush2.msra.mxu0 0.0
      %6675 = vmatprep.subr.mxu0 0.0
      %6676 = vmatpush2.msra.mxu0 0.0
      %6677 = vmatprep.subr.mxu0 0.0
      %6678 = vmatpush2.msra.mxu0 0.0
      %6679 = vmatprep.subr.mxu0 0.0
      %6680 = vmatpush2.msra.mxu0 0.0
      %6681 = vmatprep.mubr.f32.mxu0 0.0
      %6682 = vmatmul.mubr.f32.gmra.mxu0 %v6408
      %v6683 = vpop.f32.mrf.mxu0
      %v6684 = vadd.f32 0.0, %v6683
      %v6685 = vpop.f32.mrf.mxu0
      %6686 = vmatprep.mubr.f32.mxu0 0.0
      %6687 = vmatmul.mubr.f32.gmra.mxu0 %v6425
      %v6688 = vpop.f32.mrf.mxu0
      %v6689 = vadd.f32 0.0, %v6688
      %v6690 = vpop.f32.mrf.mxu0
      %6691 = vmatprep.mubr.f32.mxu0 0.0
      %6692 = vmatmul.mubr.f32.gmra.mxu0 %v6442
      %v6693 = vpop.f32.mrf.mxu0
      %v6694 = vadd.f32 0.0, %v6693
      %v6695 = vpop.f32.mrf.mxu0
      %6696 = vmatprep.mubr.f32.mxu0 0.0
      %6697 = vmatmul.mubr.f32.gmra.mxu0 %v6459
      %v6698 = vpop.f32.mrf.mxu0
      %v6699 = vadd.f32 0.0, %v6698
      %v6700 = vpop.f32.mrf.mxu0
      %6701 = vmatprep.mubr.f32.mxu0 0.0
      %6702 = vmatmul.mubr.f32.gmra.mxu0 %v6476
      %v6703 = vpop.f32.mrf.mxu0
      %v6704 = vadd.f32 0.0, %v6703
      %v6705 = vpop.f32.mrf.mxu0
      %6706 = vmatprep.mubr.f32.mxu0 0.0
      %6707 = vmatmul.mubr.f32.gmra.mxu0 %v6493
      %v6708 = vpop.f32.mrf.mxu0
      %v6709 = vadd.f32 0.0, %v6708
      %v6710 = vpop.f32.mrf.mxu0
      %6711 = vmatprep.mubr.f32.mxu0 0.0
      %6712 = vmatmul.mubr.f32.gmra.mxu0 %v6510
      %v6713 = vpop.f32.mrf.mxu0
      %v6714 = vadd.f32 0.0, %v6713
      %v6715 = vpop.f32.mrf.mxu0
      %6716 = vmatprep.mubr.f32.mxu0 0.0
      %6717 = vmatmul.mubr.f32.gmra.mxu0 %v6527
      %v6718 = vpop.f32.mrf.mxu0
      %v6719 = vadd.f32 0.0, %v6718
      %v6720 = vpop.f32.mrf.mxu0
      %6721 = vmatprep.mubr.f32.mxu0 0.0
      %6722 = vmatmul.mubr.f32.gmra.mxu0 %v6544
      %v6723 = vpop.f32.mrf.mxu0
      %v6724 = vadd.f32 0.0, %v6723
      %v6725 = vpop.f32.mrf.mxu0
      %6726 = vmatprep.mubr.f32.mxu0 0.0
      %6727 = vmatmul.mubr.f32.gmra.mxu0 %v6561
      %v6728 = vpop.f32.mrf.mxu0
      %v6729 = vadd.f32 0.0, %v6728
      %v6730 = vpop.f32.mrf.mxu0
      %6731 = vmatprep.mubr.f32.mxu0 0.0
      %6732 = vmatmul.mubr.f32.gmra.mxu0 %v6578
      %v6733 = vpop.f32.mrf.mxu0
      %v6734 = vadd.f32 0.0, %v6733
      %v6735 = vpop.f32.mrf.mxu0
      %6736 = vmatprep.mubr.f32.mxu0 0.0
      %6737 = vmatmul.mubr.f32.gmra.mxu0 %v6595
      %v6738 = vpop.f32.mrf.mxu0
      %v6739 = vadd.f32 0.0, %v6738
      %v6740 = vpop.f32.mrf.mxu0
      %6741 = vmatprep.mubr.f32.mxu0 0.0
      %6742 = vmatmul.mubr.f32.gmra.mxu0 %v6603
      %v6743 = vpop.f32.mrf.mxu0
      %v6744 = vadd.f32 0.0, %v6743
      %v6745 = vpop.f32.mrf.mxu0
      %6746 = vdwg.mxu0
      %v6747 = vadd.f32 %v6082, %v6684
      %v6748 = vadd.f32 %v6083, %v6689
      %v6749 = vadd.f32 %v6084, %v6694
      %v6750 = vadd.f32 %v6085, %v6699
      %v6751 = vadd.f32 %v6086, %v6704
      %v6752 = vadd.f32 %v6087, %v6709
      %v6753 = vadd.f32 %v6088, %v6714
      %v6754 = vadd.f32 %v6089, %v6719
      %v6755 = vadd.f32 %v6090, %v6724
      %v6756 = vadd.f32 %v6091, %v6729
      %v6757 = vadd.f32 %v6092, %v6734
      %v6758 = vadd.f32 %v6093, %v6739
      %v6759 = vadd.f32 %v6094, %v6744
      %v6760 = vld [vmem:[%s3] sm:$0x1]
      %v6762 = vlaneseq
      %v6763 = vshrl.u32 %v6762, 7
      %v6764 = vsub.s32 0, %v6763
      %v6765 = vrot.slane %v6760, %v6764
      %v6767 = vmul.f32 %v6747, %v6765
      %v6768 = vmul.f32 %v6748, %v6765
      %v6769 = vmul.f32 %v6749, %v6765
      %v6770 = vmul.f32 %v6750, %v6765
      %v6771 = vmul.f32 %v6751, %v6765
      %v6772 = vmul.f32 %v6752, %v6765
      %v6773 = vmul.f32 %v6753, %v6765
      %v6774 = vmul.f32 %v6754, %v6765
      %v6775 = vmul.f32 %v6755, %v6765
      %v6776 = vmul.f32 %v6756, %v6765
      %v6777 = vmul.f32 %v6757, %v6765
      %v6778 = vmul.f32 %v6758, %v6765
      %v6779 = vmul.f32 %v6759, %v6765
      %v6780 = vld [vmem:[%s4] sm:$0x1]
      %v6782 = vlaneseq
      %v6783 = vshrl.u32 %v6782, 7
      %v6784 = vsub.s32 0, %v6783
      %v6785 = vrot.slane %v6780, %v6784
      %v6787 = vadd.f32 %v6767, %v6785
      %v6788 = vadd.f32 %v6768, %v6785
      %v6789 = vadd.f32 %v6769, %v6785
      %v6790 = vadd.f32 %v6770, %v6785
      %v6791 = vadd.f32 %v6771, %v6785
      %v6792 = vadd.f32 %v6772, %v6785
      %v6793 = vadd.f32 %v6773, %v6785
      %v6794 = vadd.f32 %v6774, %v6785
      %v6795 = vadd.f32 %v6775, %v6785
      %v6796 = vadd.f32 %v6776, %v6785
      %v6797 = vadd.f32 %v6777, %v6785
      %v6798 = vadd.f32 %v6778, %v6785
      %v6799 = vadd.f32 %v6779, %v6785
      %v6800 = vmax.f32 %v6787, 0.0
      %v6801 = vmax.f32 %v6788, 0.0
      %v6802 = vmax.f32 %v6789, 0.0
      %v6803 = vmax.f32 %v6790, 0.0
      %v6804 = vmax.f32 %v6791, 0.0
      %v6805 = vmax.f32 %v6792, 0.0
      %v6806 = vmax.f32 %v6793, 0.0
      %v6807 = vmax.f32 %v6794, 0.0
      %v6808 = vmax.f32 %v6795, 0.0
      %v6809 = vmax.f32 %v6796, 0.0
      %v6810 = vmax.f32 %v6797, 0.0
      %v6811 = vmax.f32 %v6798, 0.0
      %v6812 = vmax.f32 %v6799, 0.0
      %v6826 = vcombine.high %v6800, %v6800
      %v6828 = vunpack.c.l.s4 1983009808
      %v6829 = vunpack.c.0.s8 %v6828
      %v6830 = vlaneseq
      %v6831 = vshrl.u32 %v6830, 7
      %v6832 = vsub.s32 %v6829, %v6831
      %v6833 = vrot.slane %v6800, %v6832
      %v6835 = vunpack.c.l.s4 1983009808
      %v6836 = vunpack.c.0.s8 %v6835
      %v6837 = vlaneseq
      %v6838 = vshrl.u32 %v6837, 7
      %v6839 = vsub.s32 %v6836, %v6838
      %v6840 = vrot.slane %v6826, %v6839
      %v6841 = vcombine.high %v6833, %v6833
      %v6842 = vcombine.high %v6840, %v6840
      %v6843 = vcombine.high %v6801, %v6801
      %v6845 = vunpack.c.l.s4 1983009808
      %v6846 = vunpack.c.0.s8 %v6845
      %v6847 = vlaneseq
      %v6848 = vshrl.u32 %v6847, 7
      %v6849 = vsub.s32 %v6846, %v6848
      %v6850 = vrot.slane %v6801, %v6849
      %v6852 = vunpack.c.l.s4 1983009808
      %v6853 = vunpack.c.0.s8 %v6852
      %v6854 = vlaneseq
      %v6855 = vshrl.u32 %v6854, 7
      %v6856 = vsub.s32 %v6853, %v6855
      %v6857 = vrot.slane %v6843, %v6856
      %v6858 = vcombine.high %v6850, %v6850
      %v6859 = vcombine.high %v6857, %v6857
      %v6860 = vcombine.high %v6802, %v6802
      %v6862 = vunpack.c.l.s4 1983009808
      %v6863 = vunpack.c.0.s8 %v6862
      %v6864 = vlaneseq
      %v6865 = vshrl.u32 %v6864, 7
      %v6866 = vsub.s32 %v6863, %v6865
      %v6867 = vrot.slane %v6802, %v6866
      %v6869 = vunpack.c.l.s4 1983009808
      %v6870 = vunpack.c.0.s8 %v6869
      %v6871 = vlaneseq
      %v6872 = vshrl.u32 %v6871, 7
      %v6873 = vsub.s32 %v6870, %v6872
      %v6874 = vrot.slane %v6860, %v6873
      %v6875 = vcombine.high %v6867, %v6867
      %v6876 = vcombine.high %v6874, %v6874
      %v6877 = vcombine.high %v6803, %v6803
      %v6879 = vunpack.c.l.s4 1983009808
      %v6880 = vunpack.c.0.s8 %v6879
      %v6881 = vlaneseq
      %v6882 = vshrl.u32 %v6881, 7
      %v6883 = vsub.s32 %v6880, %v6882
      %v6884 = vrot.slane %v6803, %v6883
      %v6886 = vunpack.c.l.s4 1983009808
      %v6887 = vunpack.c.0.s8 %v6886
      %v6888 = vlaneseq
      %v6889 = vshrl.u32 %v6888, 7
      %v6890 = vsub.s32 %v6887, %v6889
      %v6891 = vrot.slane %v6877, %v6890
      %v6892 = vcombine.high %v6884, %v6884
      %v6893 = vcombine.high %v6891, %v6891
      %v6894 = vcombine.high %v6804, %v6804
      %v6896 = vunpack.c.l.s4 1983009808
      %v6897 = vunpack.c.0.s8 %v6896
      %v6898 = vlaneseq
      %v6899 = vshrl.u32 %v6898, 7
      %v6900 = vsub.s32 %v6897, %v6899
      %v6901 = vrot.slane %v6804, %v6900
      %v6903 = vunpack.c.l.s4 1983009808
      %v6904 = vunpack.c.0.s8 %v6903
      %v6905 = vlaneseq
      %v6906 = vshrl.u32 %v6905, 7
      %v6907 = vsub.s32 %v6904, %v6906
      %v6908 = vrot.slane %v6894, %v6907
      %v6909 = vcombine.high %v6901, %v6901
      %v6910 = vcombine.high %v6908, %v6908
      %v6911 = vcombine.high %v6805, %v6805
      %v6913 = vunpack.c.l.s4 1983009808
      %v6914 = vunpack.c.0.s8 %v6913
      %v6915 = vlaneseq
      %v6916 = vshrl.u32 %v6915, 7
      %v6917 = vsub.s32 %v6914, %v6916
      %v6918 = vrot.slane %v6805, %v6917
      %v6920 = vunpack.c.l.s4 1983009808
      %v6921 = vunpack.c.0.s8 %v6920
      %v6922 = vlaneseq
      %v6923 = vshrl.u32 %v6922, 7
      %v6924 = vsub.s32 %v6921, %v6923
      %v6925 = vrot.slane %v6911, %v6924
      %v6926 = vcombine.high %v6918, %v6918
      %v6927 = vcombine.high %v6925, %v6925
      %v6928 = vcombine.high %v6806, %v6806
      %v6930 = vunpack.c.l.s4 1983009808
      %v6931 = vunpack.c.0.s8 %v6930
      %v6932 = vlaneseq
      %v6933 = vshrl.u32 %v6932, 7
      %v6934 = vsub.s32 %v6931, %v6933
      %v6935 = vrot.slane %v6806, %v6934
      %v6937 = vunpack.c.l.s4 1983009808
      %v6938 = vunpack.c.0.s8 %v6937
      %v6939 = vlaneseq
      %v6940 = vshrl.u32 %v6939, 7
      %v6941 = vsub.s32 %v6938, %v6940
      %v6942 = vrot.slane %v6928, %v6941
      %v6943 = vcombine.high %v6935, %v6935
      %v6944 = vcombine.high %v6942, %v6942
      %v6945 = vcombine.high %v6807, %v6807
      %v6947 = vunpack.c.l.s4 1983009808
      %v6948 = vunpack.c.0.s8 %v6947
      %v6949 = vlaneseq
      %v6950 = vshrl.u32 %v6949, 7
      %v6951 = vsub.s32 %v6948, %v6950
      %v6952 = vrot.slane %v6807, %v6951
      %v6954 = vunpack.c.l.s4 1983009808
      %v6955 = vunpack.c.0.s8 %v6954
      %v6956 = vlaneseq
      %v6957 = vshrl.u32 %v6956, 7
      %v6958 = vsub.s32 %v6955, %v6957
      %v6959 = vrot.slane %v6945, %v6958
      %v6960 = vcombine.high %v6952, %v6952
      %v6961 = vcombine.high %v6959, %v6959
      %v6962 = vcombine.high %v6808, %v6808
      %v6964 = vunpack.c.l.s4 1983009808
      %v6965 = vunpack.c.0.s8 %v6964
      %v6966 = vlaneseq
      %v6967 = vshrl.u32 %v6966, 7
      %v6968 = vsub.s32 %v6965, %v6967
      %v6969 = vrot.slane %v6808, %v6968
      %v6971 = vunpack.c.l.s4 1983009808
      %v6972 = vunpack.c.0.s8 %v6971
      %v6973 = vlaneseq
      %v6974 = vshrl.u32 %v6973, 7
      %v6975 = vsub.s32 %v6972, %v6974
      %v6976 = vrot.slane %v6962, %v6975
      %v6977 = vcombine.high %v6969, %v6969
      %v6978 = vcombine.high %v6976, %v6976
      %v6979 = vcombine.high %v6809, %v6809
      %v6981 = vunpack.c.l.s4 1983009808
      %v6982 = vunpack.c.0.s8 %v6981
      %v6983 = vlaneseq
      %v6984 = vshrl.u32 %v6983, 7
      %v6985 = vsub.s32 %v6982, %v6984
      %v6986 = vrot.slane %v6809, %v6985
      %v6988 = vunpack.c.l.s4 1983009808
      %v6989 = vunpack.c.0.s8 %v6988
      %v6990 = vlaneseq
      %v6991 = vshrl.u32 %v6990, 7
      %v6992 = vsub.s32 %v6989, %v6991
      %v6993 = vrot.slane %v6979, %v6992
      %v6994 = vcombine.high %v6986, %v6986
      %v6995 = vcombine.high %v6993, %v6993
      %v6996 = vcombine.high %v6810, %v6810
      %v6998 = vunpack.c.l.s4 1983009808
      %v6999 = vunpack.c.0.s8 %v6998
      %v7000 = vlaneseq
      %v7001 = vshrl.u32 %v7000, 7
      %v7002 = vsub.s32 %v6999, %v7001
      %v7003 = vrot.slane %v6810, %v7002
      %v7005 = vunpack.c.l.s4 1983009808
      %v7006 = vunpack.c.0.s8 %v7005
      %v7007 = vlaneseq
      %v7008 = vshrl.u32 %v7007, 7
      %v7009 = vsub.s32 %v7006, %v7008
      %v7010 = vrot.slane %v6996, %v7009
      %v7011 = vcombine.high %v7003, %v7003
      %v7012 = vcombine.high %v7010, %v7010
      %v7013 = vcombine.high %v6811, %v6811
      %v7015 = vunpack.c.l.s4 1983009808
      %v7016 = vunpack.c.0.s8 %v7015
      %v7017 = vlaneseq
      %v7018 = vshrl.u32 %v7017, 7
      %v7019 = vsub.s32 %v7016, %v7018
      %v7020 = vrot.slane %v6811, %v7019
      %v7022 = vunpack.c.l.s4 1983009808
      %v7023 = vunpack.c.0.s8 %v7022
      %v7024 = vlaneseq
      %v7025 = vshrl.u32 %v7024, 7
      %v7026 = vsub.s32 %v7023, %v7025
      %v7027 = vrot.slane %v7013, %v7026
      %v7028 = vcombine.high %v7020, %v7020
      %v7029 = vcombine.high %v7027, %v7027
      %v7031 = vunpack.c.l.s4 1983009808
      %v7032 = vunpack.c.0.s8 %v7031
      %v7033 = vlaneseq
      %v7034 = vshrl.u32 %v7033, 7
      %v7035 = vsub.s32 %v7032, %v7034
      %v7036 = vrot.slane %v6812, %v7035
      %v7037 = vcombine.high %v7036, %v7036
      %s7038 = ssub.s32 %s256, 1
      %v7039 = vstv %s7038
      %v7040 = vadd.s32 %v7039, 1
      %v7041 = vadd.s32 %v7039, 2
      %v7042 = vadd.s32 %v7039, 3
      %v7043 = vadd.s32 %v7039, 4
      %v7044 = vadd.s32 %v7039, 5
      %v7045 = vadd.s32 %v7039, 6
      %v7046 = vadd.s32 %v7039, 7
      %v7047 = vadd.s32 %v7039, 8
      %v7048 = vadd.s32 %v7039, 9
      %v7049 = vlaneseq
      %v7050 = vshrl.u32 %v7049, 7
      %v7051 = vadd.s32 %v7050, 8
      %vm7052 = vcmp.ge.s32.totalorder %v7039, 0
      %vm7053 = vcmp.ge.s32.totalorder %v7040, 0
      %vm7054 = vcmp.ge.s32.totalorder %v7041, 0
      %vm7055 = vcmp.ge.s32.totalorder %v7042, 0
      %vm7056 = vcmp.ge.s32.totalorder %v7043, 0
      %vm7057 = vcmp.ge.s32.totalorder %v7044, 0
      %vm7058 = vcmp.ge.s32.totalorder %v7045, 0
      %vm7059 = vcmp.ge.s32.totalorder %v7046, 0
      %vm7060 = vcmp.ge.s32.totalorder %v7047, 0
      %vm7061 = vcmp.ge.s32.totalorder %v7048, 0
      %vm7062 = vcmp.lt.s32.totalorder %v7039, 8
      %vm7063 = vcmp.lt.s32.totalorder %v7040, 8
      %vm7064 = vcmp.lt.s32.totalorder %v7041, 8
      %vm7065 = vcmp.lt.s32.totalorder %v7042, 8
      %vm7066 = vcmp.lt.s32.totalorder %v7043, 8
      %vm7067 = vcmp.lt.s32.totalorder %v7044, 8
      %vm7068 = vcmp.lt.s32.totalorder %v7045, 8
      %vm7069 = vcmp.lt.s32.totalorder %v7046, 8
      %vm7070 = vcmp.lt.s32.totalorder %v7047, 8
      %vm7071 = vcmp.lt.s32.totalorder %v7048, 8
      %vm7072 = vmand %vm7052, %vm7062
      %vm7073 = vmand %vm7053, %vm7063
      %vm7074 = vmand %vm7054, %vm7064
      %vm7075 = vmand %vm7055, %vm7065
      %vm7076 = vmand %vm7056, %vm7066
      %vm7077 = vmand %vm7057, %vm7067
      %vm7078 = vmand %vm7058, %vm7068
      %vm7079 = vmand %vm7059, %vm7069
      %vm7080 = vmand %vm7060, %vm7070
      %vm7081 = vmand %vm7061, %vm7071
      %vm7082 = vcmp.ge.s32.totalorder %v7050, 1
      %vm7083 = vcmp.ge.s32.totalorder %v7051, 1
      %vm7084 = vmand %vm7072, %vm7082
      %vm7085 = vmand %vm7072, %vm7083
      %vm7086 = vmand %vm7073, %vm7082
      %vm7087 = vmand %vm7073, %vm7083
      %vm7088 = vmand %vm7074, %vm7082
      %vm7089 = vmand %vm7074, %vm7083
      %vm7090 = vmand %vm7075, %vm7082
      %vm7091 = vmand %vm7075, %vm7083
      %vm7092 = vmand %vm7076, %vm7082
      %vm7093 = vmand %vm7076, %vm7083
      %vm7094 = vmand %vm7077, %vm7082
      %vm7095 = vmand %vm7077, %vm7083
      %vm7096 = vmand %vm7078, %vm7082
      %vm7097 = vmand %vm7078, %vm7083
      %vm7098 = vmand %vm7079, %vm7082
      %vm7099 = vmand %vm7079, %vm7083
      %vm7100 = vmand %vm7080, %vm7082
      %vm7101 = vmand %vm7080, %vm7083
      %vm7102 = vmand %vm7081, %vm7082
      %vm7103 = vmand %vm7081, %vm7083
      %vm7104 = vcmp.le.s32.totalorder %v7050, 8
      %vm7105 = vcmp.le.s32.totalorder %v7051, 8
      %vm7106 = vmand %vm7084, %vm7104
      %vm7107 = vmand %vm7085, %vm7105
      %vm7108 = vmand %vm7086, %vm7104
      %vm7109 = vmand %vm7087, %vm7105
      %vm7110 = vmand %vm7088, %vm7104
      %vm7111 = vmand %vm7089, %vm7105
      %vm7112 = vmand %vm7090, %vm7104
      %vm7113 = vmand %vm7091, %vm7105
      %vm7114 = vmand %vm7092, %vm7104
      %vm7115 = vmand %vm7093, %vm7105
      %vm7116 = vmand %vm7094, %vm7104
      %vm7117 = vmand %vm7095, %vm7105
      %vm7118 = vmand %vm7096, %vm7104
      %vm7119 = vmand %vm7097, %vm7105
      %vm7120 = vmand %vm7098, %vm7104
      %vm7121 = vmand %vm7099, %vm7105
      %vm7122 = vmand %vm7100, %vm7104
      %vm7123 = vmand %vm7101, %vm7105
      %vm7124 = vmand %vm7102, %vm7104
      %vm7125 = vmand %vm7103, %vm7105
      %v7126 = vcombine.low %v6833, %v6841
      %v7127 = vcombine.low %v6840, %v6842
      %v7129 = vunpack.c.l.s4 1983009808
      %v7130 = vunpack.c.0.s8 %v7129
      %v7131 = vlaneseq
      %v7132 = vshrl.u32 %v7131, 7
      %v7133 = vsub.s32 %v7130, %v7132
      %v7134 = vrot.slane %v7126, %v7133
      %v7136 = vunpack.c.l.s4 1983009808
      %v7137 = vunpack.c.0.s8 %v7136
      %v7138 = vlaneseq
      %v7139 = vshrl.u32 %v7138, 7
      %v7140 = vsub.s32 %v7137, %v7139
      %v7141 = vrot.slane %v7127, %v7140
      %v7142 = vcombine.low %v7134, %v7141
      %v7144 = vunpack.c.l.s4 1983009808
      %v7145 = vunpack.c.0.s8 %v7144
      %v7146 = vlaneseq
      %v7147 = vshrl.u32 %v7146, 7
      %v7148 = vsub.s32 %v7145, %v7147
      %v7149 = vrot.slane %v6850, %v7148
      %v7150 = vcombine.low %v6858, %v6857
      %v7151 = vcombine.low %v6859, %v6867
      %v7153 = vunpack.c.l.s4 1983009808
      %v7154 = vunpack.c.0.s8 %v7153
      %v7155 = vlaneseq
      %v7156 = vshrl.u32 %v7155, 7
      %v7157 = vsub.s32 %v7154, %v7156
      %v7158 = vrot.slane %v7150, %v7157
      %v7160 = vunpack.c.l.s4 1983009808
      %v7161 = vunpack.c.0.s8 %v7160
      %v7162 = vlaneseq
      %v7163 = vshrl.u32 %v7162, 7
      %v7164 = vsub.s32 %v7161, %v7163
      %v7165 = vrot.slane %v7151, %v7164
      %v7166 = vcombine.low %v7158, %v7165
      %v7168 = vunpack.c.l.s4 1983009808
      %v7169 = vunpack.c.0.s8 %v7168
      %v7170 = vlaneseq
      %v7171 = vshrl.u32 %v7170, 7
      %v7172 = vsub.s32 %v7169, %v7171
      %v7173 = vrot.slane %v6875, %v7172
      %v7174 = vcombine.low %v6874, %v6876
      %v7175 = vcombine.low %v6884, %v6892
      %v7177 = vunpack.c.l.s4 1983009808
      %v7178 = vunpack.c.0.s8 %v7177
      %v7179 = vlaneseq
      %v7180 = vshrl.u32 %v7179, 7
      %v7181 = vsub.s32 %v7178, %v7180
      %v7182 = vrot.slane %v7174, %v7181
      %v7184 = vunpack.c.l.s4 1983009808
      %v7185 = vunpack.c.0.s8 %v7184
      %v7186 = vlaneseq
      %v7187 = vshrl.u32 %v7186, 7
      %v7188 = vsub.s32 %v7185, %v7187
      %v7189 = vrot.slane %v7175, %v7188
      %v7190 = vcombine.low %v7182, %v7189
      %v7192 = vunpack.c.l.s4 1983009808
      %v7193 = vunpack.c.0.s8 %v7192
      %v7194 = vlaneseq
      %v7195 = vshrl.u32 %v7194, 7
      %v7196 = vsub.s32 %v7193, %v7195
      %v7197 = vrot.slane %v6891, %v7196
      %v7198 = vcombine.low %v6893, %v6901
      %v7199 = vcombine.low %v6909, %v6908
      %v7201 = vunpack.c.l.s4 1983009808
      %v7202 = vunpack.c.0.s8 %v7201
      %v7203 = vlaneseq
      %v7204 = vshrl.u32 %v7203, 7
      %v7205 = vsub.s32 %v7202, %v7204
      %v7206 = vrot.slane %v7198, %v7205
      %v7208 = vunpack.c.l.s4 1983009808
      %v7209 = vunpack.c.0.s8 %v7208
      %v7210 = vlaneseq
      %v7211 = vshrl.u32 %v7210, 7
      %v7212 = vsub.s32 %v7209, %v7211
      %v7213 = vrot.slane %v7199, %v7212
      %v7214 = vcombine.low %v7206, %v7213
      %v7216 = vunpack.c.l.s4 1983009808
      %v7217 = vunpack.c.0.s8 %v7216
      %v7218 = vlaneseq
      %v7219 = vshrl.u32 %v7218, 7
      %v7220 = vsub.s32 %v7217, %v7219
      %v7221 = vrot.slane %v6910, %v7220
      %v7222 = vcombine.low %v6918, %v6926
      %v7223 = vcombine.low %v6925, %v6927
      %v7225 = vunpack.c.l.s4 1983009808
      %v7226 = vunpack.c.0.s8 %v7225
      %v7227 = vlaneseq
      %v7228 = vshrl.u32 %v7227, 7
      %v7229 = vsub.s32 %v7226, %v7228
      %v7230 = vrot.slane %v7222, %v7229
      %v7232 = vunpack.c.l.s4 1983009808
      %v7233 = vunpack.c.0.s8 %v7232
      %v7234 = vlaneseq
      %v7235 = vshrl.u32 %v7234, 7
      %v7236 = vsub.s32 %v7233, %v7235
      %v7237 = vrot.slane %v7223, %v7236
      %v7238 = vcombine.low %v7230, %v7237
      %v7240 = vunpack.c.l.s4 1983009808
      %v7241 = vunpack.c.0.s8 %v7240
      %v7242 = vlaneseq
      %v7243 = vshrl.u32 %v7242, 7
      %v7244 = vsub.s32 %v7241, %v7243
      %v7245 = vrot.slane %v6935, %v7244
      %v7246 = vcombine.low %v6943, %v6942
      %v7247 = vcombine.low %v6944, %v6952
      %v7249 = vunpack.c.l.s4 1983009808
      %v7250 = vunpack.c.0.s8 %v7249
      %v7251 = vlaneseq
      %v7252 = vshrl.u32 %v7251, 7
      %v7253 = vsub.s32 %v7250, %v7252
      %v7254 = vrot.slane %v7246, %v7253
      %v7256 = vunpack.c.l.s4 1983009808
      %v7257 = vunpack.c.0.s8 %v7256
      %v7258 = vlaneseq
      %v7259 = vshrl.u32 %v7258, 7
      %v7260 = vsub.s32 %v7257, %v7259
      %v7261 = vrot.slane %v7247, %v7260
      %v7262 = vcombine.low %v7254, %v7261
      %v7264 = vunpack.c.l.s4 1983009808
      %v7265 = vunpack.c.0.s8 %v7264
      %v7266 = vlaneseq
      %v7267 = vshrl.u32 %v7266, 7
      %v7268 = vsub.s32 %v7265, %v7267
      %v7269 = vrot.slane %v6960, %v7268
      %v7270 = vcombine.low %v6959, %v6961
      %v7271 = vcombine.low %v6969, %v6977
      %v7273 = vunpack.c.l.s4 1983009808
      %v7274 = vunpack.c.0.s8 %v7273
      %v7275 = vlaneseq
      %v7276 = vshrl.u32 %v7275, 7
      %v7277 = vsub.s32 %v7274, %v7276
      %v7278 = vrot.slane %v7270, %v7277
      %v7280 = vunpack.c.l.s4 1983009808
      %v7281 = vunpack.c.0.s8 %v7280
      %v7282 = vlaneseq
      %v7283 = vshrl.u32 %v7282, 7
      %v7284 = vsub.s32 %v7281, %v7283
      %v7285 = vrot.slane %v7271, %v7284
      %v7286 = vcombine.low %v7278, %v7285
      %v7288 = vunpack.c.l.s4 1983009808
      %v7289 = vunpack.c.0.s8 %v7288
      %v7290 = vlaneseq
      %v7291 = vshrl.u32 %v7290, 7
      %v7292 = vsub.s32 %v7289, %v7291
      %v7293 = vrot.slane %v6976, %v7292
      %v7294 = vcombine.low %v6978, %v6986
      %v7295 = vcombine.low %v6994, %v6993
      %v7297 = vunpack.c.l.s4 1983009808
      %v7298 = vunpack.c.0.s8 %v7297
      %v7299 = vlaneseq
      %v7300 = vshrl.u32 %v7299, 7
      %v7301 = vsub.s32 %v7298, %v7300
      %v7302 = vrot.slane %v7294, %v7301
      %v7304 = vunpack.c.l.s4 1983009808
      %v7305 = vunpack.c.0.s8 %v7304
      %v7306 = vlaneseq
      %v7307 = vshrl.u32 %v7306, 7
      %v7308 = vsub.s32 %v7305, %v7307
      %v7309 = vrot.slane %v7295, %v7308
      %v7310 = vcombine.low %v7302, %v7309
      %v7312 = vunpack.c.l.s4 1983009808
      %v7313 = vunpack.c.0.s8 %v7312
      %v7314 = vlaneseq
      %v7315 = vshrl.u32 %v7314, 7
      %v7316 = vsub.s32 %v7313, %v7315
      %v7317 = vrot.slane %v6995, %v7316
      %v7318 = vcombine.low %v7003, %v7011
      %v7319 = vcombine.low %v7010, %v7012
      %v7321 = vunpack.c.l.s4 1983009808
      %v7322 = vunpack.c.0.s8 %v7321
      %v7323 = vlaneseq
      %v7324 = vshrl.u32 %v7323, 7
      %v7325 = vsub.s32 %v7322, %v7324
      %v7326 = vrot.slane %v7318, %v7325
      %v7328 = vunpack.c.l.s4 1983009808
      %v7329 = vunpack.c.0.s8 %v7328
      %v7330 = vlaneseq
      %v7331 = vshrl.u32 %v7330, 7
      %v7332 = vsub.s32 %v7329, %v7331
      %v7333 = vrot.slane %v7319, %v7332
      %v7334 = vcombine.low %v7326, %v7333
      %v7336 = vunpack.c.l.s4 1983009808
      %v7337 = vunpack.c.0.s8 %v7336
      %v7338 = vlaneseq
      %v7339 = vshrl.u32 %v7338, 7
      %v7340 = vsub.s32 %v7337, %v7339
      %v7341 = vrot.slane %v7020, %v7340
      %v7342 = vcombine.low %v7028, %v7027
      %v7343 = vcombine.low %v7029, %v7036
      %v7345 = vunpack.c.l.s4 1983009808
      %v7346 = vunpack.c.0.s8 %v7345
      %v7347 = vlaneseq
      %v7348 = vshrl.u32 %v7347, 7
      %v7349 = vsub.s32 %v7346, %v7348
      %v7350 = vrot.slane %v7342, %v7349
      %v7352 = vunpack.c.l.s4 1983009808
      %v7353 = vunpack.c.0.s8 %v7352
      %v7354 = vlaneseq
      %v7355 = vshrl.u32 %v7354, 7
      %v7356 = vsub.s32 %v7353, %v7355
      %v7357 = vrot.slane %v7343, %v7356
      %v7358 = vcombine.low %v7350, %v7357
      %v7360 = vunpack.c.l.s4 1983009808
      %v7361 = vunpack.c.0.s8 %v7360
      %v7362 = vlaneseq
      %v7363 = vshrl.u32 %v7362, 7
      %v7364 = vsub.s32 %v7361, %v7363
      %v7365 = vrot.slane %v7037, %v7364
      %v7386 = vsel %vm7106, %v7142, 0.0
      %v7387 = vsel %vm7107, %v7149, 0.0
      %v7388 = vsel %vm7108, %v7166, 0.0
      %v7389 = vsel %vm7109, %v7173, 0.0
      %v7390 = vsel %vm7110, %v7190, 0.0
      %v7391 = vsel %vm7111, %v7197, 0.0
      %v7392 = vsel %vm7112, %v7214, 0.0
      %v7393 = vsel %vm7113, %v7221, 0.0
      %v7394 = vsel %vm7114, %v7238, 0.0
      %v7395 = vsel %vm7115, %v7245, 0.0
      %v7396 = vsel %vm7116, %v7262, 0.0
      %v7397 = vsel %vm7117, %v7269, 0.0
      %v7398 = vsel %vm7118, %v7286, 0.0
      %v7399 = vsel %vm7119, %v7293, 0.0
      %v7400 = vsel %vm7120, %v7310, 0.0
      %v7401 = vsel %vm7121, %v7317, 0.0
      %v7402 = vsel %vm7122, %v7334, 0.0
      %v7403 = vsel %vm7123, %v7341, 0.0
      %v7404 = vsel %vm7124, %v7358, 0.0
      %v7405 = vsel %vm7125, %v7365, 0.0
      %7406 = vst [vmem:[#allocation4] sm:$0xff] %v7386
      %7407 = vst [vmem:[#allocation4 + $0x8] sm:$0x3] %v7387
      %7408 = vst [vmem:[#allocation4 + $0x10] sm:$0xff] %v7388
      %7409 = vst [vmem:[#allocation4 + $0x18] sm:$0x3] %v7389
      %7410 = vst [vmem:[#allocation4 + $0x20] sm:$0xff] %v7390
      %7411 = vst [vmem:[#allocation4 + $0x28] sm:$0x3] %v7391
      %7412 = vst [vmem:[#allocation4 + $0x30] sm:$0xff] %v7392
      %7413 = vst [vmem:[#allocation4 + $0x38] sm:$0x3] %v7393
      %7414 = vst [vmem:[#allocation4 + $0x40] sm:$0xff] %v7394
      %7415 = vst [vmem:[#allocation4 + $0x48] sm:$0x3] %v7395
      %7416 = vst [vmem:[#allocation4 + $0x50] sm:$0xff] %v7396
      %7417 = vst [vmem:[#allocation4 + $0x58] sm:$0x3] %v7397
      %7418 = vst [vmem:[#allocation4 + $0x60] sm:$0xff] %v7398
      %7419 = vst [vmem:[#allocation4 + $0x68] sm:$0x3] %v7399
      %7420 = vst [vmem:[#allocation4 + $0x70] sm:$0xff] %v7400
      %7421 = vst [vmem:[#allocation4 + $0x78] sm:$0x3] %v7401
      %7422 = vst [vmem:[#allocation4 + $0x80] sm:$0xff] %v7402
      %7423 = vst [vmem:[#allocation4 + $0x88] sm:$0x3] %v7403
      %7424 = vst [vmem:[#allocation4 + $0x90] sm:$0xff] %v7404
      %7425 = vst [vmem:[#allocation4 + $0x98] sm:$0x3] %v7405
      %v7426 = vld [vmem:[#allocation4] sm:$0xff]
      %v7427 = vld [vmem:[#allocation4 + $0x10] sm:$0xff]
      %v7428 = vld [vmem:[#allocation4 + $0x20] sm:$0xff]
      %v7429 = vld [vmem:[#allocation4 + $0x30] sm:$0xff]
      %v7430 = vld [vmem:[#allocation4 + $0x40] sm:$0xff]
      %v7431 = vld [vmem:[#allocation4 + $0x50] sm:$0xff]
      %v7432 = vld [vmem:[#allocation4 + $0x60] sm:$0xff]
      %v7433 = vld [vmem:[#allocation4 + $0x70] sm:$0xff]
      %v7434 = vld [vmem:[%s2] sm:$0xff]
      %v7435 = vld [vmem:[%s2 + $0x8] sm:$0xff]
      %v7436 = vld [vmem:[%s2 + $0x10] sm:$0xff]
      %v7437 = vld [vmem:[%s2 + $0x18] sm:$0xff]
      %v7438 = vld [vmem:[%s2 + $0x20] sm:$0xff]
      %v7439 = vld [vmem:[%s2 + $0x28] sm:$0xff]
      %v7440 = vld [vmem:[%s2 + $0x30] sm:$0xff]
      %v7441 = vld [vmem:[%s2 + $0x38] sm:$0xff]
      %v7442 = vld [vmem:[%s2 + $0x40] sm:$0xff]
      %v7443 = vld [vmem:[%s2 + $0x48] sm:$0xff]
      %v7444 = vld [vmem:[%s2 + $0x50] sm:$0xff]
      %v7445 = vld [vmem:[%s2 + $0x58] sm:$0xff]
      %v7446 = vld [vmem:[%s2 + $0x60] sm:$0xff]
      %v7447 = vld [vmem:[%s2 + $0x68] sm:$0xff]
      %v7448 = vld [vmem:[%s2 + $0x70] sm:$0xff]
      %v7449 = vld [vmem:[%s2 + $0x78] sm:$0xff]
      %v7450 = vld [vmem:[#allocation4 + $0x1] sm:$0xff]
      %v7451 = vld [vmem:[#allocation4 + $0x11] sm:$0xff]
      %v7452 = vld [vmem:[#allocation4 + $0x21] sm:$0xff]
      %v7453 = vld [vmem:[#allocation4 + $0x31] sm:$0xff]
      %v7454 = vld [vmem:[#allocation4 + $0x41] sm:$0xff]
      %v7455 = vld [vmem:[#allocation4 + $0x51] sm:$0xff]
      %v7456 = vld [vmem:[#allocation4 + $0x61] sm:$0xff]
      %v7457 = vld [vmem:[#allocation4 + $0x71] sm:$0xff]
      %s7458 = scalar_lea.vmem %s2, 128
      %v7459 = vld [vmem:[%s7458] sm:$0xff]
      %v7460 = vld [vmem:[%s7458 + $0x8] sm:$0xff]
      %v7461 = vld [vmem:[%s7458 + $0x10] sm:$0xff]
      %v7462 = vld [vmem:[%s7458 + $0x18] sm:$0xff]
      %v7463 = vld [vmem:[%s7458 + $0x20] sm:$0xff]
      %v7464 = vld [vmem:[%s7458 + $0x28] sm:$0xff]
      %v7465 = vld [vmem:[%s7458 + $0x30] sm:$0xff]
      %v7466 = vld [vmem:[%s7458 + $0x38] sm:$0xff]
      %v7467 = vld [vmem:[%s7458 + $0x40] sm:$0xff]
      %v7468 = vld [vmem:[%s7458 + $0x48] sm:$0xff]
      %v7469 = vld [vmem:[%s7458 + $0x50] sm:$0xff]
      %v7470 = vld [vmem:[%s7458 + $0x58] sm:$0xff]
      %v7471 = vld [vmem:[%s7458 + $0x60] sm:$0xff]
      %v7472 = vld [vmem:[%s7458 + $0x68] sm:$0xff]
      %v7473 = vld [vmem:[%s7458 + $0x70] sm:$0xff]
      %v7474 = vld [vmem:[%s7458 + $0x78] sm:$0xff]
      %7475 = vmatprep.subr.mxu0 0.0
      %7476 = vmatpush1.msra.mxu0 %v7474
      %7477 = vmatprep.subr.mxu0 0.0
      %7478 = vmatpush1.msra.mxu0 %v7473
      %7479 = vmatprep.subr.mxu0 0.0
      %7480 = vmatpush1.msra.mxu0 %v7472
      %7481 = vmatprep.subr.mxu0 0.0
      %7482 = vmatpush1.msra.mxu0 %v7471
      %7483 = vmatprep.subr.mxu0 0.0
      %7484 = vmatpush1.msra.mxu0 %v7470
      %7485 = vmatprep.subr.mxu0 0.0
      %7486 = vmatpush1.msra.mxu0 %v7469
      %7487 = vmatprep.subr.mxu0 0.0
      %7488 = vmatpush1.msra.mxu0 %v7468
      %7489 = vmatprep.subr.mxu0 0.0
      %7490 = vmatpush1.msra.mxu0 %v7467
      %7491 = vmatprep.subr.mxu0 0.0
      %7492 = vmatpush1.msra.mxu0 %v7466
      %7493 = vmatprep.subr.mxu0 0.0
      %7494 = vmatpush1.msra.mxu0 %v7465
      %7495 = vmatprep.subr.mxu0 0.0
      %7496 = vmatpush1.msra.mxu0 %v7464
      %7497 = vmatprep.subr.mxu0 0.0
      %7498 = vmatpush1.msra.mxu0 %v7463
      %7499 = vmatprep.subr.mxu0 0.0
      %7500 = vmatpush1.msra.mxu0 %v7462
      %7501 = vmatprep.subr.mxu0 0.0
      %7502 = vmatpush1.msra.mxu0 %v7461
      %7503 = vmatprep.subr.mxu0 0.0
      %7504 = vmatpush1.msra.mxu0 %v7460
      %7505 = vmatprep.subr.mxu0 0.0
      %7506 = vmatpush1.msra.mxu0 %v7459
      %7507 = vmatprep.subr.mxu0 0.0
      %7508 = vmatpush2.msra.mxu0 0.0
      %7509 = vmatprep.subr.mxu0 0.0
      %7510 = vmatpush2.msra.mxu0 0.0
      %7511 = vmatprep.subr.mxu0 0.0
      %7512 = vmatpush2.msra.mxu0 0.0
      %7513 = vmatprep.subr.mxu0 0.0
      %7514 = vmatpush2.msra.mxu0 0.0
      %7515 = vmatprep.subr.mxu0 0.0
      %7516 = vmatpush2.msra.mxu0 0.0
      %7517 = vmatprep.subr.mxu0 0.0
      %7518 = vmatpush2.msra.mxu0 0.0
      %7519 = vmatprep.subr.mxu0 0.0
      %7520 = vmatpush2.msra.mxu0 0.0
      %7521 = vmatprep.subr.mxu0 0.0
      %7522 = vmatpush2.msra.mxu0 0.0
      %7523 = vmatprep.subr.mxu0 0.0
      %7524 = vmatpush2.msra.mxu0 0.0
      %7525 = vmatprep.subr.mxu0 0.0
      %7526 = vmatpush2.msra.mxu0 0.0
      %7527 = vmatprep.subr.mxu0 0.0
      %7528 = vmatpush2.msra.mxu0 0.0
      %7529 = vmatprep.subr.mxu0 0.0
      %7530 = vmatpush2.msra.mxu0 0.0
      %7531 = vmatprep.subr.mxu0 0.0
      %7532 = vmatpush2.msra.mxu0 0.0
      %7533 = vmatprep.subr.mxu0 0.0
      %7534 = vmatpush2.msra.mxu0 0.0
      %7535 = vmatprep.subr.mxu0 0.0
      %7536 = vmatpush2.msra.mxu0 0.0
      %7537 = vmatprep.subr.mxu0 0.0
      %7538 = vmatpush2.msra.mxu0 0.0
      %7539 = vmatprep.mubr.f32.mxu0 0.0
      %7540 = vmatmul.mubr.f32.gmra.mxu0 %v7450
      %v7541 = vpop.f32.mrf.mxu0
      %v7542 = vadd.f32 0.0, %v7541
      %v7543 = vpop.f32.mrf.mxu0
      %7544 = vmatprep.mubr.f32.mxu0 0.0
      %7545 = vmatmul.mubr.f32.gmra.mxu0 %v7451
      %v7546 = vpop.f32.mrf.mxu0
      %v7547 = vadd.f32 0.0, %v7546
      %v7548 = vpop.f32.mrf.mxu0
      %7549 = vmatprep.mubr.f32.mxu0 0.0
      %7550 = vmatmul.mubr.f32.gmra.mxu0 %v7452
      %v7551 = vpop.f32.mrf.mxu0
      %v7552 = vadd.f32 0.0, %v7551
      %v7553 = vpop.f32.mrf.mxu0
      %7554 = vmatprep.mubr.f32.mxu0 0.0
      %7555 = vmatmul.mubr.f32.gmra.mxu0 %v7453
      %v7556 = vpop.f32.mrf.mxu0
      %v7557 = vadd.f32 0.0, %v7556
      %v7558 = vpop.f32.mrf.mxu0
      %7559 = vmatprep.mubr.f32.mxu0 0.0
      %7560 = vmatmul.mubr.f32.gmra.mxu0 %v7454
      %v7561 = vpop.f32.mrf.mxu0
      %v7562 = vadd.f32 0.0, %v7561
      %v7563 = vpop.f32.mrf.mxu0
      %7564 = vmatprep.mubr.f32.mxu0 0.0
      %7565 = vmatmul.mubr.f32.gmra.mxu0 %v7455
      %v7566 = vpop.f32.mrf.mxu0
      %v7567 = vadd.f32 0.0, %v7566
      %v7568 = vpop.f32.mrf.mxu0
      %7569 = vmatprep.mubr.f32.mxu0 0.0
      %7570 = vmatmul.mubr.f32.gmra.mxu0 %v7456
      %v7571 = vpop.f32.mrf.mxu0
      %v7572 = vadd.f32 0.0, %v7571
      %v7573 = vpop.f32.mrf.mxu0
      %7574 = vmatprep.mubr.f32.mxu0 0.0
      %7575 = vmatmul.mubr.f32.gmra.mxu0 %v7457
      %v7576 = vpop.f32.mrf.mxu0
      %v7577 = vadd.f32 0.0, %v7576
      %v7578 = vpop.f32.mrf.mxu0
      %7579 = vdwg.mxu0
      %7580 = vmatprep.subr.mxu0 0.0
      %7581 = vmatpush1.msra.mxu0 %v7449
      %7582 = vmatprep.subr.mxu0 0.0
      %7583 = vmatpush1.msra.mxu0 %v7448
      %7584 = vmatprep.subr.mxu0 0.0
      %7585 = vmatpush1.msra.mxu0 %v7447
      %7586 = vmatprep.subr.mxu0 0.0
      %7587 = vmatpush1.msra.mxu0 %v7446
      %7588 = vmatprep.subr.mxu0 0.0
      %7589 = vmatpush1.msra.mxu0 %v7445
      %7590 = vmatprep.subr.mxu0 0.0
      %7591 = vmatpush1.msra.mxu0 %v7444
      %7592 = vmatprep.subr.mxu0 0.0
      %7593 = vmatpush1.msra.mxu0 %v7443
      %7594 = vmatprep.subr.mxu0 0.0
      %7595 = vmatpush1.msra.mxu0 %v7442
      %7596 = vmatprep.subr.mxu0 0.0
      %7597 = vmatpush1.msra.mxu0 %v7441
      %7598 = vmatprep.subr.mxu0 0.0
      %7599 = vmatpush1.msra.mxu0 %v7440
      %7600 = vmatprep.subr.mxu0 0.0
      %7601 = vmatpush1.msra.mxu0 %v7439
      %7602 = vmatprep.subr.mxu0 0.0
      %7603 = vmatpush1.msra.mxu0 %v7438
      %7604 = vmatprep.subr.mxu0 0.0
      %7605 = vmatpush1.msra.mxu0 %v7437
      %7606 = vmatprep.subr.mxu0 0.0
      %7607 = vmatpush1.msra.mxu0 %v7436
      %7608 = vmatprep.subr.mxu0 0.0
      %7609 = vmatpush1.msra.mxu0 %v7435
      %7610 = vmatprep.subr.mxu0 0.0
      %7611 = vmatpush1.msra.mxu0 %v7434
      %7612 = vmatprep.subr.mxu0 0.0
      %7613 = vmatpush2.msra.mxu0 0.0
      %7614 = vmatprep.subr.mxu0 0.0
      %7615 = vmatpush2.msra.mxu0 0.0
      %7616 = vmatprep.subr.mxu0 0.0
      %7617 = vmatpush2.msra.mxu0 0.0
      %7618 = vmatprep.subr.mxu0 0.0
      %7619 = vmatpush2.msra.mxu0 0.0
      %7620 = vmatprep.subr.mxu0 0.0
      %7621 = vmatpush2.msra.mxu0 0.0
      %7622 = vmatprep.subr.mxu0 0.0
      %7623 = vmatpush2.msra.mxu0 0.0
      %7624 = vmatprep.subr.mxu0 0.0
      %7625 = vmatpush2.msra.mxu0 0.0
      %7626 = vmatprep.subr.mxu0 0.0
      %7627 = vmatpush2.msra.mxu0 0.0
      %7628 = vmatprep.subr.mxu0 0.0
      %7629 = vmatpush2.msra.mxu0 0.0
      %7630 = vmatprep.subr.mxu0 0.0
      %7631 = vmatpush2.msra.mxu0 0.0
      %7632 = vmatprep.subr.mxu0 0.0
      %7633 = vmatpush2.msra.mxu0 0.0
      %7634 = vmatprep.subr.mxu0 0.0
      %7635 = vmatpush2.msra.mxu0 0.0
      %7636 = vmatprep.subr.mxu0 0.0
      %7637 = vmatpush2.msra.mxu0 0.0
      %7638 = vmatprep.subr.mxu0 0.0
      %7639 = vmatpush2.msra.mxu0 0.0
      %7640 = vmatprep.subr.mxu0 0.0
      %7641 = vmatpush2.msra.mxu0 0.0
      %7642 = vmatprep.subr.mxu0 0.0
      %7643 = vmatpush2.msra.mxu0 0.0
      %7644 = vmatprep.mubr.f32.mxu0 0.0
      %7645 = vmatmul.mubr.f32.gmra.mxu0 %v7426
      %v7646 = vpop.f32.mrf.mxu0
      %v7647 = vadd.f32 %v7542, %v7646
      %v7648 = vpop.f32.mrf.mxu0
      %7649 = vmatprep.mubr.f32.mxu0 0.0
      %7650 = vmatmul.mubr.f32.gmra.mxu0 %v7427
      %v7651 = vpop.f32.mrf.mxu0
      %v7652 = vadd.f32 %v7547, %v7651
      %v7653 = vpop.f32.mrf.mxu0
      %7654 = vmatprep.mubr.f32.mxu0 0.0
      %7655 = vmatmul.mubr.f32.gmra.mxu0 %v7428
      %v7656 = vpop.f32.mrf.mxu0
      %v7657 = vadd.f32 %v7552, %v7656
      %v7658 = vpop.f32.mrf.mxu0
      %7659 = vmatprep.mubr.f32.mxu0 0.0
      %7660 = vmatmul.mubr.f32.gmra.mxu0 %v7429
      %v7661 = vpop.f32.mrf.mxu0
      %v7662 = vadd.f32 %v7557, %v7661
      %v7663 = vpop.f32.mrf.mxu0
      %7664 = vmatprep.mubr.f32.mxu0 0.0
      %7665 = vmatmul.mubr.f32.gmra.mxu0 %v7430
      %v7666 = vpop.f32.mrf.mxu0
      %v7667 = vadd.f32 %v7562, %v7666
      %v7668 = vpop.f32.mrf.mxu0
      %7669 = vmatprep.mubr.f32.mxu0 0.0
      %7670 = vmatmul.mubr.f32.gmra.mxu0 %v7431
      %v7671 = vpop.f32.mrf.mxu0
      %v7672 = vadd.f32 %v7567, %v7671
      %v7673 = vpop.f32.mrf.mxu0
      %7674 = vmatprep.mubr.f32.mxu0 0.0
      %7675 = vmatmul.mubr.f32.gmra.mxu0 %v7432
      %v7676 = vpop.f32.mrf.mxu0
      %v7677 = vadd.f32 %v7572, %v7676
      %v7678 = vpop.f32.mrf.mxu0
      %7679 = vmatprep.mubr.f32.mxu0 0.0
      %7680 = vmatmul.mubr.f32.gmra.mxu0 %v7433
      %v7681 = vpop.f32.mrf.mxu0
      %v7682 = vadd.f32 %v7577, %v7681
      %v7683 = vpop.f32.mrf.mxu0
      %7684 = vdwg.mxu0
      %v7685 = vld [vmem:[#allocation4 + $0x2] sm:$0xff]
      %v7686 = vld [vmem:[#allocation4 + $0x12] sm:$0xff]
      %v7687 = vld [vmem:[#allocation4 + $0x22] sm:$0xff]
      %v7688 = vld [vmem:[#allocation4 + $0x32] sm:$0xff]
      %v7689 = vld [vmem:[#allocation4 + $0x42] sm:$0xff]
      %v7690 = vld [vmem:[#allocation4 + $0x52] sm:$0xff]
      %v7691 = vld [vmem:[#allocation4 + $0x62] sm:$0xff]
      %v7692 = vld [vmem:[#allocation4 + $0x72] sm:$0xff]
      %s7693 = scalar_lea.vmem %s2, 256
      %v7694 = vld [vmem:[%s7693] sm:$0xff]
      %v7695 = vld [vmem:[%s7693 + $0x8] sm:$0xff]
      %v7696 = vld [vmem:[%s7693 + $0x10] sm:$0xff]
      %v7697 = vld [vmem:[%s7693 + $0x18] sm:$0xff]
      %v7698 = vld [vmem:[%s7693 + $0x20] sm:$0xff]
      %v7699 = vld [vmem:[%s7693 + $0x28] sm:$0xff]
      %v7700 = vld [vmem:[%s7693 + $0x30] sm:$0xff]
      %v7701 = vld [vmem:[%s7693 + $0x38] sm:$0xff]
      %v7702 = vld [vmem:[%s7693 + $0x40] sm:$0xff]
      %v7703 = vld [vmem:[%s7693 + $0x48] sm:$0xff]
      %v7704 = vld [vmem:[%s7693 + $0x50] sm:$0xff]
      %v7705 = vld [vmem:[%s7693 + $0x58] sm:$0xff]
      %v7706 = vld [vmem:[%s7693 + $0x60] sm:$0xff]
      %v7707 = vld [vmem:[%s7693 + $0x68] sm:$0xff]
      %v7708 = vld [vmem:[%s7693 + $0x70] sm:$0xff]
      %v7709 = vld [vmem:[%s7693 + $0x78] sm:$0xff]
      %7710 = vmatprep.subr.mxu0 0.0
      %7711 = vmatpush1.msra.mxu0 %v7709
      %7712 = vmatprep.subr.mxu0 0.0
      %7713 = vmatpush1.msra.mxu0 %v7708
      %7714 = vmatprep.subr.mxu0 0.0
      %7715 = vmatpush1.msra.mxu0 %v7707
      %7716 = vmatprep.subr.mxu0 0.0
      %7717 = vmatpush1.msra.mxu0 %v7706
      %7718 = vmatprep.subr.mxu0 0.0
      %7719 = vmatpush1.msra.mxu0 %v7705
      %7720 = vmatprep.subr.mxu0 0.0
      %7721 = vmatpush1.msra.mxu0 %v7704
      %7722 = vmatprep.subr.mxu0 0.0
      %7723 = vmatpush1.msra.mxu0 %v7703
      %7724 = vmatprep.subr.mxu0 0.0
      %7725 = vmatpush1.msra.mxu0 %v7702
      %7726 = vmatprep.subr.mxu0 0.0
      %7727 = vmatpush1.msra.mxu0 %v7701
      %7728 = vmatprep.subr.mxu0 0.0
      %7729 = vmatpush1.msra.mxu0 %v7700
      %7730 = vmatprep.subr.mxu0 0.0
      %7731 = vmatpush1.msra.mxu0 %v7699
      %7732 = vmatprep.subr.mxu0 0.0
      %7733 = vmatpush1.msra.mxu0 %v7698
      %7734 = vmatprep.subr.mxu0 0.0
      %7735 = vmatpush1.msra.mxu0 %v7697
      %7736 = vmatprep.subr.mxu0 0.0
      %7737 = vmatpush1.msra.mxu0 %v7696
      %7738 = vmatprep.subr.mxu0 0.0
      %7739 = vmatpush1.msra.mxu0 %v7695
      %7740 = vmatprep.subr.mxu0 0.0
      %7741 = vmatpush1.msra.mxu0 %v7694
      %7742 = vmatprep.subr.mxu0 0.0
      %7743 = vmatpush2.msra.mxu0 0.0
      %7744 = vmatprep.subr.mxu0 0.0
      %7745 = vmatpush2.msra.mxu0 0.0
      %7746 = vmatprep.subr.mxu0 0.0
      %7747 = vmatpush2.msra.mxu0 0.0
      %7748 = vmatprep.subr.mxu0 0.0
      %7749 = vmatpush2.msra.mxu0 0.0
      %7750 = vmatprep.subr.mxu0 0.0
      %7751 = vmatpush2.msra.mxu0 0.0
      %7752 = vmatprep.subr.mxu0 0.0
      %7753 = vmatpush2.msra.mxu0 0.0
      %7754 = vmatprep.subr.mxu0 0.0
      %7755 = vmatpush2.msra.mxu0 0.0
      %7756 = vmatprep.subr.mxu0 0.0
      %7757 = vmatpush2.msra.mxu0 0.0
      %7758 = vmatprep.subr.mxu0 0.0
      %7759 = vmatpush2.msra.mxu0 0.0
      %7760 = vmatprep.subr.mxu0 0.0
      %7761 = vmatpush2.msra.mxu0 0.0
      %7762 = vmatprep.subr.mxu0 0.0
      %7763 = vmatpush2.msra.mxu0 0.0
      %7764 = vmatprep.subr.mxu0 0.0
      %7765 = vmatpush2.msra.mxu0 0.0
      %7766 = vmatprep.subr.mxu0 0.0
      %7767 = vmatpush2.msra.mxu0 0.0
      %7768 = vmatprep.subr.mxu0 0.0
      %7769 = vmatpush2.msra.mxu0 0.0
      %7770 = vmatprep.subr.mxu0 0.0
      %7771 = vmatpush2.msra.mxu0 0.0
      %7772 = vmatprep.subr.mxu0 0.0
      %7773 = vmatpush2.msra.mxu0 0.0
      %7774 = vmatprep.mubr.f32.mxu0 0.0
      %7775 = vmatmul.mubr.f32.gmra.mxu0 %v7685
      %v7776 = vpop.f32.mrf.mxu0
      %v7777 = vadd.f32 0.0, %v7776
      %v7778 = vpop.f32.mrf.mxu0
      %7779 = vmatprep.mubr.f32.mxu0 0.0
      %7780 = vmatmul.mubr.f32.gmra.mxu0 %v7686
      %v7781 = vpop.f32.mrf.mxu0
      %v7782 = vadd.f32 0.0, %v7781
      %v7783 = vpop.f32.mrf.mxu0
      %7784 = vmatprep.mubr.f32.mxu0 0.0
      %7785 = vmatmul.mubr.f32.gmra.mxu0 %v7687
      %v7786 = vpop.f32.mrf.mxu0
      %v7787 = vadd.f32 0.0, %v7786
      %v7788 = vpop.f32.mrf.mxu0
      %7789 = vmatprep.mubr.f32.mxu0 0.0
      %7790 = vmatmul.mubr.f32.gmra.mxu0 %v7688
      %v7791 = vpop.f32.mrf.mxu0
      %v7792 = vadd.f32 0.0, %v7791
      %v7793 = vpop.f32.mrf.mxu0
      %7794 = vmatprep.mubr.f32.mxu0 0.0
      %7795 = vmatmul.mubr.f32.gmra.mxu0 %v7689
      %v7796 = vpop.f32.mrf.mxu0
      %v7797 = vadd.f32 0.0, %v7796
      %v7798 = vpop.f32.mrf.mxu0
      %7799 = vmatprep.mubr.f32.mxu0 0.0
      %7800 = vmatmul.mubr.f32.gmra.mxu0 %v7690
      %v7801 = vpop.f32.mrf.mxu0
      %v7802 = vadd.f32 0.0, %v7801
      %v7803 = vpop.f32.mrf.mxu0
      %7804 = vmatprep.mubr.f32.mxu0 0.0
      %7805 = vmatmul.mubr.f32.gmra.mxu0 %v7691
      %v7806 = vpop.f32.mrf.mxu0
      %v7807 = vadd.f32 0.0, %v7806
      %v7808 = vpop.f32.mrf.mxu0
      %7809 = vmatprep.mubr.f32.mxu0 0.0
      %7810 = vmatmul.mubr.f32.gmra.mxu0 %v7692
      %v7811 = vpop.f32.mrf.mxu0
      %v7812 = vadd.f32 0.0, %v7811
      %v7813 = vpop.f32.mrf.mxu0
      %7814 = vdwg.mxu0
      %v7815 = vadd.f32 %v7647, %v7777
      %v7816 = vadd.f32 %v7652, %v7782
      %v7817 = vadd.f32 %v7657, %v7787
      %v7818 = vadd.f32 %v7662, %v7792
      %v7819 = vadd.f32 %v7667, %v7797
      %v7820 = vadd.f32 %v7672, %v7802
      %v7821 = vadd.f32 %v7677, %v7807
      %v7822 = vadd.f32 %v7682, %v7812
      %s7823 = scalar_lea.vmem [#allocation4], 16
      %v7824 = vld [vmem:[%s7823] sm:$0xff]
      %v7825 = vld [vmem:[%s7823 + $0x10] sm:$0xff]
      %v7826 = vld [vmem:[%s7823 + $0x20] sm:$0xff]
      %v7827 = vld [vmem:[%s7823 + $0x30] sm:$0xff]
      %v7828 = vld [vmem:[%s7823 + $0x40] sm:$0xff]
      %v7829 = vld [vmem:[%s7823 + $0x50] sm:$0xff]
      %v7830 = vld [vmem:[%s7823 + $0x60] sm:$0xff]
      %v7831 = vld [vmem:[%s7823 + $0x70] sm:$0xff]
      %s7832 = scalar_lea.vmem %s2, 384
      %v7833 = vld [vmem:[%s7832] sm:$0xff]
      %v7834 = vld [vmem:[%s7832 + $0x8] sm:$0xff]
      %v7835 = vld [vmem:[%s7832 + $0x10] sm:$0xff]
      %v7836 = vld [vmem:[%s7832 + $0x18] sm:$0xff]
      %v7837 = vld [vmem:[%s7832 + $0x20] sm:$0xff]
      %v7838 = vld [vmem:[%s7832 + $0x28] sm:$0xff]
      %v7839 = vld [vmem:[%s7832 + $0x30] sm:$0xff]
      %v7840 = vld [vmem:[%s7832 + $0x38] sm:$0xff]
      %v7841 = vld [vmem:[%s7832 + $0x40] sm:$0xff]
      %v7842 = vld [vmem:[%s7832 + $0x48] sm:$0xff]
      %v7843 = vld [vmem:[%s7832 + $0x50] sm:$0xff]
      %v7844 = vld [vmem:[%s7832 + $0x58] sm:$0xff]
      %v7845 = vld [vmem:[%s7832 + $0x60] sm:$0xff]
      %v7846 = vld [vmem:[%s7832 + $0x68] sm:$0xff]
      %v7847 = vld [vmem:[%s7832 + $0x70] sm:$0xff]
      %v7848 = vld [vmem:[%s7832 + $0x78] sm:$0xff]
      %7849 = vmatprep.subr.mxu0 0.0
      %7850 = vmatpush1.msra.mxu0 %v7848
      %7851 = vmatprep.subr.mxu0 0.0
      %7852 = vmatpush1.msra.mxu0 %v7847
      %7853 = vmatprep.subr.mxu0 0.0
      %7854 = vmatpush1.msra.mxu0 %v7846
      %7855 = vmatprep.subr.mxu0 0.0
      %7856 = vmatpush1.msra.mxu0 %v7845
      %7857 = vmatprep.subr.mxu0 0.0
      %7858 = vmatpush1.msra.mxu0 %v7844
      %7859 = vmatprep.subr.mxu0 0.0
      %7860 = vmatpush1.msra.mxu0 %v7843
      %7861 = vmatprep.subr.mxu0 0.0
      %7862 = vmatpush1.msra.mxu0 %v7842
      %7863 = vmatprep.subr.mxu0 0.0
      %7864 = vmatpush1.msra.mxu0 %v7841
      %7865 = vmatprep.subr.mxu0 0.0
      %7866 = vmatpush1.msra.mxu0 %v7840
      %7867 = vmatprep.subr.mxu0 0.0
      %7868 = vmatpush1.msra.mxu0 %v7839
      %7869 = vmatprep.subr.mxu0 0.0
      %7870 = vmatpush1.msra.mxu0 %v7838
      %7871 = vmatprep.subr.mxu0 0.0
      %7872 = vmatpush1.msra.mxu0 %v7837
      %7873 = vmatprep.subr.mxu0 0.0
      %7874 = vmatpush1.msra.mxu0 %v7836
      %7875 = vmatprep.subr.mxu0 0.0
      %7876 = vmatpush1.msra.mxu0 %v7835
      %7877 = vmatprep.subr.mxu0 0.0
      %7878 = vmatpush1.msra.mxu0 %v7834
      %7879 = vmatprep.subr.mxu0 0.0
      %7880 = vmatpush1.msra.mxu0 %v7833
      %7881 = vmatprep.subr.mxu0 0.0
      %7882 = vmatpush2.msra.mxu0 0.0
      %7883 = vmatprep.subr.mxu0 0.0
      %7884 = vmatpush2.msra.mxu0 0.0
      %7885 = vmatprep.subr.mxu0 0.0
      %7886 = vmatpush2.msra.mxu0 0.0
      %7887 = vmatprep.subr.mxu0 0.0
      %7888 = vmatpush2.msra.mxu0 0.0
      %7889 = vmatprep.subr.mxu0 0.0
      %7890 = vmatpush2.msra.mxu0 0.0
      %7891 = vmatprep.subr.mxu0 0.0
      %7892 = vmatpush2.msra.mxu0 0.0
      %7893 = vmatprep.subr.mxu0 0.0
      %7894 = vmatpush2.msra.mxu0 0.0
      %7895 = vmatprep.subr.mxu0 0.0
      %7896 = vmatpush2.msra.mxu0 0.0
      %7897 = vmatprep.subr.mxu0 0.0
      %7898 = vmatpush2.msra.mxu0 0.0
      %7899 = vmatprep.subr.mxu0 0.0
      %7900 = vmatpush2.msra.mxu0 0.0
      %7901 = vmatprep.subr.mxu0 0.0
      %7902 = vmatpush2.msra.mxu0 0.0
      %7903 = vmatprep.subr.mxu0 0.0
      %7904 = vmatpush2.msra.mxu0 0.0
      %7905 = vmatprep.subr.mxu0 0.0
      %7906 = vmatpush2.msra.mxu0 0.0
      %7907 = vmatprep.subr.mxu0 0.0
      %7908 = vmatpush2.msra.mxu0 0.0
      %7909 = vmatprep.subr.mxu0 0.0
      %7910 = vmatpush2.msra.mxu0 0.0
      %7911 = vmatprep.subr.mxu0 0.0
      %7912 = vmatpush2.msra.mxu0 0.0
      %7913 = vmatprep.mubr.f32.mxu0 0.0
      %7914 = vmatmul.mubr.f32.gmra.mxu0 %v7824
      %v7915 = vpop.f32.mrf.mxu0
      %v7916 = vadd.f32 0.0, %v7915
      %v7917 = vpop.f32.mrf.mxu0
      %7918 = vmatprep.mubr.f32.mxu0 0.0
      %7919 = vmatmul.mubr.f32.gmra.mxu0 %v7825
      %v7920 = vpop.f32.mrf.mxu0
      %v7921 = vadd.f32 0.0, %v7920
      %v7922 = vpop.f32.mrf.mxu0
      %7923 = vmatprep.mubr.f32.mxu0 0.0
      %7924 = vmatmul.mubr.f32.gmra.mxu0 %v7826
      %v7925 = vpop.f32.mrf.mxu0
      %v7926 = vadd.f32 0.0, %v7925
      %v7927 = vpop.f32.mrf.mxu0
      %7928 = vmatprep.mubr.f32.mxu0 0.0
      %7929 = vmatmul.mubr.f32.gmra.mxu0 %v7827
      %v7930 = vpop.f32.mrf.mxu0
      %v7931 = vadd.f32 0.0, %v7930
      %v7932 = vpop.f32.mrf.mxu0
      %7933 = vmatprep.mubr.f32.mxu0 0.0
      %7934 = vmatmul.mubr.f32.gmra.mxu0 %v7828
      %v7935 = vpop.f32.mrf.mxu0
      %v7936 = vadd.f32 0.0, %v7935
      %v7937 = vpop.f32.mrf.mxu0
      %7938 = vmatprep.mubr.f32.mxu0 0.0
      %7939 = vmatmul.mubr.f32.gmra.mxu0 %v7829
      %v7940 = vpop.f32.mrf.mxu0
      %v7941 = vadd.f32 0.0, %v7940
      %v7942 = vpop.f32.mrf.mxu0
      %7943 = vmatprep.mubr.f32.mxu0 0.0
      %7944 = vmatmul.mubr.f32.gmra.mxu0 %v7830
      %v7945 = vpop.f32.mrf.mxu0
      %v7946 = vadd.f32 0.0, %v7945
      %v7947 = vpop.f32.mrf.mxu0
      %7948 = vmatprep.mubr.f32.mxu0 0.0
      %7949 = vmatmul.mubr.f32.gmra.mxu0 %v7831
      %v7950 = vpop.f32.mrf.mxu0
      %v7951 = vadd.f32 0.0, %v7950
      %v7952 = vpop.f32.mrf.mxu0
      %7953 = vdwg.mxu0
      %v7954 = vadd.f32 %v7815, %v7916
      %v7955 = vadd.f32 %v7816, %v7921
      %v7956 = vadd.f32 %v7817, %v7926
      %v7957 = vadd.f32 %v7818, %v7931
      %v7958 = vadd.f32 %v7819, %v7936
      %v7959 = vadd.f32 %v7820, %v7941
      %v7960 = vadd.f32 %v7821, %v7946
      %v7961 = vadd.f32 %v7822, %v7951
      %v7962 = vld [vmem:[%s7823 + $0x1] sm:$0xff]
      %v7963 = vld [vmem:[%s7823 + $0x11] sm:$0xff]
      %v7964 = vld [vmem:[%s7823 + $0x21] sm:$0xff]
      %v7965 = vld [vmem:[%s7823 + $0x31] sm:$0xff]
      %v7966 = vld [vmem:[%s7823 + $0x41] sm:$0xff]
      %v7967 = vld [vmem:[%s7823 + $0x51] sm:$0xff]
      %v7968 = vld [vmem:[%s7823 + $0x61] sm:$0xff]
      %v7969 = vld [vmem:[%s7823 + $0x71] sm:$0xff]
      %s7970 = scalar_lea.vmem %s2, 512
      %v7971 = vld [vmem:[%s7970] sm:$0xff]
      %v7972 = vld [vmem:[%s7970 + $0x8] sm:$0xff]
      %v7973 = vld [vmem:[%s7970 + $0x10] sm:$0xff]
      %v7974 = vld [vmem:[%s7970 + $0x18] sm:$0xff]
      %v7975 = vld [vmem:[%s7970 + $0x20] sm:$0xff]
      %v7976 = vld [vmem:[%s7970 + $0x28] sm:$0xff]
      %v7977 = vld [vmem:[%s7970 + $0x30] sm:$0xff]
      %v7978 = vld [vmem:[%s7970 + $0x38] sm:$0xff]
      %v7979 = vld [vmem:[%s7970 + $0x40] sm:$0xff]
      %v7980 = vld [vmem:[%s7970 + $0x48] sm:$0xff]
      %v7981 = vld [vmem:[%s7970 + $0x50] sm:$0xff]
      %v7982 = vld [vmem:[%s7970 + $0x58] sm:$0xff]
      %v7983 = vld [vmem:[%s7970 + $0x60] sm:$0xff]
      %v7984 = vld [vmem:[%s7970 + $0x68] sm:$0xff]
      %v7985 = vld [vmem:[%s7970 + $0x70] sm:$0xff]
      %v7986 = vld [vmem:[%s7970 + $0x78] sm:$0xff]
      %7987 = vmatprep.subr.mxu0 0.0
      %7988 = vmatpush1.msra.mxu0 %v7986
      %7989 = vmatprep.subr.mxu0 0.0
      %7990 = vmatpush1.msra.mxu0 %v7985
      %7991 = vmatprep.subr.mxu0 0.0
      %7992 = vmatpush1.msra.mxu0 %v7984
      %7993 = vmatprep.subr.mxu0 0.0
      %7994 = vmatpush1.msra.mxu0 %v7983
      %7995 = vmatprep.subr.mxu0 0.0
      %7996 = vmatpush1.msra.mxu0 %v7982
      %7997 = vmatprep.subr.mxu0 0.0
      %7998 = vmatpush1.msra.mxu0 %v7981
      %7999 = vmatprep.subr.mxu0 0.0
      %8000 = vmatpush1.msra.mxu0 %v7980
      %8001 = vmatprep.subr.mxu0 0.0
      %8002 = vmatpush1.msra.mxu0 %v7979
      %8003 = vmatprep.subr.mxu0 0.0
      %8004 = vmatpush1.msra.mxu0 %v7978
      %8005 = vmatprep.subr.mxu0 0.0
      %8006 = vmatpush1.msra.mxu0 %v7977
      %8007 = vmatprep.subr.mxu0 0.0
      %8008 = vmatpush1.msra.mxu0 %v7976
      %8009 = vmatprep.subr.mxu0 0.0
      %8010 = vmatpush1.msra.mxu0 %v7975
      %8011 = vmatprep.subr.mxu0 0.0
      %8012 = vmatpush1.msra.mxu0 %v7974
      %8013 = vmatprep.subr.mxu0 0.0
      %8014 = vmatpush1.msra.mxu0 %v7973
      %8015 = vmatprep.subr.mxu0 0.0
      %8016 = vmatpush1.msra.mxu0 %v7972
      %8017 = vmatprep.subr.mxu0 0.0
      %8018 = vmatpush1.msra.mxu0 %v7971
      %8019 = vmatprep.subr.mxu0 0.0
      %8020 = vmatpush2.msra.mxu0 0.0
      %8021 = vmatprep.subr.mxu0 0.0
      %8022 = vmatpush2.msra.mxu0 0.0
      %8023 = vmatprep.subr.mxu0 0.0
      %8024 = vmatpush2.msra.mxu0 0.0
      %8025 = vmatprep.subr.mxu0 0.0
      %8026 = vmatpush2.msra.mxu0 0.0
      %8027 = vmatprep.subr.mxu0 0.0
      %8028 = vmatpush2.msra.mxu0 0.0
      %8029 = vmatprep.subr.mxu0 0.0
      %8030 = vmatpush2.msra.mxu0 0.0
      %8031 = vmatprep.subr.mxu0 0.0
      %8032 = vmatpush2.msra.mxu0 0.0
      %8033 = vmatprep.subr.mxu0 0.0
      %8034 = vmatpush2.msra.mxu0 0.0
      %8035 = vmatprep.subr.mxu0 0.0
      %8036 = vmatpush2.msra.mxu0 0.0
      %8037 = vmatprep.subr.mxu0 0.0
      %8038 = vmatpush2.msra.mxu0 0.0
      %8039 = vmatprep.subr.mxu0 0.0
      %8040 = vmatpush2.msra.mxu0 0.0
      %8041 = vmatprep.subr.mxu0 0.0
      %8042 = vmatpush2.msra.mxu0 0.0
      %8043 = vmatprep.subr.mxu0 0.0
      %8044 = vmatpush2.msra.mxu0 0.0
      %8045 = vmatprep.subr.mxu0 0.0
      %8046 = vmatpush2.msra.mxu0 0.0
      %8047 = vmatprep.subr.mxu0 0.0
      %8048 = vmatpush2.msra.mxu0 0.0
      %8049 = vmatprep.subr.mxu0 0.0
      %8050 = vmatpush2.msra.mxu0 0.0
      %8051 = vmatprep.mubr.f32.mxu0 0.0
      %8052 = vmatmul.mubr.f32.gmra.mxu0 %v7962
      %v8053 = vpop.f32.mrf.mxu0
      %v8054 = vadd.f32 0.0, %v8053
      %v8055 = vpop.f32.mrf.mxu0
      %8056 = vmatprep.mubr.f32.mxu0 0.0
      %8057 = vmatmul.mubr.f32.gmra.mxu0 %v7963
      %v8058 = vpop.f32.mrf.mxu0
      %v8059 = vadd.f32 0.0, %v8058
      %v8060 = vpop.f32.mrf.mxu0
      %8061 = vmatprep.mubr.f32.mxu0 0.0
      %8062 = vmatmul.mubr.f32.gmra.mxu0 %v7964
      %v8063 = vpop.f32.mrf.mxu0
      %v8064 = vadd.f32 0.0, %v8063
      %v8065 = vpop.f32.mrf.mxu0
      %8066 = vmatprep.mubr.f32.mxu0 0.0
      %8067 = vmatmul.mubr.f32.gmra.mxu0 %v7965
      %v8068 = vpop.f32.mrf.mxu0
      %v8069 = vadd.f32 0.0, %v8068
      %v8070 = vpop.f32.mrf.mxu0
      %8071 = vmatprep.mubr.f32.mxu0 0.0
      %8072 = vmatmul.mubr.f32.gmra.mxu0 %v7966
      %v8073 = vpop.f32.mrf.mxu0
      %v8074 = vadd.f32 0.0, %v8073
      %v8075 = vpop.f32.mrf.mxu0
      %8076 = vmatprep.mubr.f32.mxu0 0.0
      %8077 = vmatmul.mubr.f32.gmra.mxu0 %v7967
      %v8078 = vpop.f32.mrf.mxu0
      %v8079 = vadd.f32 0.0, %v8078
      %v8080 = vpop.f32.mrf.mxu0
      %8081 = vmatprep.mubr.f32.mxu0 0.0
      %8082 = vmatmul.mubr.f32.gmra.mxu0 %v7968
      %v8083 = vpop.f32.mrf.mxu0
      %v8084 = vadd.f32 0.0, %v8083
      %v8085 = vpop.f32.mrf.mxu0
      %8086 = vmatprep.mubr.f32.mxu0 0.0
      %8087 = vmatmul.mubr.f32.gmra.mxu0 %v7969
      %v8088 = vpop.f32.mrf.mxu0
      %v8089 = vadd.f32 0.0, %v8088
      %v8090 = vpop.f32.mrf.mxu0
      %8091 = vdwg.mxu0
      %v8092 = vadd.f32 %v7954, %v8054
      %v8093 = vadd.f32 %v7955, %v8059
      %v8094 = vadd.f32 %v7956, %v8064
      %v8095 = vadd.f32 %v7957, %v8069
      %v8096 = vadd.f32 %v7958, %v8074
      %v8097 = vadd.f32 %v7959, %v8079
      %v8098 = vadd.f32 %v7960, %v8084
      %v8099 = vadd.f32 %v7961, %v8089
      %v8100 = vld [vmem:[%s7823 + $0x2] sm:$0xff]
      %v8101 = vld [vmem:[%s7823 + $0x12] sm:$0xff]
      %v8102 = vld [vmem:[%s7823 + $0x22] sm:$0xff]
      %v8103 = vld [vmem:[%s7823 + $0x32] sm:$0xff]
      %v8104 = vld [vmem:[%s7823 + $0x42] sm:$0xff]
      %v8105 = vld [vmem:[%s7823 + $0x52] sm:$0xff]
      %v8106 = vld [vmem:[%s7823 + $0x62] sm:$0xff]
      %v8107 = vld [vmem:[%s7823 + $0x72] sm:$0xff]
      %s8108 = scalar_lea.vmem %s2, 640
      %v8109 = vld [vmem:[%s8108] sm:$0xff]
      %v8110 = vld [vmem:[%s8108 + $0x8] sm:$0xff]
      %v8111 = vld [vmem:[%s8108 + $0x10] sm:$0xff]
      %v8112 = vld [vmem:[%s8108 + $0x18] sm:$0xff]
      %v8113 = vld [vmem:[%s8108 + $0x20] sm:$0xff]
      %v8114 = vld [vmem:[%s8108 + $0x28] sm:$0xff]
      %v8115 = vld [vmem:[%s8108 + $0x30] sm:$0xff]
      %v8116 = vld [vmem:[%s8108 + $0x38] sm:$0xff]
      %v8117 = vld [vmem:[%s8108 + $0x40] sm:$0xff]
      %v8118 = vld [vmem:[%s8108 + $0x48] sm:$0xff]
      %v8119 = vld [vmem:[%s8108 + $0x50] sm:$0xff]
      %v8120 = vld [vmem:[%s8108 + $0x58] sm:$0xff]
      %v8121 = vld [vmem:[%s8108 + $0x60] sm:$0xff]
      %v8122 = vld [vmem:[%s8108 + $0x68] sm:$0xff]
      %v8123 = vld [vmem:[%s8108 + $0x70] sm:$0xff]
      %v8124 = vld [vmem:[%s8108 + $0x78] sm:$0xff]
      %8125 = vmatprep.subr.mxu0 0.0
      %8126 = vmatpush1.msra.mxu0 %v8124
      %8127 = vmatprep.subr.mxu0 0.0
      %8128 = vmatpush1.msra.mxu0 %v8123
      %8129 = vmatprep.subr.mxu0 0.0
      %8130 = vmatpush1.msra.mxu0 %v8122
      %8131 = vmatprep.subr.mxu0 0.0
      %8132 = vmatpush1.msra.mxu0 %v8121
      %8133 = vmatprep.subr.mxu0 0.0
      %8134 = vmatpush1.msra.mxu0 %v8120
      %8135 = vmatprep.subr.mxu0 0.0
      %8136 = vmatpush1.msra.mxu0 %v8119
      %8137 = vmatprep.subr.mxu0 0.0
      %8138 = vmatpush1.msra.mxu0 %v8118
      %8139 = vmatprep.subr.mxu0 0.0
      %8140 = vmatpush1.msra.mxu0 %v8117
      %8141 = vmatprep.subr.mxu0 0.0
      %8142 = vmatpush1.msra.mxu0 %v8116
      %8143 = vmatprep.subr.mxu0 0.0
      %8144 = vmatpush1.msra.mxu0 %v8115
      %8145 = vmatprep.subr.mxu0 0.0
      %8146 = vmatpush1.msra.mxu0 %v8114
      %8147 = vmatprep.subr.mxu0 0.0
      %8148 = vmatpush1.msra.mxu0 %v8113
      %8149 = vmatprep.subr.mxu0 0.0
      %8150 = vmatpush1.msra.mxu0 %v8112
      %8151 = vmatprep.subr.mxu0 0.0
      %8152 = vmatpush1.msra.mxu0 %v8111
      %8153 = vmatprep.subr.mxu0 0.0
      %8154 = vmatpush1.msra.mxu0 %v8110
      %8155 = vmatprep.subr.mxu0 0.0
      %8156 = vmatpush1.msra.mxu0 %v8109
      %8157 = vmatprep.subr.mxu0 0.0
      %8158 = vmatpush2.msra.mxu0 0.0
      %8159 = vmatprep.subr.mxu0 0.0
      %8160 = vmatpush2.msra.mxu0 0.0
      %8161 = vmatprep.subr.mxu0 0.0
      %8162 = vmatpush2.msra.mxu0 0.0
      %8163 = vmatprep.subr.mxu0 0.0
      %8164 = vmatpush2.msra.mxu0 0.0
      %8165 = vmatprep.subr.mxu0 0.0
      %8166 = vmatpush2.msra.mxu0 0.0
      %8167 = vmatprep.subr.mxu0 0.0
      %8168 = vmatpush2.msra.mxu0 0.0
      %8169 = vmatprep.subr.mxu0 0.0
      %8170 = vmatpush2.msra.mxu0 0.0
      %8171 = vmatprep.subr.mxu0 0.0
      %8172 = vmatpush2.msra.mxu0 0.0
      %8173 = vmatprep.subr.mxu0 0.0
      %8174 = vmatpush2.msra.mxu0 0.0
      %8175 = vmatprep.subr.mxu0 0.0
      %8176 = vmatpush2.msra.mxu0 0.0
      %8177 = vmatprep.subr.mxu0 0.0
      %8178 = vmatpush2.msra.mxu0 0.0
      %8179 = vmatprep.subr.mxu0 0.0
      %8180 = vmatpush2.msra.mxu0 0.0
      %8181 = vmatprep.subr.mxu0 0.0
      %8182 = vmatpush2.msra.mxu0 0.0
      %8183 = vmatprep.subr.mxu0 0.0
      %8184 = vmatpush2.msra.mxu0 0.0
      %8185 = vmatprep.subr.mxu0 0.0
      %8186 = vmatpush2.msra.mxu0 0.0
      %8187 = vmatprep.subr.mxu0 0.0
      %8188 = vmatpush2.msra.mxu0 0.0
      %8189 = vmatprep.mubr.f32.mxu0 0.0
      %8190 = vmatmul.mubr.f32.gmra.mxu0 %v8100
      %v8191 = vpop.f32.mrf.mxu0
      %v8192 = vadd.f32 0.0, %v8191
      %v8193 = vpop.f32.mrf.mxu0
      %8194 = vmatprep.mubr.f32.mxu0 0.0
      %8195 = vmatmul.mubr.f32.gmra.mxu0 %v8101
      %v8196 = vpop.f32.mrf.mxu0
      %v8197 = vadd.f32 0.0, %v8196
      %v8198 = vpop.f32.mrf.mxu0
      %8199 = vmatprep.mubr.f32.mxu0 0.0
      %8200 = vmatmul.mubr.f32.gmra.mxu0 %v8102
      %v8201 = vpop.f32.mrf.mxu0
      %v8202 = vadd.f32 0.0, %v8201
      %v8203 = vpop.f32.mrf.mxu0
      %8204 = vmatprep.mubr.f32.mxu0 0.0
      %8205 = vmatmul.mubr.f32.gmra.mxu0 %v8103
      %v8206 = vpop.f32.mrf.mxu0
      %v8207 = vadd.f32 0.0, %v8206
      %v8208 = vpop.f32.mrf.mxu0
      %8209 = vmatprep.mubr.f32.mxu0 0.0
      %8210 = vmatmul.mubr.f32.gmra.mxu0 %v8104
      %v8211 = vpop.f32.mrf.mxu0
      %v8212 = vadd.f32 0.0, %v8211
      %v8213 = vpop.f32.mrf.mxu0
      %8214 = vmatprep.mubr.f32.mxu0 0.0
      %8215 = vmatmul.mubr.f32.gmra.mxu0 %v8105
      %v8216 = vpop.f32.mrf.mxu0
      %v8217 = vadd.f32 0.0, %v8216
      %v8218 = vpop.f32.mrf.mxu0
      %8219 = vmatprep.mubr.f32.mxu0 0.0
      %8220 = vmatmul.mubr.f32.gmra.mxu0 %v8106
      %v8221 = vpop.f32.mrf.mxu0
      %v8222 = vadd.f32 0.0, %v8221
      %v8223 = vpop.f32.mrf.mxu0
      %8224 = vmatprep.mubr.f32.mxu0 0.0
      %8225 = vmatmul.mubr.f32.gmra.mxu0 %v8107
      %v8226 = vpop.f32.mrf.mxu0
      %v8227 = vadd.f32 0.0, %v8226
      %v8228 = vpop.f32.mrf.mxu0
      %8229 = vdwg.mxu0
      %v8230 = vadd.f32 %v8092, %v8192
      %v8231 = vadd.f32 %v8093, %v8197
      %v8232 = vadd.f32 %v8094, %v8202
      %v8233 = vadd.f32 %v8095, %v8207
      %v8234 = vadd.f32 %v8096, %v8212
      %v8235 = vadd.f32 %v8097, %v8217
      %v8236 = vadd.f32 %v8098, %v8222
      %v8237 = vadd.f32 %v8099, %v8227
      %s8238 = scalar_lea.vmem [#allocation4], 32
      %v8239 = vld [vmem:[%s8238] sm:$0xff]
      %v8240 = vld [vmem:[%s8238 + $0x10] sm:$0xff]
      %v8241 = vld [vmem:[%s8238 + $0x20] sm:$0xff]
      %v8242 = vld [vmem:[%s8238 + $0x30] sm:$0xff]
      %v8243 = vld [vmem:[%s8238 + $0x40] sm:$0xff]
      %v8244 = vld [vmem:[%s8238 + $0x50] sm:$0xff]
      %v8245 = vld [vmem:[%s8238 + $0x60] sm:$0xff]
      %v8246 = vld [vmem:[%s8238 + $0x70] sm:$0xff]
      %s8247 = scalar_lea.vmem %s2, 768
      %v8248 = vld [vmem:[%s8247] sm:$0xff]
      %v8249 = vld [vmem:[%s8247 + $0x8] sm:$0xff]
      %v8250 = vld [vmem:[%s8247 + $0x10] sm:$0xff]
      %v8251 = vld [vmem:[%s8247 + $0x18] sm:$0xff]
      %v8252 = vld [vmem:[%s8247 + $0x20] sm:$0xff]
      %v8253 = vld [vmem:[%s8247 + $0x28] sm:$0xff]
      %v8254 = vld [vmem:[%s8247 + $0x30] sm:$0xff]
      %v8255 = vld [vmem:[%s8247 + $0x38] sm:$0xff]
      %v8256 = vld [vmem:[%s8247 + $0x40] sm:$0xff]
      %v8257 = vld [vmem:[%s8247 + $0x48] sm:$0xff]
      %v8258 = vld [vmem:[%s8247 + $0x50] sm:$0xff]
      %v8259 = vld [vmem:[%s8247 + $0x58] sm:$0xff]
      %v8260 = vld [vmem:[%s8247 + $0x60] sm:$0xff]
      %v8261 = vld [vmem:[%s8247 + $0x68] sm:$0xff]
      %v8262 = vld [vmem:[%s8247 + $0x70] sm:$0xff]
      %v8263 = vld [vmem:[%s8247 + $0x78] sm:$0xff]
      %8264 = vmatprep.subr.mxu0 0.0
      %8265 = vmatpush1.msra.mxu0 %v8263
      %8266 = vmatprep.subr.mxu0 0.0
      %8267 = vmatpush1.msra.mxu0 %v8262
      %8268 = vmatprep.subr.mxu0 0.0
      %8269 = vmatpush1.msra.mxu0 %v8261
      %8270 = vmatprep.subr.mxu0 0.0
      %8271 = vmatpush1.msra.mxu0 %v8260
      %8272 = vmatprep.subr.mxu0 0.0
      %8273 = vmatpush1.msra.mxu0 %v8259
      %8274 = vmatprep.subr.mxu0 0.0
      %8275 = vmatpush1.msra.mxu0 %v8258
      %8276 = vmatprep.subr.mxu0 0.0
      %8277 = vmatpush1.msra.mxu0 %v8257
      %8278 = vmatprep.subr.mxu0 0.0
      %8279 = vmatpush1.msra.mxu0 %v8256
      %8280 = vmatprep.subr.mxu0 0.0
      %8281 = vmatpush1.msra.mxu0 %v8255
      %8282 = vmatprep.subr.mxu0 0.0
      %8283 = vmatpush1.msra.mxu0 %v8254
      %8284 = vmatprep.subr.mxu0 0.0
      %8285 = vmatpush1.msra.mxu0 %v8253
      %8286 = vmatprep.subr.mxu0 0.0
      %8287 = vmatpush1.msra.mxu0 %v8252
      %8288 = vmatprep.subr.mxu0 0.0
      %8289 = vmatpush1.msra.mxu0 %v8251
      %8290 = vmatprep.subr.mxu0 0.0
      %8291 = vmatpush1.msra.mxu0 %v8250
      %8292 = vmatprep.subr.mxu0 0.0
      %8293 = vmatpush1.msra.mxu0 %v8249
      %8294 = vmatprep.subr.mxu0 0.0
      %8295 = vmatpush1.msra.mxu0 %v8248
      %8296 = vmatprep.subr.mxu0 0.0
      %8297 = vmatpush2.msra.mxu0 0.0
      %8298 = vmatprep.subr.mxu0 0.0
      %8299 = vmatpush2.msra.mxu0 0.0
      %8300 = vmatprep.subr.mxu0 0.0
      %8301 = vmatpush2.msra.mxu0 0.0
      %8302 = vmatprep.subr.mxu0 0.0
      %8303 = vmatpush2.msra.mxu0 0.0
      %8304 = vmatprep.subr.mxu0 0.0
      %8305 = vmatpush2.msra.mxu0 0.0
      %8306 = vmatprep.subr.mxu0 0.0
      %8307 = vmatpush2.msra.mxu0 0.0
      %8308 = vmatprep.subr.mxu0 0.0
      %8309 = vmatpush2.msra.mxu0 0.0
      %8310 = vmatprep.subr.mxu0 0.0
      %8311 = vmatpush2.msra.mxu0 0.0
      %8312 = vmatprep.subr.mxu0 0.0
      %8313 = vmatpush2.msra.mxu0 0.0
      %8314 = vmatprep.subr.mxu0 0.0
      %8315 = vmatpush2.msra.mxu0 0.0
      %8316 = vmatprep.subr.mxu0 0.0
      %8317 = vmatpush2.msra.mxu0 0.0
      %8318 = vmatprep.subr.mxu0 0.0
      %8319 = vmatpush2.msra.mxu0 0.0
      %8320 = vmatprep.subr.mxu0 0.0
      %8321 = vmatpush2.msra.mxu0 0.0
      %8322 = vmatprep.subr.mxu0 0.0
      %8323 = vmatpush2.msra.mxu0 0.0
      %8324 = vmatprep.subr.mxu0 0.0
      %8325 = vmatpush2.msra.mxu0 0.0
      %8326 = vmatprep.subr.mxu0 0.0
      %8327 = vmatpush2.msra.mxu0 0.0
      %8328 = vmatprep.mubr.f32.mxu0 0.0
      %8329 = vmatmul.mubr.f32.gmra.mxu0 %v8239
      %v8330 = vpop.f32.mrf.mxu0
      %v8331 = vadd.f32 0.0, %v8330
      %v8332 = vpop.f32.mrf.mxu0
      %8333 = vmatprep.mubr.f32.mxu0 0.0
      %8334 = vmatmul.mubr.f32.gmra.mxu0 %v8240
      %v8335 = vpop.f32.mrf.mxu0
      %v8336 = vadd.f32 0.0, %v8335
      %v8337 = vpop.f32.mrf.mxu0
      %8338 = vmatprep.mubr.f32.mxu0 0.0
      %8339 = vmatmul.mubr.f32.gmra.mxu0 %v8241
      %v8340 = vpop.f32.mrf.mxu0
      %v8341 = vadd.f32 0.0, %v8340
      %v8342 = vpop.f32.mrf.mxu0
      %8343 = vmatprep.mubr.f32.mxu0 0.0
      %8344 = vmatmul.mubr.f32.gmra.mxu0 %v8242
      %v8345 = vpop.f32.mrf.mxu0
      %v8346 = vadd.f32 0.0, %v8345
      %v8347 = vpop.f32.mrf.mxu0
      %8348 = vmatprep.mubr.f32.mxu0 0.0
      %8349 = vmatmul.mubr.f32.gmra.mxu0 %v8243
      %v8350 = vpop.f32.mrf.mxu0
      %v8351 = vadd.f32 0.0, %v8350
      %v8352 = vpop.f32.mrf.mxu0
      %8353 = vmatprep.mubr.f32.mxu0 0.0
      %8354 = vmatmul.mubr.f32.gmra.mxu0 %v8244
      %v8355 = vpop.f32.mrf.mxu0
      %v8356 = vadd.f32 0.0, %v8355
      %v8357 = vpop.f32.mrf.mxu0
      %8358 = vmatprep.mubr.f32.mxu0 0.0
      %8359 = vmatmul.mubr.f32.gmra.mxu0 %v8245
      %v8360 = vpop.f32.mrf.mxu0
      %v8361 = vadd.f32 0.0, %v8360
      %v8362 = vpop.f32.mrf.mxu0
      %8363 = vmatprep.mubr.f32.mxu0 0.0
      %8364 = vmatmul.mubr.f32.gmra.mxu0 %v8246
      %v8365 = vpop.f32.mrf.mxu0
      %v8366 = vadd.f32 0.0, %v8365
      %v8367 = vpop.f32.mrf.mxu0
      %8368 = vdwg.mxu0
      %v8369 = vadd.f32 %v8230, %v8331
      %v8370 = vadd.f32 %v8231, %v8336
      %v8371 = vadd.f32 %v8232, %v8341
      %v8372 = vadd.f32 %v8233, %v8346
      %v8373 = vadd.f32 %v8234, %v8351
      %v8374 = vadd.f32 %v8235, %v8356
      %v8375 = vadd.f32 %v8236, %v8361
      %v8376 = vadd.f32 %v8237, %v8366
      %v8377 = vld [vmem:[%s8238 + $0x1] sm:$0xff]
      %v8378 = vld [vmem:[%s8238 + $0x11] sm:$0xff]
      %v8379 = vld [vmem:[%s8238 + $0x21] sm:$0xff]
      %v8380 = vld [vmem:[%s8238 + $0x31] sm:$0xff]
      %v8381 = vld [vmem:[%s8238 + $0x41] sm:$0xff]
      %v8382 = vld [vmem:[%s8238 + $0x51] sm:$0xff]
      %v8383 = vld [vmem:[%s8238 + $0x61] sm:$0xff]
      %v8384 = vld [vmem:[%s8238 + $0x71] sm:$0xff]
      %s8385 = scalar_lea.vmem %s2, 896
      %v8386 = vld [vmem:[%s8385] sm:$0xff]
      %v8387 = vld [vmem:[%s8385 + $0x8] sm:$0xff]
      %v8388 = vld [vmem:[%s8385 + $0x10] sm:$0xff]
      %v8389 = vld [vmem:[%s8385 + $0x18] sm:$0xff]
      %v8390 = vld [vmem:[%s8385 + $0x20] sm:$0xff]
      %v8391 = vld [vmem:[%s8385 + $0x28] sm:$0xff]
      %v8392 = vld [vmem:[%s8385 + $0x30] sm:$0xff]
      %v8393 = vld [vmem:[%s8385 + $0x38] sm:$0xff]
      %v8394 = vld [vmem:[%s8385 + $0x40] sm:$0xff]
      %v8395 = vld [vmem:[%s8385 + $0x48] sm:$0xff]
      %v8396 = vld [vmem:[%s8385 + $0x50] sm:$0xff]
      %v8397 = vld [vmem:[%s8385 + $0x58] sm:$0xff]
      %v8398 = vld [vmem:[%s8385 + $0x60] sm:$0xff]
      %v8399 = vld [vmem:[%s8385 + $0x68] sm:$0xff]
      %v8400 = vld [vmem:[%s8385 + $0x70] sm:$0xff]
      %v8401 = vld [vmem:[%s8385 + $0x78] sm:$0xff]
      %8402 = vmatprep.subr.mxu0 0.0
      %8403 = vmatpush1.msra.mxu0 %v8401
      %8404 = vmatprep.subr.mxu0 0.0
      %8405 = vmatpush1.msra.mxu0 %v8400
      %8406 = vmatprep.subr.mxu0 0.0
      %8407 = vmatpush1.msra.mxu0 %v8399
      %8408 = vmatprep.subr.mxu0 0.0
      %8409 = vmatpush1.msra.mxu0 %v8398
      %8410 = vmatprep.subr.mxu0 0.0
      %8411 = vmatpush1.msra.mxu0 %v8397
      %8412 = vmatprep.subr.mxu0 0.0
      %8413 = vmatpush1.msra.mxu0 %v8396
      %8414 = vmatprep.subr.mxu0 0.0
      %8415 = vmatpush1.msra.mxu0 %v8395
      %8416 = vmatprep.subr.mxu0 0.0
      %8417 = vmatpush1.msra.mxu0 %v8394
      %8418 = vmatprep.subr.mxu0 0.0
      %8419 = vmatpush1.msra.mxu0 %v8393
      %8420 = vmatprep.subr.mxu0 0.0
      %8421 = vmatpush1.msra.mxu0 %v8392
      %8422 = vmatprep.subr.mxu0 0.0
      %8423 = vmatpush1.msra.mxu0 %v8391
      %8424 = vmatprep.subr.mxu0 0.0
      %8425 = vmatpush1.msra.mxu0 %v8390
      %8426 = vmatprep.subr.mxu0 0.0
      %8427 = vmatpush1.msra.mxu0 %v8389
      %8428 = vmatprep.subr.mxu0 0.0
      %8429 = vmatpush1.msra.mxu0 %v8388
      %8430 = vmatprep.subr.mxu0 0.0
      %8431 = vmatpush1.msra.mxu0 %v8387
      %8432 = vmatprep.subr.mxu0 0.0
      %8433 = vmatpush1.msra.mxu0 %v8386
      %8434 = vmatprep.subr.mxu0 0.0
      %8435 = vmatpush2.msra.mxu0 0.0
      %8436 = vmatprep.subr.mxu0 0.0
      %8437 = vmatpush2.msra.mxu0 0.0
      %8438 = vmatprep.subr.mxu0 0.0
      %8439 = vmatpush2.msra.mxu0 0.0
      %8440 = vmatprep.subr.mxu0 0.0
      %8441 = vmatpush2.msra.mxu0 0.0
      %8442 = vmatprep.subr.mxu0 0.0
      %8443 = vmatpush2.msra.mxu0 0.0
      %8444 = vmatprep.subr.mxu0 0.0
      %8445 = vmatpush2.msra.mxu0 0.0
      %8446 = vmatprep.subr.mxu0 0.0
      %8447 = vmatpush2.msra.mxu0 0.0
      %8448 = vmatprep.subr.mxu0 0.0
      %8449 = vmatpush2.msra.mxu0 0.0
      %8450 = vmatprep.subr.mxu0 0.0
      %8451 = vmatpush2.msra.mxu0 0.0
      %8452 = vmatprep.subr.mxu0 0.0
      %8453 = vmatpush2.msra.mxu0 0.0
      %8454 = vmatprep.subr.mxu0 0.0
      %8455 = vmatpush2.msra.mxu0 0.0
      %8456 = vmatprep.subr.mxu0 0.0
      %8457 = vmatpush2.msra.mxu0 0.0
      %8458 = vmatprep.subr.mxu0 0.0
      %8459 = vmatpush2.msra.mxu0 0.0
      %8460 = vmatprep.subr.mxu0 0.0
      %8461 = vmatpush2.msra.mxu0 0.0
      %8462 = vmatprep.subr.mxu0 0.0
      %8463 = vmatpush2.msra.mxu0 0.0
      %8464 = vmatprep.subr.mxu0 0.0
      %8465 = vmatpush2.msra.mxu0 0.0
      %8466 = vmatprep.mubr.f32.mxu0 0.0
      %8467 = vmatmul.mubr.f32.gmra.mxu0 %v8377
      %v8468 = vpop.f32.mrf.mxu0
      %v8469 = vadd.f32 0.0, %v8468
      %v8470 = vpop.f32.mrf.mxu0
      %8471 = vmatprep.mubr.f32.mxu0 0.0
      %8472 = vmatmul.mubr.f32.gmra.mxu0 %v8378
      %v8473 = vpop.f32.mrf.mxu0
      %v8474 = vadd.f32 0.0, %v8473
      %v8475 = vpop.f32.mrf.mxu0
      %8476 = vmatprep.mubr.f32.mxu0 0.0
      %8477 = vmatmul.mubr.f32.gmra.mxu0 %v8379
      %v8478 = vpop.f32.mrf.mxu0
      %v8479 = vadd.f32 0.0, %v8478
      %v8480 = vpop.f32.mrf.mxu0
      %8481 = vmatprep.mubr.f32.mxu0 0.0
      %8482 = vmatmul.mubr.f32.gmra.mxu0 %v8380
      %v8483 = vpop.f32.mrf.mxu0
      %v8484 = vadd.f32 0.0, %v8483
      %v8485 = vpop.f32.mrf.mxu0
      %8486 = vmatprep.mubr.f32.mxu0 0.0
      %8487 = vmatmul.mubr.f32.gmra.mxu0 %v8381
      %v8488 = vpop.f32.mrf.mxu0
      %v8489 = vadd.f32 0.0, %v8488
      %v8490 = vpop.f32.mrf.mxu0
      %8491 = vmatprep.mubr.f32.mxu0 0.0
      %8492 = vmatmul.mubr.f32.gmra.mxu0 %v8382
      %v8493 = vpop.f32.mrf.mxu0
      %v8494 = vadd.f32 0.0, %v8493
      %v8495 = vpop.f32.mrf.mxu0
      %8496 = vmatprep.mubr.f32.mxu0 0.0
      %8497 = vmatmul.mubr.f32.gmra.mxu0 %v8383
      %v8498 = vpop.f32.mrf.mxu0
      %v8499 = vadd.f32 0.0, %v8498
      %v8500 = vpop.f32.mrf.mxu0
      %8501 = vmatprep.mubr.f32.mxu0 0.0
      %8502 = vmatmul.mubr.f32.gmra.mxu0 %v8384
      %v8503 = vpop.f32.mrf.mxu0
      %v8504 = vadd.f32 0.0, %v8503
      %v8505 = vpop.f32.mrf.mxu0
      %8506 = vdwg.mxu0
      %v8507 = vadd.f32 %v8369, %v8469
      %v8508 = vadd.f32 %v8370, %v8474
      %v8509 = vadd.f32 %v8371, %v8479
      %v8510 = vadd.f32 %v8372, %v8484
      %v8511 = vadd.f32 %v8373, %v8489
      %v8512 = vadd.f32 %v8374, %v8494
      %v8513 = vadd.f32 %v8375, %v8499
      %v8514 = vadd.f32 %v8376, %v8504
      %v8515 = vld [vmem:[%s8238 + $0x2] sm:$0xff]
      %v8516 = vld [vmem:[%s8238 + $0x12] sm:$0xff]
      %v8517 = vld [vmem:[%s8238 + $0x22] sm:$0xff]
      %v8518 = vld [vmem:[%s8238 + $0x32] sm:$0xff]
      %v8519 = vld [vmem:[%s8238 + $0x42] sm:$0xff]
      %v8520 = vld [vmem:[%s8238 + $0x52] sm:$0xff]
      %v8521 = vld [vmem:[%s8238 + $0x62] sm:$0xff]
      %v8522 = vld [vmem:[%s8238 + $0x72] sm:$0xff]
      %s8523 = scalar_lea.vmem %s2, 1024
      %v8524 = vld [vmem:[%s8523] sm:$0xff]
      %v8525 = vld [vmem:[%s8523 + $0x8] sm:$0xff]
      %v8526 = vld [vmem:[%s8523 + $0x10] sm:$0xff]
      %v8527 = vld [vmem:[%s8523 + $0x18] sm:$0xff]
      %v8528 = vld [vmem:[%s8523 + $0x20] sm:$0xff]
      %v8529 = vld [vmem:[%s8523 + $0x28] sm:$0xff]
      %v8530 = vld [vmem:[%s8523 + $0x30] sm:$0xff]
      %v8531 = vld [vmem:[%s8523 + $0x38] sm:$0xff]
      %v8532 = vld [vmem:[%s8523 + $0x40] sm:$0xff]
      %v8533 = vld [vmem:[%s8523 + $0x48] sm:$0xff]
      %v8534 = vld [vmem:[%s8523 + $0x50] sm:$0xff]
      %v8535 = vld [vmem:[%s8523 + $0x58] sm:$0xff]
      %v8536 = vld [vmem:[%s8523 + $0x60] sm:$0xff]
      %v8537 = vld [vmem:[%s8523 + $0x68] sm:$0xff]
      %v8538 = vld [vmem:[%s8523 + $0x70] sm:$0xff]
      %v8539 = vld [vmem:[%s8523 + $0x78] sm:$0xff]
      %8540 = vmatprep.subr.mxu0 0.0
      %8541 = vmatpush1.msra.mxu0 %v8539
      %8542 = vmatprep.subr.mxu0 0.0
      %8543 = vmatpush1.msra.mxu0 %v8538
      %8544 = vmatprep.subr.mxu0 0.0
      %8545 = vmatpush1.msra.mxu0 %v8537
      %8546 = vmatprep.subr.mxu0 0.0
      %8547 = vmatpush1.msra.mxu0 %v8536
      %8548 = vmatprep.subr.mxu0 0.0
      %8549 = vmatpush1.msra.mxu0 %v8535
      %8550 = vmatprep.subr.mxu0 0.0
      %8551 = vmatpush1.msra.mxu0 %v8534
      %8552 = vmatprep.subr.mxu0 0.0
      %8553 = vmatpush1.msra.mxu0 %v8533
      %8554 = vmatprep.subr.mxu0 0.0
      %8555 = vmatpush1.msra.mxu0 %v8532
      %8556 = vmatprep.subr.mxu0 0.0
      %8557 = vmatpush1.msra.mxu0 %v8531
      %8558 = vmatprep.subr.mxu0 0.0
      %8559 = vmatpush1.msra.mxu0 %v8530
      %8560 = vmatprep.subr.mxu0 0.0
      %8561 = vmatpush1.msra.mxu0 %v8529
      %8562 = vmatprep.subr.mxu0 0.0
      %8563 = vmatpush1.msra.mxu0 %v8528
      %8564 = vmatprep.subr.mxu0 0.0
      %8565 = vmatpush1.msra.mxu0 %v8527
      %8566 = vmatprep.subr.mxu0 0.0
      %8567 = vmatpush1.msra.mxu0 %v8526
      %8568 = vmatprep.subr.mxu0 0.0
      %8569 = vmatpush1.msra.mxu0 %v8525
      %8570 = vmatprep.subr.mxu0 0.0
      %8571 = vmatpush1.msra.mxu0 %v8524
      %8572 = vmatprep.subr.mxu0 0.0
      %8573 = vmatpush2.msra.mxu0 0.0
      %8574 = vmatprep.subr.mxu0 0.0
      %8575 = vmatpush2.msra.mxu0 0.0
      %8576 = vmatprep.subr.mxu0 0.0
      %8577 = vmatpush2.msra.mxu0 0.0
      %8578 = vmatprep.subr.mxu0 0.0
      %8579 = vmatpush2.msra.mxu0 0.0
      %8580 = vmatprep.subr.mxu0 0.0
      %8581 = vmatpush2.msra.mxu0 0.0
      %8582 = vmatprep.subr.mxu0 0.0
      %8583 = vmatpush2.msra.mxu0 0.0
      %8584 = vmatprep.subr.mxu0 0.0
      %8585 = vmatpush2.msra.mxu0 0.0
      %8586 = vmatprep.subr.mxu0 0.0
      %8587 = vmatpush2.msra.mxu0 0.0
      %8588 = vmatprep.subr.mxu0 0.0
      %8589 = vmatpush2.msra.mxu0 0.0
      %8590 = vmatprep.subr.mxu0 0.0
      %8591 = vmatpush2.msra.mxu0 0.0
      %8592 = vmatprep.subr.mxu0 0.0
      %8593 = vmatpush2.msra.mxu0 0.0
      %8594 = vmatprep.subr.mxu0 0.0
      %8595 = vmatpush2.msra.mxu0 0.0
      %8596 = vmatprep.subr.mxu0 0.0
      %8597 = vmatpush2.msra.mxu0 0.0
      %8598 = vmatprep.subr.mxu0 0.0
      %8599 = vmatpush2.msra.mxu0 0.0
      %8600 = vmatprep.subr.mxu0 0.0
      %8601 = vmatpush2.msra.mxu0 0.0
      %8602 = vmatprep.subr.mxu0 0.0
      %8603 = vmatpush2.msra.mxu0 0.0
      %8604 = vmatprep.mubr.f32.mxu0 0.0
      %8605 = vmatmul.mubr.f32.gmra.mxu0 %v8515
      %v8606 = vpop.f32.mrf.mxu0
      %v8607 = vadd.f32 0.0, %v8606
      %v8608 = vpop.f32.mrf.mxu0
      %8609 = vmatprep.mubr.f32.mxu0 0.0
      %8610 = vmatmul.mubr.f32.gmra.mxu0 %v8516
      %v8611 = vpop.f32.mrf.mxu0
      %v8612 = vadd.f32 0.0, %v8611
      %v8613 = vpop.f32.mrf.mxu0
      %8614 = vmatprep.mubr.f32.mxu0 0.0
      %8615 = vmatmul.mubr.f32.gmra.mxu0 %v8517
      %v8616 = vpop.f32.mrf.mxu0
      %v8617 = vadd.f32 0.0, %v8616
      %v8618 = vpop.f32.mrf.mxu0
      %8619 = vmatprep.mubr.f32.mxu0 0.0
      %8620 = vmatmul.mubr.f32.gmra.mxu0 %v8518
      %v8621 = vpop.f32.mrf.mxu0
      %v8622 = vadd.f32 0.0, %v8621
      %v8623 = vpop.f32.mrf.mxu0
      %8624 = vmatprep.mubr.f32.mxu0 0.0
      %8625 = vmatmul.mubr.f32.gmra.mxu0 %v8519
      %v8626 = vpop.f32.mrf.mxu0
      %v8627 = vadd.f32 0.0, %v8626
      %v8628 = vpop.f32.mrf.mxu0
      %8629 = vmatprep.mubr.f32.mxu0 0.0
      %8630 = vmatmul.mubr.f32.gmra.mxu0 %v8520
      %v8631 = vpop.f32.mrf.mxu0
      %v8632 = vadd.f32 0.0, %v8631
      %v8633 = vpop.f32.mrf.mxu0
      %8634 = vmatprep.mubr.f32.mxu0 0.0
      %8635 = vmatmul.mubr.f32.gmra.mxu0 %v8521
      %v8636 = vpop.f32.mrf.mxu0
      %v8637 = vadd.f32 0.0, %v8636
      %v8638 = vpop.f32.mrf.mxu0
      %8639 = vmatprep.mubr.f32.mxu0 0.0
      %8640 = vmatmul.mubr.f32.gmra.mxu0 %v8522
      %v8641 = vpop.f32.mrf.mxu0
      %v8642 = vadd.f32 0.0, %v8641
      %v8643 = vpop.f32.mrf.mxu0
      %8644 = vdwg.mxu0
      %v8645 = vadd.f32 %v8507, %v8607
      %v8646 = vadd.f32 %v8508, %v8612
      %v8647 = vadd.f32 %v8509, %v8617
      %v8648 = vadd.f32 %v8510, %v8622
      %v8649 = vadd.f32 %v8511, %v8627
      %v8650 = vadd.f32 %v8512, %v8632
      %v8651 = vadd.f32 %v8513, %v8637
      %v8652 = vadd.f32 %v8514, %v8642
      %v8653 = vld [vmem:[%s5] sm:$0x1]
      %v8655 = vlaneseq
      %v8656 = vshrl.u32 %v8655, 7
      %v8657 = vsub.s32 0, %v8656
      %v8658 = vrot.slane %v8653, %v8657
      %v8660 = vmul.f32 %v8645, %v8658
      %v8661 = vmul.f32 %v8646, %v8658
      %v8662 = vmul.f32 %v8647, %v8658
      %v8663 = vmul.f32 %v8648, %v8658
      %v8664 = vmul.f32 %v8649, %v8658
      %v8665 = vmul.f32 %v8650, %v8658
      %v8666 = vmul.f32 %v8651, %v8658
      %v8667 = vmul.f32 %v8652, %v8658
      %v8668 = vld [vmem:[%s6] sm:$0x1]
      %v8670 = vlaneseq
      %v8671 = vshrl.u32 %v8670, 7
      %v8672 = vsub.s32 0, %v8671
      %v8673 = vrot.slane %v8668, %v8672
      %v8675 = vadd.f32 %v8660, %v8673
      %v8676 = vadd.f32 %v8661, %v8673
      %v8677 = vadd.f32 %v8662, %v8673
      %v8678 = vadd.f32 %v8663, %v8673
      %v8679 = vadd.f32 %v8664, %v8673
      %v8680 = vadd.f32 %v8665, %v8673
      %v8681 = vadd.f32 %v8666, %v8673
      %v8682 = vadd.f32 %v8667, %v8673
      %v8683 = vmax.f32 %v8675, 0.0
      %v8684 = vmax.f32 %v8676, 0.0
      %v8685 = vmax.f32 %v8677, 0.0
      %v8686 = vmax.f32 %v8678, 0.0
      %v8687 = vmax.f32 %v8679, 0.0
      %v8688 = vmax.f32 %v8680, 0.0
      %v8689 = vmax.f32 %v8681, 0.0
      %v8690 = vmax.f32 %v8682, 0.0
      %8691 = vst [vmem:[%s254] sm:$0xff] %v8683
      %8692 = vst [vmem:[%s254 + $0x8] sm:$0xff] %v8684
      %8693 = vst [vmem:[%s254 + $0x10] sm:$0xff] %v8685
      %8694 = vst [vmem:[%s254 + $0x18] sm:$0xff] %v8686
      %8695 = vst [vmem:[%s254 + $0x20] sm:$0xff] %v8687
      %8696 = vst [vmem:[%s254 + $0x28] sm:$0xff] %v8688
      %8697 = vst [vmem:[%s254 + $0x30] sm:$0xff] %v8689
      %8698 = vst [vmem:[%s254 + $0x38] sm:$0xff] %v8690
      %s8699 = smul.u32 8, %s23
      %p8700 = scmp.lt.s32.totalorder %s22, 1
      %s8701 = scalar_select %p8700, %s22, 1
      %p8702 = scmp.lt.s32.totalorder %s8699, 7
      %s8703 = scalar_select %p8702, %s8699, 7
      %s8704 = smul.addr %s8701, 8
      %s8705 = sadd.s32 %s8703, %s8704
      %s8706 = smul.addr %s8705, 8
      %s8707 = scalar_lea.vmem %s7, %s8706
      // Predicated region
      $region82: #{down_forward.1} parent=43 // pred_check
        %p8708 = pneg %p176
      $region83: #{down_forward.1} parent=43 // pred_check_branch
        %8710 = sbr.rel (%p8708) target = $region85
      $region84: #{down_forward.1} parent=43 // pred_region
        %s8711 = smul.u32 8, %s23
      $region85: #{down_forward.1} parent=43 // pred_fallthru
        _
    $region44: #{down_forward.1} parent=5 // pred_fallthru
      _
    %p8712 = scmp.le.s32.totalorder 2, %s13
    // Predicated region
    $region86: #{down_forward.1} parent=5 // pred_check
      %p8713 = pneg %p8712
    $region87: #{down_forward.1} parent=5 // pred_check_branch
      %8715 = sbr.rel (%p8713) target = $region89
    $region88: #{down_forward.1} parent=5 // pred_region
      %s8716 = ssub.s32 %s13, 2
      // Predicated region
      $region90: #{down_forward.1} parent=88 // pred_check
        %p8717 = pneg %p182
      $region91: #{down_forward.1} parent=88 // pred_check_branch
        %8719 = sbr.rel (%p8717) target = $region93
      $region92: #{down_forward.1} parent=88 // pred_region
        %s8720 = smul.u32 8, %s25
        %p8721 = scmp.lt.s32.totalorder %s24, 1
        %s8722 = scalar_select %p8721, %s24, 1
        %p8723 = scmp.lt.s32.totalorder %s8720, 7
        %s8724 = scalar_select %p8723, %s8720, 7
        %s8725 = smul.addr %s8722, 8
        %s8726 = sadd.s32 %s8724, %s8725
        %s8727 = smul.addr %s8726, 8
        %s8728 = scalar_lea.vmem %s7, %s8727
      $region93: #{down_forward.1} parent=88 // pred_fallthru
        _
    $region89: #{down_forward.1} parent=5 // pred_fallthru
      _
  $region6: #{down_forward.1} parent=0 // loop_footer
    %s17 = sadd.s32 1, %s13
  $region7: #{down_forward.1} parent=0 // loop_footer_branch
    %12 = sbr.rel target = $region3
  $region8: #{down_forward.1} parent=0 // loop_exit
    _
  %8729 = vsyncmov [#allocation5]
  %s8730 = vpop.sfrf %8729
  %p8731 = scmp.eq.s32.totalorder %s8730, 0
  %p8732 = pneg %p8731
  %8734 = shalt.err (%p8732)

</llo_original>
